<compile_context>
chip_gen: v6e
topology: v6e:2x2x1
jax: 0.10.0
libtpu: 0.0.40
codegen_flags: <defaults>
</compile_context>

<pallas_src>
import jax
import jax.numpy as jnp
from jax.experimental import pallas as pl
from jax.experimental.pallas import tpu as pltpu

EMBED_DIM = 32
NUM_HEADS = 4
NUM_LAYERS = 4
MLP_HIDDEN = 512
HEAD_DIM = EMBED_DIM // NUM_HEADS
LN_EPS = 1e-5
NEG_INF = -1e30


def _layer_norm(x, gamma, beta):
    mu = jnp.mean(x, axis=-1, keepdims=True)
    var = jnp.mean((x - mu) ** 2, axis=-1, keepdims=True)
    return (x - mu) * jax.lax.rsqrt(var + LN_EPS) * gamma + beta


# ----------------------------- fused kernel ----------------------------------
def transformer_kernel(x_ref, mask_ref,
                       wqkv_ref, bqkv_ref, wo_ref, bo_ref,
                       w1_ref, b1_ref, w2_ref, b2_ref,
                       g1_ref, be1_ref, g2_ref, be2_ref,
                       o_ref):
    x = x_ref[...]            # (BS, E)  — all sequences, flattened batch
    mask = mask_ref[...]      # (BS, BS) — 0 within a sequence, -1e30 across

    for l in range(NUM_LAYERS):          # static unroll: all 4 layers in-kernel
        # ---- fused QKV projection: one (BS,E)@(E,3E) matmul per layer ------
        #      (1/sqrt(D) already folded into the Q columns + Q bias)
        qkv = jnp.dot(x, wqkv_ref[l],
                      preferred_element_type=jnp.float32) + bqkv_ref[l]

        # ---- per-head attention on static lane slices of qkv ---------------
        heads = []
        for h in range(NUM_HEADS):
            q = qkv[:, h * HEAD_DIM:(h + 1) * HEAD_DIM]
            k = qkv[:, EMBED_DIM + h * HEAD_DIM:EMBED_DIM + (h + 1) * HEAD_DIM]
            v = qkv[:, 2 * EMBED_DIM + h * HEAD_DIM:
                       2 * EMBED_DIM + (h + 1) * HEAD_DIM]
            # q @ k.T without an explicit transpose (contract last dims).
            s = jax.lax.dot_general(q, k, (((1,), (1,)), ((), ())),
                                    preferred_element_type=jnp.float32)
            s = s + mask                                   # block-diag per seq
            s = s - jnp.max(s, axis=-1, keepdims=True)
            p = jnp.exp(s)
            p = p * pl.reciprocal(jnp.sum(p, axis=-1, keepdims=True),
                                  approx=True)
            heads.append(jnp.dot(p, v,
                                 preferred_element_type=jnp.float32))  # (BS, D)

        # ---- fused output projection: lane-place heads, one matmul ---------
        attn = jnp.concatenate(heads, axis=-1)             # (BS, E), in-tile
        attn = jnp.dot(attn, wo_ref[l],
                       preferred_element_type=jnp.float32) + bo_ref[l]
        # TODO(synk): dropout (p=0.05) is identity in eval mode, so omitted.

        # ---- residual + LayerNorm1 (post-LN) --------------------------------
        y = _layer_norm(x + attn, g1_ref[l], be1_ref[l])

        # ---- feed-forward: Linear(32->512) -> ReLU -> Linear(512->32) -------
        h1 = jnp.dot(y, w1_ref[l],
                     preferred_element_type=jnp.float32) + b1_ref[l]
        h1 = jnp.maximum(h1, 0.0)
        ff = jnp.dot(h1, w2_ref[l],
                     preferred_element_type=jnp.float32) + b2_ref[l]

        # ---- residual + LayerNorm2 ------------------------------------------
        x = _layer_norm(y + ff, g2_ref[l], be2_ref[l])

    o_ref[...] = x


# --------------------------- wrapper / packing --------------------------------
def pack_params(all_params, rows):
    """Stack per-layer weights along a leading layer axis, pre-transpose them,
    fuse Q|K|V into one (E, 3E) weight with the 1/sqrt(D) scale folded into the
    Q columns/bias, and pre-broadcast every bias / LN param to full row extent
    (so the unrolled kernel has no repeated broadcast_in_dim)."""
    scale = 1.0 / (HEAD_DIM ** 0.5)
    acc = [[] for _ in range(12)]
    for (wqkv, bqkv, wo, bo, w1, b1, w2, b2, g1, be1, g2, be2) in all_params:
        # Fused QKV weight: proj = x @ wqkv.T  ->  (E, 3E), Q columns scaled.
        wqkv_t = wqkv.T                                            # (E, 3E)
        wqkv_t = wqkv_t.at[:, :EMBED_DIM].multiply(scale)
        bqkv_f = bqkv.reshape(3 * EMBED_DIM)
        bqkv_f = bqkv_f.at[:EMBED_DIM].multiply(scale)

        def bc(v, cols):
            return jnp.broadcast_to(v.reshape(cols), (rows, cols))

        layer = (wqkv_t,                      bc(bqkv_f, 3 * EMBED_DIM),
                 wo.T,                        bc(bo, EMBED_DIM),
                 w1.T,                        bc(b1, MLP_HIDDEN),
                 w2.T,                        bc(b2, EMBED_DIM),
                 bc(g1, EMBED_DIM),           bc(be1, EMBED_DIM),
                 bc(g2, EMBED_DIM),           bc(be2, EMBED_DIM))
        for i, a in enumerate(layer):
            acc[i].append(a)
    return tuple(jnp.stack(a, axis=0) for a in acc)       # leading layer axis


def transformer_pallas(x, all_params):
    B, S, E = x.shape
    BS = B * S
    packed = pack_params(all_params, BS)
    x_flat = x.reshape(BS, E)

    # Block-diagonal additive mask: rows only attend within their own sequence.
    seq_id = jnp.arange(BS) // S
    mask = jnp.where(seq_id[:, None] == seq_id[None, :],
                     0.0, NEG_INF).astype(jnp.float32)

    def full_spec(a):
        nd = a.ndim
        return pl.BlockSpec(a.shape, lambda i, _nd=nd: (0,) * _nd)

    out = pl.pallas_call(
        transformer_kernel,
        out_shape=jax.ShapeDtypeStruct((BS, E), jnp.float32),
        grid=(1,),
        in_specs=[full_spec(x_flat), full_spec(mask)]
                 + [full_spec(a) for a in packed],
        out_specs=pl.BlockSpec((BS, E), lambda i: (0, 0)),
        compiler_params=pltpu.CompilerParams(
            dimension_semantics=("arbitrary",)),
    )(x_flat, mask, *packed)
    return out.reshape(B, S, E)


# ---------------- pure-JAX reference (mirrors PyTorch eval forward) ----------
def encoder_layer_ref(x, params):
    wqkv, bqkv, wo, bo, w1, b1, w2, b2, g1, be1, g2, be2 = params
    B, S, _ = x.shape
    qkv = x @ wqkv.T + bqkv
    q, k, v = jnp.split(qkv, 3, axis=-1)

    def to_heads(t):
        return t.reshape(B, S, NUM_HEADS, HEAD_DIM).transpose(0, 2, 1, 3)

    qh, kh, vh = to_heads(q), to_heads(k), to_heads(v)
    s = jnp.einsum('bhqd,bhkd->bhqk', qh, kh) / (HEAD_DIM ** 0.5)
    p = jax.nn.softmax(s, axis=-1)
    a = jnp.einsum('bhqk,bhkd->bhqd', p, vh)
    a = a.transpose(0, 2, 1, 3).reshape(B, S, EMBED_DIM)
    a = a @ wo.T + bo
    y = _layer_norm(x + a, g1, be1)
    ff = jnp.maximum(y @ w1.T + b1, 0.0) @ w2.T + b2
    return _layer_norm(y + ff, g2, be2)


def transformer_ref(x, all_params):
    for params in all_params:
        x = encoder_layer_ref(x, params)
    return x


# ---------------- deterministic parameter init --------------------------------
def init_layer_params(key):
    ks = jax.random.split(key, 8)

    def uni(k, shape, fan_in):
        bound = 1.0 / (fan_in ** 0.5)
        return jax.random.uniform(k, shape, jnp.float32, -bound, bound)

    wqkv = uni(ks[0], (3 * EMBED_DIM, EMBED_DIM), EMBED_DIM)
    bqkv = uni(ks[1], (1, 3 * EMBED_DIM), EMBED_DIM)
    wo = uni(ks[2], (EMBED_DIM, EMBED_DIM), EMBED_DIM)
    bo = uni(ks[3], (1, EMBED_DIM), EMBED_DIM)
    w1 = uni(ks[4], (MLP_HIDDEN, EMBED_DIM), EMBED_DIM)
    b1 = uni(ks[5], (1, MLP_HIDDEN), EMBED_DIM)
    w2 = uni(ks[6], (EMBED_DIM, MLP_HIDDEN), MLP_HIDDEN)
    b2 = uni(ks[7], (1, EMBED_DIM), MLP_HIDDEN)
    g1 = jnp.ones((1, EMBED_DIM), jnp.float32)
    be1 = jnp.zeros((1, EMBED_DIM), jnp.float32)
    g2 = jnp.ones((1, EMBED_DIM), jnp.float32)
    be2 = jnp.zeros((1, EMBED_DIM), jnp.float32)
    return (wqkv, bqkv, wo, bo, w1, b1, w2, b2, g1, be1, g2, be2)


if __name__ == "__main__":
    key = jax.random.PRNGKey(0)
    k_x, k_p = jax.random.split(key)

    B, S = 2, 8
    x = jax.random.normal(k_x, (B, S, EMBED_DIM), jnp.float32)
    all_params = [init_layer_params(jax.random.fold_in(k_p, i))
                  for i in range(NUM_LAYERS)]

    fwd = jax.jit(transformer_pallas)
    out = jax.block_until_ready(fwd(x, all_params))

    ref = jax.block_until_ready(jax.jit(transformer_ref)(x, all_params))
    assert out.shape == (B, S, EMBED_DIM)
    assert jnp.allclose(out, ref, atol=2e-3, rtol=2e-3), "mismatch vs reference"

    print("KERNEL_OK")
</pallas_src>

<mosaic_0001>
module attributes {stable_mosaic.version = 11 : i64} {
  func.func @transformer_kernel(%arg0: i32, %arg1: memref<16x32xf32, #tpu.memory_space<vmem>>, %arg2: memref<16x16xf32, #tpu.memory_space<vmem>>, %arg3: memref<4x32x96xf32, #tpu.memory_space<vmem>>, %arg4: memref<4x16x96xf32, #tpu.memory_space<vmem>>, %arg5: memref<4x32x32xf32, #tpu.memory_space<vmem>>, %arg6: memref<4x16x32xf32, #tpu.memory_space<vmem>>, %arg7: memref<4x32x512xf32, #tpu.memory_space<vmem>>, %arg8: memref<4x16x512xf32, #tpu.memory_space<vmem>>, %arg9: memref<4x512x32xf32, #tpu.memory_space<vmem>>, %arg10: memref<4x16x32xf32, #tpu.memory_space<vmem>>, %arg11: memref<4x16x32xf32, #tpu.memory_space<vmem>>, %arg12: memref<4x16x32xf32, #tpu.memory_space<vmem>>, %arg13: memref<4x16x32xf32, #tpu.memory_space<vmem>>, %arg14: memref<4x16x32xf32, #tpu.memory_space<vmem>>, %arg15: memref<16x32xf32, #tpu.memory_space<vmem>>) attributes {dimension_semantics = [#tpu.dimension_semantics<arbitrary>], iteration_bounds = array<i64: 1>, scalar_prefetch = 0 : i64, scratch_operands = 0 : i64, tpu.core_type = #tpu.core_type<tc>, window_params = [{pipeline_mode = #tpu.pipeline_mode<synchronous>, transform_indices = @transform_0, window_bounds = array<i64: 16, 32>}, {pipeline_mode = #tpu.pipeline_mode<synchronous>, transform_indices = @transform_1, window_bounds = array<i64: 16, 16>}, {pipeline_mode = #tpu.pipeline_mode<synchronous>, transform_indices = @transform_2, window_bounds = array<i64: 4, 32, 96>}, {pipeline_mode = #tpu.pipeline_mode<synchronous>, transform_indices = @transform_3, window_bounds = array<i64: 4, 16, 96>}, {pipeline_mode = #tpu.pipeline_mode<synchronous>, transform_indices = @transform_4, window_bounds = array<i64: 4, 32, 32>}, {pipeline_mode = #tpu.pipeline_mode<synchronous>, transform_indices = @transform_5, window_bounds = array<i64: 4, 16, 32>}, {pipeline_mode = #tpu.pipeline_mode<synchronous>, transform_indices = @transform_6, window_bounds = array<i64: 4, 32, 512>}, {pipeline_mode = #tpu.pipeline_mode<synchronous>, transform_indices = @transform_7, window_bounds = array<i64: 4, 16, 512>}, {pipeline_mode = #tpu.pipeline_mode<synchronous>, transform_indices = @transform_8, window_bounds = array<i64: 4, 512, 32>}, {pipeline_mode = #tpu.pipeline_mode<synchronous>, transform_indices = @transform_9, window_bounds = array<i64: 4, 16, 32>}, {pipeline_mode = #tpu.pipeline_mode<synchronous>, transform_indices = @transform_10, window_bounds = array<i64: 4, 16, 32>}, {pipeline_mode = #tpu.pipeline_mode<synchronous>, transform_indices = @transform_11, window_bounds = array<i64: 4, 16, 32>}, {pipeline_mode = #tpu.pipeline_mode<synchronous>, transform_indices = @transform_12, window_bounds = array<i64: 4, 16, 32>}, {pipeline_mode = #tpu.pipeline_mode<synchronous>, transform_indices = @transform_13, window_bounds = array<i64: 4, 16, 32>}, {pipeline_mode = #tpu.pipeline_mode<synchronous>, transform_indices = @transform_14, window_bounds = array<i64: 16, 32>}]} {
    %c0 = arith.constant 0 : index
    %c0_0 = arith.constant 0 : index
    %0 = vector.load %arg1[%c0, %c0_0] : memref<16x32xf32, #tpu.memory_space<vmem>>, vector<16x32xf32>
    %c0_1 = arith.constant 0 : index
    %c0_2 = arith.constant 0 : index
    %1 = vector.load %arg2[%c0_1, %c0_2] : memref<16x16xf32, #tpu.memory_space<vmem>>, vector<16x16xf32>
    %c0_3 = arith.constant 0 : index
    %c0_4 = arith.constant 0 : index
    %c0_5 = arith.constant 0 : index
    %2 = vector.load %arg3[%c0_3, %c0_4, %c0_5] : memref<4x32x96xf32, #tpu.memory_space<vmem>>, vector<1x32x96xf32>
    %3 = vector.shape_cast %2 : vector<1x32x96xf32> to vector<32x96xf32>
    %cst = arith.constant dense<0.000000e+00> : vector<16x96xf32>
    %4 = tpu.matmul %0, %3, %cst {dimension_numbers = #tpu.dot_dimension_numbers<[1], [0], [0], [1], [0, 0, 1, 1], [], []>} : vector<16x32xf32>, vector<32x96xf32>, vector<16x96xf32> -> vector<16x96xf32>
    %c0_6 = arith.constant 0 : index
    %c0_7 = arith.constant 0 : index
    %c0_8 = arith.constant 0 : index
    %5 = vector.load %arg4[%c0_6, %c0_7, %c0_8] : memref<4x16x96xf32, #tpu.memory_space<vmem>>, vector<1x16x96xf32>
    %6 = vector.shape_cast %5 : vector<1x16x96xf32> to vector<16x96xf32>
    %7 = arith.addf %4, %6 : vector<16x96xf32>
    %8 = vector.extract_strided_slice %7 {offsets = [0, 0], sizes = [16, 8], strides = [1, 1]} : vector<16x96xf32> to vector<16x8xf32>
    %9 = vector.extract_strided_slice %7 {offsets = [0, 32], sizes = [16, 8], strides = [1, 1]} : vector<16x96xf32> to vector<16x8xf32>
    %10 = vector.extract_strided_slice %7 {offsets = [0, 64], sizes = [16, 8], strides = [1, 1]} : vector<16x96xf32> to vector<16x8xf32>
    %cst_9 = arith.constant dense<0.000000e+00> : vector<16x16xf32>
    %11 = tpu.matmul %8, %9, %cst_9 {dimension_numbers = #tpu.dot_dimension_numbers<[1], [1], [0], [0], [0, 0, 1, 0], [], []>} : vector<16x8xf32>, vector<16x8xf32>, vector<16x16xf32> -> vector<16x16xf32>
    %12 = arith.addf %11, %1 : vector<16x16xf32>
    %cst_10 = arith.constant dense<0xFF800000> : vector<16xf32>
    %13 = vector.multi_reduction <maximumf>, %12, %cst_10 [1] : vector<16x16xf32> to vector<16xf32>
    %14 = vector.shape_cast %13 : vector<16xf32> to vector<16x1xf32>
    %15 = vector.broadcast %14 : vector<16x1xf32> to vector<16x16xf32>
    %16 = arith.subf %12, %15 : vector<16x16xf32>
    %17 = math.exp %16 : vector<16x16xf32>
    %cst_11 = arith.constant dense<0.000000e+00> : vector<16xf32>
    %18 = vector.multi_reduction <add>, %17, %cst_11 [1] : vector<16x16xf32> to vector<16xf32>
    %19 = vector.shape_cast %18 : vector<16xf32> to vector<16x1xf32>
    %20 = tpu.reciprocal %19 {approx = true} : vector<16x1xf32> -> vector<16x1xf32>
    %21 = vector.broadcast %20 : vector<16x1xf32> to vector<16x16xf32>
    %22 = arith.mulf %17, %21 : vector<16x16xf32>
    %cst_12 = arith.constant dense<0.000000e+00> : vector<16x8xf32>
    %23 = tpu.matmul %22, %10, %cst_12 {dimension_numbers = #tpu.dot_dimension_numbers<[1], [0], [0], [1], [0, 0, 1, 1], [], []>} : vector<16x16xf32>, vector<16x8xf32>, vector<16x8xf32> -> vector<16x8xf32>
    %24 = vector.extract_strided_slice %7 {offsets = [0, 8], sizes = [16, 8], strides = [1, 1]} : vector<16x96xf32> to vector<16x8xf32>
    %25 = vector.extract_strided_slice %7 {offsets = [0, 40], sizes = [16, 8], strides = [1, 1]} : vector<16x96xf32> to vector<16x8xf32>
    %26 = vector.extract_strided_slice %7 {offsets = [0, 72], sizes = [16, 8], strides = [1, 1]} : vector<16x96xf32> to vector<16x8xf32>
    %cst_13 = arith.constant dense<0.000000e+00> : vector<16x16xf32>
    %27 = tpu.matmul %24, %25, %cst_13 {dimension_numbers = #tpu.dot_dimension_numbers<[1], [1], [0], [0], [0, 0, 1, 0], [], []>} : vector<16x8xf32>, vector<16x8xf32>, vector<16x16xf32> -> vector<16x16xf32>
    %28 = arith.addf %27, %1 : vector<16x16xf32>
    %cst_14 = arith.constant dense<0xFF800000> : vector<16xf32>
    %29 = vector.multi_reduction <maximumf>, %28, %cst_14 [1] : vector<16x16xf32> to vector<16xf32>
    %30 = vector.shape_cast %29 : vector<16xf32> to vector<16x1xf32>
    %31 = vector.broadcast %30 : vector<16x1xf32> to vector<16x16xf32>
    %32 = arith.subf %28, %31 : vector<16x16xf32>
    %33 = math.exp %32 : vector<16x16xf32>
    %cst_15 = arith.constant dense<0.000000e+00> : vector<16xf32>
    %34 = vector.multi_reduction <add>, %33, %cst_15 [1] : vector<16x16xf32> to vector<16xf32>
    %35 = vector.shape_cast %34 : vector<16xf32> to vector<16x1xf32>
    %36 = tpu.reciprocal %35 {approx = true} : vector<16x1xf32> -> vector<16x1xf32>
    %37 = vector.broadcast %36 : vector<16x1xf32> to vector<16x16xf32>
    %38 = arith.mulf %33, %37 : vector<16x16xf32>
    %cst_16 = arith.constant dense<0.000000e+00> : vector<16x8xf32>
    %39 = tpu.matmul %38, %26, %cst_16 {dimension_numbers = #tpu.dot_dimension_numbers<[1], [0], [0], [1], [0, 0, 1, 1], [], []>} : vector<16x16xf32>, vector<16x8xf32>, vector<16x8xf32> -> vector<16x8xf32>
    %40 = vector.extract_strided_slice %7 {offsets = [0, 16], sizes = [16, 8], strides = [1, 1]} : vector<16x96xf32> to vector<16x8xf32>
    %41 = vector.extract_strided_slice %7 {offsets = [0, 48], sizes = [16, 8], strides = [1, 1]} : vector<16x96xf32> to vector<16x8xf32>
    %42 = vector.extract_strided_slice %7 {offsets = [0, 80], sizes = [16, 8], strides = [1, 1]} : vector<16x96xf32> to vector<16x8xf32>
    %cst_17 = arith.constant dense<0.000000e+00> : vector<16x16xf32>
    %43 = tpu.matmul %40, %41, %cst_17 {dimension_numbers = #tpu.dot_dimension_numbers<[1], [1], [0], [0], [0, 0, 1, 0], [], []>} : vector<16x8xf32>, vector<16x8xf32>, vector<16x16xf32> -> vector<16x16xf32>
    %44 = arith.addf %43, %1 : vector<16x16xf32>
    %cst_18 = arith.constant dense<0xFF800000> : vector<16xf32>
    %45 = vector.multi_reduction <maximumf>, %44, %cst_18 [1] : vector<16x16xf32> to vector<16xf32>
    %46 = vector.shape_cast %45 : vector<16xf32> to vector<16x1xf32>
    %47 = vector.broadcast %46 : vector<16x1xf32> to vector<16x16xf32>
    %48 = arith.subf %44, %47 : vector<16x16xf32>
    %49 = math.exp %48 : vector<16x16xf32>
    %cst_19 = arith.constant dense<0.000000e+00> : vector<16xf32>
    %50 = vector.multi_reduction <add>, %49, %cst_19 [1] : vector<16x16xf32> to vector<16xf32>
    %51 = vector.shape_cast %50 : vector<16xf32> to vector<16x1xf32>
    %52 = tpu.reciprocal %51 {approx = true} : vector<16x1xf32> -> vector<16x1xf32>
    %53 = vector.broadcast %52 : vector<16x1xf32> to vector<16x16xf32>
    %54 = arith.mulf %49, %53 : vector<16x16xf32>
    %cst_20 = arith.constant dense<0.000000e+00> : vector<16x8xf32>
    %55 = tpu.matmul %54, %42, %cst_20 {dimension_numbers = #tpu.dot_dimension_numbers<[1], [0], [0], [1], [0, 0, 1, 1], [], []>} : vector<16x16xf32>, vector<16x8xf32>, vector<16x8xf32> -> vector<16x8xf32>
    %56 = vector.extract_strided_slice %7 {offsets = [0, 24], sizes = [16, 8], strides = [1, 1]} : vector<16x96xf32> to vector<16x8xf32>
    %57 = vector.extract_strided_slice %7 {offsets = [0, 56], sizes = [16, 8], strides = [1, 1]} : vector<16x96xf32> to vector<16x8xf32>
    %58 = vector.extract_strided_slice %7 {offsets = [0, 88], sizes = [16, 8], strides = [1, 1]} : vector<16x96xf32> to vector<16x8xf32>
    %cst_21 = arith.constant dense<0.000000e+00> : vector<16x16xf32>
    %59 = tpu.matmul %56, %57, %cst_21 {dimension_numbers = #tpu.dot_dimension_numbers<[1], [1], [0], [0], [0, 0, 1, 0], [], []>} : vector<16x8xf32>, vector<16x8xf32>, vector<16x16xf32> -> vector<16x16xf32>
    %60 = arith.addf %59, %1 : vector<16x16xf32>
    %cst_22 = arith.constant dense<0xFF800000> : vector<16xf32>
    %61 = vector.multi_reduction <maximumf>, %60, %cst_22 [1] : vector<16x16xf32> to vector<16xf32>
    %62 = vector.shape_cast %61 : vector<16xf32> to vector<16x1xf32>
    %63 = vector.broadcast %62 : vector<16x1xf32> to vector<16x16xf32>
    %64 = arith.subf %60, %63 : vector<16x16xf32>
    %65 = math.exp %64 : vector<16x16xf32>
    %cst_23 = arith.constant dense<0.000000e+00> : vector<16xf32>
    %66 = vector.multi_reduction <add>, %65, %cst_23 [1] : vector<16x16xf32> to vector<16xf32>
    %67 = vector.shape_cast %66 : vector<16xf32> to vector<16x1xf32>
    %68 = tpu.reciprocal %67 {approx = true} : vector<16x1xf32> -> vector<16x1xf32>
    %69 = vector.broadcast %68 : vector<16x1xf32> to vector<16x16xf32>
    %70 = arith.mulf %65, %69 : vector<16x16xf32>
    %cst_24 = arith.constant dense<0.000000e+00> : vector<16x8xf32>
    %71 = tpu.matmul %70, %58, %cst_24 {dimension_numbers = #tpu.dot_dimension_numbers<[1], [0], [0], [1], [0, 0, 1, 1], [], []>} : vector<16x16xf32>, vector<16x8xf32>, vector<16x8xf32> -> vector<16x8xf32>
    %72 = tpu.concatenate %23, %39, %55, %71 in 1 : vector<16x8xf32>, vector<16x8xf32>, vector<16x8xf32>, vector<16x8xf32> -> vector<16x32xf32>
    %c0_25 = arith.constant 0 : index
    %c0_26 = arith.constant 0 : index
    %c0_27 = arith.constant 0 : index
    %73 = vector.load %arg5[%c0_25, %c0_26, %c0_27] : memref<4x32x32xf32, #tpu.memory_space<vmem>>, vector<1x32x32xf32>
    %74 = vector.shape_cast %73 : vector<1x32x32xf32> to vector<32x32xf32>
    %cst_28 = arith.constant dense<0.000000e+00> : vector<16x32xf32>
    %75 = tpu.matmul %72, %74, %cst_28 {dimension_numbers = #tpu.dot_dimension_numbers<[1], [0], [0], [1], [0, 0, 1, 1], [], []>} : vector<16x32xf32>, vector<32x32xf32>, vector<16x32xf32> -> vector<16x32xf32>
    %c0_29 = arith.constant 0 : index
    %c0_30 = arith.constant 0 : index
    %c0_31 = arith.constant 0 : index
    %76 = vector.load %arg6[%c0_29, %c0_30, %c0_31] : memref<4x16x32xf32, #tpu.memory_space<vmem>>, vector<1x16x32xf32>
    %77 = vector.shape_cast %76 : vector<1x16x32xf32> to vector<16x32xf32>
    %78 = arith.addf %75, %77 : vector<16x32xf32>
    %79 = arith.addf %0, %78 : vector<16x32xf32>
    %c0_32 = arith.constant 0 : index
    %c0_33 = arith.constant 0 : index
    %c0_34 = arith.constant 0 : index
    %80 = vector.load %arg11[%c0_32, %c0_33, %c0_34] : memref<4x16x32xf32, #tpu.memory_space<vmem>>, vector<1x16x32xf32>
    %81 = vector.shape_cast %80 : vector<1x16x32xf32> to vector<16x32xf32>
    %c0_35 = arith.constant 0 : index
    %c0_36 = arith.constant 0 : index
    %c0_37 = arith.constant 0 : index
    %82 = vector.load %arg12[%c0_35, %c0_36, %c0_37] : memref<4x16x32xf32, #tpu.memory_space<vmem>>, vector<1x16x32xf32>
    %83 = vector.shape_cast %82 : vector<1x16x32xf32> to vector<16x32xf32>
    %cst_38 = arith.constant dense<0.000000e+00> : vector<16xf32>
    %84 = vector.multi_reduction <add>, %79, %cst_38 [1] : vector<16x32xf32> to vector<16xf32>
    %85 = vector.shape_cast %84 : vector<16xf32> to vector<16x1xf32>
    %cst_39 = arith.constant 3.200000e+01 : f32
    %86 = vector.broadcast %cst_39 : f32 to vector<16x1xf32>
    %87 = arith.divf %85, %86 : vector<16x1xf32>
    %88 = vector.broadcast %87 : vector<16x1xf32> to vector<16x32xf32>
    %89 = arith.subf %79, %88 : vector<16x32xf32>
    %90 = arith.mulf %89, %89 : vector<16x32xf32>
    %cst_40 = arith.constant dense<0.000000e+00> : vector<16xf32>
    %91 = vector.multi_reduction <add>, %90, %cst_40 [1] : vector<16x32xf32> to vector<16xf32>
    %92 = vector.shape_cast %91 : vector<16xf32> to vector<16x1xf32>
    %cst_41 = arith.constant 3.200000e+01 : f32
    %93 = vector.broadcast %cst_41 : f32 to vector<16x1xf32>
    %94 = arith.divf %92, %93 : vector<16x1xf32>
    %95 = vector.broadcast %87 : vector<16x1xf32> to vector<16x32xf32>
    %96 = arith.subf %79, %95 : vector<16x32xf32>
    %cst_42 = arith.constant 9.99999974E-6 : f32
    %97 = vector.broadcast %cst_42 : f32 to vector<16x1xf32>
    %98 = arith.addf %94, %97 : vector<16x1xf32>
    %99 = math.rsqrt %98 : vector<16x1xf32>
    %100 = vector.broadcast %99 : vector<16x1xf32> to vector<16x32xf32>
    %101 = arith.mulf %96, %100 : vector<16x32xf32>
    %102 = arith.mulf %101, %81 : vector<16x32xf32>
    %103 = arith.addf %102, %83 : vector<16x32xf32>
    %c0_43 = arith.constant 0 : index
    %c0_44 = arith.constant 0 : index
    %c0_45 = arith.constant 0 : index
    %104 = vector.load %arg7[%c0_43, %c0_44, %c0_45] : memref<4x32x512xf32, #tpu.memory_space<vmem>>, vector<1x32x512xf32>
    %105 = vector.shape_cast %104 : vector<1x32x512xf32> to vector<32x512xf32>
    %cst_46 = arith.constant dense<0.000000e+00> : vector<16x512xf32>
    %106 = tpu.matmul %103, %105, %cst_46 {dimension_numbers = #tpu.dot_dimension_numbers<[1], [0], [0], [1], [0, 0, 1, 1], [], []>} : vector<16x32xf32>, vector<32x512xf32>, vector<16x512xf32> -> vector<16x512xf32>
    %c0_47 = arith.constant 0 : index
    %c0_48 = arith.constant 0 : index
    %c0_49 = arith.constant 0 : index
    %107 = vector.load %arg8[%c0_47, %c0_48, %c0_49] : memref<4x16x512xf32, #tpu.memory_space<vmem>>, vector<1x16x512xf32>
    %108 = vector.shape_cast %107 : vector<1x16x512xf32> to vector<16x512xf32>
    %109 = arith.addf %106, %108 : vector<16x512xf32>
    %cst_50 = arith.constant 0.000000e+00 : f32
    %110 = vector.broadcast %cst_50 : f32 to vector<16x512xf32>
    %111 = arith.maximumf %109, %110 : vector<16x512xf32>
    %c0_51 = arith.constant 0 : index
    %c0_52 = arith.constant 0 : index
    %c0_53 = arith.constant 0 : index
    %112 = vector.load %arg9[%c0_51, %c0_52, %c0_53] : memref<4x512x32xf32, #tpu.memory_space<vmem>>, vector<1x512x32xf32>
    %113 = vector.shape_cast %112 : vector<1x512x32xf32> to vector<512x32xf32>
    %cst_54 = arith.constant dense<0.000000e+00> : vector<16x32xf32>
    %114 = tpu.matmul %111, %113, %cst_54 {dimension_numbers = #tpu.dot_dimension_numbers<[1], [0], [0], [1], [0, 0, 1, 1], [], []>} : vector<16x512xf32>, vector<512x32xf32>, vector<16x32xf32> -> vector<16x32xf32>
    %c0_55 = arith.constant 0 : index
    %c0_56 = arith.constant 0 : index
    %c0_57 = arith.constant 0 : index
    %115 = vector.load %arg10[%c0_55, %c0_56, %c0_57] : memref<4x16x32xf32, #tpu.memory_space<vmem>>, vector<1x16x32xf32>
    %116 = vector.shape_cast %115 : vector<1x16x32xf32> to vector<16x32xf32>
    %117 = arith.addf %114, %116 : vector<16x32xf32>
    %118 = arith.addf %103, %117 : vector<16x32xf32>
    %c0_58 = arith.constant 0 : index
    %c0_59 = arith.constant 0 : index
    %c0_60 = arith.constant 0 : index
    %119 = vector.load %arg13[%c0_58, %c0_59, %c0_60] : memref<4x16x32xf32, #tpu.memory_space<vmem>>, vector<1x16x32xf32>
    %120 = vector.shape_cast %119 : vector<1x16x32xf32> to vector<16x32xf32>
    %c0_61 = arith.constant 0 : index
    %c0_62 = arith.constant 0 : index
    %c0_63 = arith.constant 0 : index
    %121 = vector.load %arg14[%c0_61, %c0_62, %c0_63] : memref<4x16x32xf32, #tpu.memory_space<vmem>>, vector<1x16x32xf32>
    %122 = vector.shape_cast %121 : vector<1x16x32xf32> to vector<16x32xf32>
    %cst_64 = arith.constant dense<0.000000e+00> : vector<16xf32>
    %123 = vector.multi_reduction <add>, %118, %cst_64 [1] : vector<16x32xf32> to vector<16xf32>
    %124 = vector.shape_cast %123 : vector<16xf32> to vector<16x1xf32>
    %cst_65 = arith.constant 3.200000e+01 : f32
    %125 = vector.broadcast %cst_65 : f32 to vector<16x1xf32>
    %126 = arith.divf %124, %125 : vector<16x1xf32>
    %127 = vector.broadcast %126 : vector<16x1xf32> to vector<16x32xf32>
    %128 = arith.subf %118, %127 : vector<16x32xf32>
    %129 = arith.mulf %128, %128 : vector<16x32xf32>
    %cst_66 = arith.constant dense<0.000000e+00> : vector<16xf32>
    %130 = vector.multi_reduction <add>, %129, %cst_66 [1] : vector<16x32xf32> to vector<16xf32>
    %131 = vector.shape_cast %130 : vector<16xf32> to vector<16x1xf32>
    %cst_67 = arith.constant 3.200000e+01 : f32
    %132 = vector.broadcast %cst_67 : f32 to vector<16x1xf32>
    %133 = arith.divf %131, %132 : vector<16x1xf32>
    %134 = vector.broadcast %126 : vector<16x1xf32> to vector<16x32xf32>
    %135 = arith.subf %118, %134 : vector<16x32xf32>
    %cst_68 = arith.constant 9.99999974E-6 : f32
    %136 = vector.broadcast %cst_68 : f32 to vector<16x1xf32>
    %137 = arith.addf %133, %136 : vector<16x1xf32>
    %138 = math.rsqrt %137 : vector<16x1xf32>
    %139 = vector.broadcast %138 : vector<16x1xf32> to vector<16x32xf32>
    %140 = arith.mulf %135, %139 : vector<16x32xf32>
    %141 = arith.mulf %140, %120 : vector<16x32xf32>
    %142 = arith.addf %141, %122 : vector<16x32xf32>
    %c1 = arith.constant 1 : index
    %c0_69 = arith.constant 0 : index
    %c0_70 = arith.constant 0 : index
    %143 = vector.load %arg3[%c1, %c0_69, %c0_70] : memref<4x32x96xf32, #tpu.memory_space<vmem>>, vector<1x32x96xf32>
    %144 = vector.shape_cast %143 : vector<1x32x96xf32> to vector<32x96xf32>
    %cst_71 = arith.constant dense<0.000000e+00> : vector<16x96xf32>
    %145 = tpu.matmul %142, %144, %cst_71 {dimension_numbers = #tpu.dot_dimension_numbers<[1], [0], [0], [1], [0, 0, 1, 1], [], []>} : vector<16x32xf32>, vector<32x96xf32>, vector<16x96xf32> -> vector<16x96xf32>
    %c1_72 = arith.constant 1 : index
    %c0_73 = arith.constant 0 : index
    %c0_74 = arith.constant 0 : index
    %146 = vector.load %arg4[%c1_72, %c0_73, %c0_74] : memref<4x16x96xf32, #tpu.memory_space<vmem>>, vector<1x16x96xf32>
    %147 = vector.shape_cast %146 : vector<1x16x96xf32> to vector<16x96xf32>
    %148 = arith.addf %145, %147 : vector<16x96xf32>
    %149 = vector.extract_strided_slice %148 {offsets = [0, 0], sizes = [16, 8], strides = [1, 1]} : vector<16x96xf32> to vector<16x8xf32>
    %150 = vector.extract_strided_slice %148 {offsets = [0, 32], sizes = [16, 8], strides = [1, 1]} : vector<16x96xf32> to vector<16x8xf32>
    %151 = vector.extract_strided_slice %148 {offsets = [0, 64], sizes = [16, 8], strides = [1, 1]} : vector<16x96xf32> to vector<16x8xf32>
    %cst_75 = arith.constant dense<0.000000e+00> : vector<16x16xf32>
    %152 = tpu.matmul %149, %150, %cst_75 {dimension_numbers = #tpu.dot_dimension_numbers<[1], [1], [0], [0], [0, 0, 1, 0], [], []>} : vector<16x8xf32>, vector<16x8xf32>, vector<16x16xf32> -> vector<16x16xf32>
    %153 = arith.addf %152, %1 : vector<16x16xf32>
    %cst_76 = arith.constant dense<0xFF800000> : vector<16xf32>
    %154 = vector.multi_reduction <maximumf>, %153, %cst_76 [1] : vector<16x16xf32> to vector<16xf32>
    %155 = vector.shape_cast %154 : vector<16xf32> to vector<16x1xf32>
    %156 = vector.broadcast %155 : vector<16x1xf32> to vector<16x16xf32>
    %157 = arith.subf %153, %156 : vector<16x16xf32>
    %158 = math.exp %157 : vector<16x16xf32>
    %cst_77 = arith.constant dense<0.000000e+00> : vector<16xf32>
    %159 = vector.multi_reduction <add>, %158, %cst_77 [1] : vector<16x16xf32> to vector<16xf32>
    %160 = vector.shape_cast %159 : vector<16xf32> to vector<16x1xf32>
    %161 = tpu.reciprocal %160 {approx = true} : vector<16x1xf32> -> vector<16x1xf32>
    %162 = vector.broadcast %161 : vector<16x1xf32> to vector<16x16xf32>
    %163 = arith.mulf %158, %162 : vector<16x16xf32>
    %cst_78 = arith.constant dense<0.000000e+00> : vector<16x8xf32>
    %164 = tpu.matmul %163, %151, %cst_78 {dimension_numbers = #tpu.dot_dimension_numbers<[1], [0], [0], [1], [0, 0, 1, 1], [], []>} : vector<16x16xf32>, vector<16x8xf32>, vector<16x8xf32> -> vector<16x8xf32>
    %165 = vector.extract_strided_slice %148 {offsets = [0, 8], sizes = [16, 8], strides = [1, 1]} : vector<16x96xf32> to vector<16x8xf32>
    %166 = vector.extract_strided_slice %148 {offsets = [0, 40], sizes = [16, 8], strides = [1, 1]} : vector<16x96xf32> to vector<16x8xf32>
    %167 = vector.extract_strided_slice %148 {offsets = [0, 72], sizes = [16, 8], strides = [1, 1]} : vector<16x96xf32> to vector<16x8xf32>
    %cst_79 = arith.constant dense<0.000000e+00> : vector<16x16xf32>
    %168 = tpu.matmul %165, %166, %cst_79 {dimension_numbers = #tpu.dot_dimension_numbers<[1], [1], [0], [0], [0, 0, 1, 0], [], []>} : vector<16x8xf32>, vector<16x8xf32>, vector<16x16xf32> -> vector<16x16xf32>
    %169 = arith.addf %168, %1 : vector<16x16xf32>
    %cst_80 = arith.constant dense<0xFF800000> : vector<16xf32>
    %170 = vector.multi_reduction <maximumf>, %169, %cst_80 [1] : vector<16x16xf32> to vector<16xf32>
    %171 = vector.shape_cast %170 : vector<16xf32> to vector<16x1xf32>
    %172 = vector.broadcast %171 : vector<16x1xf32> to vector<16x16xf32>
    %173 = arith.subf %169, %172 : vector<16x16xf32>
    %174 = math.exp %173 : vector<16x16xf32>
    %cst_81 = arith.constant dense<0.000000e+00> : vector<16xf32>
    %175 = vector.multi_reduction <add>, %174, %cst_81 [1] : vector<16x16xf32> to vector<16xf32>
    %176 = vector.shape_cast %175 : vector<16xf32> to vector<16x1xf32>
    %177 = tpu.reciprocal %176 {approx = true} : vector<16x1xf32> -> vector<16x1xf32>
    %178 = vector.broadcast %177 : vector<16x1xf32> to vector<16x16xf32>
    %179 = arith.mulf %174, %178 : vector<16x16xf32>
    %cst_82 = arith.constant dense<0.000000e+00> : vector<16x8xf32>
    %180 = tpu.matmul %179, %167, %cst_82 {dimension_numbers = #tpu.dot_dimension_numbers<[1], [0], [0], [1], [0, 0, 1, 1], [], []>} : vector<16x16xf32>, vector<16x8xf32>, vector<16x8xf32> -> vector<16x8xf32>
    %181 = vector.extract_strided_slice %148 {offsets = [0, 16], sizes = [16, 8], strides = [1, 1]} : vector<16x96xf32> to vector<16x8xf32>
    %182 = vector.extract_strided_slice %148 {offsets = [0, 48], sizes = [16, 8], strides = [1, 1]} : vector<16x96xf32> to vector<16x8xf32>
    %183 = vector.extract_strided_slice %148 {offsets = [0, 80], sizes = [16, 8], strides = [1, 1]} : vector<16x96xf32> to vector<16x8xf32>
    %cst_83 = arith.constant dense<0.000000e+00> : vector<16x16xf32>
    %184 = tpu.matmul %181, %182, %cst_83 {dimension_numbers = #tpu.dot_dimension_numbers<[1], [1], [0], [0], [0, 0, 1, 0], [], []>} : vector<16x8xf32>, vector<16x8xf32>, vector<16x16xf32> -> vector<16x16xf32>
    %185 = arith.addf %184, %1 : vector<16x16xf32>
    %cst_84 = arith.constant dense<0xFF800000> : vector<16xf32>
    %186 = vector.multi_reduction <maximumf>, %185, %cst_84 [1] : vector<16x16xf32> to vector<16xf32>
    %187 = vector.shape_cast %186 : vector<16xf32> to vector<16x1xf32>
    %188 = vector.broadcast %187 : vector<16x1xf32> to vector<16x16xf32>
    %189 = arith.subf %185, %188 : vector<16x16xf32>
    %190 = math.exp %189 : vector<16x16xf32>
    %cst_85 = arith.constant dense<0.000000e+00> : vector<16xf32>
    %191 = vector.multi_reduction <add>, %190, %cst_85 [1] : vector<16x16xf32> to vector<16xf32>
    %192 = vector.shape_cast %191 : vector<16xf32> to vector<16x1xf32>
    %193 = tpu.reciprocal %192 {approx = true} : vector<16x1xf32> -> vector<16x1xf32>
    %194 = vector.broadcast %193 : vector<16x1xf32> to vector<16x16xf32>
    %195 = arith.mulf %190, %194 : vector<16x16xf32>
    %cst_86 = arith.constant dense<0.000000e+00> : vector<16x8xf32>
    %196 = tpu.matmul %195, %183, %cst_86 {dimension_numbers = #tpu.dot_dimension_numbers<[1], [0], [0], [1], [0, 0, 1, 1], [], []>} : vector<16x16xf32>, vector<16x8xf32>, vector<16x8xf32> -> vector<16x8xf32>
    %197 = vector.extract_strided_slice %148 {offsets = [0, 24], sizes = [16, 8], strides = [1, 1]} : vector<16x96xf32> to vector<16x8xf32>
    %198 = vector.extract_strided_slice %148 {offsets = [0, 56], sizes = [16, 8], strides = [1, 1]} : vector<16x96xf32> to vector<16x8xf32>
    %199 = vector.extract_strided_slice %148 {offsets = [0, 88], sizes = [16, 8], strides = [1, 1]} : vector<16x96xf32> to vector<16x8xf32>
    %cst_87 = arith.constant dense<0.000000e+00> : vector<16x16xf32>
    %200 = tpu.matmul %197, %198, %cst_87 {dimension_numbers = #tpu.dot_dimension_numbers<[1], [1], [0], [0], [0, 0, 1, 0], [], []>} : vector<16x8xf32>, vector<16x8xf32>, vector<16x16xf32> -> vector<16x16xf32>
    %201 = arith.addf %200, %1 : vector<16x16xf32>
    %cst_88 = arith.constant dense<0xFF800000> : vector<16xf32>
    %202 = vector.multi_reduction <maximumf>, %201, %cst_88 [1] : vector<16x16xf32> to vector<16xf32>
    %203 = vector.shape_cast %202 : vector<16xf32> to vector<16x1xf32>
    %204 = vector.broadcast %203 : vector<16x1xf32> to vector<16x16xf32>
    %205 = arith.subf %201, %204 : vector<16x16xf32>
    %206 = math.exp %205 : vector<16x16xf32>
    %cst_89 = arith.constant dense<0.000000e+00> : vector<16xf32>
    %207 = vector.multi_reduction <add>, %206, %cst_89 [1] : vector<16x16xf32> to vector<16xf32>
    %208 = vector.shape_cast %207 : vector<16xf32> to vector<16x1xf32>
    %209 = tpu.reciprocal %208 {approx = true} : vector<16x1xf32> -> vector<16x1xf32>
    %210 = vector.broadcast %209 : vector<16x1xf32> to vector<16x16xf32>
    %211 = arith.mulf %206, %210 : vector<16x16xf32>
    %cst_90 = arith.constant dense<0.000000e+00> : vector<16x8xf32>
    %212 = tpu.matmul %211, %199, %cst_90 {dimension_numbers = #tpu.dot_dimension_numbers<[1], [0], [0], [1], [0, 0, 1, 1], [], []>} : vector<16x16xf32>, vector<16x8xf32>, vector<16x8xf32> -> vector<16x8xf32>
    %213 = tpu.concatenate %164, %180, %196, %212 in 1 : vector<16x8xf32>, vector<16x8xf32>, vector<16x8xf32>, vector<16x8xf32> -> vector<16x32xf32>
    %c1_91 = arith.constant 1 : index
    %c0_92 = arith.constant 0 : index
    %c0_93 = arith.constant 0 : index
    %214 = vector.load %arg5[%c1_91, %c0_92, %c0_93] : memref<4x32x32xf32, #tpu.memory_space<vmem>>, vector<1x32x32xf32>
    %215 = vector.shape_cast %214 : vector<1x32x32xf32> to vector<32x32xf32>
    %cst_94 = arith.constant dense<0.000000e+00> : vector<16x32xf32>
    %216 = tpu.matmul %213, %215, %cst_94 {dimension_numbers = #tpu.dot_dimension_numbers<[1], [0], [0], [1], [0, 0, 1, 1], [], []>} : vector<16x32xf32>, vector<32x32xf32>, vector<16x32xf32> -> vector<16x32xf32>
    %c1_95 = arith.constant 1 : index
    %c0_96 = arith.constant 0 : index
    %c0_97 = arith.constant 0 : index
    %217 = vector.load %arg6[%c1_95, %c0_96, %c0_97] : memref<4x16x32xf32, #tpu.memory_space<vmem>>, vector<1x16x32xf32>
    %218 = vector.shape_cast %217 : vector<1x16x32xf32> to vector<16x32xf32>
    %219 = arith.addf %216, %218 : vector<16x32xf32>
    %220 = arith.addf %142, %219 : vector<16x32xf32>
    %c1_98 = arith.constant 1 : index
    %c0_99 = arith.constant 0 : index
    %c0_100 = arith.constant 0 : index
    %221 = vector.load %arg11[%c1_98, %c0_99, %c0_100] : memref<4x16x32xf32, #tpu.memory_space<vmem>>, vector<1x16x32xf32>
    %222 = vector.shape_cast %221 : vector<1x16x32xf32> to vector<16x32xf32>
    %c1_101 = arith.constant 1 : index
    %c0_102 = arith.constant 0 : index
    %c0_103 = arith.constant 0 : index
    %223 = vector.load %arg12[%c1_101, %c0_102, %c0_103] : memref<4x16x32xf32, #tpu.memory_space<vmem>>, vector<1x16x32xf32>
    %224 = vector.shape_cast %223 : vector<1x16x32xf32> to vector<16x32xf32>
    %cst_104 = arith.constant dense<0.000000e+00> : vector<16xf32>
    %225 = vector.multi_reduction <add>, %220, %cst_104 [1] : vector<16x32xf32> to vector<16xf32>
    %226 = vector.shape_cast %225 : vector<16xf32> to vector<16x1xf32>
    %cst_105 = arith.constant 3.200000e+01 : f32
    %227 = vector.broadcast %cst_105 : f32 to vector<16x1xf32>
    %228 = arith.divf %226, %227 : vector<16x1xf32>
    %229 = vector.broadcast %228 : vector<16x1xf32> to vector<16x32xf32>
    %230 = arith.subf %220, %229 : vector<16x32xf32>
    %231 = arith.mulf %230, %230 : vector<16x32xf32>
    %cst_106 = arith.constant dense<0.000000e+00> : vector<16xf32>
    %232 = vector.multi_reduction <add>, %231, %cst_106 [1] : vector<16x32xf32> to vector<16xf32>
    %233 = vector.shape_cast %232 : vector<16xf32> to vector<16x1xf32>
    %cst_107 = arith.constant 3.200000e+01 : f32
    %234 = vector.broadcast %cst_107 : f32 to vector<16x1xf32>
    %235 = arith.divf %233, %234 : vector<16x1xf32>
    %236 = vector.broadcast %228 : vector<16x1xf32> to vector<16x32xf32>
    %237 = arith.subf %220, %236 : vector<16x32xf32>
    %cst_108 = arith.constant 9.99999974E-6 : f32
    %238 = vector.broadcast %cst_108 : f32 to vector<16x1xf32>
    %239 = arith.addf %235, %238 : vector<16x1xf32>
    %240 = math.rsqrt %239 : vector<16x1xf32>
    %241 = vector.broadcast %240 : vector<16x1xf32> to vector<16x32xf32>
    %242 = arith.mulf %237, %241 : vector<16x32xf32>
    %243 = arith.mulf %242, %222 : vector<16x32xf32>
    %244 = arith.addf %243, %224 : vector<16x32xf32>
    %c1_109 = arith.constant 1 : index
    %c0_110 = arith.constant 0 : index
    %c0_111 = arith.constant 0 : index
    %245 = vector.load %arg7[%c1_109, %c0_110, %c0_111] : memref<4x32x512xf32, #tpu.memory_space<vmem>>, vector<1x32x512xf32>
    %246 = vector.shape_cast %245 : vector<1x32x512xf32> to vector<32x512xf32>
    %cst_112 = arith.constant dense<0.000000e+00> : vector<16x512xf32>
    %247 = tpu.matmul %244, %246, %cst_112 {dimension_numbers = #tpu.dot_dimension_numbers<[1], [0], [0], [1], [0, 0, 1, 1], [], []>} : vector<16x32xf32>, vector<32x512xf32>, vector<16x512xf32> -> vector<16x512xf32>
    %c1_113 = arith.constant 1 : index
    %c0_114 = arith.constant 0 : index
    %c0_115 = arith.constant 0 : index
    %248 = vector.load %arg8[%c1_113, %c0_114, %c0_115] : memref<4x16x512xf32, #tpu.memory_space<vmem>>, vector<1x16x512xf32>
    %249 = vector.shape_cast %248 : vector<1x16x512xf32> to vector<16x512xf32>
    %250 = arith.addf %247, %249 : vector<16x512xf32>
    %cst_116 = arith.constant 0.000000e+00 : f32
    %251 = vector.broadcast %cst_116 : f32 to vector<16x512xf32>
    %252 = arith.maximumf %250, %251 : vector<16x512xf32>
    %c1_117 = arith.constant 1 : index
    %c0_118 = arith.constant 0 : index
    %c0_119 = arith.constant 0 : index
    %253 = vector.load %arg9[%c1_117, %c0_118, %c0_119] : memref<4x512x32xf32, #tpu.memory_space<vmem>>, vector<1x512x32xf32>
    %254 = vector.shape_cast %253 : vector<1x512x32xf32> to vector<512x32xf32>
    %cst_120 = arith.constant dense<0.000000e+00> : vector<16x32xf32>
    %255 = tpu.matmul %252, %254, %cst_120 {dimension_numbers = #tpu.dot_dimension_numbers<[1], [0], [0], [1], [0, 0, 1, 1], [], []>} : vector<16x512xf32>, vector<512x32xf32>, vector<16x32xf32> -> vector<16x32xf32>
    %c1_121 = arith.constant 1 : index
    %c0_122 = arith.constant 0 : index
    %c0_123 = arith.constant 0 : index
    %256 = vector.load %arg10[%c1_121, %c0_122, %c0_123] : memref<4x16x32xf32, #tpu.memory_space<vmem>>, vector<1x16x32xf32>
    %257 = vector.shape_cast %256 : vector<1x16x32xf32> to vector<16x32xf32>
    %258 = arith.addf %255, %257 : vector<16x32xf32>
    %259 = arith.addf %244, %258 : vector<16x32xf32>
    %c1_124 = arith.constant 1 : index
    %c0_125 = arith.constant 0 : index
    %c0_126 = arith.constant 0 : index
    %260 = vector.load %arg13[%c1_124, %c0_125, %c0_126] : memref<4x16x32xf32, #tpu.memory_space<vmem>>, vector<1x16x32xf32>
    %261 = vector.shape_cast %260 : vector<1x16x32xf32> to vector<16x32xf32>
    %c1_127 = arith.constant 1 : index
    %c0_128 = arith.constant 0 : index
    %c0_129 = arith.constant 0 : index
    %262 = vector.load %arg14[%c1_127, %c0_128, %c0_129] : memref<4x16x32xf32, #tpu.memory_space<vmem>>, vector<1x16x32xf32>
    %263 = vector.shape_cast %262 : vector<1x16x32xf32> to vector<16x32xf32>
    %cst_130 = arith.constant dense<0.000000e+00> : vector<16xf32>
    %264 = vector.multi_reduction <add>, %259, %cst_130 [1] : vector<16x32xf32> to vector<16xf32>
    %265 = vector.shape_cast %264 : vector<16xf32> to vector<16x1xf32>
    %cst_131 = arith.constant 3.200000e+01 : f32
    %266 = vector.broadcast %cst_131 : f32 to vector<16x1xf32>
    %267 = arith.divf %265, %266 : vector<16x1xf32>
    %268 = vector.broadcast %267 : vector<16x1xf32> to vector<16x32xf32>
    %269 = arith.subf %259, %268 : vector<16x32xf32>
    %270 = arith.mulf %269, %269 : vector<16x32xf32>
    %cst_132 = arith.constant dense<0.000000e+00> : vector<16xf32>
    %271 = vector.multi_reduction <add>, %270, %cst_132 [1] : vector<16x32xf32> to vector<16xf32>
    %272 = vector.shape_cast %271 : vector<16xf32> to vector<16x1xf32>
    %cst_133 = arith.constant 3.200000e+01 : f32
    %273 = vector.broadcast %cst_133 : f32 to vector<16x1xf32>
    %274 = arith.divf %272, %273 : vector<16x1xf32>
    %275 = vector.broadcast %267 : vector<16x1xf32> to vector<16x32xf32>
    %276 = arith.subf %259, %275 : vector<16x32xf32>
    %cst_134 = arith.constant 9.99999974E-6 : f32
    %277 = vector.broadcast %cst_134 : f32 to vector<16x1xf32>
    %278 = arith.addf %274, %277 : vector<16x1xf32>
    %279 = math.rsqrt %278 : vector<16x1xf32>
    %280 = vector.broadcast %279 : vector<16x1xf32> to vector<16x32xf32>
    %281 = arith.mulf %276, %280 : vector<16x32xf32>
    %282 = arith.mulf %281, %261 : vector<16x32xf32>
    %283 = arith.addf %282, %263 : vector<16x32xf32>
    %c2 = arith.constant 2 : index
    %c0_135 = arith.constant 0 : index
    %c0_136 = arith.constant 0 : index
    %284 = vector.load %arg3[%c2, %c0_135, %c0_136] : memref<4x32x96xf32, #tpu.memory_space<vmem>>, vector<1x32x96xf32>
    %285 = vector.shape_cast %284 : vector<1x32x96xf32> to vector<32x96xf32>
    %cst_137 = arith.constant dense<0.000000e+00> : vector<16x96xf32>
    %286 = tpu.matmul %283, %285, %cst_137 {dimension_numbers = #tpu.dot_dimension_numbers<[1], [0], [0], [1], [0, 0, 1, 1], [], []>} : vector<16x32xf32>, vector<32x96xf32>, vector<16x96xf32> -> vector<16x96xf32>
    %c2_138 = arith.constant 2 : index
    %c0_139 = arith.constant 0 : index
    %c0_140 = arith.constant 0 : index
    %287 = vector.load %arg4[%c2_138, %c0_139, %c0_140] : memref<4x16x96xf32, #tpu.memory_space<vmem>>, vector<1x16x96xf32>
    %288 = vector.shape_cast %287 : vector<1x16x96xf32> to vector<16x96xf32>
    %289 = arith.addf %286, %288 : vector<16x96xf32>
    %290 = vector.extract_strided_slice %289 {offsets = [0, 0], sizes = [16, 8], strides = [1, 1]} : vector<16x96xf32> to vector<16x8xf32>
    %291 = vector.extract_strided_slice %289 {offsets = [0, 32], sizes = [16, 8], strides = [1, 1]} : vector<16x96xf32> to vector<16x8xf32>
    %292 = vector.extract_strided_slice %289 {offsets = [0, 64], sizes = [16, 8], strides = [1, 1]} : vector<16x96xf32> to vector<16x8xf32>
    %cst_141 = arith.constant dense<0.000000e+00> : vector<16x16xf32>
    %293 = tpu.matmul %290, %291, %cst_141 {dimension_numbers = #tpu.dot_dimension_numbers<[1], [1], [0], [0], [0, 0, 1, 0], [], []>} : vector<16x8xf32>, vector<16x8xf32>, vector<16x16xf32> -> vector<16x16xf32>
    %294 = arith.addf %293, %1 : vector<16x16xf32>
    %cst_142 = arith.constant dense<0xFF800000> : vector<16xf32>
    %295 = vector.multi_reduction <maximumf>, %294, %cst_142 [1] : vector<16x16xf32> to vector<16xf32>
    %296 = vector.shape_cast %295 : vector<16xf32> to vector<16x1xf32>
    %297 = vector.broadcast %296 : vector<16x1xf32> to vector<16x16xf32>
    %298 = arith.subf %294, %297 : vector<16x16xf32>
    %299 = math.exp %298 : vector<16x16xf32>
    %cst_143 = arith.constant dense<0.000000e+00> : vector<16xf32>
    %300 = vector.multi_reduction <add>, %299, %cst_143 [1] : vector<16x16xf32> to vector<16xf32>
    %301 = vector.shape_cast %300 : vector<16xf32> to vector<16x1xf32>
    %302 = tpu.reciprocal %301 {approx = true} : vector<16x1xf32> -> vector<16x1xf32>
    %303 = vector.broadcast %302 : vector<16x1xf32> to vector<16x16xf32>
    %304 = arith.mulf %299, %303 : vector<16x16xf32>
    %cst_144 = arith.constant dense<0.000000e+00> : vector<16x8xf32>
    %305 = tpu.matmul %304, %292, %cst_144 {dimension_numbers = #tpu.dot_dimension_numbers<[1], [0], [0], [1], [0, 0, 1, 1], [], []>} : vector<16x16xf32>, vector<16x8xf32>, vector<16x8xf32> -> vector<16x8xf32>
    %306 = vector.extract_strided_slice %289 {offsets = [0, 8], sizes = [16, 8], strides = [1, 1]} : vector<16x96xf32> to vector<16x8xf32>
    %307 = vector.extract_strided_slice %289 {offsets = [0, 40], sizes = [16, 8], strides = [1, 1]} : vector<16x96xf32> to vector<16x8xf32>
    %308 = vector.extract_strided_slice %289 {offsets = [0, 72], sizes = [16, 8], strides = [1, 1]} : vector<16x96xf32> to vector<16x8xf32>
    %cst_145 = arith.constant dense<0.000000e+00> : vector<16x16xf32>
    %309 = tpu.matmul %306, %307, %cst_145 {dimension_numbers = #tpu.dot_dimension_numbers<[1], [1], [0], [0], [0, 0, 1, 0], [], []>} : vector<16x8xf32>, vector<16x8xf32>, vector<16x16xf32> -> vector<16x16xf32>
    %310 = arith.addf %309, %1 : vector<16x16xf32>
    %cst_146 = arith.constant dense<0xFF800000> : vector<16xf32>
    %311 = vector.multi_reduction <maximumf>, %310, %cst_146 [1] : vector<16x16xf32> to vector<16xf32>
    %312 = vector.shape_cast %311 : vector<16xf32> to vector<16x1xf32>
    %313 = vector.broadcast %312 : vector<16x1xf32> to vector<16x16xf32>
    %314 = arith.subf %310, %313 : vector<16x16xf32>
    %315 = math.exp %314 : vector<16x16xf32>
    %cst_147 = arith.constant dense<0.000000e+00> : vector<16xf32>
    %316 = vector.multi_reduction <add>, %315, %cst_147 [1] : vector<16x16xf32> to vector<16xf32>
    %317 = vector.shape_cast %316 : vector<16xf32> to vector<16x1xf32>
    %318 = tpu.reciprocal %317 {approx = true} : vector<16x1xf32> -> vector<16x1xf32>
    %319 = vector.broadcast %318 : vector<16x1xf32> to vector<16x16xf32>
    %320 = arith.mulf %315, %319 : vector<16x16xf32>
    %cst_148 = arith.constant dense<0.000000e+00> : vector<16x8xf32>
    %321 = tpu.matmul %320, %308, %cst_148 {dimension_numbers = #tpu.dot_dimension_numbers<[1], [0], [0], [1], [0, 0, 1, 1], [], []>} : vector<16x16xf32>, vector<16x8xf32>, vector<16x8xf32> -> vector<16x8xf32>
    %322 = vector.extract_strided_slice %289 {offsets = [0, 16], sizes = [16, 8], strides = [1, 1]} : vector<16x96xf32> to vector<16x8xf32>
    %323 = vector.extract_strided_slice %289 {offsets = [0, 48], sizes = [16, 8], strides = [1, 1]} : vector<16x96xf32> to vector<16x8xf32>
    %324 = vector.extract_strided_slice %289 {offsets = [0, 80], sizes = [16, 8], strides = [1, 1]} : vector<16x96xf32> to vector<16x8xf32>
    %cst_149 = arith.constant dense<0.000000e+00> : vector<16x16xf32>
    %325 = tpu.matmul %322, %323, %cst_149 {dimension_numbers = #tpu.dot_dimension_numbers<[1], [1], [0], [0], [0, 0, 1, 0], [], []>} : vector<16x8xf32>, vector<16x8xf32>, vector<16x16xf32> -> vector<16x16xf32>
    %326 = arith.addf %325, %1 : vector<16x16xf32>
    %cst_150 = arith.constant dense<0xFF800000> : vector<16xf32>
    %327 = vector.multi_reduction <maximumf>, %326, %cst_150 [1] : vector<16x16xf32> to vector<16xf32>
    %328 = vector.shape_cast %327 : vector<16xf32> to vector<16x1xf32>
    %329 = vector.broadcast %328 : vector<16x1xf32> to vector<16x16xf32>
    %330 = arith.subf %326, %329 : vector<16x16xf32>
    %331 = math.exp %330 : vector<16x16xf32>
    %cst_151 = arith.constant dense<0.000000e+00> : vector<16xf32>
    %332 = vector.multi_reduction <add>, %331, %cst_151 [1] : vector<16x16xf32> to vector<16xf32>
    %333 = vector.shape_cast %332 : vector<16xf32> to vector<16x1xf32>
    %334 = tpu.reciprocal %333 {approx = true} : vector<16x1xf32> -> vector<16x1xf32>
    %335 = vector.broadcast %334 : vector<16x1xf32> to vector<16x16xf32>
    %336 = arith.mulf %331, %335 : vector<16x16xf32>
    %cst_152 = arith.constant dense<0.000000e+00> : vector<16x8xf32>
    %337 = tpu.matmul %336, %324, %cst_152 {dimension_numbers = #tpu.dot_dimension_numbers<[1], [0], [0], [1], [0, 0, 1, 1], [], []>} : vector<16x16xf32>, vector<16x8xf32>, vector<16x8xf32> -> vector<16x8xf32>
    %338 = vector.extract_strided_slice %289 {offsets = [0, 24], sizes = [16, 8], strides = [1, 1]} : vector<16x96xf32> to vector<16x8xf32>
    %339 = vector.extract_strided_slice %289 {offsets = [0, 56], sizes = [16, 8], strides = [1, 1]} : vector<16x96xf32> to vector<16x8xf32>
    %340 = vector.extract_strided_slice %289 {offsets = [0, 88], sizes = [16, 8], strides = [1, 1]} : vector<16x96xf32> to vector<16x8xf32>
    %cst_153 = arith.constant dense<0.000000e+00> : vector<16x16xf32>
    %341 = tpu.matmul %338, %339, %cst_153 {dimension_numbers = #tpu.dot_dimension_numbers<[1], [1], [0], [0], [0, 0, 1, 0], [], []>} : vector<16x8xf32>, vector<16x8xf32>, vector<16x16xf32> -> vector<16x16xf32>
    %342 = arith.addf %341, %1 : vector<16x16xf32>
    %cst_154 = arith.constant dense<0xFF800000> : vector<16xf32>
    %343 = vector.multi_reduction <maximumf>, %342, %cst_154 [1] : vector<16x16xf32> to vector<16xf32>
    %344 = vector.shape_cast %343 : vector<16xf32> to vector<16x1xf32>
    %345 = vector.broadcast %344 : vector<16x1xf32> to vector<16x16xf32>
    %346 = arith.subf %342, %345 : vector<16x16xf32>
    %347 = math.exp %346 : vector<16x16xf32>
    %cst_155 = arith.constant dense<0.000000e+00> : vector<16xf32>
    %348 = vector.multi_reduction <add>, %347, %cst_155 [1] : vector<16x16xf32> to vector<16xf32>
    %349 = vector.shape_cast %348 : vector<16xf32> to vector<16x1xf32>
    %350 = tpu.reciprocal %349 {approx = true} : vector<16x1xf32> -> vector<16x1xf32>
    %351 = vector.broadcast %350 : vector<16x1xf32> to vector<16x16xf32>
    %352 = arith.mulf %347, %351 : vector<16x16xf32>
    %cst_156 = arith.constant dense<0.000000e+00> : vector<16x8xf32>
    %353 = tpu.matmul %352, %340, %cst_156 {dimension_numbers = #tpu.dot_dimension_numbers<[1], [0], [0], [1], [0, 0, 1, 1], [], []>} : vector<16x16xf32>, vector<16x8xf32>, vector<16x8xf32> -> vector<16x8xf32>
    %354 = tpu.concatenate %305, %321, %337, %353 in 1 : vector<16x8xf32>, vector<16x8xf32>, vector<16x8xf32>, vector<16x8xf32> -> vector<16x32xf32>
    %c2_157 = arith.constant 2 : index
    %c0_158 = arith.constant 0 : index
    %c0_159 = arith.constant 0 : index
    %355 = vector.load %arg5[%c2_157, %c0_158, %c0_159] : memref<4x32x32xf32, #tpu.memory_space<vmem>>, vector<1x32x32xf32>
    %356 = vector.shape_cast %355 : vector<1x32x32xf32> to vector<32x32xf32>
    %cst_160 = arith.constant dense<0.000000e+00> : vector<16x32xf32>
    %357 = tpu.matmul %354, %356, %cst_160 {dimension_numbers = #tpu.dot_dimension_numbers<[1], [0], [0], [1], [0, 0, 1, 1], [], []>} : vector<16x32xf32>, vector<32x32xf32>, vector<16x32xf32> -> vector<16x32xf32>
    %c2_161 = arith.constant 2 : index
    %c0_162 = arith.constant 0 : index
    %c0_163 = arith.constant 0 : index
    %358 = vector.load %arg6[%c2_161, %c0_162, %c0_163] : memref<4x16x32xf32, #tpu.memory_space<vmem>>, vector<1x16x32xf32>
    %359 = vector.shape_cast %358 : vector<1x16x32xf32> to vector<16x32xf32>
    %360 = arith.addf %357, %359 : vector<16x32xf32>
    %361 = arith.addf %283, %360 : vector<16x32xf32>
    %c2_164 = arith.constant 2 : index
    %c0_165 = arith.constant 0 : index
    %c0_166 = arith.constant 0 : index
    %362 = vector.load %arg11[%c2_164, %c0_165, %c0_166] : memref<4x16x32xf32, #tpu.memory_space<vmem>>, vector<1x16x32xf32>
    %363 = vector.shape_cast %362 : vector<1x16x32xf32> to vector<16x32xf32>
    %c2_167 = arith.constant 2 : index
    %c0_168 = arith.constant 0 : index
    %c0_169 = arith.constant 0 : index
    %364 = vector.load %arg12[%c2_167, %c0_168, %c0_169] : memref<4x16x32xf32, #tpu.memory_space<vmem>>, vector<1x16x32xf32>
    %365 = vector.shape_cast %364 : vector<1x16x32xf32> to vector<16x32xf32>
    %cst_170 = arith.constant dense<0.000000e+00> : vector<16xf32>
    %366 = vector.multi_reduction <add>, %361, %cst_170 [1] : vector<16x32xf32> to vector<16xf32>
    %367 = vector.shape_cast %366 : vector<16xf32> to vector<16x1xf32>
    %cst_171 = arith.constant 3.200000e+01 : f32
    %368 = vector.broadcast %cst_171 : f32 to vector<16x1xf32>
    %369 = arith.divf %367, %368 : vector<16x1xf32>
    %370 = vector.broadcast %369 : vector<16x1xf32> to vector<16x32xf32>
    %371 = arith.subf %361, %370 : vector<16x32xf32>
    %372 = arith.mulf %371, %371 : vector<16x32xf32>
    %cst_172 = arith.constant dense<0.000000e+00> : vector<16xf32>
    %373 = vector.multi_reduction <add>, %372, %cst_172 [1] : vector<16x32xf32> to vector<16xf32>
    %374 = vector.shape_cast %373 : vector<16xf32> to vector<16x1xf32>
    %cst_173 = arith.constant 3.200000e+01 : f32
    %375 = vector.broadcast %cst_173 : f32 to vector<16x1xf32>
    %376 = arith.divf %374, %375 : vector<16x1xf32>
    %377 = vector.broadcast %369 : vector<16x1xf32> to vector<16x32xf32>
    %378 = arith.subf %361, %377 : vector<16x32xf32>
    %cst_174 = arith.constant 9.99999974E-6 : f32
    %379 = vector.broadcast %cst_174 : f32 to vector<16x1xf32>
    %380 = arith.addf %376, %379 : vector<16x1xf32>
    %381 = math.rsqrt %380 : vector<16x1xf32>
    %382 = vector.broadcast %381 : vector<16x1xf32> to vector<16x32xf32>
    %383 = arith.mulf %378, %382 : vector<16x32xf32>
    %384 = arith.mulf %383, %363 : vector<16x32xf32>
    %385 = arith.addf %384, %365 : vector<16x32xf32>
    %c2_175 = arith.constant 2 : index
    %c0_176 = arith.constant 0 : index
    %c0_177 = arith.constant 0 : index
    %386 = vector.load %arg7[%c2_175, %c0_176, %c0_177] : memref<4x32x512xf32, #tpu.memory_space<vmem>>, vector<1x32x512xf32>
    %387 = vector.shape_cast %386 : vector<1x32x512xf32> to vector<32x512xf32>
    %cst_178 = arith.constant dense<0.000000e+00> : vector<16x512xf32>
    %388 = tpu.matmul %385, %387, %cst_178 {dimension_numbers = #tpu.dot_dimension_numbers<[1], [0], [0], [1], [0, 0, 1, 1], [], []>} : vector<16x32xf32>, vector<32x512xf32>, vector<16x512xf32> -> vector<16x512xf32>
    %c2_179 = arith.constant 2 : index
    %c0_180 = arith.constant 0 : index
    %c0_181 = arith.constant 0 : index
    %389 = vector.load %arg8[%c2_179, %c0_180, %c0_181] : memref<4x16x512xf32, #tpu.memory_space<vmem>>, vector<1x16x512xf32>
    %390 = vector.shape_cast %389 : vector<1x16x512xf32> to vector<16x512xf32>
    %391 = arith.addf %388, %390 : vector<16x512xf32>
    %cst_182 = arith.constant 0.000000e+00 : f32
    %392 = vector.broadcast %cst_182 : f32 to vector<16x512xf32>
    %393 = arith.maximumf %391, %392 : vector<16x512xf32>
    %c2_183 = arith.constant 2 : index
    %c0_184 = arith.constant 0 : index
    %c0_185 = arith.constant 0 : index
    %394 = vector.load %arg9[%c2_183, %c0_184, %c0_185] : memref<4x512x32xf32, #tpu.memory_space<vmem>>, vector<1x512x32xf32>
    %395 = vector.shape_cast %394 : vector<1x512x32xf32> to vector<512x32xf32>
    %cst_186 = arith.constant dense<0.000000e+00> : vector<16x32xf32>
    %396 = tpu.matmul %393, %395, %cst_186 {dimension_numbers = #tpu.dot_dimension_numbers<[1], [0], [0], [1], [0, 0, 1, 1], [], []>} : vector<16x512xf32>, vector<512x32xf32>, vector<16x32xf32> -> vector<16x32xf32>
    %c2_187 = arith.constant 2 : index
    %c0_188 = arith.constant 0 : index
    %c0_189 = arith.constant 0 : index
    %397 = vector.load %arg10[%c2_187, %c0_188, %c0_189] : memref<4x16x32xf32, #tpu.memory_space<vmem>>, vector<1x16x32xf32>
    %398 = vector.shape_cast %397 : vector<1x16x32xf32> to vector<16x32xf32>
    %399 = arith.addf %396, %398 : vector<16x32xf32>
    %400 = arith.addf %385, %399 : vector<16x32xf32>
    %c2_190 = arith.constant 2 : index
    %c0_191 = arith.constant 0 : index
    %c0_192 = arith.constant 0 : index
    %401 = vector.load %arg13[%c2_190, %c0_191, %c0_192] : memref<4x16x32xf32, #tpu.memory_space<vmem>>, vector<1x16x32xf32>
    %402 = vector.shape_cast %401 : vector<1x16x32xf32> to vector<16x32xf32>
    %c2_193 = arith.constant 2 : index
    %c0_194 = arith.constant 0 : index
    %c0_195 = arith.constant 0 : index
    %403 = vector.load %arg14[%c2_193, %c0_194, %c0_195] : memref<4x16x32xf32, #tpu.memory_space<vmem>>, vector<1x16x32xf32>
    %404 = vector.shape_cast %403 : vector<1x16x32xf32> to vector<16x32xf32>
    %cst_196 = arith.constant dense<0.000000e+00> : vector<16xf32>
    %405 = vector.multi_reduction <add>, %400, %cst_196 [1] : vector<16x32xf32> to vector<16xf32>
    %406 = vector.shape_cast %405 : vector<16xf32> to vector<16x1xf32>
    %cst_197 = arith.constant 3.200000e+01 : f32
    %407 = vector.broadcast %cst_197 : f32 to vector<16x1xf32>
    %408 = arith.divf %406, %407 : vector<16x1xf32>
    %409 = vector.broadcast %408 : vector<16x1xf32> to vector<16x32xf32>
    %410 = arith.subf %400, %409 : vector<16x32xf32>
    %411 = arith.mulf %410, %410 : vector<16x32xf32>
    %cst_198 = arith.constant dense<0.000000e+00> : vector<16xf32>
    %412 = vector.multi_reduction <add>, %411, %cst_198 [1] : vector<16x32xf32> to vector<16xf32>
    %413 = vector.shape_cast %412 : vector<16xf32> to vector<16x1xf32>
    %cst_199 = arith.constant 3.200000e+01 : f32
    %414 = vector.broadcast %cst_199 : f32 to vector<16x1xf32>
    %415 = arith.divf %413, %414 : vector<16x1xf32>
    %416 = vector.broadcast %408 : vector<16x1xf32> to vector<16x32xf32>
    %417 = arith.subf %400, %416 : vector<16x32xf32>
    %cst_200 = arith.constant 9.99999974E-6 : f32
    %418 = vector.broadcast %cst_200 : f32 to vector<16x1xf32>
    %419 = arith.addf %415, %418 : vector<16x1xf32>
    %420 = math.rsqrt %419 : vector<16x1xf32>
    %421 = vector.broadcast %420 : vector<16x1xf32> to vector<16x32xf32>
    %422 = arith.mulf %417, %421 : vector<16x32xf32>
    %423 = arith.mulf %422, %402 : vector<16x32xf32>
    %424 = arith.addf %423, %404 : vector<16x32xf32>
    %c3 = arith.constant 3 : index
    %c0_201 = arith.constant 0 : index
    %c0_202 = arith.constant 0 : index
    %425 = vector.load %arg3[%c3, %c0_201, %c0_202] : memref<4x32x96xf32, #tpu.memory_space<vmem>>, vector<1x32x96xf32>
    %426 = vector.shape_cast %425 : vector<1x32x96xf32> to vector<32x96xf32>
    %cst_203 = arith.constant dense<0.000000e+00> : vector<16x96xf32>
    %427 = tpu.matmul %424, %426, %cst_203 {dimension_numbers = #tpu.dot_dimension_numbers<[1], [0], [0], [1], [0, 0, 1, 1], [], []>} : vector<16x32xf32>, vector<32x96xf32>, vector<16x96xf32> -> vector<16x96xf32>
    %c3_204 = arith.constant 3 : index
    %c0_205 = arith.constant 0 : index
    %c0_206 = arith.constant 0 : index
    %428 = vector.load %arg4[%c3_204, %c0_205, %c0_206] : memref<4x16x96xf32, #tpu.memory_space<vmem>>, vector<1x16x96xf32>
    %429 = vector.shape_cast %428 : vector<1x16x96xf32> to vector<16x96xf32>
    %430 = arith.addf %427, %429 : vector<16x96xf32>
    %431 = vector.extract_strided_slice %430 {offsets = [0, 0], sizes = [16, 8], strides = [1, 1]} : vector<16x96xf32> to vector<16x8xf32>
    %432 = vector.extract_strided_slice %430 {offsets = [0, 32], sizes = [16, 8], strides = [1, 1]} : vector<16x96xf32> to vector<16x8xf32>
    %433 = vector.extract_strided_slice %430 {offsets = [0, 64], sizes = [16, 8], strides = [1, 1]} : vector<16x96xf32> to vector<16x8xf32>
    %cst_207 = arith.constant dense<0.000000e+00> : vector<16x16xf32>
    %434 = tpu.matmul %431, %432, %cst_207 {dimension_numbers = #tpu.dot_dimension_numbers<[1], [1], [0], [0], [0, 0, 1, 0], [], []>} : vector<16x8xf32>, vector<16x8xf32>, vector<16x16xf32> -> vector<16x16xf32>
    %435 = arith.addf %434, %1 : vector<16x16xf32>
    %cst_208 = arith.constant dense<0xFF800000> : vector<16xf32>
    %436 = vector.multi_reduction <maximumf>, %435, %cst_208 [1] : vector<16x16xf32> to vector<16xf32>
    %437 = vector.shape_cast %436 : vector<16xf32> to vector<16x1xf32>
    %438 = vector.broadcast %437 : vector<16x1xf32> to vector<16x16xf32>
    %439 = arith.subf %435, %438 : vector<16x16xf32>
    %440 = math.exp %439 : vector<16x16xf32>
    %cst_209 = arith.constant dense<0.000000e+00> : vector<16xf32>
    %441 = vector.multi_reduction <add>, %440, %cst_209 [1] : vector<16x16xf32> to vector<16xf32>
    %442 = vector.shape_cast %441 : vector<16xf32> to vector<16x1xf32>
    %443 = tpu.reciprocal %442 {approx = true} : vector<16x1xf32> -> vector<16x1xf32>
    %444 = vector.broadcast %443 : vector<16x1xf32> to vector<16x16xf32>
    %445 = arith.mulf %440, %444 : vector<16x16xf32>
    %cst_210 = arith.constant dense<0.000000e+00> : vector<16x8xf32>
    %446 = tpu.matmul %445, %433, %cst_210 {dimension_numbers = #tpu.dot_dimension_numbers<[1], [0], [0], [1], [0, 0, 1, 1], [], []>} : vector<16x16xf32>, vector<16x8xf32>, vector<16x8xf32> -> vector<16x8xf32>
    %447 = vector.extract_strided_slice %430 {offsets = [0, 8], sizes = [16, 8], strides = [1, 1]} : vector<16x96xf32> to vector<16x8xf32>
    %448 = vector.extract_strided_slice %430 {offsets = [0, 40], sizes = [16, 8], strides = [1, 1]} : vector<16x96xf32> to vector<16x8xf32>
    %449 = vector.extract_strided_slice %430 {offsets = [0, 72], sizes = [16, 8], strides = [1, 1]} : vector<16x96xf32> to vector<16x8xf32>
    %cst_211 = arith.constant dense<0.000000e+00> : vector<16x16xf32>
    %450 = tpu.matmul %447, %448, %cst_211 {dimension_numbers = #tpu.dot_dimension_numbers<[1], [1], [0], [0], [0, 0, 1, 0], [], []>} : vector<16x8xf32>, vector<16x8xf32>, vector<16x16xf32> -> vector<16x16xf32>
    %451 = arith.addf %450, %1 : vector<16x16xf32>
    %cst_212 = arith.constant dense<0xFF800000> : vector<16xf32>
    %452 = vector.multi_reduction <maximumf>, %451, %cst_212 [1] : vector<16x16xf32> to vector<16xf32>
    %453 = vector.shape_cast %452 : vector<16xf32> to vector<16x1xf32>
    %454 = vector.broadcast %453 : vector<16x1xf32> to vector<16x16xf32>
    %455 = arith.subf %451, %454 : vector<16x16xf32>
    %456 = math.exp %455 : vector<16x16xf32>
    %cst_213 = arith.constant dense<0.000000e+00> : vector<16xf32>
    %457 = vector.multi_reduction <add>, %456, %cst_213 [1] : vector<16x16xf32> to vector<16xf32>
    %458 = vector.shape_cast %457 : vector<16xf32> to vector<16x1xf32>
    %459 = tpu.reciprocal %458 {approx = true} : vector<16x1xf32> -> vector<16x1xf32>
    %460 = vector.broadcast %459 : vector<16x1xf32> to vector<16x16xf32>
    %461 = arith.mulf %456, %460 : vector<16x16xf32>
    %cst_214 = arith.constant dense<0.000000e+00> : vector<16x8xf32>
    %462 = tpu.matmul %461, %449, %cst_214 {dimension_numbers = #tpu.dot_dimension_numbers<[1], [0], [0], [1], [0, 0, 1, 1], [], []>} : vector<16x16xf32>, vector<16x8xf32>, vector<16x8xf32> -> vector<16x8xf32>
    %463 = vector.extract_strided_slice %430 {offsets = [0, 16], sizes = [16, 8], strides = [1, 1]} : vector<16x96xf32> to vector<16x8xf32>
    %464 = vector.extract_strided_slice %430 {offsets = [0, 48], sizes = [16, 8], strides = [1, 1]} : vector<16x96xf32> to vector<16x8xf32>
    %465 = vector.extract_strided_slice %430 {offsets = [0, 80], sizes = [16, 8], strides = [1, 1]} : vector<16x96xf32> to vector<16x8xf32>
    %cst_215 = arith.constant dense<0.000000e+00> : vector<16x16xf32>
    %466 = tpu.matmul %463, %464, %cst_215 {dimension_numbers = #tpu.dot_dimension_numbers<[1], [1], [0], [0], [0, 0, 1, 0], [], []>} : vector<16x8xf32>, vector<16x8xf32>, vector<16x16xf32> -> vector<16x16xf32>
    %467 = arith.addf %466, %1 : vector<16x16xf32>
    %cst_216 = arith.constant dense<0xFF800000> : vector<16xf32>
    %468 = vector.multi_reduction <maximumf>, %467, %cst_216 [1] : vector<16x16xf32> to vector<16xf32>
    %469 = vector.shape_cast %468 : vector<16xf32> to vector<16x1xf32>
    %470 = vector.broadcast %469 : vector<16x1xf32> to vector<16x16xf32>
    %471 = arith.subf %467, %470 : vector<16x16xf32>
    %472 = math.exp %471 : vector<16x16xf32>
    %cst_217 = arith.constant dense<0.000000e+00> : vector<16xf32>
    %473 = vector.multi_reduction <add>, %472, %cst_217 [1] : vector<16x16xf32> to vector<16xf32>
    %474 = vector.shape_cast %473 : vector<16xf32> to vector<16x1xf32>
    %475 = tpu.reciprocal %474 {approx = true} : vector<16x1xf32> -> vector<16x1xf32>
    %476 = vector.broadcast %475 : vector<16x1xf32> to vector<16x16xf32>
    %477 = arith.mulf %472, %476 : vector<16x16xf32>
    %cst_218 = arith.constant dense<0.000000e+00> : vector<16x8xf32>
    %478 = tpu.matmul %477, %465, %cst_218 {dimension_numbers = #tpu.dot_dimension_numbers<[1], [0], [0], [1], [0, 0, 1, 1], [], []>} : vector<16x16xf32>, vector<16x8xf32>, vector<16x8xf32> -> vector<16x8xf32>
    %479 = vector.extract_strided_slice %430 {offsets = [0, 24], sizes = [16, 8], strides = [1, 1]} : vector<16x96xf32> to vector<16x8xf32>
    %480 = vector.extract_strided_slice %430 {offsets = [0, 56], sizes = [16, 8], strides = [1, 1]} : vector<16x96xf32> to vector<16x8xf32>
    %481 = vector.extract_strided_slice %430 {offsets = [0, 88], sizes = [16, 8], strides = [1, 1]} : vector<16x96xf32> to vector<16x8xf32>
    %cst_219 = arith.constant dense<0.000000e+00> : vector<16x16xf32>
    %482 = tpu.matmul %479, %480, %cst_219 {dimension_numbers = #tpu.dot_dimension_numbers<[1], [1], [0], [0], [0, 0, 1, 0], [], []>} : vector<16x8xf32>, vector<16x8xf32>, vector<16x16xf32> -> vector<16x16xf32>
    %483 = arith.addf %482, %1 : vector<16x16xf32>
    %cst_220 = arith.constant dense<0xFF800000> : vector<16xf32>
    %484 = vector.multi_reduction <maximumf>, %483, %cst_220 [1] : vector<16x16xf32> to vector<16xf32>
    %485 = vector.shape_cast %484 : vector<16xf32> to vector<16x1xf32>
    %486 = vector.broadcast %485 : vector<16x1xf32> to vector<16x16xf32>
    %487 = arith.subf %483, %486 : vector<16x16xf32>
    %488 = math.exp %487 : vector<16x16xf32>
    %cst_221 = arith.constant dense<0.000000e+00> : vector<16xf32>
    %489 = vector.multi_reduction <add>, %488, %cst_221 [1] : vector<16x16xf32> to vector<16xf32>
    %490 = vector.shape_cast %489 : vector<16xf32> to vector<16x1xf32>
    %491 = tpu.reciprocal %490 {approx = true} : vector<16x1xf32> -> vector<16x1xf32>
    %492 = vector.broadcast %491 : vector<16x1xf32> to vector<16x16xf32>
    %493 = arith.mulf %488, %492 : vector<16x16xf32>
    %cst_222 = arith.constant dense<0.000000e+00> : vector<16x8xf32>
    %494 = tpu.matmul %493, %481, %cst_222 {dimension_numbers = #tpu.dot_dimension_numbers<[1], [0], [0], [1], [0, 0, 1, 1], [], []>} : vector<16x16xf32>, vector<16x8xf32>, vector<16x8xf32> -> vector<16x8xf32>
    %495 = tpu.concatenate %446, %462, %478, %494 in 1 : vector<16x8xf32>, vector<16x8xf32>, vector<16x8xf32>, vector<16x8xf32> -> vector<16x32xf32>
    %c3_223 = arith.constant 3 : index
    %c0_224 = arith.constant 0 : index
    %c0_225 = arith.constant 0 : index
    %496 = vector.load %arg5[%c3_223, %c0_224, %c0_225] : memref<4x32x32xf32, #tpu.memory_space<vmem>>, vector<1x32x32xf32>
    %497 = vector.shape_cast %496 : vector<1x32x32xf32> to vector<32x32xf32>
    %cst_226 = arith.constant dense<0.000000e+00> : vector<16x32xf32>
    %498 = tpu.matmul %495, %497, %cst_226 {dimension_numbers = #tpu.dot_dimension_numbers<[1], [0], [0], [1], [0, 0, 1, 1], [], []>} : vector<16x32xf32>, vector<32x32xf32>, vector<16x32xf32> -> vector<16x32xf32>
    %c3_227 = arith.constant 3 : index
    %c0_228 = arith.constant 0 : index
    %c0_229 = arith.constant 0 : index
    %499 = vector.load %arg6[%c3_227, %c0_228, %c0_229] : memref<4x16x32xf32, #tpu.memory_space<vmem>>, vector<1x16x32xf32>
    %500 = vector.shape_cast %499 : vector<1x16x32xf32> to vector<16x32xf32>
    %501 = arith.addf %498, %500 : vector<16x32xf32>
    %502 = arith.addf %424, %501 : vector<16x32xf32>
    %c3_230 = arith.constant 3 : index
    %c0_231 = arith.constant 0 : index
    %c0_232 = arith.constant 0 : index
    %503 = vector.load %arg11[%c3_230, %c0_231, %c0_232] : memref<4x16x32xf32, #tpu.memory_space<vmem>>, vector<1x16x32xf32>
    %504 = vector.shape_cast %503 : vector<1x16x32xf32> to vector<16x32xf32>
    %c3_233 = arith.constant 3 : index
    %c0_234 = arith.constant 0 : index
    %c0_235 = arith.constant 0 : index
    %505 = vector.load %arg12[%c3_233, %c0_234, %c0_235] : memref<4x16x32xf32, #tpu.memory_space<vmem>>, vector<1x16x32xf32>
    %506 = vector.shape_cast %505 : vector<1x16x32xf32> to vector<16x32xf32>
    %cst_236 = arith.constant dense<0.000000e+00> : vector<16xf32>
    %507 = vector.multi_reduction <add>, %502, %cst_236 [1] : vector<16x32xf32> to vector<16xf32>
    %508 = vector.shape_cast %507 : vector<16xf32> to vector<16x1xf32>
    %cst_237 = arith.constant 3.200000e+01 : f32
    %509 = vector.broadcast %cst_237 : f32 to vector<16x1xf32>
    %510 = arith.divf %508, %509 : vector<16x1xf32>
    %511 = vector.broadcast %510 : vector<16x1xf32> to vector<16x32xf32>
    %512 = arith.subf %502, %511 : vector<16x32xf32>
    %513 = arith.mulf %512, %512 : vector<16x32xf32>
    %cst_238 = arith.constant dense<0.000000e+00> : vector<16xf32>
    %514 = vector.multi_reduction <add>, %513, %cst_238 [1] : vector<16x32xf32> to vector<16xf32>
    %515 = vector.shape_cast %514 : vector<16xf32> to vector<16x1xf32>
    %cst_239 = arith.constant 3.200000e+01 : f32
    %516 = vector.broadcast %cst_239 : f32 to vector<16x1xf32>
    %517 = arith.divf %515, %516 : vector<16x1xf32>
    %518 = vector.broadcast %510 : vector<16x1xf32> to vector<16x32xf32>
    %519 = arith.subf %502, %518 : vector<16x32xf32>
    %cst_240 = arith.constant 9.99999974E-6 : f32
    %520 = vector.broadcast %cst_240 : f32 to vector<16x1xf32>
    %521 = arith.addf %517, %520 : vector<16x1xf32>
    %522 = math.rsqrt %521 : vector<16x1xf32>
    %523 = vector.broadcast %522 : vector<16x1xf32> to vector<16x32xf32>
    %524 = arith.mulf %519, %523 : vector<16x32xf32>
    %525 = arith.mulf %524, %504 : vector<16x32xf32>
    %526 = arith.addf %525, %506 : vector<16x32xf32>
    %c3_241 = arith.constant 3 : index
    %c0_242 = arith.constant 0 : index
    %c0_243 = arith.constant 0 : index
    %527 = vector.load %arg7[%c3_241, %c0_242, %c0_243] : memref<4x32x512xf32, #tpu.memory_space<vmem>>, vector<1x32x512xf32>
    %528 = vector.shape_cast %527 : vector<1x32x512xf32> to vector<32x512xf32>
    %cst_244 = arith.constant dense<0.000000e+00> : vector<16x512xf32>
    %529 = tpu.matmul %526, %528, %cst_244 {dimension_numbers = #tpu.dot_dimension_numbers<[1], [0], [0], [1], [0, 0, 1, 1], [], []>} : vector<16x32xf32>, vector<32x512xf32>, vector<16x512xf32> -> vector<16x512xf32>
    %c3_245 = arith.constant 3 : index
    %c0_246 = arith.constant 0 : index
    %c0_247 = arith.constant 0 : index
    %530 = vector.load %arg8[%c3_245, %c0_246, %c0_247] : memref<4x16x512xf32, #tpu.memory_space<vmem>>, vector<1x16x512xf32>
    %531 = vector.shape_cast %530 : vector<1x16x512xf32> to vector<16x512xf32>
    %532 = arith.addf %529, %531 : vector<16x512xf32>
    %cst_248 = arith.constant 0.000000e+00 : f32
    %533 = vector.broadcast %cst_248 : f32 to vector<16x512xf32>
    %534 = arith.maximumf %532, %533 : vector<16x512xf32>
    %c3_249 = arith.constant 3 : index
    %c0_250 = arith.constant 0 : index
    %c0_251 = arith.constant 0 : index
    %535 = vector.load %arg9[%c3_249, %c0_250, %c0_251] : memref<4x512x32xf32, #tpu.memory_space<vmem>>, vector<1x512x32xf32>
    %536 = vector.shape_cast %535 : vector<1x512x32xf32> to vector<512x32xf32>
    %cst_252 = arith.constant dense<0.000000e+00> : vector<16x32xf32>
    %537 = tpu.matmul %534, %536, %cst_252 {dimension_numbers = #tpu.dot_dimension_numbers<[1], [0], [0], [1], [0, 0, 1, 1], [], []>} : vector<16x512xf32>, vector<512x32xf32>, vector<16x32xf32> -> vector<16x32xf32>
    %c3_253 = arith.constant 3 : index
    %c0_254 = arith.constant 0 : index
    %c0_255 = arith.constant 0 : index
    %538 = vector.load %arg10[%c3_253, %c0_254, %c0_255] : memref<4x16x32xf32, #tpu.memory_space<vmem>>, vector<1x16x32xf32>
    %539 = vector.shape_cast %538 : vector<1x16x32xf32> to vector<16x32xf32>
    %540 = arith.addf %537, %539 : vector<16x32xf32>
    %541 = arith.addf %526, %540 : vector<16x32xf32>
    %c3_256 = arith.constant 3 : index
    %c0_257 = arith.constant 0 : index
    %c0_258 = arith.constant 0 : index
    %542 = vector.load %arg13[%c3_256, %c0_257, %c0_258] : memref<4x16x32xf32, #tpu.memory_space<vmem>>, vector<1x16x32xf32>
    %543 = vector.shape_cast %542 : vector<1x16x32xf32> to vector<16x32xf32>
    %c3_259 = arith.constant 3 : index
    %c0_260 = arith.constant 0 : index
    %c0_261 = arith.constant 0 : index
    %544 = vector.load %arg14[%c3_259, %c0_260, %c0_261] : memref<4x16x32xf32, #tpu.memory_space<vmem>>, vector<1x16x32xf32>
    %545 = vector.shape_cast %544 : vector<1x16x32xf32> to vector<16x32xf32>
    %cst_262 = arith.constant dense<0.000000e+00> : vector<16xf32>
    %546 = vector.multi_reduction <add>, %541, %cst_262 [1] : vector<16x32xf32> to vector<16xf32>
    %547 = vector.shape_cast %546 : vector<16xf32> to vector<16x1xf32>
    %cst_263 = arith.constant 3.200000e+01 : f32
    %548 = vector.broadcast %cst_263 : f32 to vector<16x1xf32>
    %549 = arith.divf %547, %548 : vector<16x1xf32>
    %550 = vector.broadcast %549 : vector<16x1xf32> to vector<16x32xf32>
    %551 = arith.subf %541, %550 : vector<16x32xf32>
    %552 = arith.mulf %551, %551 : vector<16x32xf32>
    %cst_264 = arith.constant dense<0.000000e+00> : vector<16xf32>
    %553 = vector.multi_reduction <add>, %552, %cst_264 [1] : vector<16x32xf32> to vector<16xf32>
    %554 = vector.shape_cast %553 : vector<16xf32> to vector<16x1xf32>
    %cst_265 = arith.constant 3.200000e+01 : f32
    %555 = vector.broadcast %cst_265 : f32 to vector<16x1xf32>
    %556 = arith.divf %554, %555 : vector<16x1xf32>
    %557 = vector.broadcast %549 : vector<16x1xf32> to vector<16x32xf32>
    %558 = arith.subf %541, %557 : vector<16x32xf32>
    %cst_266 = arith.constant 9.99999974E-6 : f32
    %559 = vector.broadcast %cst_266 : f32 to vector<16x1xf32>
    %560 = arith.addf %556, %559 : vector<16x1xf32>
    %561 = math.rsqrt %560 : vector<16x1xf32>
    %562 = vector.broadcast %561 : vector<16x1xf32> to vector<16x32xf32>
    %563 = arith.mulf %558, %562 : vector<16x32xf32>
    %564 = arith.mulf %563, %543 : vector<16x32xf32>
    %565 = arith.addf %564, %545 : vector<16x32xf32>
    %c0_267 = arith.constant 0 : index
    %c0_268 = arith.constant 0 : index
    %566 = vector.load %arg15[%c0_267, %c0_268] : memref<16x32xf32, #tpu.memory_space<vmem>>, vector<16x32xf32>
    tpu.vector_store %arg15[%c0_267, %c0_268], %565 {strides = array<i32>} : memref<16x32xf32, #tpu.memory_space<vmem>>, vector<16x32xf32>,
    return
  }
  func.func @transform_0(%arg0: i32) -> (i32, i32) {
    %c0_i32 = arith.constant 0 : i32
    %c0_i32_0 = arith.constant 0 : i32
    %c0_i32_1 = arith.constant 0 : i32
    return %c0_i32, %c0_i32_0 : i32, i32
  }
  func.func @transform_1(%arg0: i32) -> (i32, i32) {
    %c0_i32 = arith.constant 0 : i32
    %c0_i32_0 = arith.constant 0 : i32
    %c0_i32_1 = arith.constant 0 : i32
    return %c0_i32, %c0_i32_0 : i32, i32
  }
  func.func @transform_2(%arg0: i32) -> (i32, i32, i32) {
    %c0_i32 = arith.constant 0 : i32
    %c0_i32_0 = arith.constant 0 : i32
    %c0_i32_1 = arith.constant 0 : i32
    %c0_i32_2 = arith.constant 0 : i32
    return %c0_i32, %c0_i32_0, %c0_i32_1 : i32, i32, i32
  }
  func.func @transform_3(%arg0: i32) -> (i32, i32, i32) {
    %c0_i32 = arith.constant 0 : i32
    %c0_i32_0 = arith.constant 0 : i32
    %c0_i32_1 = arith.constant 0 : i32
    %c0_i32_2 = arith.constant 0 : i32
    return %c0_i32, %c0_i32_0, %c0_i32_1 : i32, i32, i32
  }
  func.func @transform_4(%arg0: i32) -> (i32, i32, i32) {
    %c0_i32 = arith.constant 0 : i32
    %c0_i32_0 = arith.constant 0 : i32
    %c0_i32_1 = arith.constant 0 : i32
    %c0_i32_2 = arith.constant 0 : i32
    return %c0_i32, %c0_i32_0, %c0_i32_1 : i32, i32, i32
  }
  func.func @transform_5(%arg0: i32) -> (i32, i32, i32) {
    %c0_i32 = arith.constant 0 : i32
    %c0_i32_0 = arith.constant 0 : i32
    %c0_i32_1 = arith.constant 0 : i32
    %c0_i32_2 = arith.constant 0 : i32
    return %c0_i32, %c0_i32_0, %c0_i32_1 : i32, i32, i32
  }
  func.func @transform_6(%arg0: i32) -> (i32, i32, i32) {
    %c0_i32 = arith.constant 0 : i32
    %c0_i32_0 = arith.constant 0 : i32
    %c0_i32_1 = arith.constant 0 : i32
    %c0_i32_2 = arith.constant 0 : i32
    return %c0_i32, %c0_i32_0, %c0_i32_1 : i32, i32, i32
  }
  func.func @transform_7(%arg0: i32) -> (i32, i32, i32) {
    %c0_i32 = arith.constant 0 : i32
    %c0_i32_0 = arith.constant 0 : i32
    %c0_i32_1 = arith.constant 0 : i32
    %c0_i32_2 = arith.constant 0 : i32
    return %c0_i32, %c0_i32_0, %c0_i32_1 : i32, i32, i32
  }
  func.func @transform_8(%arg0: i32) -> (i32, i32, i32) {
    %c0_i32 = arith.constant 0 : i32
    %c0_i32_0 = arith.constant 0 : i32
    %c0_i32_1 = arith.constant 0 : i32
    %c0_i32_2 = arith.constant 0 : i32
    return %c0_i32, %c0_i32_0, %c0_i32_1 : i32, i32, i32
  }
  func.func @transform_9(%arg0: i32) -> (i32, i32, i32) {
    %c0_i32 = arith.constant 0 : i32
    %c0_i32_0 = arith.constant 0 : i32
    %c0_i32_1 = arith.constant 0 : i32
    %c0_i32_2 = arith.constant 0 : i32
    return %c0_i32, %c0_i32_0, %c0_i32_1 : i32, i32, i32
  }
  func.func @transform_10(%arg0: i32) -> (i32, i32, i32) {
    %c0_i32 = arith.constant 0 : i32
    %c0_i32_0 = arith.constant 0 : i32
    %c0_i32_1 = arith.constant 0 : i32
    %c0_i32_2 = arith.constant 0 : i32
    return %c0_i32, %c0_i32_0, %c0_i32_1 : i32, i32, i32
  }
  func.func @transform_11(%arg0: i32) -> (i32, i32, i32) {
    %c0_i32 = arith.constant 0 : i32
    %c0_i32_0 = arith.constant 0 : i32
    %c0_i32_1 = arith.constant 0 : i32
    %c0_i32_2 = arith.constant 0 : i32
    return %c0_i32, %c0_i32_0, %c0_i32_1 : i32, i32, i32
  }
  func.func @transform_12(%arg0: i32) -> (i32, i32, i32) {
    %c0_i32 = arith.constant 0 : i32
    %c0_i32_0 = arith.constant 0 : i32
    %c0_i32_1 = arith.constant 0 : i32
    %c0_i32_2 = arith.constant 0 : i32
    return %c0_i32, %c0_i32_0, %c0_i32_1 : i32, i32, i32
  }
  func.func @transform_13(%arg0: i32) -> (i32, i32, i32) {
    %c0_i32 = arith.constant 0 : i32
    %c0_i32_0 = arith.constant 0 : i32
    %c0_i32_1 = arith.constant 0 : i32
    %c0_i32_2 = arith.constant 0 : i32
    return %c0_i32, %c0_i32_0, %c0_i32_1 : i32, i32, i32
  }
  func.func @transform_14(%arg0: i32) -> (i32, i32) {
    %c0_i32 = arith.constant 0 : i32
    %c0_i32_0 = arith.constant 0 : i32
    %c0_i32_1 = arith.constant 0 : i32
    return %c0_i32, %c0_i32_0 : i32, i32
  }
}

</mosaic_0001>

<llo_original>
// kernel: transformer_pallas.1
$region0: #{transformer_pallas.1}
  #allocation0 [shape = 'u32[]', space=smem, size = 0x4, offset = 0x4, fixed_abs, tag = 'smem constant byte address 0x4 - core index']
  #allocation1 [shape = 'u32[144,128]{1,0:T(1,128)}', space=vmem, size = 0x12000, scoped, tag = 'internal scratch']
  %s0 = inlined_call_operand.vmem [shape: f32[16,32], index: 0, kind: input, shape index: {}]
  %s1 = inlined_call_operand.vmem [shape: f32[16,16], index: 1, kind: input, shape index: {}]
  %s2 = inlined_call_operand.vmem [shape: f32[4,32,96], index: 2, kind: input, shape index: {}]
  %s3 = inlined_call_operand.vmem [shape: f32[4,16,96], index: 3, kind: input, shape index: {}]
  %s4 = inlined_call_operand.vmem [shape: f32[4,32,32], index: 4, kind: input, shape index: {}]
  %s5 = inlined_call_operand.vmem [shape: f32[4,16,32], index: 5, kind: input, shape index: {}]
  %s6 = inlined_call_operand.vmem [shape: f32[4,32,512], index: 6, kind: input, shape index: {}]
  %s7 = inlined_call_operand.vmem [shape: f32[4,16,512], index: 7, kind: input, shape index: {}]
  %s8 = inlined_call_operand.vmem [shape: f32[4,512,32], index: 8, kind: input, shape index: {}]
  %s9 = inlined_call_operand.vmem [shape: f32[4,16,32], index: 9, kind: input, shape index: {}]
  %s10 = inlined_call_operand.vmem [shape: f32[4,16,32], index: 10, kind: input, shape index: {}]
  %s11 = inlined_call_operand.vmem [shape: f32[4,16,32], index: 11, kind: input, shape index: {}]
  %s12 = inlined_call_operand.vmem [shape: f32[4,16,32], index: 12, kind: input, shape index: {}]
  %s13 = inlined_call_operand.vmem [shape: f32[4,16,32], index: 13, kind: input, shape index: {}]
  %s14 = inlined_call_operand.hbm [shape: f32[16,32], index: 14, kind: output, shape index: {}]
  %s15 = sld [smem:[#allocation0]]
  $region66: #{transformer_pallas.1} parent=0
    _
  %s17 = ssub.s32 1, %s15
  %s18 = scalar_select 0, %s17, %s15
  $region1: #{transformer_pallas.1} parent=0
    #allocation2 [shape = 'u8[8192]{0}', space=vmem, size = 0x2000, scoped, tag = 'output window, operand 0, single buffered']
    #allocation3 [shape = 's32[1]{0}', space=sflag, size = 0x4, scoped, tag = 'scoped memory for transformer_pallas.1']
    %19 = vsyncpa [#allocation3], 0
    // Predicated region
    $region2: #{transformer_pallas.1} parent=1 // pred_check
      _
    $region3: #{transformer_pallas.1} parent=1 // pred_check_branch
      %21 = sbr.rel (0) target = $region5
    $region4: #{transformer_pallas.1} parent=1 // pred_region
      _
    $region5: #{transformer_pallas.1} parent=1 // pred_fallthru
      _
    // Predicated region
    $region6: #{transformer_pallas.1} parent=1 // pred_check
      _
    $region7: #{transformer_pallas.1} parent=1 // pred_check_branch
      %23 = sbr.rel (0) target = $region9
    $region8: #{transformer_pallas.1} parent=1 // pred_region
      _
    $region9: #{transformer_pallas.1} parent=1 // pred_fallthru
      _
    // Predicated region
    $region10: #{transformer_pallas.1} parent=1 // pred_check
      _
    $region11: #{transformer_pallas.1} parent=1 // pred_check_branch
      %25 = sbr.rel (0) target = $region13
    $region12: #{transformer_pallas.1} parent=1 // pred_region
      _
    $region13: #{transformer_pallas.1} parent=1 // pred_fallthru
      _
    // Predicated region
    $region14: #{transformer_pallas.1} parent=1 // pred_check
      _
    $region15: #{transformer_pallas.1} parent=1 // pred_check_branch
      %27 = sbr.rel (0) target = $region17
    $region16: #{transformer_pallas.1} parent=1 // pred_region
      _
    $region17: #{transformer_pallas.1} parent=1 // pred_fallthru
      _
    // Predicated region
    $region18: #{transformer_pallas.1} parent=1 // pred_check
      _
    $region19: #{transformer_pallas.1} parent=1 // pred_check_branch
      %29 = sbr.rel (0) target = $region21
    $region20: #{transformer_pallas.1} parent=1 // pred_region
      _
    $region21: #{transformer_pallas.1} parent=1 // pred_fallthru
      _
    // Predicated region
    $region22: #{transformer_pallas.1} parent=1 // pred_check
      _
    $region23: #{transformer_pallas.1} parent=1 // pred_check_branch
      %31 = sbr.rel (0) target = $region25
    $region24: #{transformer_pallas.1} parent=1 // pred_region
      _
    $region25: #{transformer_pallas.1} parent=1 // pred_fallthru
      _
    // Predicated region
    $region26: #{transformer_pallas.1} parent=1 // pred_check
      _
    $region27: #{transformer_pallas.1} parent=1 // pred_check_branch
      %33 = sbr.rel (0) target = $region29
    $region28: #{transformer_pallas.1} parent=1 // pred_region
      _
    $region29: #{transformer_pallas.1} parent=1 // pred_fallthru
      _
    // Predicated region
    $region30: #{transformer_pallas.1} parent=1 // pred_check
      _
    $region31: #{transformer_pallas.1} parent=1 // pred_check_branch
      %35 = sbr.rel (0) target = $region33
    $region32: #{transformer_pallas.1} parent=1 // pred_region
      _
    $region33: #{transformer_pallas.1} parent=1 // pred_fallthru
      _
    // Predicated region
    $region34: #{transformer_pallas.1} parent=1 // pred_check
      _
    $region35: #{transformer_pallas.1} parent=1 // pred_check_branch
      %37 = sbr.rel (0) target = $region37
    $region36: #{transformer_pallas.1} parent=1 // pred_region
      _
    $region37: #{transformer_pallas.1} parent=1 // pred_fallthru
      _
    // Predicated region
    $region38: #{transformer_pallas.1} parent=1 // pred_check
      _
    $region39: #{transformer_pallas.1} parent=1 // pred_check_branch
      %39 = sbr.rel (0) target = $region41
    $region40: #{transformer_pallas.1} parent=1 // pred_region
      _
    $region41: #{transformer_pallas.1} parent=1 // pred_fallthru
      _
    // Predicated region
    $region42: #{transformer_pallas.1} parent=1 // pred_check
      _
    $region43: #{transformer_pallas.1} parent=1 // pred_check_branch
      %41 = sbr.rel (0) target = $region45
    $region44: #{transformer_pallas.1} parent=1 // pred_region
      _
    $region45: #{transformer_pallas.1} parent=1 // pred_fallthru
      _
    // Predicated region
    $region46: #{transformer_pallas.1} parent=1 // pred_check
      _
    $region47: #{transformer_pallas.1} parent=1 // pred_check_branch
      %43 = sbr.rel (0) target = $region49
    $region48: #{transformer_pallas.1} parent=1 // pred_region
      _
    $region49: #{transformer_pallas.1} parent=1 // pred_fallthru
      _
    // Predicated region
    $region50: #{transformer_pallas.1} parent=1 // pred_check
      _
    $region51: #{transformer_pallas.1} parent=1 // pred_check_branch
      %45 = sbr.rel (0) target = $region53
    $region52: #{transformer_pallas.1} parent=1 // pred_region
      _
    $region53: #{transformer_pallas.1} parent=1 // pred_fallthru
      _
    // Predicated region
    $region54: #{transformer_pallas.1} parent=1 // pred_check
      _
    $region55: #{transformer_pallas.1} parent=1 // pred_check_branch
      %47 = sbr.rel (0) target = $region57
    $region56: #{transformer_pallas.1} parent=1 // pred_region
      _
    $region57: #{transformer_pallas.1} parent=1 // pred_fallthru
      _
    %v48 = vld [vmem:[%s0] sm:$0xff]
    %v49 = vld [vmem:[%s0 + $0x8] sm:$0xff]
    %v50 = vld [vmem:[%s1] sm:$0xff]
    %v51 = vld [vmem:[%s1 + $0x8] sm:$0xff]
    %v52 = vld [vmem:[%s2] sm:$0xff]
    %v53 = vld [vmem:[%s2 + $0x8] sm:$0xff]
    %v54 = vld [vmem:[%s2 + $0x10] sm:$0xff]
    %v55 = vld [vmem:[%s2 + $0x18] sm:$0xff]
    %v56 = vld [vmem:[%s3] sm:$0xff]
    %v57 = vld [vmem:[%s3 + $0x8] sm:$0xff]
    %vm58 = vcmask 261120
    %v60 = vsel %vm58, %v48, 0
    %v63 = vsel %vm58, %v49, 0
    %65 = vmatprep.subr.mxu0 0.0
    %66 = vmatpush1.msra.mxu0 0.0
    %67 = vmatprep.subr.mxu0 0.0
    %68 = vmatpush1.msra.mxu0 0.0
    %69 = vmatprep.subr.mxu0 0.0
    %70 = vmatpush1.msra.mxu0 0.0
    %71 = vmatprep.subr.mxu0 0.0
    %72 = vmatpush1.msra.mxu0 0.0
    %73 = vmatprep.subr.mxu0 0.0
    %74 = vmatpush1.msra.mxu0 0.0
    %75 = vmatprep.subr.mxu0 0.0
    %76 = vmatpush1.msra.mxu0 0.0
    %77 = vmatprep.subr.mxu0 0.0
    %78 = vmatpush1.msra.mxu0 0.0
    %79 = vmatprep.subr.mxu0 0.0
    %80 = vmatpush1.msra.mxu0 0.0
    %81 = vmatprep.subr.mxu0 0.0
    %82 = vmatpush1.msra.mxu0 0.0
    %83 = vmatprep.subr.mxu0 0.0
    %84 = vmatpush1.msra.mxu0 0.0
    %85 = vmatprep.subr.mxu0 0.0
    %86 = vmatpush1.msra.mxu0 0.0
    %87 = vmatprep.subr.mxu0 0.0
    %88 = vmatpush1.msra.mxu0 0.0
    %89 = vmatprep.subr.mxu0 0.0
    %90 = vmatpush1.msra.mxu0 %v55
    %91 = vmatprep.subr.mxu0 0.0
    %92 = vmatpush1.msra.mxu0 %v54
    %93 = vmatprep.subr.mxu0 0.0
    %94 = vmatpush1.msra.mxu0 %v53
    %95 = vmatprep.subr.mxu0 0.0
    %96 = vmatpush1.msra.mxu0 %v52
    %97 = vmatprep.subr.mxu0 0.0
    %98 = vmatpush2.msra.mxu0 0.0
    %99 = vmatprep.subr.mxu0 0.0
    %100 = vmatpush2.msra.mxu0 0.0
    %101 = vmatprep.subr.mxu0 0.0
    %102 = vmatpush2.msra.mxu0 0.0
    %103 = vmatprep.subr.mxu0 0.0
    %104 = vmatpush2.msra.mxu0 0.0
    %105 = vmatprep.subr.mxu0 0.0
    %106 = vmatpush2.msra.mxu0 0.0
    %107 = vmatprep.subr.mxu0 0.0
    %108 = vmatpush2.msra.mxu0 0.0
    %109 = vmatprep.subr.mxu0 0.0
    %110 = vmatpush2.msra.mxu0 0.0
    %111 = vmatprep.subr.mxu0 0.0
    %112 = vmatpush2.msra.mxu0 0.0
    %113 = vmatprep.subr.mxu0 0.0
    %114 = vmatpush2.msra.mxu0 0.0
    %115 = vmatprep.subr.mxu0 0.0
    %116 = vmatpush2.msra.mxu0 0.0
    %117 = vmatprep.subr.mxu0 0.0
    %118 = vmatpush2.msra.mxu0 0.0
    %119 = vmatprep.subr.mxu0 0.0
    %120 = vmatpush2.msra.mxu0 0.0
    %121 = vmatprep.subr.mxu0 0.0
    %122 = vmatpush2.msra.mxu0 0.0
    %123 = vmatprep.subr.mxu0 0.0
    %124 = vmatpush2.msra.mxu0 0.0
    %125 = vmatprep.subr.mxu0 0.0
    %126 = vmatpush2.msra.mxu0 0.0
    %127 = vmatprep.subr.mxu0 0.0
    %128 = vmatpush2.msra.mxu0 0.0
    %129 = vmatprep.mubr.f32.mxu0 0.0
    %130 = vmatmul.mubr.f32.gmra.mxu0 %v60
    %v131 = vpop.f32.mrf.mxu0
    %v132 = vadd.f32 %v56, %v131
    %v133 = vpop.f32.mrf.mxu0
    %134 = vmatprep.mubr.f32.mxu0 0.0
    %135 = vmatmul.mubr.f32.gmra.mxu0 %v63
    %v136 = vpop.f32.mrf.mxu0
    %v137 = vadd.f32 %v57, %v136
    %v138 = vpop.f32.mrf.mxu0
    %139 = vdwg.mxu0
    %142 = vrot.lane.b32.xlu0 %v132, 96
    %v143 = vpop.permute.xlu0 %142
    %144 = vrot.lane.b32.xlu0 %v137, 96
    %v145 = vpop.permute.xlu0 %144
    %vm146 = vcmask 64512
    %v147 = vsel %vm146, %v132, 0
    %v149 = vsel %vm146, %v137, 0
    %v151 = vsel %vm146, %v143, 0
    %v153 = vsel %vm146, %v145, 0
    %155 = vmatprep.subr.mxu0 0.0
    %156 = vmatpush1.xpose.msra.mxu0 0.0
    %157 = vmatprep.subr.mxu0 0.0
    %158 = vmatpush1.xpose.msra.mxu0 0.0
    %159 = vmatprep.subr.mxu0 0.0
    %160 = vmatpush1.xpose.msra.mxu0 0.0
    %161 = vmatprep.subr.mxu0 0.0
    %162 = vmatpush1.xpose.msra.mxu0 0.0
    %163 = vmatprep.subr.mxu0 0.0
    %164 = vmatpush1.xpose.msra.mxu0 0.0
    %165 = vmatprep.subr.mxu0 0.0
    %166 = vmatpush1.xpose.msra.mxu0 0.0
    %167 = vmatprep.subr.mxu0 0.0
    %168 = vmatpush1.xpose.msra.mxu0 0.0
    %169 = vmatprep.subr.mxu0 0.0
    %170 = vmatpush1.xpose.msra.mxu0 0.0
    %171 = vmatprep.subr.mxu0 0.0
    %172 = vmatpush1.xpose.msra.mxu0 0.0
    %173 = vmatprep.subr.mxu0 0.0
    %174 = vmatpush1.xpose.msra.mxu0 0.0
    %175 = vmatprep.subr.mxu0 0.0
    %176 = vmatpush1.xpose.msra.mxu0 0.0
    %177 = vmatprep.subr.mxu0 0.0
    %178 = vmatpush1.xpose.msra.mxu0 0.0
    %179 = vmatprep.subr.mxu0 0.0
    %180 = vmatpush1.xpose.msra.mxu0 0.0
    %181 = vmatprep.subr.mxu0 0.0
    %182 = vmatpush1.xpose.msra.mxu0 0.0
    %183 = vmatprep.subr.mxu0 0.0
    %184 = vmatpush1.xpose.msra.mxu0 %v153
    %185 = vmatprep.subr.mxu0 0.0
    %186 = vmatpush1.xpose.msra.mxu0 %v151
    %187 = vmatprep.subr.mxu0 0.0
    %188 = vmatpush2.xpose.msra.mxu0 0.0
    %189 = vmatprep.subr.mxu0 0.0
    %190 = vmatpush2.xpose.msra.mxu0 0.0
    %191 = vmatprep.subr.mxu0 0.0
    %192 = vmatpush2.xpose.msra.mxu0 0.0
    %193 = vmatprep.subr.mxu0 0.0
    %194 = vmatpush2.xpose.msra.mxu0 0.0
    %195 = vmatprep.subr.mxu0 0.0
    %196 = vmatpush2.xpose.msra.mxu0 0.0
    %197 = vmatprep.subr.mxu0 0.0
    %198 = vmatpush2.xpose.msra.mxu0 0.0
    %199 = vmatprep.subr.mxu0 0.0
    %200 = vmatpush2.xpose.msra.mxu0 0.0
    %201 = vmatprep.subr.mxu0 0.0
    %202 = vmatpush2.xpose.msra.mxu0 0.0
    %203 = vmatprep.subr.mxu0 0.0
    %204 = vmatpush2.xpose.msra.mxu0 0.0
    %205 = vmatprep.subr.mxu0 0.0
    %206 = vmatpush2.xpose.msra.mxu0 0.0
    %207 = vmatprep.subr.mxu0 0.0
    %208 = vmatpush2.xpose.msra.mxu0 0.0
    %209 = vmatprep.subr.mxu0 0.0
    %210 = vmatpush2.xpose.msra.mxu0 0.0
    %211 = vmatprep.subr.mxu0 0.0
    %212 = vmatpush2.xpose.msra.mxu0 0.0
    %213 = vmatprep.subr.mxu0 0.0
    %214 = vmatpush2.xpose.msra.mxu0 0.0
    %215 = vmatprep.subr.mxu0 0.0
    %216 = vmatpush2.xpose.msra.mxu0 0.0
    %217 = vmatprep.subr.mxu0 0.0
    %218 = vmatpush2.xpose.msra.mxu0 0.0
    %219 = vmatprep.mubr.f32.mxu0 0.0
    %220 = vmatmul.mubr.f32.gmra.mxu0 %v147
    %v221 = vpop.f32.mrf.mxu0
    %v222 = vadd.f32 %v50, %v221
    %v223 = vpop.f32.mrf.mxu0
    %224 = vmatprep.mubr.f32.mxu0 0.0
    %225 = vmatmul.mubr.f32.gmra.mxu0 %v149
    %v226 = vpop.f32.mrf.mxu0
    %v227 = vadd.f32 %v51, %v226
    %v228 = vpop.f32.mrf.mxu0
    %229 = vdwg.mxu0
    %vm230 = vcmask 130048
    %v231 = vsel %vm230, %v222, -inf
    %232 = vmax.xlane.f32.xlu0 %v231
    %v233 = vpop.xlane.xlu0 %232
    %v234 = vsel %vm230, %v227, -inf
    %235 = vmax.xlane.f32.xlu0 %v234
    %v236 = vpop.xlane.xlu0 %235
    %v237 = vsub.f32 %v222, %v233
    %v238 = vsub.f32 %v227, %v236
    %v239 = vmul.f32 %v237, 1.442695
    %v240 = vpow.pop %v239
    %v241 = vmul.f32 %v238, 1.442695
    %v242 = vpow.pop %v241
    %v243 = vsel %vm230, %v240, 0.0
    %244 = vadd.xlane.f32.xlu0 %v243
    %v245 = vpop.xlane.xlu0 %244
    %v246 = vsel %vm230, %v242, 0.0
    %247 = vadd.xlane.f32.xlu0 %v246
    %v248 = vpop.xlane.xlu0 %247
    %v249 = vrcp.pop %v245
    %v250 = vrcp.pop %v248
    %v251 = vmul.f32 %v240, %v249
    %v252 = vmul.f32 %v242, %v250
    %253 = vrot.lane.b32.xlu0 %v132, 64
    %v254 = vpop.permute.xlu0 %253
    %255 = vrot.lane.b32.xlu0 %v137, 64
    %v256 = vpop.permute.xlu0 %255
    %v260 = vsel %vm230, %v251, 0
    %v263 = vsel %vm230, %v252, 0
    %265 = vmatprep.subr.mxu0 0.0
    %266 = vmatpush1.msra.mxu0 0.0
    %267 = vmatprep.subr.mxu0 0.0
    %268 = vmatpush1.msra.mxu0 0.0
    %269 = vmatprep.subr.mxu0 0.0
    %270 = vmatpush1.msra.mxu0 0.0
    %271 = vmatprep.subr.mxu0 0.0
    %272 = vmatpush1.msra.mxu0 0.0
    %273 = vmatprep.subr.mxu0 0.0
    %274 = vmatpush1.msra.mxu0 0.0
    %275 = vmatprep.subr.mxu0 0.0
    %276 = vmatpush1.msra.mxu0 0.0
    %277 = vmatprep.subr.mxu0 0.0
    %278 = vmatpush1.msra.mxu0 0.0
    %279 = vmatprep.subr.mxu0 0.0
    %280 = vmatpush1.msra.mxu0 0.0
    %281 = vmatprep.subr.mxu0 0.0
    %282 = vmatpush1.msra.mxu0 0.0
    %283 = vmatprep.subr.mxu0 0.0
    %284 = vmatpush1.msra.mxu0 0.0
    %285 = vmatprep.subr.mxu0 0.0
    %286 = vmatpush1.msra.mxu0 0.0
    %287 = vmatprep.subr.mxu0 0.0
    %288 = vmatpush1.msra.mxu0 0.0
    %289 = vmatprep.subr.mxu0 0.0
    %290 = vmatpush1.msra.mxu0 0.0
    %291 = vmatprep.subr.mxu0 0.0
    %292 = vmatpush1.msra.mxu0 0.0
    %293 = vmatprep.subr.mxu0 0.0
    %294 = vmatpush1.msra.mxu0 %v256
    %295 = vmatprep.subr.mxu0 0.0
    %296 = vmatpush1.msra.mxu0 %v254
    %297 = vmatprep.subr.mxu0 0.0
    %298 = vmatpush2.msra.mxu0 0.0
    %299 = vmatprep.subr.mxu0 0.0
    %300 = vmatpush2.msra.mxu0 0.0
    %301 = vmatprep.subr.mxu0 0.0
    %302 = vmatpush2.msra.mxu0 0.0
    %303 = vmatprep.subr.mxu0 0.0
    %304 = vmatpush2.msra.mxu0 0.0
    %305 = vmatprep.subr.mxu0 0.0
    %306 = vmatpush2.msra.mxu0 0.0
    %307 = vmatprep.subr.mxu0 0.0
    %308 = vmatpush2.msra.mxu0 0.0
    %309 = vmatprep.subr.mxu0 0.0
    %310 = vmatpush2.msra.mxu0 0.0
    %311 = vmatprep.subr.mxu0 0.0
    %312 = vmatpush2.msra.mxu0 0.0
    %313 = vmatprep.subr.mxu0 0.0
    %314 = vmatpush2.msra.mxu0 0.0
    %315 = vmatprep.subr.mxu0 0.0
    %316 = vmatpush2.msra.mxu0 0.0
    %317 = vmatprep.subr.mxu0 0.0
    %318 = vmatpush2.msra.mxu0 0.0
    %319 = vmatprep.subr.mxu0 0.0
    %320 = vmatpush2.msra.mxu0 0.0
    %321 = vmatprep.subr.mxu0 0.0
    %322 = vmatpush2.msra.mxu0 0.0
    %323 = vmatprep.subr.mxu0 0.0
    %324 = vmatpush2.msra.mxu0 0.0
    %325 = vmatprep.subr.mxu0 0.0
    %326 = vmatpush2.msra.mxu0 0.0
    %327 = vmatprep.subr.mxu0 0.0
    %328 = vmatpush2.msra.mxu0 0.0
    %329 = vmatprep.mubr.f32.mxu0 0.0
    %330 = vmatmul.mubr.f32.gmra.mxu0 %v260
    %v331 = vpop.f32.mrf.mxu0
    %v332 = vadd.f32 0.0, %v331
    %v333 = vpop.f32.mrf.mxu0
    %334 = vmatprep.mubr.f32.mxu0 0.0
    %335 = vmatmul.mubr.f32.gmra.mxu0 %v263
    %v336 = vpop.f32.mrf.mxu0
    %v337 = vadd.f32 0.0, %v336
    %v338 = vpop.f32.mrf.mxu0
    %339 = vdwg.mxu0
    %340 = vrot.lane.b32.xlu0 %v132, 120
    %v341 = vpop.permute.xlu0 %340
    %342 = vrot.lane.b32.xlu0 %v137, 120
    %v343 = vpop.permute.xlu0 %342
    %344 = vrot.lane.b32.xlu0 %v132, 88
    %v345 = vpop.permute.xlu0 %344
    %346 = vrot.lane.b32.xlu0 %v137, 88
    %v347 = vpop.permute.xlu0 %346
    %v348 = vsel %vm146, %v341, 0
    %v350 = vsel %vm146, %v343, 0
    %v352 = vsel %vm146, %v345, 0
    %v354 = vsel %vm146, %v347, 0
    %356 = vmatprep.subr.mxu0 0.0
    %357 = vmatpush1.xpose.msra.mxu0 0.0
    %358 = vmatprep.subr.mxu0 0.0
    %359 = vmatpush1.xpose.msra.mxu0 0.0
    %360 = vmatprep.subr.mxu0 0.0
    %361 = vmatpush1.xpose.msra.mxu0 0.0
    %362 = vmatprep.subr.mxu0 0.0
    %363 = vmatpush1.xpose.msra.mxu0 0.0
    %364 = vmatprep.subr.mxu0 0.0
    %365 = vmatpush1.xpose.msra.mxu0 0.0
    %366 = vmatprep.subr.mxu0 0.0
    %367 = vmatpush1.xpose.msra.mxu0 0.0
    %368 = vmatprep.subr.mxu0 0.0
    %369 = vmatpush1.xpose.msra.mxu0 0.0
    %370 = vmatprep.subr.mxu0 0.0
    %371 = vmatpush1.xpose.msra.mxu0 0.0
    %372 = vmatprep.subr.mxu0 0.0
    %373 = vmatpush1.xpose.msra.mxu0 0.0
    %374 = vmatprep.subr.mxu0 0.0
    %375 = vmatpush1.xpose.msra.mxu0 0.0
    %376 = vmatprep.subr.mxu0 0.0
    %377 = vmatpush1.xpose.msra.mxu0 0.0
    %378 = vmatprep.subr.mxu0 0.0
    %379 = vmatpush1.xpose.msra.mxu0 0.0
    %380 = vmatprep.subr.mxu0 0.0
    %381 = vmatpush1.xpose.msra.mxu0 0.0
    %382 = vmatprep.subr.mxu0 0.0
    %383 = vmatpush1.xpose.msra.mxu0 0.0
    %384 = vmatprep.subr.mxu0 0.0
    %385 = vmatpush1.xpose.msra.mxu0 %v354
    %386 = vmatprep.subr.mxu0 0.0
    %387 = vmatpush1.xpose.msra.mxu0 %v352
    %388 = vmatprep.subr.mxu0 0.0
    %389 = vmatpush2.xpose.msra.mxu0 0.0
    %390 = vmatprep.subr.mxu0 0.0
    %391 = vmatpush2.xpose.msra.mxu0 0.0
    %392 = vmatprep.subr.mxu0 0.0
    %393 = vmatpush2.xpose.msra.mxu0 0.0
    %394 = vmatprep.subr.mxu0 0.0
    %395 = vmatpush2.xpose.msra.mxu0 0.0
    %396 = vmatprep.subr.mxu0 0.0
    %397 = vmatpush2.xpose.msra.mxu0 0.0
    %398 = vmatprep.subr.mxu0 0.0
    %399 = vmatpush2.xpose.msra.mxu0 0.0
    %400 = vmatprep.subr.mxu0 0.0
    %401 = vmatpush2.xpose.msra.mxu0 0.0
    %402 = vmatprep.subr.mxu0 0.0
    %403 = vmatpush2.xpose.msra.mxu0 0.0
    %404 = vmatprep.subr.mxu0 0.0
    %405 = vmatpush2.xpose.msra.mxu0 0.0
    %406 = vmatprep.subr.mxu0 0.0
    %407 = vmatpush2.xpose.msra.mxu0 0.0
    %408 = vmatprep.subr.mxu0 0.0
    %409 = vmatpush2.xpose.msra.mxu0 0.0
    %410 = vmatprep.subr.mxu0 0.0
    %411 = vmatpush2.xpose.msra.mxu0 0.0
    %412 = vmatprep.subr.mxu0 0.0
    %413 = vmatpush2.xpose.msra.mxu0 0.0
    %414 = vmatprep.subr.mxu0 0.0
    %415 = vmatpush2.xpose.msra.mxu0 0.0
    %416 = vmatprep.subr.mxu0 0.0
    %417 = vmatpush2.xpose.msra.mxu0 0.0
    %418 = vmatprep.subr.mxu0 0.0
    %419 = vmatpush2.xpose.msra.mxu0 0.0
    %420 = vmatprep.mubr.f32.mxu0 0.0
    %421 = vmatmul.mubr.f32.gmra.mxu0 %v348
    %v422 = vpop.f32.mrf.mxu0
    %v423 = vadd.f32 %v50, %v422
    %v424 = vpop.f32.mrf.mxu0
    %425 = vmatprep.mubr.f32.mxu0 0.0
    %426 = vmatmul.mubr.f32.gmra.mxu0 %v350
    %v427 = vpop.f32.mrf.mxu0
    %v428 = vadd.f32 %v51, %v427
    %v429 = vpop.f32.mrf.mxu0
    %430 = vdwg.mxu0
    %v431 = vsel %vm230, %v423, -inf
    %432 = vmax.xlane.f32.xlu0 %v431
    %v433 = vpop.xlane.xlu0 %432
    %v434 = vsel %vm230, %v428, -inf
    %435 = vmax.xlane.f32.xlu0 %v434
    %v436 = vpop.xlane.xlu0 %435
    %v437 = vsub.f32 %v423, %v433
    %v438 = vsub.f32 %v428, %v436
    %v439 = vmul.f32 %v437, 1.442695
    %v440 = vpow.pop %v439
    %v441 = vmul.f32 %v438, 1.442695
    %v442 = vpow.pop %v441
    %v443 = vsel %vm230, %v440, 0.0
    %444 = vadd.xlane.f32.xlu0 %v443
    %v445 = vpop.xlane.xlu0 %444
    %v446 = vsel %vm230, %v442, 0.0
    %447 = vadd.xlane.f32.xlu0 %v446
    %v448 = vpop.xlane.xlu0 %447
    %v449 = vrcp.pop %v445
    %v450 = vrcp.pop %v448
    %v451 = vmul.f32 %v440, %v449
    %v452 = vmul.f32 %v442, %v450
    %453 = vrot.lane.b32.xlu0 %v132, 56
    %v454 = vpop.permute.xlu0 %453
    %455 = vrot.lane.b32.xlu0 %v137, 56
    %v456 = vpop.permute.xlu0 %455
    %v460 = vsel %vm230, %v451, 0
    %v463 = vsel %vm230, %v452, 0
    %465 = vmatprep.subr.mxu0 0.0
    %466 = vmatpush1.msra.mxu0 0.0
    %467 = vmatprep.subr.mxu0 0.0
    %468 = vmatpush1.msra.mxu0 0.0
    %469 = vmatprep.subr.mxu0 0.0
    %470 = vmatpush1.msra.mxu0 0.0
    %471 = vmatprep.subr.mxu0 0.0
    %472 = vmatpush1.msra.mxu0 0.0
    %473 = vmatprep.subr.mxu0 0.0
    %474 = vmatpush1.msra.mxu0 0.0
    %475 = vmatprep.subr.mxu0 0.0
    %476 = vmatpush1.msra.mxu0 0.0
    %477 = vmatprep.subr.mxu0 0.0
    %478 = vmatpush1.msra.mxu0 0.0
    %479 = vmatprep.subr.mxu0 0.0
    %480 = vmatpush1.msra.mxu0 0.0
    %481 = vmatprep.subr.mxu0 0.0
    %482 = vmatpush1.msra.mxu0 0.0
    %483 = vmatprep.subr.mxu0 0.0
    %484 = vmatpush1.msra.mxu0 0.0
    %485 = vmatprep.subr.mxu0 0.0
    %486 = vmatpush1.msra.mxu0 0.0
    %487 = vmatprep.subr.mxu0 0.0
    %488 = vmatpush1.msra.mxu0 0.0
    %489 = vmatprep.subr.mxu0 0.0
    %490 = vmatpush1.msra.mxu0 0.0
    %491 = vmatprep.subr.mxu0 0.0
    %492 = vmatpush1.msra.mxu0 0.0
    %493 = vmatprep.subr.mxu0 0.0
    %494 = vmatpush1.msra.mxu0 %v456
    %495 = vmatprep.subr.mxu0 0.0
    %496 = vmatpush1.msra.mxu0 %v454
    %497 = vmatprep.subr.mxu0 0.0
    %498 = vmatpush2.msra.mxu0 0.0
    %499 = vmatprep.subr.mxu0 0.0
    %500 = vmatpush2.msra.mxu0 0.0
    %501 = vmatprep.subr.mxu0 0.0
    %502 = vmatpush2.msra.mxu0 0.0
    %503 = vmatprep.subr.mxu0 0.0
    %504 = vmatpush2.msra.mxu0 0.0
    %505 = vmatprep.subr.mxu0 0.0
    %506 = vmatpush2.msra.mxu0 0.0
    %507 = vmatprep.subr.mxu0 0.0
    %508 = vmatpush2.msra.mxu0 0.0
    %509 = vmatprep.subr.mxu0 0.0
    %510 = vmatpush2.msra.mxu0 0.0
    %511 = vmatprep.subr.mxu0 0.0
    %512 = vmatpush2.msra.mxu0 0.0
    %513 = vmatprep.subr.mxu0 0.0
    %514 = vmatpush2.msra.mxu0 0.0
    %515 = vmatprep.subr.mxu0 0.0
    %516 = vmatpush2.msra.mxu0 0.0
    %517 = vmatprep.subr.mxu0 0.0
    %518 = vmatpush2.msra.mxu0 0.0
    %519 = vmatprep.subr.mxu0 0.0
    %520 = vmatpush2.msra.mxu0 0.0
    %521 = vmatprep.subr.mxu0 0.0
    %522 = vmatpush2.msra.mxu0 0.0
    %523 = vmatprep.subr.mxu0 0.0
    %524 = vmatpush2.msra.mxu0 0.0
    %525 = vmatprep.subr.mxu0 0.0
    %526 = vmatpush2.msra.mxu0 0.0
    %527 = vmatprep.subr.mxu0 0.0
    %528 = vmatpush2.msra.mxu0 0.0
    %529 = vmatprep.mubr.f32.mxu0 0.0
    %530 = vmatmul.mubr.f32.gmra.mxu0 %v460
    %v531 = vpop.f32.mrf.mxu0
    %v532 = vadd.f32 0.0, %v531
    %v533 = vpop.f32.mrf.mxu0
    %534 = vmatprep.mubr.f32.mxu0 0.0
    %535 = vmatmul.mubr.f32.gmra.mxu0 %v463
    %v536 = vpop.f32.mrf.mxu0
    %v537 = vadd.f32 0.0, %v536
    %v538 = vpop.f32.mrf.mxu0
    %539 = vdwg.mxu0
    %540 = vrot.lane.b32.xlu0 %v132, 112
    %v541 = vpop.permute.xlu0 %540
    %542 = vrot.lane.b32.xlu0 %v137, 112
    %v543 = vpop.permute.xlu0 %542
    %544 = vrot.lane.b32.xlu0 %v132, 80
    %v545 = vpop.permute.xlu0 %544
    %546 = vrot.lane.b32.xlu0 %v137, 80
    %v547 = vpop.permute.xlu0 %546
    %v548 = vsel %vm146, %v541, 0
    %v550 = vsel %vm146, %v543, 0
    %v552 = vsel %vm146, %v545, 0
    %v554 = vsel %vm146, %v547, 0
    %556 = vmatprep.subr.mxu0 0.0
    %557 = vmatpush1.xpose.msra.mxu0 0.0
    %558 = vmatprep.subr.mxu0 0.0
    %559 = vmatpush1.xpose.msra.mxu0 0.0
    %560 = vmatprep.subr.mxu0 0.0
    %561 = vmatpush1.xpose.msra.mxu0 0.0
    %562 = vmatprep.subr.mxu0 0.0
    %563 = vmatpush1.xpose.msra.mxu0 0.0
    %564 = vmatprep.subr.mxu0 0.0
    %565 = vmatpush1.xpose.msra.mxu0 0.0
    %566 = vmatprep.subr.mxu0 0.0
    %567 = vmatpush1.xpose.msra.mxu0 0.0
    %568 = vmatprep.subr.mxu0 0.0
    %569 = vmatpush1.xpose.msra.mxu0 0.0
    %570 = vmatprep.subr.mxu0 0.0
    %571 = vmatpush1.xpose.msra.mxu0 0.0
    %572 = vmatprep.subr.mxu0 0.0
    %573 = vmatpush1.xpose.msra.mxu0 0.0
    %574 = vmatprep.subr.mxu0 0.0
    %575 = vmatpush1.xpose.msra.mxu0 0.0
    %576 = vmatprep.subr.mxu0 0.0
    %577 = vmatpush1.xpose.msra.mxu0 0.0
    %578 = vmatprep.subr.mxu0 0.0
    %579 = vmatpush1.xpose.msra.mxu0 0.0
    %580 = vmatprep.subr.mxu0 0.0
    %581 = vmatpush1.xpose.msra.mxu0 0.0
    %582 = vmatprep.subr.mxu0 0.0
    %583 = vmatpush1.xpose.msra.mxu0 0.0
    %584 = vmatprep.subr.mxu0 0.0
    %585 = vmatpush1.xpose.msra.mxu0 %v554
    %586 = vmatprep.subr.mxu0 0.0
    %587 = vmatpush1.xpose.msra.mxu0 %v552
    %588 = vmatprep.subr.mxu0 0.0
    %589 = vmatpush2.xpose.msra.mxu0 0.0
    %590 = vmatprep.subr.mxu0 0.0
    %591 = vmatpush2.xpose.msra.mxu0 0.0
    %592 = vmatprep.subr.mxu0 0.0
    %593 = vmatpush2.xpose.msra.mxu0 0.0
    %594 = vmatprep.subr.mxu0 0.0
    %595 = vmatpush2.xpose.msra.mxu0 0.0
    %596 = vmatprep.subr.mxu0 0.0
    %597 = vmatpush2.xpose.msra.mxu0 0.0
    %598 = vmatprep.subr.mxu0 0.0
    %599 = vmatpush2.xpose.msra.mxu0 0.0
    %600 = vmatprep.subr.mxu0 0.0
    %601 = vmatpush2.xpose.msra.mxu0 0.0
    %602 = vmatprep.subr.mxu0 0.0
    %603 = vmatpush2.xpose.msra.mxu0 0.0
    %604 = vmatprep.subr.mxu0 0.0
    %605 = vmatpush2.xpose.msra.mxu0 0.0
    %606 = vmatprep.subr.mxu0 0.0
    %607 = vmatpush2.xpose.msra.mxu0 0.0
    %608 = vmatprep.subr.mxu0 0.0
    %609 = vmatpush2.xpose.msra.mxu0 0.0
    %610 = vmatprep.subr.mxu0 0.0
    %611 = vmatpush2.xpose.msra.mxu0 0.0
    %612 = vmatprep.subr.mxu0 0.0
    %613 = vmatpush2.xpose.msra.mxu0 0.0
    %614 = vmatprep.subr.mxu0 0.0
    %615 = vmatpush2.xpose.msra.mxu0 0.0
    %616 = vmatprep.subr.mxu0 0.0
    %617 = vmatpush2.xpose.msra.mxu0 0.0
    %618 = vmatprep.subr.mxu0 0.0
    %619 = vmatpush2.xpose.msra.mxu0 0.0
    %620 = vmatprep.mubr.f32.mxu0 0.0
    %621 = vmatmul.mubr.f32.gmra.mxu0 %v548
    %v622 = vpop.f32.mrf.mxu0
    %v623 = vadd.f32 %v50, %v622
    %v624 = vpop.f32.mrf.mxu0
    %625 = vmatprep.mubr.f32.mxu0 0.0
    %626 = vmatmul.mubr.f32.gmra.mxu0 %v550
    %v627 = vpop.f32.mrf.mxu0
    %v628 = vadd.f32 %v51, %v627
    %v629 = vpop.f32.mrf.mxu0
    %630 = vdwg.mxu0
    %v631 = vsel %vm230, %v623, -inf
    %632 = vmax.xlane.f32.xlu0 %v631
    %v633 = vpop.xlane.xlu0 %632
    %v634 = vsel %vm230, %v628, -inf
    %635 = vmax.xlane.f32.xlu0 %v634
    %v636 = vpop.xlane.xlu0 %635
    %v637 = vsub.f32 %v623, %v633
    %v638 = vsub.f32 %v628, %v636
    %v639 = vmul.f32 %v637, 1.442695
    %v640 = vpow.pop %v639
    %v641 = vmul.f32 %v638, 1.442695
    %v642 = vpow.pop %v641
    %v643 = vsel %vm230, %v640, 0.0
    %644 = vadd.xlane.f32.xlu0 %v643
    %v645 = vpop.xlane.xlu0 %644
    %v646 = vsel %vm230, %v642, 0.0
    %647 = vadd.xlane.f32.xlu0 %v646
    %v648 = vpop.xlane.xlu0 %647
    %v649 = vrcp.pop %v645
    %v650 = vrcp.pop %v648
    %v651 = vmul.f32 %v640, %v649
    %v652 = vmul.f32 %v642, %v650
    %653 = vrot.lane.b32.xlu0 %v132, 48
    %v654 = vpop.permute.xlu0 %653
    %655 = vrot.lane.b32.xlu0 %v137, 48
    %v656 = vpop.permute.xlu0 %655
    %v660 = vsel %vm230, %v651, 0
    %v663 = vsel %vm230, %v652, 0
    %665 = vmatprep.subr.mxu0 0.0
    %666 = vmatpush1.msra.mxu0 0.0
    %667 = vmatprep.subr.mxu0 0.0
    %668 = vmatpush1.msra.mxu0 0.0
    %669 = vmatprep.subr.mxu0 0.0
    %670 = vmatpush1.msra.mxu0 0.0
    %671 = vmatprep.subr.mxu0 0.0
    %672 = vmatpush1.msra.mxu0 0.0
    %673 = vmatprep.subr.mxu0 0.0
    %674 = vmatpush1.msra.mxu0 0.0
    %675 = vmatprep.subr.mxu0 0.0
    %676 = vmatpush1.msra.mxu0 0.0
    %677 = vmatprep.subr.mxu0 0.0
    %678 = vmatpush1.msra.mxu0 0.0
    %679 = vmatprep.subr.mxu0 0.0
    %680 = vmatpush1.msra.mxu0 0.0
    %681 = vmatprep.subr.mxu0 0.0
    %682 = vmatpush1.msra.mxu0 0.0
    %683 = vmatprep.subr.mxu0 0.0
    %684 = vmatpush1.msra.mxu0 0.0
    %685 = vmatprep.subr.mxu0 0.0
    %686 = vmatpush1.msra.mxu0 0.0
    %687 = vmatprep.subr.mxu0 0.0
    %688 = vmatpush1.msra.mxu0 0.0
    %689 = vmatprep.subr.mxu0 0.0
    %690 = vmatpush1.msra.mxu0 0.0
    %691 = vmatprep.subr.mxu0 0.0
    %692 = vmatpush1.msra.mxu0 0.0
    %693 = vmatprep.subr.mxu0 0.0
    %694 = vmatpush1.msra.mxu0 %v656
    %695 = vmatprep.subr.mxu0 0.0
    %696 = vmatpush1.msra.mxu0 %v654
    %697 = vmatprep.subr.mxu0 0.0
    %698 = vmatpush2.msra.mxu0 0.0
    %699 = vmatprep.subr.mxu0 0.0
    %700 = vmatpush2.msra.mxu0 0.0
    %701 = vmatprep.subr.mxu0 0.0
    %702 = vmatpush2.msra.mxu0 0.0
    %703 = vmatprep.subr.mxu0 0.0
    %704 = vmatpush2.msra.mxu0 0.0
    %705 = vmatprep.subr.mxu0 0.0
    %706 = vmatpush2.msra.mxu0 0.0
    %707 = vmatprep.subr.mxu0 0.0
    %708 = vmatpush2.msra.mxu0 0.0
    %709 = vmatprep.subr.mxu0 0.0
    %710 = vmatpush2.msra.mxu0 0.0
    %711 = vmatprep.subr.mxu0 0.0
    %712 = vmatpush2.msra.mxu0 0.0
    %713 = vmatprep.subr.mxu0 0.0
    %714 = vmatpush2.msra.mxu0 0.0
    %715 = vmatprep.subr.mxu0 0.0
    %716 = vmatpush2.msra.mxu0 0.0
    %717 = vmatprep.subr.mxu0 0.0
    %718 = vmatpush2.msra.mxu0 0.0
    %719 = vmatprep.subr.mxu0 0.0
    %720 = vmatpush2.msra.mxu0 0.0
    %721 = vmatprep.subr.mxu0 0.0
    %722 = vmatpush2.msra.mxu0 0.0
    %723 = vmatprep.subr.mxu0 0.0
    %724 = vmatpush2.msra.mxu0 0.0
    %725 = vmatprep.subr.mxu0 0.0
    %726 = vmatpush2.msra.mxu0 0.0
    %727 = vmatprep.subr.mxu0 0.0
    %728 = vmatpush2.msra.mxu0 0.0
    %729 = vmatprep.mubr.f32.mxu0 0.0
    %730 = vmatmul.mubr.f32.gmra.mxu0 %v660
    %v731 = vpop.f32.mrf.mxu0
    %v732 = vadd.f32 0.0, %v731
    %v733 = vpop.f32.mrf.mxu0
    %734 = vmatprep.mubr.f32.mxu0 0.0
    %735 = vmatmul.mubr.f32.gmra.mxu0 %v663
    %v736 = vpop.f32.mrf.mxu0
    %v737 = vadd.f32 0.0, %v736
    %v738 = vpop.f32.mrf.mxu0
    %739 = vdwg.mxu0
    %740 = vrot.lane.b32.xlu0 %v132, 104
    %v741 = vpop.permute.xlu0 %740
    %742 = vrot.lane.b32.xlu0 %v137, 104
    %v743 = vpop.permute.xlu0 %742
    %744 = vrot.lane.b32.xlu0 %v132, 72
    %v745 = vpop.permute.xlu0 %744
    %746 = vrot.lane.b32.xlu0 %v137, 72
    %v747 = vpop.permute.xlu0 %746
    %v748 = vsel %vm146, %v741, 0
    %v750 = vsel %vm146, %v743, 0
    %v752 = vsel %vm146, %v745, 0
    %v754 = vsel %vm146, %v747, 0
    %756 = vmatprep.subr.mxu0 0.0
    %757 = vmatpush1.xpose.msra.mxu0 0.0
    %758 = vmatprep.subr.mxu0 0.0
    %759 = vmatpush1.xpose.msra.mxu0 0.0
    %760 = vmatprep.subr.mxu0 0.0
    %761 = vmatpush1.xpose.msra.mxu0 0.0
    %762 = vmatprep.subr.mxu0 0.0
    %763 = vmatpush1.xpose.msra.mxu0 0.0
    %764 = vmatprep.subr.mxu0 0.0
    %765 = vmatpush1.xpose.msra.mxu0 0.0
    %766 = vmatprep.subr.mxu0 0.0
    %767 = vmatpush1.xpose.msra.mxu0 0.0
    %768 = vmatprep.subr.mxu0 0.0
    %769 = vmatpush1.xpose.msra.mxu0 0.0
    %770 = vmatprep.subr.mxu0 0.0
    %771 = vmatpush1.xpose.msra.mxu0 0.0
    %772 = vmatprep.subr.mxu0 0.0
    %773 = vmatpush1.xpose.msra.mxu0 0.0
    %774 = vmatprep.subr.mxu0 0.0
    %775 = vmatpush1.xpose.msra.mxu0 0.0
    %776 = vmatprep.subr.mxu0 0.0
    %777 = vmatpush1.xpose.msra.mxu0 0.0
    %778 = vmatprep.subr.mxu0 0.0
    %779 = vmatpush1.xpose.msra.mxu0 0.0
    %780 = vmatprep.subr.mxu0 0.0
    %781 = vmatpush1.xpose.msra.mxu0 0.0
    %782 = vmatprep.subr.mxu0 0.0
    %783 = vmatpush1.xpose.msra.mxu0 0.0
    %784 = vmatprep.subr.mxu0 0.0
    %785 = vmatpush1.xpose.msra.mxu0 %v754
    %786 = vmatprep.subr.mxu0 0.0
    %787 = vmatpush1.xpose.msra.mxu0 %v752
    %788 = vmatprep.subr.mxu0 0.0
    %789 = vmatpush2.xpose.msra.mxu0 0.0
    %790 = vmatprep.subr.mxu0 0.0
    %791 = vmatpush2.xpose.msra.mxu0 0.0
    %792 = vmatprep.subr.mxu0 0.0
    %793 = vmatpush2.xpose.msra.mxu0 0.0
    %794 = vmatprep.subr.mxu0 0.0
    %795 = vmatpush2.xpose.msra.mxu0 0.0
    %796 = vmatprep.subr.mxu0 0.0
    %797 = vmatpush2.xpose.msra.mxu0 0.0
    %798 = vmatprep.subr.mxu0 0.0
    %799 = vmatpush2.xpose.msra.mxu0 0.0
    %800 = vmatprep.subr.mxu0 0.0
    %801 = vmatpush2.xpose.msra.mxu0 0.0
    %802 = vmatprep.subr.mxu0 0.0
    %803 = vmatpush2.xpose.msra.mxu0 0.0
    %804 = vmatprep.subr.mxu0 0.0
    %805 = vmatpush2.xpose.msra.mxu0 0.0
    %806 = vmatprep.subr.mxu0 0.0
    %807 = vmatpush2.xpose.msra.mxu0 0.0
    %808 = vmatprep.subr.mxu0 0.0
    %809 = vmatpush2.xpose.msra.mxu0 0.0
    %810 = vmatprep.subr.mxu0 0.0
    %811 = vmatpush2.xpose.msra.mxu0 0.0
    %812 = vmatprep.subr.mxu0 0.0
    %813 = vmatpush2.xpose.msra.mxu0 0.0
    %814 = vmatprep.subr.mxu0 0.0
    %815 = vmatpush2.xpose.msra.mxu0 0.0
    %816 = vmatprep.subr.mxu0 0.0
    %817 = vmatpush2.xpose.msra.mxu0 0.0
    %818 = vmatprep.subr.mxu0 0.0
    %819 = vmatpush2.xpose.msra.mxu0 0.0
    %820 = vmatprep.mubr.f32.mxu0 0.0
    %821 = vmatmul.mubr.f32.gmra.mxu0 %v748
    %v822 = vpop.f32.mrf.mxu0
    %v823 = vadd.f32 %v50, %v822
    %v824 = vpop.f32.mrf.mxu0
    %825 = vmatprep.mubr.f32.mxu0 0.0
    %826 = vmatmul.mubr.f32.gmra.mxu0 %v750
    %v827 = vpop.f32.mrf.mxu0
    %v828 = vadd.f32 %v51, %v827
    %v829 = vpop.f32.mrf.mxu0
    %830 = vdwg.mxu0
    %v831 = vsel %vm230, %v823, -inf
    %832 = vmax.xlane.f32.xlu0 %v831
    %v833 = vpop.xlane.xlu0 %832
    %v834 = vsel %vm230, %v828, -inf
    %835 = vmax.xlane.f32.xlu0 %v834
    %v836 = vpop.xlane.xlu0 %835
    %v837 = vsub.f32 %v823, %v833
    %v838 = vsub.f32 %v828, %v836
    %v839 = vmul.f32 %v837, 1.442695
    %v840 = vpow.pop %v839
    %v841 = vmul.f32 %v838, 1.442695
    %v842 = vpow.pop %v841
    %v843 = vsel %vm230, %v840, 0.0
    %844 = vadd.xlane.f32.xlu0 %v843
    %v845 = vpop.xlane.xlu0 %844
    %v846 = vsel %vm230, %v842, 0.0
    %847 = vadd.xlane.f32.xlu0 %v846
    %v848 = vpop.xlane.xlu0 %847
    %v849 = vrcp.pop %v845
    %v850 = vrcp.pop %v848
    %v851 = vmul.f32 %v840, %v849
    %v852 = vmul.f32 %v842, %v850
    %853 = vrot.lane.b32.xlu0 %v132, 40
    %v854 = vpop.permute.xlu0 %853
    %855 = vrot.lane.b32.xlu0 %v137, 40
    %v856 = vpop.permute.xlu0 %855
    %v860 = vsel %vm230, %v851, 0
    %v863 = vsel %vm230, %v852, 0
    %865 = vmatprep.subr.mxu0 0.0
    %866 = vmatpush1.msra.mxu0 0.0
    %867 = vmatprep.subr.mxu0 0.0
    %868 = vmatpush1.msra.mxu0 0.0
    %869 = vmatprep.subr.mxu0 0.0
    %870 = vmatpush1.msra.mxu0 0.0
    %871 = vmatprep.subr.mxu0 0.0
    %872 = vmatpush1.msra.mxu0 0.0
    %873 = vmatprep.subr.mxu0 0.0
    %874 = vmatpush1.msra.mxu0 0.0
    %875 = vmatprep.subr.mxu0 0.0
    %876 = vmatpush1.msra.mxu0 0.0
    %877 = vmatprep.subr.mxu0 0.0
    %878 = vmatpush1.msra.mxu0 0.0
    %879 = vmatprep.subr.mxu0 0.0
    %880 = vmatpush1.msra.mxu0 0.0
    %881 = vmatprep.subr.mxu0 0.0
    %882 = vmatpush1.msra.mxu0 0.0
    %883 = vmatprep.subr.mxu0 0.0
    %884 = vmatpush1.msra.mxu0 0.0
    %885 = vmatprep.subr.mxu0 0.0
    %886 = vmatpush1.msra.mxu0 0.0
    %887 = vmatprep.subr.mxu0 0.0
    %888 = vmatpush1.msra.mxu0 0.0
    %889 = vmatprep.subr.mxu0 0.0
    %890 = vmatpush1.msra.mxu0 0.0
    %891 = vmatprep.subr.mxu0 0.0
    %892 = vmatpush1.msra.mxu0 0.0
    %893 = vmatprep.subr.mxu0 0.0
    %894 = vmatpush1.msra.mxu0 %v856
    %895 = vmatprep.subr.mxu0 0.0
    %896 = vmatpush1.msra.mxu0 %v854
    %897 = vmatprep.subr.mxu0 0.0
    %898 = vmatpush2.msra.mxu0 0.0
    %899 = vmatprep.subr.mxu0 0.0
    %900 = vmatpush2.msra.mxu0 0.0
    %901 = vmatprep.subr.mxu0 0.0
    %902 = vmatpush2.msra.mxu0 0.0
    %903 = vmatprep.subr.mxu0 0.0
    %904 = vmatpush2.msra.mxu0 0.0
    %905 = vmatprep.subr.mxu0 0.0
    %906 = vmatpush2.msra.mxu0 0.0
    %907 = vmatprep.subr.mxu0 0.0
    %908 = vmatpush2.msra.mxu0 0.0
    %909 = vmatprep.subr.mxu0 0.0
    %910 = vmatpush2.msra.mxu0 0.0
    %911 = vmatprep.subr.mxu0 0.0
    %912 = vmatpush2.msra.mxu0 0.0
    %913 = vmatprep.subr.mxu0 0.0
    %914 = vmatpush2.msra.mxu0 0.0
    %915 = vmatprep.subr.mxu0 0.0
    %916 = vmatpush2.msra.mxu0 0.0
    %917 = vmatprep.subr.mxu0 0.0
    %918 = vmatpush2.msra.mxu0 0.0
    %919 = vmatprep.subr.mxu0 0.0
    %920 = vmatpush2.msra.mxu0 0.0
    %921 = vmatprep.subr.mxu0 0.0
    %922 = vmatpush2.msra.mxu0 0.0
    %923 = vmatprep.subr.mxu0 0.0
    %924 = vmatpush2.msra.mxu0 0.0
    %925 = vmatprep.subr.mxu0 0.0
    %926 = vmatpush2.msra.mxu0 0.0
    %927 = vmatprep.subr.mxu0 0.0
    %928 = vmatpush2.msra.mxu0 0.0
    %929 = vmatprep.mubr.f32.mxu0 0.0
    %930 = vmatmul.mubr.f32.gmra.mxu0 %v860
    %v931 = vpop.f32.mrf.mxu0
    %v932 = vadd.f32 0.0, %v931
    %v933 = vpop.f32.mrf.mxu0
    %934 = vmatprep.mubr.f32.mxu0 0.0
    %935 = vmatmul.mubr.f32.gmra.mxu0 %v863
    %v936 = vpop.f32.mrf.mxu0
    %v937 = vadd.f32 0.0, %v936
    %v938 = vpop.f32.mrf.mxu0
    %939 = vdwg.mxu0
    %942 = vrot.lane.b32.xlu0 %v532, 8
    %v943 = vpop.permute.xlu0 %942
    %944 = vrot.lane.b32.xlu0 %v537, 8
    %v945 = vpop.permute.xlu0 %944
    %950 = vrot.lane.b32.xlu0 %v732, 16
    %v951 = vpop.permute.xlu0 %950
    %952 = vrot.lane.b32.xlu0 %v737, 16
    %v953 = vpop.permute.xlu0 %952
    %958 = vrot.lane.b32.xlu0 %v932, 24
    %v959 = vpop.permute.xlu0 %958
    %960 = vrot.lane.b32.xlu0 %v937, 24
    %v961 = vpop.permute.xlu0 %960
    %v964 = vsel %vm146, %v332, %v943
    %v965 = vsel %vm146, %v337, %v945
    %v966 = vsel %vm230, %v964, %v951
    %v967 = vsel %vm230, %v965, %v953
    %vm968 = vcmask 195584
    %v969 = vsel %vm968, %v966, %v959
    %v970 = vsel %vm968, %v967, %v961
    %v971 = vld [vmem:[%s4] sm:$0xff]
    %v972 = vld [vmem:[%s4 + $0x8] sm:$0xff]
    %v973 = vld [vmem:[%s4 + $0x10] sm:$0xff]
    %v974 = vld [vmem:[%s4 + $0x18] sm:$0xff]
    %v975 = vld [vmem:[%s5] sm:$0xff]
    %v976 = vld [vmem:[%s5 + $0x8] sm:$0xff]
    %v978 = vsel %vm58, %v969, 0
    %v981 = vsel %vm58, %v970, 0
    %983 = vmatprep.subr.mxu0 0.0
    %984 = vmatpush1.msra.mxu0 0.0
    %985 = vmatprep.subr.mxu0 0.0
    %986 = vmatpush1.msra.mxu0 0.0
    %987 = vmatprep.subr.mxu0 0.0
    %988 = vmatpush1.msra.mxu0 0.0
    %989 = vmatprep.subr.mxu0 0.0
    %990 = vmatpush1.msra.mxu0 0.0
    %991 = vmatprep.subr.mxu0 0.0
    %992 = vmatpush1.msra.mxu0 0.0
    %993 = vmatprep.subr.mxu0 0.0
    %994 = vmatpush1.msra.mxu0 0.0
    %995 = vmatprep.subr.mxu0 0.0
    %996 = vmatpush1.msra.mxu0 0.0
    %997 = vmatprep.subr.mxu0 0.0
    %998 = vmatpush1.msra.mxu0 0.0
    %999 = vmatprep.subr.mxu0 0.0
    %1000 = vmatpush1.msra.mxu0 0.0
    %1001 = vmatprep.subr.mxu0 0.0
    %1002 = vmatpush1.msra.mxu0 0.0
    %1003 = vmatprep.subr.mxu0 0.0
    %1004 = vmatpush1.msra.mxu0 0.0
    %1005 = vmatprep.subr.mxu0 0.0
    %1006 = vmatpush1.msra.mxu0 0.0
    %1007 = vmatprep.subr.mxu0 0.0
    %1008 = vmatpush1.msra.mxu0 %v974
    %1009 = vmatprep.subr.mxu0 0.0
    %1010 = vmatpush1.msra.mxu0 %v973
    %1011 = vmatprep.subr.mxu0 0.0
    %1012 = vmatpush1.msra.mxu0 %v972
    %1013 = vmatprep.subr.mxu0 0.0
    %1014 = vmatpush1.msra.mxu0 %v971
    %1015 = vmatprep.subr.mxu0 0.0
    %1016 = vmatpush2.msra.mxu0 0.0
    %1017 = vmatprep.subr.mxu0 0.0
    %1018 = vmatpush2.msra.mxu0 0.0
    %1019 = vmatprep.subr.mxu0 0.0
    %1020 = vmatpush2.msra.mxu0 0.0
    %1021 = vmatprep.subr.mxu0 0.0
    %1022 = vmatpush2.msra.mxu0 0.0
    %1023 = vmatprep.subr.mxu0 0.0
    %1024 = vmatpush2.msra.mxu0 0.0
    %1025 = vmatprep.subr.mxu0 0.0
    %1026 = vmatpush2.msra.mxu0 0.0
    %1027 = vmatprep.subr.mxu0 0.0
    %1028 = vmatpush2.msra.mxu0 0.0
    %1029 = vmatprep.subr.mxu0 0.0
    %1030 = vmatpush2.msra.mxu0 0.0
    %1031 = vmatprep.subr.mxu0 0.0
    %1032 = vmatpush2.msra.mxu0 0.0
    %1033 = vmatprep.subr.mxu0 0.0
    %1034 = vmatpush2.msra.mxu0 0.0
    %1035 = vmatprep.subr.mxu0 0.0
    %1036 = vmatpush2.msra.mxu0 0.0
    %1037 = vmatprep.subr.mxu0 0.0
    %1038 = vmatpush2.msra.mxu0 0.0
    %1039 = vmatprep.subr.mxu0 0.0
    %1040 = vmatpush2.msra.mxu0 0.0
    %1041 = vmatprep.subr.mxu0 0.0
    %1042 = vmatpush2.msra.mxu0 0.0
    %1043 = vmatprep.subr.mxu0 0.0
    %1044 = vmatpush2.msra.mxu0 0.0
    %1045 = vmatprep.subr.mxu0 0.0
    %1046 = vmatpush2.msra.mxu0 0.0
    %1047 = vmatprep.mubr.f32.mxu0 0.0
    %1048 = vmatmul.mubr.f32.gmra.mxu0 %v978
    %v1049 = vpop.f32.mrf.mxu0
    %v1050 = vadd.f32 %v975, %v1049
    %v1051 = vpop.f32.mrf.mxu0
    %1052 = vmatprep.mubr.f32.mxu0 0.0
    %1053 = vmatmul.mubr.f32.gmra.mxu0 %v981
    %v1054 = vpop.f32.mrf.mxu0
    %v1055 = vadd.f32 %v976, %v1054
    %v1056 = vpop.f32.mrf.mxu0
    %1057 = vdwg.mxu0
    %v1058 = vadd.f32 %v48, %v1050
    %v1059 = vadd.f32 %v49, %v1055
    %v1060 = vld [vmem:[%s10] sm:$0xff]
    %v1061 = vld [vmem:[%s10 + $0x8] sm:$0xff]
    %v1062 = vld [vmem:[%s11] sm:$0xff]
    %v1063 = vld [vmem:[%s11 + $0x8] sm:$0xff]
    %v1064 = vsel %vm58, %v1058, 0.0
    %1065 = vadd.xlane.f32.xlu0 %v1064
    %v1066 = vpop.xlane.xlu0 %1065
    %v1067 = vsel %vm58, %v1059, 0.0
    %1068 = vadd.xlane.f32.xlu0 %v1067
    %v1069 = vpop.xlane.xlu0 %1068
    %v1070 = vrcp.pop 32.0
    %v1071 = vmul.f32 %v1066, %v1070
    %v1072 = vmul.f32 %v1069, %v1070
    %v1073 = vsub.f32 %v1058, %v1071
    %v1074 = vsub.f32 %v1059, %v1072
    %v1075 = vmul.f32 %v1073, %v1073
    %v1076 = vmul.f32 %v1074, %v1074
    %v1077 = vsel %vm58, %v1075, 0.0
    %1078 = vadd.xlane.f32.xlu0 %v1077
    %v1079 = vpop.xlane.xlu0 %1078
    %v1080 = vsel %vm58, %v1076, 0.0
    %1081 = vadd.xlane.f32.xlu0 %v1080
    %v1082 = vpop.xlane.xlu0 %1081
    %v1083 = vmul.f32 %v1079, %v1070
    %v1084 = vmul.f32 %v1082, %v1070
    %v1085 = vadd.f32 %v1083, 1e-05
    %v1086 = vadd.f32 %v1084, 1e-05
    %v1087 = vrsqrt.pop %v1085
    %v1088 = vrsqrt.pop %v1086
    %v1089 = vmul.f32 %v1073, %v1087
    %v1090 = vmul.f32 %v1074, %v1088
    %v1091 = vmul.f32 %v1089, %v1060
    %v1092 = vmul.f32 %v1090, %v1061
    %v1093 = vadd.f32 %v1091, %v1062
    %v1094 = vadd.f32 %v1092, %v1063
    %v1095 = vld [vmem:[%s6] sm:$0xff]
    %v1096 = vld [vmem:[%s6 + $0x8] sm:$0xff]
    %v1097 = vld [vmem:[%s6 + $0x10] sm:$0xff]
    %v1098 = vld [vmem:[%s6 + $0x18] sm:$0xff]
    %v1099 = vld [vmem:[%s6 + $0x20] sm:$0xff]
    %v1100 = vld [vmem:[%s6 + $0x28] sm:$0xff]
    %v1101 = vld [vmem:[%s6 + $0x30] sm:$0xff]
    %v1102 = vld [vmem:[%s6 + $0x38] sm:$0xff]
    %v1103 = vld [vmem:[%s6 + $0x40] sm:$0xff]
    %v1104 = vld [vmem:[%s6 + $0x48] sm:$0xff]
    %v1105 = vld [vmem:[%s6 + $0x50] sm:$0xff]
    %v1106 = vld [vmem:[%s6 + $0x58] sm:$0xff]
    %v1107 = vld [vmem:[%s6 + $0x60] sm:$0xff]
    %v1108 = vld [vmem:[%s6 + $0x68] sm:$0xff]
    %v1109 = vld [vmem:[%s6 + $0x70] sm:$0xff]
    %v1110 = vld [vmem:[%s6 + $0x78] sm:$0xff]
    %v1111 = vld [vmem:[%s7] sm:$0xff]
    %v1112 = vld [vmem:[%s7 + $0x8] sm:$0xff]
    %v1113 = vld [vmem:[%s7 + $0x10] sm:$0xff]
    %v1114 = vld [vmem:[%s7 + $0x18] sm:$0xff]
    %v1115 = vld [vmem:[%s7 + $0x20] sm:$0xff]
    %v1116 = vld [vmem:[%s7 + $0x28] sm:$0xff]
    %v1117 = vld [vmem:[%s7 + $0x30] sm:$0xff]
    %v1118 = vld [vmem:[%s7 + $0x38] sm:$0xff]
    %v1120 = vsel %vm58, %v1093, 0
    %v1123 = vsel %vm58, %v1094, 0
    %1125 = vmatprep.subr.mxu0 0.0
    %1126 = vmatpush1.msra.mxu0 0.0
    %1127 = vmatprep.subr.mxu0 0.0
    %1128 = vmatpush1.msra.mxu0 0.0
    %1129 = vmatprep.subr.mxu0 0.0
    %1130 = vmatpush1.msra.mxu0 0.0
    %1131 = vmatprep.subr.mxu0 0.0
    %1132 = vmatpush1.msra.mxu0 0.0
    %1133 = vmatprep.subr.mxu0 0.0
    %1134 = vmatpush1.msra.mxu0 0.0
    %1135 = vmatprep.subr.mxu0 0.0
    %1136 = vmatpush1.msra.mxu0 0.0
    %1137 = vmatprep.subr.mxu0 0.0
    %1138 = vmatpush1.msra.mxu0 0.0
    %1139 = vmatprep.subr.mxu0 0.0
    %1140 = vmatpush1.msra.mxu0 0.0
    %1141 = vmatprep.subr.mxu0 0.0
    %1142 = vmatpush1.msra.mxu0 0.0
    %1143 = vmatprep.subr.mxu0 0.0
    %1144 = vmatpush1.msra.mxu0 0.0
    %1145 = vmatprep.subr.mxu0 0.0
    %1146 = vmatpush1.msra.mxu0 0.0
    %1147 = vmatprep.subr.mxu0 0.0
    %1148 = vmatpush1.msra.mxu0 0.0
    %1149 = vmatprep.subr.mxu0 %v1108
    %1150 = vmatpush1.msra.mxu0 %v1107
    %1151 = vmatprep.subr.mxu0 %v1104
    %1152 = vmatpush1.msra.mxu0 %v1103
    %1153 = vmatprep.subr.mxu0 %v1100
    %1154 = vmatpush1.msra.mxu0 %v1099
    %1155 = vmatprep.subr.mxu0 %v1096
    %1156 = vmatpush1.msra.mxu0 %v1095
    %1157 = vmatprep.subr.mxu0 0.0
    %1158 = vmatpush2.msra.mxu0 0.0
    %1159 = vmatprep.subr.mxu0 0.0
    %1160 = vmatpush2.msra.mxu0 0.0
    %1161 = vmatprep.subr.mxu0 0.0
    %1162 = vmatpush2.msra.mxu0 0.0
    %1163 = vmatprep.subr.mxu0 0.0
    %1164 = vmatpush2.msra.mxu0 0.0
    %1165 = vmatprep.subr.mxu0 0.0
    %1166 = vmatpush2.msra.mxu0 0.0
    %1167 = vmatprep.subr.mxu0 0.0
    %1168 = vmatpush2.msra.mxu0 0.0
    %1169 = vmatprep.subr.mxu0 0.0
    %1170 = vmatpush2.msra.mxu0 0.0
    %1171 = vmatprep.subr.mxu0 0.0
    %1172 = vmatpush2.msra.mxu0 0.0
    %1173 = vmatprep.subr.mxu0 0.0
    %1174 = vmatpush2.msra.mxu0 0.0
    %1175 = vmatprep.subr.mxu0 0.0
    %1176 = vmatpush2.msra.mxu0 0.0
    %1177 = vmatprep.subr.mxu0 0.0
    %1178 = vmatpush2.msra.mxu0 0.0
    %1179 = vmatprep.subr.mxu0 0.0
    %1180 = vmatpush2.msra.mxu0 0.0
    %1181 = vmatprep.subr.mxu0 0.0
    %1182 = vmatpush2.msra.mxu0 0.0
    %1183 = vmatprep.subr.mxu0 0.0
    %1184 = vmatpush2.msra.mxu0 0.0
    %1185 = vmatprep.subr.mxu0 0.0
    %1186 = vmatpush2.msra.mxu0 0.0
    %1187 = vmatprep.subr.mxu0 0.0
    %1188 = vmatpush2.msra.mxu0 0.0
    %1189 = vmatprep.mubr.f32.mxu0 0.0
    %1190 = vmatmul.mubr.f32.gmra.mxu0 %v1120
    %v1191 = vpop.f32.mrf.mxu0
    %v1192 = vadd.f32 %v1111, %v1191
    %v1193 = vpop.f32.mrf.mxu0
    %v1194 = vadd.f32 %v1112, %v1193
    %1195 = vmatprep.mubr.f32.mxu0 0.0
    %1196 = vmatmul.mubr.f32.gmra.mxu0 %v1123
    %v1197 = vpop.f32.mrf.mxu0
    %v1198 = vadd.f32 %v1115, %v1197
    %v1199 = vpop.f32.mrf.mxu0
    %v1200 = vadd.f32 %v1116, %v1199
    %1201 = vdwg.mxu0
    %1202 = vmatprep.subr.mxu0 0.0
    %1203 = vmatpush1.msra.mxu0 0.0
    %1204 = vmatprep.subr.mxu0 0.0
    %1205 = vmatpush1.msra.mxu0 0.0
    %1206 = vmatprep.subr.mxu0 0.0
    %1207 = vmatpush1.msra.mxu0 0.0
    %1208 = vmatprep.subr.mxu0 0.0
    %1209 = vmatpush1.msra.mxu0 0.0
    %1210 = vmatprep.subr.mxu0 0.0
    %1211 = vmatpush1.msra.mxu0 0.0
    %1212 = vmatprep.subr.mxu0 0.0
    %1213 = vmatpush1.msra.mxu0 0.0
    %1214 = vmatprep.subr.mxu0 0.0
    %1215 = vmatpush1.msra.mxu0 0.0
    %1216 = vmatprep.subr.mxu0 0.0
    %1217 = vmatpush1.msra.mxu0 0.0
    %1218 = vmatprep.subr.mxu0 0.0
    %1219 = vmatpush1.msra.mxu0 0.0
    %1220 = vmatprep.subr.mxu0 0.0
    %1221 = vmatpush1.msra.mxu0 0.0
    %1222 = vmatprep.subr.mxu0 0.0
    %1223 = vmatpush1.msra.mxu0 0.0
    %1224 = vmatprep.subr.mxu0 0.0
    %1225 = vmatpush1.msra.mxu0 0.0
    %1226 = vmatprep.subr.mxu0 %v1110
    %1227 = vmatpush1.msra.mxu0 %v1109
    %1228 = vmatprep.subr.mxu0 %v1106
    %1229 = vmatpush1.msra.mxu0 %v1105
    %1230 = vmatprep.subr.mxu0 %v1102
    %1231 = vmatpush1.msra.mxu0 %v1101
    %1232 = vmatprep.subr.mxu0 %v1098
    %1233 = vmatpush1.msra.mxu0 %v1097
    %1234 = vmatprep.subr.mxu0 0.0
    %1235 = vmatpush2.msra.mxu0 0.0
    %1236 = vmatprep.subr.mxu0 0.0
    %1237 = vmatpush2.msra.mxu0 0.0
    %1238 = vmatprep.subr.mxu0 0.0
    %1239 = vmatpush2.msra.mxu0 0.0
    %1240 = vmatprep.subr.mxu0 0.0
    %1241 = vmatpush2.msra.mxu0 0.0
    %1242 = vmatprep.subr.mxu0 0.0
    %1243 = vmatpush2.msra.mxu0 0.0
    %1244 = vmatprep.subr.mxu0 0.0
    %1245 = vmatpush2.msra.mxu0 0.0
    %1246 = vmatprep.subr.mxu0 0.0
    %1247 = vmatpush2.msra.mxu0 0.0
    %1248 = vmatprep.subr.mxu0 0.0
    %1249 = vmatpush2.msra.mxu0 0.0
    %1250 = vmatprep.subr.mxu0 0.0
    %1251 = vmatpush2.msra.mxu0 0.0
    %1252 = vmatprep.subr.mxu0 0.0
    %1253 = vmatpush2.msra.mxu0 0.0
    %1254 = vmatprep.subr.mxu0 0.0
    %1255 = vmatpush2.msra.mxu0 0.0
    %1256 = vmatprep.subr.mxu0 0.0
    %1257 = vmatpush2.msra.mxu0 0.0
    %1258 = vmatprep.subr.mxu0 0.0
    %1259 = vmatpush2.msra.mxu0 0.0
    %1260 = vmatprep.subr.mxu0 0.0
    %1261 = vmatpush2.msra.mxu0 0.0
    %1262 = vmatprep.subr.mxu0 0.0
    %1263 = vmatpush2.msra.mxu0 0.0
    %1264 = vmatprep.subr.mxu0 0.0
    %1265 = vmatpush2.msra.mxu0 0.0
    %1266 = vmatprep.mubr.f32.mxu0 0.0
    %1267 = vmatmul.mubr.f32.gmra.mxu0 %v1120
    %v1268 = vpop.f32.mrf.mxu0
    %v1269 = vadd.f32 %v1113, %v1268
    %v1270 = vpop.f32.mrf.mxu0
    %v1271 = vadd.f32 %v1114, %v1270
    %1272 = vmatprep.mubr.f32.mxu0 0.0
    %1273 = vmatmul.mubr.f32.gmra.mxu0 %v1123
    %v1274 = vpop.f32.mrf.mxu0
    %v1275 = vadd.f32 %v1117, %v1274
    %v1276 = vpop.f32.mrf.mxu0
    %v1277 = vadd.f32 %v1118, %v1276
    %1278 = vdwg.mxu0
    %v1279 = vmax.f32 %v1192, 0.0
    %v1280 = vmax.f32 %v1194, 0.0
    %v1281 = vmax.f32 %v1269, 0.0
    %v1282 = vmax.f32 %v1271, 0.0
    %v1283 = vmax.f32 %v1198, 0.0
    %v1284 = vmax.f32 %v1200, 0.0
    %v1285 = vmax.f32 %v1275, 0.0
    %v1286 = vmax.f32 %v1277, 0.0
    %v1287 = vld [vmem:[%s8] sm:$0xff]
    %v1288 = vld [vmem:[%s8 + $0x8] sm:$0xff]
    %v1289 = vld [vmem:[%s8 + $0x10] sm:$0xff]
    %v1290 = vld [vmem:[%s8 + $0x18] sm:$0xff]
    %v1291 = vld [vmem:[%s8 + $0x20] sm:$0xff]
    %v1292 = vld [vmem:[%s8 + $0x28] sm:$0xff]
    %v1293 = vld [vmem:[%s8 + $0x30] sm:$0xff]
    %v1294 = vld [vmem:[%s8 + $0x38] sm:$0xff]
    %v1295 = vld [vmem:[%s8 + $0x40] sm:$0xff]
    %v1296 = vld [vmem:[%s8 + $0x48] sm:$0xff]
    %v1297 = vld [vmem:[%s8 + $0x50] sm:$0xff]
    %v1298 = vld [vmem:[%s8 + $0x58] sm:$0xff]
    %v1299 = vld [vmem:[%s8 + $0x60] sm:$0xff]
    %v1300 = vld [vmem:[%s8 + $0x68] sm:$0xff]
    %v1301 = vld [vmem:[%s8 + $0x70] sm:$0xff]
    %v1302 = vld [vmem:[%s8 + $0x78] sm:$0xff]
    %v1303 = vld [vmem:[%s8 + $0x80] sm:$0xff]
    %v1304 = vld [vmem:[%s8 + $0x88] sm:$0xff]
    %v1305 = vld [vmem:[%s8 + $0x90] sm:$0xff]
    %v1306 = vld [vmem:[%s8 + $0x98] sm:$0xff]
    %v1307 = vld [vmem:[%s8 + $0xa0] sm:$0xff]
    %v1308 = vld [vmem:[%s8 + $0xa8] sm:$0xff]
    %v1309 = vld [vmem:[%s8 + $0xb0] sm:$0xff]
    %v1310 = vld [vmem:[%s8 + $0xb8] sm:$0xff]
    %v1311 = vld [vmem:[%s8 + $0xc0] sm:$0xff]
    %v1312 = vld [vmem:[%s8 + $0xc8] sm:$0xff]
    %v1313 = vld [vmem:[%s8 + $0xd0] sm:$0xff]
    %v1314 = vld [vmem:[%s8 + $0xd8] sm:$0xff]
    %v1315 = vld [vmem:[%s8 + $0xe0] sm:$0xff]
    %v1316 = vld [vmem:[%s8 + $0xe8] sm:$0xff]
    %v1317 = vld [vmem:[%s8 + $0xf0] sm:$0xff]
    %v1318 = vld [vmem:[%s8 + $0xf8] sm:$0xff]
    %v1319 = vld [vmem:[%s8 + $0x100] sm:$0xff]
    %v1320 = vld [vmem:[%s8 + $0x108] sm:$0xff]
    %v1321 = vld [vmem:[%s8 + $0x110] sm:$0xff]
    %v1322 = vld [vmem:[%s8 + $0x118] sm:$0xff]
    %v1323 = vld [vmem:[%s8 + $0x120] sm:$0xff]
    %v1324 = vld [vmem:[%s8 + $0x128] sm:$0xff]
    %v1325 = vld [vmem:[%s8 + $0x130] sm:$0xff]
    %v1326 = vld [vmem:[%s8 + $0x138] sm:$0xff]
    %v1327 = vld [vmem:[%s8 + $0x140] sm:$0xff]
    %v1328 = vld [vmem:[%s8 + $0x148] sm:$0xff]
    %v1329 = vld [vmem:[%s8 + $0x150] sm:$0xff]
    %v1330 = vld [vmem:[%s8 + $0x158] sm:$0xff]
    %v1331 = vld [vmem:[%s8 + $0x160] sm:$0xff]
    %v1332 = vld [vmem:[%s8 + $0x168] sm:$0xff]
    %v1333 = vld [vmem:[%s8 + $0x170] sm:$0xff]
    %v1334 = vld [vmem:[%s8 + $0x178] sm:$0xff]
    %v1335 = vld [vmem:[%s8 + $0x180] sm:$0xff]
    %v1336 = vld [vmem:[%s8 + $0x188] sm:$0xff]
    %v1337 = vld [vmem:[%s8 + $0x190] sm:$0xff]
    %v1338 = vld [vmem:[%s8 + $0x198] sm:$0xff]
    %v1339 = vld [vmem:[%s8 + $0x1a0] sm:$0xff]
    %v1340 = vld [vmem:[%s8 + $0x1a8] sm:$0xff]
    %v1341 = vld [vmem:[%s8 + $0x1b0] sm:$0xff]
    %v1342 = vld [vmem:[%s8 + $0x1b8] sm:$0xff]
    %v1343 = vld [vmem:[%s8 + $0x1c0] sm:$0xff]
    %v1344 = vld [vmem:[%s8 + $0x1c8] sm:$0xff]
    %v1345 = vld [vmem:[%s8 + $0x1d0] sm:$0xff]
    %v1346 = vld [vmem:[%s8 + $0x1d8] sm:$0xff]
    %v1347 = vld [vmem:[%s8 + $0x1e0] sm:$0xff]
    %v1348 = vld [vmem:[%s8 + $0x1e8] sm:$0xff]
    %v1349 = vld [vmem:[%s8 + $0x1f0] sm:$0xff]
    %v1350 = vld [vmem:[%s8 + $0x1f8] sm:$0xff]
    %v1351 = vld [vmem:[%s9] sm:$0xff]
    %v1352 = vld [vmem:[%s9 + $0x8] sm:$0xff]
    %1353 = vmatprep.subr.mxu0 0.0
    %1354 = vmatpush1.msra.mxu0 %v1302
    %1355 = vmatprep.subr.mxu0 0.0
    %1356 = vmatpush1.msra.mxu0 %v1301
    %1357 = vmatprep.subr.mxu0 0.0
    %1358 = vmatpush1.msra.mxu0 %v1300
    %1359 = vmatprep.subr.mxu0 0.0
    %1360 = vmatpush1.msra.mxu0 %v1299
    %1361 = vmatprep.subr.mxu0 0.0
    %1362 = vmatpush1.msra.mxu0 %v1298
    %1363 = vmatprep.subr.mxu0 0.0
    %1364 = vmatpush1.msra.mxu0 %v1297
    %1365 = vmatprep.subr.mxu0 0.0
    %1366 = vmatpush1.msra.mxu0 %v1296
    %1367 = vmatprep.subr.mxu0 0.0
    %1368 = vmatpush1.msra.mxu0 %v1295
    %1369 = vmatprep.subr.mxu0 0.0
    %1370 = vmatpush1.msra.mxu0 %v1294
    %1371 = vmatprep.subr.mxu0 0.0
    %1372 = vmatpush1.msra.mxu0 %v1293
    %1373 = vmatprep.subr.mxu0 0.0
    %1374 = vmatpush1.msra.mxu0 %v1292
    %1375 = vmatprep.subr.mxu0 0.0
    %1376 = vmatpush1.msra.mxu0 %v1291
    %1377 = vmatprep.subr.mxu0 0.0
    %1378 = vmatpush1.msra.mxu0 %v1290
    %1379 = vmatprep.subr.mxu0 0.0
    %1380 = vmatpush1.msra.mxu0 %v1289
    %1381 = vmatprep.subr.mxu0 0.0
    %1382 = vmatpush1.msra.mxu0 %v1288
    %1383 = vmatprep.subr.mxu0 0.0
    %1384 = vmatpush1.msra.mxu0 %v1287
    %1385 = vmatprep.subr.mxu0 0.0
    %1386 = vmatpush2.msra.mxu0 %v1318
    %1387 = vmatprep.subr.mxu0 0.0
    %1388 = vmatpush2.msra.mxu0 %v1317
    %1389 = vmatprep.subr.mxu0 0.0
    %1390 = vmatpush2.msra.mxu0 %v1316
    %1391 = vmatprep.subr.mxu0 0.0
    %1392 = vmatpush2.msra.mxu0 %v1315
    %1393 = vmatprep.subr.mxu0 0.0
    %1394 = vmatpush2.msra.mxu0 %v1314
    %1395 = vmatprep.subr.mxu0 0.0
    %1396 = vmatpush2.msra.mxu0 %v1313
    %1397 = vmatprep.subr.mxu0 0.0
    %1398 = vmatpush2.msra.mxu0 %v1312
    %1399 = vmatprep.subr.mxu0 0.0
    %1400 = vmatpush2.msra.mxu0 %v1311
    %1401 = vmatprep.subr.mxu0 0.0
    %1402 = vmatpush2.msra.mxu0 %v1310
    %1403 = vmatprep.subr.mxu0 0.0
    %1404 = vmatpush2.msra.mxu0 %v1309
    %1405 = vmatprep.subr.mxu0 0.0
    %1406 = vmatpush2.msra.mxu0 %v1308
    %1407 = vmatprep.subr.mxu0 0.0
    %1408 = vmatpush2.msra.mxu0 %v1307
    %1409 = vmatprep.subr.mxu0 0.0
    %1410 = vmatpush2.msra.mxu0 %v1306
    %1411 = vmatprep.subr.mxu0 0.0
    %1412 = vmatpush2.msra.mxu0 %v1305
    %1413 = vmatprep.subr.mxu0 0.0
    %1414 = vmatpush2.msra.mxu0 %v1304
    %1415 = vmatprep.subr.mxu0 0.0
    %1416 = vmatpush2.msra.mxu0 %v1303
    %1417 = vmatprep.mubr.f32.mxu0 %v1280
    %1418 = vmatmul.mubr.f32.gmra.mxu0 %v1279
    %v1419 = vpop.f32.mrf.mxu0
    %v1420 = vadd.f32 %v1351, %v1419
    %v1421 = vpop.f32.mrf.mxu0
    %1422 = vmatprep.mubr.f32.mxu0 %v1284
    %1423 = vmatmul.mubr.f32.gmra.mxu0 %v1283
    %v1424 = vpop.f32.mrf.mxu0
    %v1425 = vadd.f32 %v1352, %v1424
    %v1426 = vpop.f32.mrf.mxu0
    %1427 = vdwg.mxu0
    %1428 = vmatprep.subr.mxu0 0.0
    %1429 = vmatpush1.msra.mxu0 %v1334
    %1430 = vmatprep.subr.mxu0 0.0
    %1431 = vmatpush1.msra.mxu0 %v1333
    %1432 = vmatprep.subr.mxu0 0.0
    %1433 = vmatpush1.msra.mxu0 %v1332
    %1434 = vmatprep.subr.mxu0 0.0
    %1435 = vmatpush1.msra.mxu0 %v1331
    %1436 = vmatprep.subr.mxu0 0.0
    %1437 = vmatpush1.msra.mxu0 %v1330
    %1438 = vmatprep.subr.mxu0 0.0
    %1439 = vmatpush1.msra.mxu0 %v1329
    %1440 = vmatprep.subr.mxu0 0.0
    %1441 = vmatpush1.msra.mxu0 %v1328
    %1442 = vmatprep.subr.mxu0 0.0
    %1443 = vmatpush1.msra.mxu0 %v1327
    %1444 = vmatprep.subr.mxu0 0.0
    %1445 = vmatpush1.msra.mxu0 %v1326
    %1446 = vmatprep.subr.mxu0 0.0
    %1447 = vmatpush1.msra.mxu0 %v1325
    %1448 = vmatprep.subr.mxu0 0.0
    %1449 = vmatpush1.msra.mxu0 %v1324
    %1450 = vmatprep.subr.mxu0 0.0
    %1451 = vmatpush1.msra.mxu0 %v1323
    %1452 = vmatprep.subr.mxu0 0.0
    %1453 = vmatpush1.msra.mxu0 %v1322
    %1454 = vmatprep.subr.mxu0 0.0
    %1455 = vmatpush1.msra.mxu0 %v1321
    %1456 = vmatprep.subr.mxu0 0.0
    %1457 = vmatpush1.msra.mxu0 %v1320
    %1458 = vmatprep.subr.mxu0 0.0
    %1459 = vmatpush1.msra.mxu0 %v1319
    %1460 = vmatprep.subr.mxu0 0.0
    %1461 = vmatpush2.msra.mxu0 %v1350
    %1462 = vmatprep.subr.mxu0 0.0
    %1463 = vmatpush2.msra.mxu0 %v1349
    %1464 = vmatprep.subr.mxu0 0.0
    %1465 = vmatpush2.msra.mxu0 %v1348
    %1466 = vmatprep.subr.mxu0 0.0
    %1467 = vmatpush2.msra.mxu0 %v1347
    %1468 = vmatprep.subr.mxu0 0.0
    %1469 = vmatpush2.msra.mxu0 %v1346
    %1470 = vmatprep.subr.mxu0 0.0
    %1471 = vmatpush2.msra.mxu0 %v1345
    %1472 = vmatprep.subr.mxu0 0.0
    %1473 = vmatpush2.msra.mxu0 %v1344
    %1474 = vmatprep.subr.mxu0 0.0
    %1475 = vmatpush2.msra.mxu0 %v1343
    %1476 = vmatprep.subr.mxu0 0.0
    %1477 = vmatpush2.msra.mxu0 %v1342
    %1478 = vmatprep.subr.mxu0 0.0
    %1479 = vmatpush2.msra.mxu0 %v1341
    %1480 = vmatprep.subr.mxu0 0.0
    %1481 = vmatpush2.msra.mxu0 %v1340
    %1482 = vmatprep.subr.mxu0 0.0
    %1483 = vmatpush2.msra.mxu0 %v1339
    %1484 = vmatprep.subr.mxu0 0.0
    %1485 = vmatpush2.msra.mxu0 %v1338
    %1486 = vmatprep.subr.mxu0 0.0
    %1487 = vmatpush2.msra.mxu0 %v1337
    %1488 = vmatprep.subr.mxu0 0.0
    %1489 = vmatpush2.msra.mxu0 %v1336
    %1490 = vmatprep.subr.mxu0 0.0
    %1491 = vmatpush2.msra.mxu0 %v1335
    %1492 = vmatprep.mubr.f32.mxu0 %v1282
    %1493 = vmatmul.mubr.f32.gmra.mxu0 %v1281
    %v1494 = vpop.f32.mrf.mxu0
    %v1495 = vadd.f32 %v1420, %v1494
    %v1496 = vpop.f32.mrf.mxu0
    %1497 = vmatprep.mubr.f32.mxu0 %v1286
    %1498 = vmatmul.mubr.f32.gmra.mxu0 %v1285
    %v1499 = vpop.f32.mrf.mxu0
    %v1500 = vadd.f32 %v1425, %v1499
    %v1501 = vpop.f32.mrf.mxu0
    %1502 = vdwg.mxu0
    %v1503 = vadd.f32 %v1093, %v1495
    %v1504 = vadd.f32 %v1094, %v1500
    %v1505 = vld [vmem:[%s12] sm:$0xff]
    %v1506 = vld [vmem:[%s12 + $0x8] sm:$0xff]
    %v1507 = vld [vmem:[%s13] sm:$0xff]
    %v1508 = vld [vmem:[%s13 + $0x8] sm:$0xff]
    %v1509 = vsel %vm58, %v1503, 0.0
    %1510 = vadd.xlane.f32.xlu0 %v1509
    %v1511 = vpop.xlane.xlu0 %1510
    %v1512 = vsel %vm58, %v1504, 0.0
    %1513 = vadd.xlane.f32.xlu0 %v1512
    %v1514 = vpop.xlane.xlu0 %1513
    %v1515 = vmul.f32 %v1511, %v1070
    %v1516 = vmul.f32 %v1514, %v1070
    %v1517 = vsub.f32 %v1503, %v1515
    %v1518 = vsub.f32 %v1504, %v1516
    %v1519 = vmul.f32 %v1517, %v1517
    %v1520 = vmul.f32 %v1518, %v1518
    %v1521 = vsel %vm58, %v1519, 0.0
    %1522 = vadd.xlane.f32.xlu0 %v1521
    %v1523 = vpop.xlane.xlu0 %1522
    %v1524 = vsel %vm58, %v1520, 0.0
    %1525 = vadd.xlane.f32.xlu0 %v1524
    %v1526 = vpop.xlane.xlu0 %1525
    %v1527 = vmul.f32 %v1523, %v1070
    %v1528 = vmul.f32 %v1526, %v1070
    %v1529 = vadd.f32 %v1527, 1e-05
    %v1530 = vadd.f32 %v1528, 1e-05
    %v1531 = vrsqrt.pop %v1529
    %v1532 = vrsqrt.pop %v1530
    %v1533 = vmul.f32 %v1517, %v1531
    %v1534 = vmul.f32 %v1518, %v1532
    %v1535 = vmul.f32 %v1533, %v1505
    %v1536 = vmul.f32 %v1534, %v1506
    %v1537 = vadd.f32 %v1535, %v1507
    %v1538 = vadd.f32 %v1536, %v1508
    %s1539 = scalar_lea.vmem %s2, 32
    %v1540 = vld [vmem:[%s1539] sm:$0xff]
    %v1541 = vld [vmem:[%s1539 + $0x8] sm:$0xff]
    %v1542 = vld [vmem:[%s1539 + $0x10] sm:$0xff]
    %v1543 = vld [vmem:[%s1539 + $0x18] sm:$0xff]
    %s1544 = scalar_lea.vmem %s3, 16
    %v1545 = vld [vmem:[%s1544] sm:$0xff]
    %v1546 = vld [vmem:[%s1544 + $0x8] sm:$0xff]
    %v1548 = vsel %vm58, %v1537, 0
    %v1551 = vsel %vm58, %v1538, 0
    %1553 = vmatprep.subr.mxu0 0.0
    %1554 = vmatpush1.msra.mxu0 0.0
    %1555 = vmatprep.subr.mxu0 0.0
    %1556 = vmatpush1.msra.mxu0 0.0
    %1557 = vmatprep.subr.mxu0 0.0
    %1558 = vmatpush1.msra.mxu0 0.0
    %1559 = vmatprep.subr.mxu0 0.0
    %1560 = vmatpush1.msra.mxu0 0.0
    %1561 = vmatprep.subr.mxu0 0.0
    %1562 = vmatpush1.msra.mxu0 0.0
    %1563 = vmatprep.subr.mxu0 0.0
    %1564 = vmatpush1.msra.mxu0 0.0
    %1565 = vmatprep.subr.mxu0 0.0
    %1566 = vmatpush1.msra.mxu0 0.0
    %1567 = vmatprep.subr.mxu0 0.0
    %1568 = vmatpush1.msra.mxu0 0.0
    %1569 = vmatprep.subr.mxu0 0.0
    %1570 = vmatpush1.msra.mxu0 0.0
    %1571 = vmatprep.subr.mxu0 0.0
    %1572 = vmatpush1.msra.mxu0 0.0
    %1573 = vmatprep.subr.mxu0 0.0
    %1574 = vmatpush1.msra.mxu0 0.0
    %1575 = vmatprep.subr.mxu0 0.0
    %1576 = vmatpush1.msra.mxu0 0.0
    %1577 = vmatprep.subr.mxu0 0.0
    %1578 = vmatpush1.msra.mxu0 %v1543
    %1579 = vmatprep.subr.mxu0 0.0
    %1580 = vmatpush1.msra.mxu0 %v1542
    %1581 = vmatprep.subr.mxu0 0.0
    %1582 = vmatpush1.msra.mxu0 %v1541
    %1583 = vmatprep.subr.mxu0 0.0
    %1584 = vmatpush1.msra.mxu0 %v1540
    %1585 = vmatprep.subr.mxu0 0.0
    %1586 = vmatpush2.msra.mxu0 0.0
    %1587 = vmatprep.subr.mxu0 0.0
    %1588 = vmatpush2.msra.mxu0 0.0
    %1589 = vmatprep.subr.mxu0 0.0
    %1590 = vmatpush2.msra.mxu0 0.0
    %1591 = vmatprep.subr.mxu0 0.0
    %1592 = vmatpush2.msra.mxu0 0.0
    %1593 = vmatprep.subr.mxu0 0.0
    %1594 = vmatpush2.msra.mxu0 0.0
    %1595 = vmatprep.subr.mxu0 0.0
    %1596 = vmatpush2.msra.mxu0 0.0
    %1597 = vmatprep.subr.mxu0 0.0
    %1598 = vmatpush2.msra.mxu0 0.0
    %1599 = vmatprep.subr.mxu0 0.0
    %1600 = vmatpush2.msra.mxu0 0.0
    %1601 = vmatprep.subr.mxu0 0.0
    %1602 = vmatpush2.msra.mxu0 0.0
    %1603 = vmatprep.subr.mxu0 0.0
    %1604 = vmatpush2.msra.mxu0 0.0
    %1605 = vmatprep.subr.mxu0 0.0
    %1606 = vmatpush2.msra.mxu0 0.0
    %1607 = vmatprep.subr.mxu0 0.0
    %1608 = vmatpush2.msra.mxu0 0.0
    %1609 = vmatprep.subr.mxu0 0.0
    %1610 = vmatpush2.msra.mxu0 0.0
    %1611 = vmatprep.subr.mxu0 0.0
    %1612 = vmatpush2.msra.mxu0 0.0
    %1613 = vmatprep.subr.mxu0 0.0
    %1614 = vmatpush2.msra.mxu0 0.0
    %1615 = vmatprep.subr.mxu0 0.0
    %1616 = vmatpush2.msra.mxu0 0.0
    %1617 = vmatprep.mubr.f32.mxu0 0.0
    %1618 = vmatmul.mubr.f32.gmra.mxu0 %v1548
    %v1619 = vpop.f32.mrf.mxu0
    %v1620 = vadd.f32 %v1545, %v1619
    %v1621 = vpop.f32.mrf.mxu0
    %1622 = vmatprep.mubr.f32.mxu0 0.0
    %1623 = vmatmul.mubr.f32.gmra.mxu0 %v1551
    %v1624 = vpop.f32.mrf.mxu0
    %v1625 = vadd.f32 %v1546, %v1624
    %v1626 = vpop.f32.mrf.mxu0
    %1627 = vdwg.mxu0
    %1630 = vrot.lane.b32.xlu0 %v1620, 96
    %v1631 = vpop.permute.xlu0 %1630
    %1632 = vrot.lane.b32.xlu0 %v1625, 96
    %v1633 = vpop.permute.xlu0 %1632
    %v1634 = vsel %vm146, %v1620, 0
    %v1636 = vsel %vm146, %v1625, 0
    %v1638 = vsel %vm146, %v1631, 0
    %v1640 = vsel %vm146, %v1633, 0
    %1642 = vmatprep.subr.mxu0 0.0
    %1643 = vmatpush1.xpose.msra.mxu0 0.0
    %1644 = vmatprep.subr.mxu0 0.0
    %1645 = vmatpush1.xpose.msra.mxu0 0.0
    %1646 = vmatprep.subr.mxu0 0.0
    %1647 = vmatpush1.xpose.msra.mxu0 0.0
    %1648 = vmatprep.subr.mxu0 0.0
    %1649 = vmatpush1.xpose.msra.mxu0 0.0
    %1650 = vmatprep.subr.mxu0 0.0
    %1651 = vmatpush1.xpose.msra.mxu0 0.0
    %1652 = vmatprep.subr.mxu0 0.0
    %1653 = vmatpush1.xpose.msra.mxu0 0.0
    %1654 = vmatprep.subr.mxu0 0.0
    %1655 = vmatpush1.xpose.msra.mxu0 0.0
    %1656 = vmatprep.subr.mxu0 0.0
    %1657 = vmatpush1.xpose.msra.mxu0 0.0
    %1658 = vmatprep.subr.mxu0 0.0
    %1659 = vmatpush1.xpose.msra.mxu0 0.0
    %1660 = vmatprep.subr.mxu0 0.0
    %1661 = vmatpush1.xpose.msra.mxu0 0.0
    %1662 = vmatprep.subr.mxu0 0.0
    %1663 = vmatpush1.xpose.msra.mxu0 0.0
    %1664 = vmatprep.subr.mxu0 0.0
    %1665 = vmatpush1.xpose.msra.mxu0 0.0
    %1666 = vmatprep.subr.mxu0 0.0
    %1667 = vmatpush1.xpose.msra.mxu0 0.0
    %1668 = vmatprep.subr.mxu0 0.0
    %1669 = vmatpush1.xpose.msra.mxu0 0.0
    %1670 = vmatprep.subr.mxu0 0.0
    %1671 = vmatpush1.xpose.msra.mxu0 %v1640
    %1672 = vmatprep.subr.mxu0 0.0
    %1673 = vmatpush1.xpose.msra.mxu0 %v1638
    %1674 = vmatprep.subr.mxu0 0.0
    %1675 = vmatpush2.xpose.msra.mxu0 0.0
    %1676 = vmatprep.subr.mxu0 0.0
    %1677 = vmatpush2.xpose.msra.mxu0 0.0
    %1678 = vmatprep.subr.mxu0 0.0
    %1679 = vmatpush2.xpose.msra.mxu0 0.0
    %1680 = vmatprep.subr.mxu0 0.0
    %1681 = vmatpush2.xpose.msra.mxu0 0.0
    %1682 = vmatprep.subr.mxu0 0.0
    %1683 = vmatpush2.xpose.msra.mxu0 0.0
    %1684 = vmatprep.subr.mxu0 0.0
    %1685 = vmatpush2.xpose.msra.mxu0 0.0
    %1686 = vmatprep.subr.mxu0 0.0
    %1687 = vmatpush2.xpose.msra.mxu0 0.0
    %1688 = vmatprep.subr.mxu0 0.0
    %1689 = vmatpush2.xpose.msra.mxu0 0.0
    %1690 = vmatprep.subr.mxu0 0.0
    %1691 = vmatpush2.xpose.msra.mxu0 0.0
    %1692 = vmatprep.subr.mxu0 0.0
    %1693 = vmatpush2.xpose.msra.mxu0 0.0
    %1694 = vmatprep.subr.mxu0 0.0
    %1695 = vmatpush2.xpose.msra.mxu0 0.0
    %1696 = vmatprep.subr.mxu0 0.0
    %1697 = vmatpush2.xpose.msra.mxu0 0.0
    %1698 = vmatprep.subr.mxu0 0.0
    %1699 = vmatpush2.xpose.msra.mxu0 0.0
    %1700 = vmatprep.subr.mxu0 0.0
    %1701 = vmatpush2.xpose.msra.mxu0 0.0
    %1702 = vmatprep.subr.mxu0 0.0
    %1703 = vmatpush2.xpose.msra.mxu0 0.0
    %1704 = vmatprep.subr.mxu0 0.0
    %1705 = vmatpush2.xpose.msra.mxu0 0.0
    %1706 = vmatprep.mubr.f32.mxu0 0.0
    %1707 = vmatmul.mubr.f32.gmra.mxu0 %v1634
    %v1708 = vpop.f32.mrf.mxu0
    %v1709 = vadd.f32 %v50, %v1708
    %v1710 = vpop.f32.mrf.mxu0
    %1711 = vmatprep.mubr.f32.mxu0 0.0
    %1712 = vmatmul.mubr.f32.gmra.mxu0 %v1636
    %v1713 = vpop.f32.mrf.mxu0
    %v1714 = vadd.f32 %v51, %v1713
    %v1715 = vpop.f32.mrf.mxu0
    %1716 = vdwg.mxu0
    %v1717 = vsel %vm230, %v1709, -inf
    %1718 = vmax.xlane.f32.xlu0 %v1717
    %v1719 = vpop.xlane.xlu0 %1718
    %v1720 = vsel %vm230, %v1714, -inf
    %1721 = vmax.xlane.f32.xlu0 %v1720
    %v1722 = vpop.xlane.xlu0 %1721
    %v1723 = vsub.f32 %v1709, %v1719
    %v1724 = vsub.f32 %v1714, %v1722
    %v1725 = vmul.f32 %v1723, 1.442695
    %v1726 = vpow.pop %v1725
    %v1727 = vmul.f32 %v1724, 1.442695
    %v1728 = vpow.pop %v1727
    %v1729 = vsel %vm230, %v1726, 0.0
    %1730 = vadd.xlane.f32.xlu0 %v1729
    %v1731 = vpop.xlane.xlu0 %1730
    %v1732 = vsel %vm230, %v1728, 0.0
    %1733 = vadd.xlane.f32.xlu0 %v1732
    %v1734 = vpop.xlane.xlu0 %1733
    %v1735 = vrcp.pop %v1731
    %v1736 = vrcp.pop %v1734
    %v1737 = vmul.f32 %v1726, %v1735
    %v1738 = vmul.f32 %v1728, %v1736
    %1739 = vrot.lane.b32.xlu0 %v1620, 64
    %v1740 = vpop.permute.xlu0 %1739
    %1741 = vrot.lane.b32.xlu0 %v1625, 64
    %v1742 = vpop.permute.xlu0 %1741
    %v1746 = vsel %vm230, %v1737, 0
    %v1749 = vsel %vm230, %v1738, 0
    %1751 = vmatprep.subr.mxu0 0.0
    %1752 = vmatpush1.msra.mxu0 0.0
    %1753 = vmatprep.subr.mxu0 0.0
    %1754 = vmatpush1.msra.mxu0 0.0
    %1755 = vmatprep.subr.mxu0 0.0
    %1756 = vmatpush1.msra.mxu0 0.0
    %1757 = vmatprep.subr.mxu0 0.0
    %1758 = vmatpush1.msra.mxu0 0.0
    %1759 = vmatprep.subr.mxu0 0.0
    %1760 = vmatpush1.msra.mxu0 0.0
    %1761 = vmatprep.subr.mxu0 0.0
    %1762 = vmatpush1.msra.mxu0 0.0
    %1763 = vmatprep.subr.mxu0 0.0
    %1764 = vmatpush1.msra.mxu0 0.0
    %1765 = vmatprep.subr.mxu0 0.0
    %1766 = vmatpush1.msra.mxu0 0.0
    %1767 = vmatprep.subr.mxu0 0.0
    %1768 = vmatpush1.msra.mxu0 0.0
    %1769 = vmatprep.subr.mxu0 0.0
    %1770 = vmatpush1.msra.mxu0 0.0
    %1771 = vmatprep.subr.mxu0 0.0
    %1772 = vmatpush1.msra.mxu0 0.0
    %1773 = vmatprep.subr.mxu0 0.0
    %1774 = vmatpush1.msra.mxu0 0.0
    %1775 = vmatprep.subr.mxu0 0.0
    %1776 = vmatpush1.msra.mxu0 0.0
    %1777 = vmatprep.subr.mxu0 0.0
    %1778 = vmatpush1.msra.mxu0 0.0
    %1779 = vmatprep.subr.mxu0 0.0
    %1780 = vmatpush1.msra.mxu0 %v1742
    %1781 = vmatprep.subr.mxu0 0.0
    %1782 = vmatpush1.msra.mxu0 %v1740
    %1783 = vmatprep.subr.mxu0 0.0
    %1784 = vmatpush2.msra.mxu0 0.0
    %1785 = vmatprep.subr.mxu0 0.0
    %1786 = vmatpush2.msra.mxu0 0.0
    %1787 = vmatprep.subr.mxu0 0.0
    %1788 = vmatpush2.msra.mxu0 0.0
    %1789 = vmatprep.subr.mxu0 0.0
    %1790 = vmatpush2.msra.mxu0 0.0
    %1791 = vmatprep.subr.mxu0 0.0
    %1792 = vmatpush2.msra.mxu0 0.0
    %1793 = vmatprep.subr.mxu0 0.0
    %1794 = vmatpush2.msra.mxu0 0.0
    %1795 = vmatprep.subr.mxu0 0.0
    %1796 = vmatpush2.msra.mxu0 0.0
    %1797 = vmatprep.subr.mxu0 0.0
    %1798 = vmatpush2.msra.mxu0 0.0
    %1799 = vmatprep.subr.mxu0 0.0
    %1800 = vmatpush2.msra.mxu0 0.0
    %1801 = vmatprep.subr.mxu0 0.0
    %1802 = vmatpush2.msra.mxu0 0.0
    %1803 = vmatprep.subr.mxu0 0.0
    %1804 = vmatpush2.msra.mxu0 0.0
    %1805 = vmatprep.subr.mxu0 0.0
    %1806 = vmatpush2.msra.mxu0 0.0
    %1807 = vmatprep.subr.mxu0 0.0
    %1808 = vmatpush2.msra.mxu0 0.0
    %1809 = vmatprep.subr.mxu0 0.0
    %1810 = vmatpush2.msra.mxu0 0.0
    %1811 = vmatprep.subr.mxu0 0.0
    %1812 = vmatpush2.msra.mxu0 0.0
    %1813 = vmatprep.subr.mxu0 0.0
    %1814 = vmatpush2.msra.mxu0 0.0
    %1815 = vmatprep.mubr.f32.mxu0 0.0
    %1816 = vmatmul.mubr.f32.gmra.mxu0 %v1746
    %v1817 = vpop.f32.mrf.mxu0
    %v1818 = vadd.f32 0.0, %v1817
    %v1819 = vpop.f32.mrf.mxu0
    %1820 = vmatprep.mubr.f32.mxu0 0.0
    %1821 = vmatmul.mubr.f32.gmra.mxu0 %v1749
    %v1822 = vpop.f32.mrf.mxu0
    %v1823 = vadd.f32 0.0, %v1822
    %v1824 = vpop.f32.mrf.mxu0
    %1825 = vdwg.mxu0
    %1826 = vrot.lane.b32.xlu0 %v1620, 120
    %v1827 = vpop.permute.xlu0 %1826
    %1828 = vrot.lane.b32.xlu0 %v1625, 120
    %v1829 = vpop.permute.xlu0 %1828
    %1830 = vrot.lane.b32.xlu0 %v1620, 88
    %v1831 = vpop.permute.xlu0 %1830
    %1832 = vrot.lane.b32.xlu0 %v1625, 88
    %v1833 = vpop.permute.xlu0 %1832
    %v1834 = vsel %vm146, %v1827, 0
    %v1836 = vsel %vm146, %v1829, 0
    %v1838 = vsel %vm146, %v1831, 0
    %v1840 = vsel %vm146, %v1833, 0
    %1842 = vmatprep.subr.mxu0 0.0
    %1843 = vmatpush1.xpose.msra.mxu0 0.0
    %1844 = vmatprep.subr.mxu0 0.0
    %1845 = vmatpush1.xpose.msra.mxu0 0.0
    %1846 = vmatprep.subr.mxu0 0.0
    %1847 = vmatpush1.xpose.msra.mxu0 0.0
    %1848 = vmatprep.subr.mxu0 0.0
    %1849 = vmatpush1.xpose.msra.mxu0 0.0
    %1850 = vmatprep.subr.mxu0 0.0
    %1851 = vmatpush1.xpose.msra.mxu0 0.0
    %1852 = vmatprep.subr.mxu0 0.0
    %1853 = vmatpush1.xpose.msra.mxu0 0.0
    %1854 = vmatprep.subr.mxu0 0.0
    %1855 = vmatpush1.xpose.msra.mxu0 0.0
    %1856 = vmatprep.subr.mxu0 0.0
    %1857 = vmatpush1.xpose.msra.mxu0 0.0
    %1858 = vmatprep.subr.mxu0 0.0
    %1859 = vmatpush1.xpose.msra.mxu0 0.0
    %1860 = vmatprep.subr.mxu0 0.0
    %1861 = vmatpush1.xpose.msra.mxu0 0.0
    %1862 = vmatprep.subr.mxu0 0.0
    %1863 = vmatpush1.xpose.msra.mxu0 0.0
    %1864 = vmatprep.subr.mxu0 0.0
    %1865 = vmatpush1.xpose.msra.mxu0 0.0
    %1866 = vmatprep.subr.mxu0 0.0
    %1867 = vmatpush1.xpose.msra.mxu0 0.0
    %1868 = vmatprep.subr.mxu0 0.0
    %1869 = vmatpush1.xpose.msra.mxu0 0.0
    %1870 = vmatprep.subr.mxu0 0.0
    %1871 = vmatpush1.xpose.msra.mxu0 %v1840
    %1872 = vmatprep.subr.mxu0 0.0
    %1873 = vmatpush1.xpose.msra.mxu0 %v1838
    %1874 = vmatprep.subr.mxu0 0.0
    %1875 = vmatpush2.xpose.msra.mxu0 0.0
    %1876 = vmatprep.subr.mxu0 0.0
    %1877 = vmatpush2.xpose.msra.mxu0 0.0
    %1878 = vmatprep.subr.mxu0 0.0
    %1879 = vmatpush2.xpose.msra.mxu0 0.0
    %1880 = vmatprep.subr.mxu0 0.0
    %1881 = vmatpush2.xpose.msra.mxu0 0.0
    %1882 = vmatprep.subr.mxu0 0.0
    %1883 = vmatpush2.xpose.msra.mxu0 0.0
    %1884 = vmatprep.subr.mxu0 0.0
    %1885 = vmatpush2.xpose.msra.mxu0 0.0
    %1886 = vmatprep.subr.mxu0 0.0
    %1887 = vmatpush2.xpose.msra.mxu0 0.0
    %1888 = vmatprep.subr.mxu0 0.0
    %1889 = vmatpush2.xpose.msra.mxu0 0.0
    %1890 = vmatprep.subr.mxu0 0.0
    %1891 = vmatpush2.xpose.msra.mxu0 0.0
    %1892 = vmatprep.subr.mxu0 0.0
    %1893 = vmatpush2.xpose.msra.mxu0 0.0
    %1894 = vmatprep.subr.mxu0 0.0
    %1895 = vmatpush2.xpose.msra.mxu0 0.0
    %1896 = vmatprep.subr.mxu0 0.0
    %1897 = vmatpush2.xpose.msra.mxu0 0.0
    %1898 = vmatprep.subr.mxu0 0.0
    %1899 = vmatpush2.xpose.msra.mxu0 0.0
    %1900 = vmatprep.subr.mxu0 0.0
    %1901 = vmatpush2.xpose.msra.mxu0 0.0
    %1902 = vmatprep.subr.mxu0 0.0
    %1903 = vmatpush2.xpose.msra.mxu0 0.0
    %1904 = vmatprep.subr.mxu0 0.0
    %1905 = vmatpush2.xpose.msra.mxu0 0.0
    %1906 = vmatprep.mubr.f32.mxu0 0.0
    %1907 = vmatmul.mubr.f32.gmra.mxu0 %v1834
    %v1908 = vpop.f32.mrf.mxu0
    %v1909 = vadd.f32 %v50, %v1908
    %v1910 = vpop.f32.mrf.mxu0
    %1911 = vmatprep.mubr.f32.mxu0 0.0
    %1912 = vmatmul.mubr.f32.gmra.mxu0 %v1836
    %v1913 = vpop.f32.mrf.mxu0
    %v1914 = vadd.f32 %v51, %v1913
    %v1915 = vpop.f32.mrf.mxu0
    %1916 = vdwg.mxu0
    %v1917 = vsel %vm230, %v1909, -inf
    %1918 = vmax.xlane.f32.xlu0 %v1917
    %v1919 = vpop.xlane.xlu0 %1918
    %v1920 = vsel %vm230, %v1914, -inf
    %1921 = vmax.xlane.f32.xlu0 %v1920
    %v1922 = vpop.xlane.xlu0 %1921
    %v1923 = vsub.f32 %v1909, %v1919
    %v1924 = vsub.f32 %v1914, %v1922
    %v1925 = vmul.f32 %v1923, 1.442695
    %v1926 = vpow.pop %v1925
    %v1927 = vmul.f32 %v1924, 1.442695
    %v1928 = vpow.pop %v1927
    %v1929 = vsel %vm230, %v1926, 0.0
    %1930 = vadd.xlane.f32.xlu0 %v1929
    %v1931 = vpop.xlane.xlu0 %1930
    %v1932 = vsel %vm230, %v1928, 0.0
    %1933 = vadd.xlane.f32.xlu0 %v1932
    %v1934 = vpop.xlane.xlu0 %1933
    %v1935 = vrcp.pop %v1931
    %v1936 = vrcp.pop %v1934
    %v1937 = vmul.f32 %v1926, %v1935
    %v1938 = vmul.f32 %v1928, %v1936
    %1939 = vrot.lane.b32.xlu0 %v1620, 56
    %v1940 = vpop.permute.xlu0 %1939
    %1941 = vrot.lane.b32.xlu0 %v1625, 56
    %v1942 = vpop.permute.xlu0 %1941
    %v1946 = vsel %vm230, %v1937, 0
    %v1949 = vsel %vm230, %v1938, 0
    %1951 = vmatprep.subr.mxu0 0.0
    %1952 = vmatpush1.msra.mxu0 0.0
    %1953 = vmatprep.subr.mxu0 0.0
    %1954 = vmatpush1.msra.mxu0 0.0
    %1955 = vmatprep.subr.mxu0 0.0
    %1956 = vmatpush1.msra.mxu0 0.0
    %1957 = vmatprep.subr.mxu0 0.0
    %1958 = vmatpush1.msra.mxu0 0.0
    %1959 = vmatprep.subr.mxu0 0.0
    %1960 = vmatpush1.msra.mxu0 0.0
    %1961 = vmatprep.subr.mxu0 0.0
    %1962 = vmatpush1.msra.mxu0 0.0
    %1963 = vmatprep.subr.mxu0 0.0
    %1964 = vmatpush1.msra.mxu0 0.0
    %1965 = vmatprep.subr.mxu0 0.0
    %1966 = vmatpush1.msra.mxu0 0.0
    %1967 = vmatprep.subr.mxu0 0.0
    %1968 = vmatpush1.msra.mxu0 0.0
    %1969 = vmatprep.subr.mxu0 0.0
    %1970 = vmatpush1.msra.mxu0 0.0
    %1971 = vmatprep.subr.mxu0 0.0
    %1972 = vmatpush1.msra.mxu0 0.0
    %1973 = vmatprep.subr.mxu0 0.0
    %1974 = vmatpush1.msra.mxu0 0.0
    %1975 = vmatprep.subr.mxu0 0.0
    %1976 = vmatpush1.msra.mxu0 0.0
    %1977 = vmatprep.subr.mxu0 0.0
    %1978 = vmatpush1.msra.mxu0 0.0
    %1979 = vmatprep.subr.mxu0 0.0
    %1980 = vmatpush1.msra.mxu0 %v1942
    %1981 = vmatprep.subr.mxu0 0.0
    %1982 = vmatpush1.msra.mxu0 %v1940
    %1983 = vmatprep.subr.mxu0 0.0
    %1984 = vmatpush2.msra.mxu0 0.0
    %1985 = vmatprep.subr.mxu0 0.0
    %1986 = vmatpush2.msra.mxu0 0.0
    %1987 = vmatprep.subr.mxu0 0.0
    %1988 = vmatpush2.msra.mxu0 0.0
    %1989 = vmatprep.subr.mxu0 0.0
    %1990 = vmatpush2.msra.mxu0 0.0
    %1991 = vmatprep.subr.mxu0 0.0
    %1992 = vmatpush2.msra.mxu0 0.0
    %1993 = vmatprep.subr.mxu0 0.0
    %1994 = vmatpush2.msra.mxu0 0.0
    %1995 = vmatprep.subr.mxu0 0.0
    %1996 = vmatpush2.msra.mxu0 0.0
    %1997 = vmatprep.subr.mxu0 0.0
    %1998 = vmatpush2.msra.mxu0 0.0
    %1999 = vmatprep.subr.mxu0 0.0
    %2000 = vmatpush2.msra.mxu0 0.0
    %2001 = vmatprep.subr.mxu0 0.0
    %2002 = vmatpush2.msra.mxu0 0.0
    %2003 = vmatprep.subr.mxu0 0.0
    %2004 = vmatpush2.msra.mxu0 0.0
    %2005 = vmatprep.subr.mxu0 0.0
    %2006 = vmatpush2.msra.mxu0 0.0
    %2007 = vmatprep.subr.mxu0 0.0
    %2008 = vmatpush2.msra.mxu0 0.0
    %2009 = vmatprep.subr.mxu0 0.0
    %2010 = vmatpush2.msra.mxu0 0.0
    %2011 = vmatprep.subr.mxu0 0.0
    %2012 = vmatpush2.msra.mxu0 0.0
    %2013 = vmatprep.subr.mxu0 0.0
    %2014 = vmatpush2.msra.mxu0 0.0
    %2015 = vmatprep.mubr.f32.mxu0 0.0
    %2016 = vmatmul.mubr.f32.gmra.mxu0 %v1946
    %v2017 = vpop.f32.mrf.mxu0
    %v2018 = vadd.f32 0.0, %v2017
    %v2019 = vpop.f32.mrf.mxu0
    %2020 = vmatprep.mubr.f32.mxu0 0.0
    %2021 = vmatmul.mubr.f32.gmra.mxu0 %v1949
    %v2022 = vpop.f32.mrf.mxu0
    %v2023 = vadd.f32 0.0, %v2022
    %v2024 = vpop.f32.mrf.mxu0
    %2025 = vdwg.mxu0
    %2026 = vrot.lane.b32.xlu0 %v1620, 112
    %v2027 = vpop.permute.xlu0 %2026
    %2028 = vrot.lane.b32.xlu0 %v1625, 112
    %v2029 = vpop.permute.xlu0 %2028
    %2030 = vrot.lane.b32.xlu0 %v1620, 80
    %v2031 = vpop.permute.xlu0 %2030
    %2032 = vrot.lane.b32.xlu0 %v1625, 80
    %v2033 = vpop.permute.xlu0 %2032
    %v2034 = vsel %vm146, %v2027, 0
    %v2036 = vsel %vm146, %v2029, 0
    %v2038 = vsel %vm146, %v2031, 0
    %v2040 = vsel %vm146, %v2033, 0
    %2042 = vmatprep.subr.mxu0 0.0
    %2043 = vmatpush1.xpose.msra.mxu0 0.0
    %2044 = vmatprep.subr.mxu0 0.0
    %2045 = vmatpush1.xpose.msra.mxu0 0.0
    %2046 = vmatprep.subr.mxu0 0.0
    %2047 = vmatpush1.xpose.msra.mxu0 0.0
    %2048 = vmatprep.subr.mxu0 0.0
    %2049 = vmatpush1.xpose.msra.mxu0 0.0
    %2050 = vmatprep.subr.mxu0 0.0
    %2051 = vmatpush1.xpose.msra.mxu0 0.0
    %2052 = vmatprep.subr.mxu0 0.0
    %2053 = vmatpush1.xpose.msra.mxu0 0.0
    %2054 = vmatprep.subr.mxu0 0.0
    %2055 = vmatpush1.xpose.msra.mxu0 0.0
    %2056 = vmatprep.subr.mxu0 0.0
    %2057 = vmatpush1.xpose.msra.mxu0 0.0
    %2058 = vmatprep.subr.mxu0 0.0
    %2059 = vmatpush1.xpose.msra.mxu0 0.0
    %2060 = vmatprep.subr.mxu0 0.0
    %2061 = vmatpush1.xpose.msra.mxu0 0.0
    %2062 = vmatprep.subr.mxu0 0.0
    %2063 = vmatpush1.xpose.msra.mxu0 0.0
    %2064 = vmatprep.subr.mxu0 0.0
    %2065 = vmatpush1.xpose.msra.mxu0 0.0
    %2066 = vmatprep.subr.mxu0 0.0
    %2067 = vmatpush1.xpose.msra.mxu0 0.0
    %2068 = vmatprep.subr.mxu0 0.0
    %2069 = vmatpush1.xpose.msra.mxu0 0.0
    %2070 = vmatprep.subr.mxu0 0.0
    %2071 = vmatpush1.xpose.msra.mxu0 %v2040
    %2072 = vmatprep.subr.mxu0 0.0
    %2073 = vmatpush1.xpose.msra.mxu0 %v2038
    %2074 = vmatprep.subr.mxu0 0.0
    %2075 = vmatpush2.xpose.msra.mxu0 0.0
    %2076 = vmatprep.subr.mxu0 0.0
    %2077 = vmatpush2.xpose.msra.mxu0 0.0
    %2078 = vmatprep.subr.mxu0 0.0
    %2079 = vmatpush2.xpose.msra.mxu0 0.0
    %2080 = vmatprep.subr.mxu0 0.0
    %2081 = vmatpush2.xpose.msra.mxu0 0.0
    %2082 = vmatprep.subr.mxu0 0.0
    %2083 = vmatpush2.xpose.msra.mxu0 0.0
    %2084 = vmatprep.subr.mxu0 0.0
    %2085 = vmatpush2.xpose.msra.mxu0 0.0
    %2086 = vmatprep.subr.mxu0 0.0
    %2087 = vmatpush2.xpose.msra.mxu0 0.0
    %2088 = vmatprep.subr.mxu0 0.0
    %2089 = vmatpush2.xpose.msra.mxu0 0.0
    %2090 = vmatprep.subr.mxu0 0.0
    %2091 = vmatpush2.xpose.msra.mxu0 0.0
    %2092 = vmatprep.subr.mxu0 0.0
    %2093 = vmatpush2.xpose.msra.mxu0 0.0
    %2094 = vmatprep.subr.mxu0 0.0
    %2095 = vmatpush2.xpose.msra.mxu0 0.0
    %2096 = vmatprep.subr.mxu0 0.0
    %2097 = vmatpush2.xpose.msra.mxu0 0.0
    %2098 = vmatprep.subr.mxu0 0.0
    %2099 = vmatpush2.xpose.msra.mxu0 0.0
    %2100 = vmatprep.subr.mxu0 0.0
    %2101 = vmatpush2.xpose.msra.mxu0 0.0
    %2102 = vmatprep.subr.mxu0 0.0
    %2103 = vmatpush2.xpose.msra.mxu0 0.0
    %2104 = vmatprep.subr.mxu0 0.0
    %2105 = vmatpush2.xpose.msra.mxu0 0.0
    %2106 = vmatprep.mubr.f32.mxu0 0.0
    %2107 = vmatmul.mubr.f32.gmra.mxu0 %v2034
    %v2108 = vpop.f32.mrf.mxu0
    %v2109 = vadd.f32 %v50, %v2108
    %v2110 = vpop.f32.mrf.mxu0
    %2111 = vmatprep.mubr.f32.mxu0 0.0
    %2112 = vmatmul.mubr.f32.gmra.mxu0 %v2036
    %v2113 = vpop.f32.mrf.mxu0
    %v2114 = vadd.f32 %v51, %v2113
    %v2115 = vpop.f32.mrf.mxu0
    %2116 = vdwg.mxu0
    %v2117 = vsel %vm230, %v2109, -inf
    %2118 = vmax.xlane.f32.xlu0 %v2117
    %v2119 = vpop.xlane.xlu0 %2118
    %v2120 = vsel %vm230, %v2114, -inf
    %2121 = vmax.xlane.f32.xlu0 %v2120
    %v2122 = vpop.xlane.xlu0 %2121
    %v2123 = vsub.f32 %v2109, %v2119
    %v2124 = vsub.f32 %v2114, %v2122
    %v2125 = vmul.f32 %v2123, 1.442695
    %v2126 = vpow.pop %v2125
    %v2127 = vmul.f32 %v2124, 1.442695
    %v2128 = vpow.pop %v2127
    %v2129 = vsel %vm230, %v2126, 0.0
    %2130 = vadd.xlane.f32.xlu0 %v2129
    %v2131 = vpop.xlane.xlu0 %2130
    %v2132 = vsel %vm230, %v2128, 0.0
    %2133 = vadd.xlane.f32.xlu0 %v2132
    %v2134 = vpop.xlane.xlu0 %2133
    %v2135 = vrcp.pop %v2131
    %v2136 = vrcp.pop %v2134
    %v2137 = vmul.f32 %v2126, %v2135
    %v2138 = vmul.f32 %v2128, %v2136
    %2139 = vrot.lane.b32.xlu0 %v1620, 48
    %v2140 = vpop.permute.xlu0 %2139
    %2141 = vrot.lane.b32.xlu0 %v1625, 48
    %v2142 = vpop.permute.xlu0 %2141
    %v2146 = vsel %vm230, %v2137, 0
    %v2149 = vsel %vm230, %v2138, 0
    %2151 = vmatprep.subr.mxu0 0.0
    %2152 = vmatpush1.msra.mxu0 0.0
    %2153 = vmatprep.subr.mxu0 0.0
    %2154 = vmatpush1.msra.mxu0 0.0
    %2155 = vmatprep.subr.mxu0 0.0
    %2156 = vmatpush1.msra.mxu0 0.0
    %2157 = vmatprep.subr.mxu0 0.0
    %2158 = vmatpush1.msra.mxu0 0.0
    %2159 = vmatprep.subr.mxu0 0.0
    %2160 = vmatpush1.msra.mxu0 0.0
    %2161 = vmatprep.subr.mxu0 0.0
    %2162 = vmatpush1.msra.mxu0 0.0
    %2163 = vmatprep.subr.mxu0 0.0
    %2164 = vmatpush1.msra.mxu0 0.0
    %2165 = vmatprep.subr.mxu0 0.0
    %2166 = vmatpush1.msra.mxu0 0.0
    %2167 = vmatprep.subr.mxu0 0.0
    %2168 = vmatpush1.msra.mxu0 0.0
    %2169 = vmatprep.subr.mxu0 0.0
    %2170 = vmatpush1.msra.mxu0 0.0
    %2171 = vmatprep.subr.mxu0 0.0
    %2172 = vmatpush1.msra.mxu0 0.0
    %2173 = vmatprep.subr.mxu0 0.0
    %2174 = vmatpush1.msra.mxu0 0.0
    %2175 = vmatprep.subr.mxu0 0.0
    %2176 = vmatpush1.msra.mxu0 0.0
    %2177 = vmatprep.subr.mxu0 0.0
    %2178 = vmatpush1.msra.mxu0 0.0
    %2179 = vmatprep.subr.mxu0 0.0
    %2180 = vmatpush1.msra.mxu0 %v2142
    %2181 = vmatprep.subr.mxu0 0.0
    %2182 = vmatpush1.msra.mxu0 %v2140
    %2183 = vmatprep.subr.mxu0 0.0
    %2184 = vmatpush2.msra.mxu0 0.0
    %2185 = vmatprep.subr.mxu0 0.0
    %2186 = vmatpush2.msra.mxu0 0.0
    %2187 = vmatprep.subr.mxu0 0.0
    %2188 = vmatpush2.msra.mxu0 0.0
    %2189 = vmatprep.subr.mxu0 0.0
    %2190 = vmatpush2.msra.mxu0 0.0
    %2191 = vmatprep.subr.mxu0 0.0
    %2192 = vmatpush2.msra.mxu0 0.0
    %2193 = vmatprep.subr.mxu0 0.0
    %2194 = vmatpush2.msra.mxu0 0.0
    %2195 = vmatprep.subr.mxu0 0.0
    %2196 = vmatpush2.msra.mxu0 0.0
    %2197 = vmatprep.subr.mxu0 0.0
    %2198 = vmatpush2.msra.mxu0 0.0
    %2199 = vmatprep.subr.mxu0 0.0
    %2200 = vmatpush2.msra.mxu0 0.0
    %2201 = vmatprep.subr.mxu0 0.0
    %2202 = vmatpush2.msra.mxu0 0.0
    %2203 = vmatprep.subr.mxu0 0.0
    %2204 = vmatpush2.msra.mxu0 0.0
    %2205 = vmatprep.subr.mxu0 0.0
    %2206 = vmatpush2.msra.mxu0 0.0
    %2207 = vmatprep.subr.mxu0 0.0
    %2208 = vmatpush2.msra.mxu0 0.0
    %2209 = vmatprep.subr.mxu0 0.0
    %2210 = vmatpush2.msra.mxu0 0.0
    %2211 = vmatprep.subr.mxu0 0.0
    %2212 = vmatpush2.msra.mxu0 0.0
    %2213 = vmatprep.subr.mxu0 0.0
    %2214 = vmatpush2.msra.mxu0 0.0
    %2215 = vmatprep.mubr.f32.mxu0 0.0
    %2216 = vmatmul.mubr.f32.gmra.mxu0 %v2146
    %v2217 = vpop.f32.mrf.mxu0
    %v2218 = vadd.f32 0.0, %v2217
    %v2219 = vpop.f32.mrf.mxu0
    %2220 = vmatprep.mubr.f32.mxu0 0.0
    %2221 = vmatmul.mubr.f32.gmra.mxu0 %v2149
    %v2222 = vpop.f32.mrf.mxu0
    %v2223 = vadd.f32 0.0, %v2222
    %v2224 = vpop.f32.mrf.mxu0
    %2225 = vdwg.mxu0
    %2226 = vrot.lane.b32.xlu0 %v1620, 104
    %v2227 = vpop.permute.xlu0 %2226
    %2228 = vrot.lane.b32.xlu0 %v1625, 104
    %v2229 = vpop.permute.xlu0 %2228
    %2230 = vrot.lane.b32.xlu0 %v1620, 72
    %v2231 = vpop.permute.xlu0 %2230
    %2232 = vrot.lane.b32.xlu0 %v1625, 72
    %v2233 = vpop.permute.xlu0 %2232
    %v2234 = vsel %vm146, %v2227, 0
    %v2236 = vsel %vm146, %v2229, 0
    %v2238 = vsel %vm146, %v2231, 0
    %v2240 = vsel %vm146, %v2233, 0
    %2242 = vmatprep.subr.mxu0 0.0
    %2243 = vmatpush1.xpose.msra.mxu0 0.0
    %2244 = vmatprep.subr.mxu0 0.0
    %2245 = vmatpush1.xpose.msra.mxu0 0.0
    %2246 = vmatprep.subr.mxu0 0.0
    %2247 = vmatpush1.xpose.msra.mxu0 0.0
    %2248 = vmatprep.subr.mxu0 0.0
    %2249 = vmatpush1.xpose.msra.mxu0 0.0
    %2250 = vmatprep.subr.mxu0 0.0
    %2251 = vmatpush1.xpose.msra.mxu0 0.0
    %2252 = vmatprep.subr.mxu0 0.0
    %2253 = vmatpush1.xpose.msra.mxu0 0.0
    %2254 = vmatprep.subr.mxu0 0.0
    %2255 = vmatpush1.xpose.msra.mxu0 0.0
    %2256 = vmatprep.subr.mxu0 0.0
    %2257 = vmatpush1.xpose.msra.mxu0 0.0
    %2258 = vmatprep.subr.mxu0 0.0
    %2259 = vmatpush1.xpose.msra.mxu0 0.0
    %2260 = vmatprep.subr.mxu0 0.0
    %2261 = vmatpush1.xpose.msra.mxu0 0.0
    %2262 = vmatprep.subr.mxu0 0.0
    %2263 = vmatpush1.xpose.msra.mxu0 0.0
    %2264 = vmatprep.subr.mxu0 0.0
    %2265 = vmatpush1.xpose.msra.mxu0 0.0
    %2266 = vmatprep.subr.mxu0 0.0
    %2267 = vmatpush1.xpose.msra.mxu0 0.0
    %2268 = vmatprep.subr.mxu0 0.0
    %2269 = vmatpush1.xpose.msra.mxu0 0.0
    %2270 = vmatprep.subr.mxu0 0.0
    %2271 = vmatpush1.xpose.msra.mxu0 %v2240
    %2272 = vmatprep.subr.mxu0 0.0
    %2273 = vmatpush1.xpose.msra.mxu0 %v2238
    %2274 = vmatprep.subr.mxu0 0.0
    %2275 = vmatpush2.xpose.msra.mxu0 0.0
    %2276 = vmatprep.subr.mxu0 0.0
    %2277 = vmatpush2.xpose.msra.mxu0 0.0
    %2278 = vmatprep.subr.mxu0 0.0
    %2279 = vmatpush2.xpose.msra.mxu0 0.0
    %2280 = vmatprep.subr.mxu0 0.0
    %2281 = vmatpush2.xpose.msra.mxu0 0.0
    %2282 = vmatprep.subr.mxu0 0.0
    %2283 = vmatpush2.xpose.msra.mxu0 0.0
    %2284 = vmatprep.subr.mxu0 0.0
    %2285 = vmatpush2.xpose.msra.mxu0 0.0
    %2286 = vmatprep.subr.mxu0 0.0
    %2287 = vmatpush2.xpose.msra.mxu0 0.0
    %2288 = vmatprep.subr.mxu0 0.0
    %2289 = vmatpush2.xpose.msra.mxu0 0.0
    %2290 = vmatprep.subr.mxu0 0.0
    %2291 = vmatpush2.xpose.msra.mxu0 0.0
    %2292 = vmatprep.subr.mxu0 0.0
    %2293 = vmatpush2.xpose.msra.mxu0 0.0
    %2294 = vmatprep.subr.mxu0 0.0
    %2295 = vmatpush2.xpose.msra.mxu0 0.0
    %2296 = vmatprep.subr.mxu0 0.0
    %2297 = vmatpush2.xpose.msra.mxu0 0.0
    %2298 = vmatprep.subr.mxu0 0.0
    %2299 = vmatpush2.xpose.msra.mxu0 0.0
    %2300 = vmatprep.subr.mxu0 0.0
    %2301 = vmatpush2.xpose.msra.mxu0 0.0
    %2302 = vmatprep.subr.mxu0 0.0
    %2303 = vmatpush2.xpose.msra.mxu0 0.0
    %2304 = vmatprep.subr.mxu0 0.0
    %2305 = vmatpush2.xpose.msra.mxu0 0.0
    %2306 = vmatprep.mubr.f32.mxu0 0.0
    %2307 = vmatmul.mubr.f32.gmra.mxu0 %v2234
    %v2308 = vpop.f32.mrf.mxu0
    %v2309 = vadd.f32 %v50, %v2308
    %v2310 = vpop.f32.mrf.mxu0
    %2311 = vmatprep.mubr.f32.mxu0 0.0
    %2312 = vmatmul.mubr.f32.gmra.mxu0 %v2236
    %v2313 = vpop.f32.mrf.mxu0
    %v2314 = vadd.f32 %v51, %v2313
    %v2315 = vpop.f32.mrf.mxu0
    %2316 = vdwg.mxu0
    %v2317 = vsel %vm230, %v2309, -inf
    %2318 = vmax.xlane.f32.xlu0 %v2317
    %v2319 = vpop.xlane.xlu0 %2318
    %v2320 = vsel %vm230, %v2314, -inf
    %2321 = vmax.xlane.f32.xlu0 %v2320
    %v2322 = vpop.xlane.xlu0 %2321
    %v2323 = vsub.f32 %v2309, %v2319
    %v2324 = vsub.f32 %v2314, %v2322
    %v2325 = vmul.f32 %v2323, 1.442695
    %v2326 = vpow.pop %v2325
    %v2327 = vmul.f32 %v2324, 1.442695
    %v2328 = vpow.pop %v2327
    %v2329 = vsel %vm230, %v2326, 0.0
    %2330 = vadd.xlane.f32.xlu0 %v2329
    %v2331 = vpop.xlane.xlu0 %2330
    %v2332 = vsel %vm230, %v2328, 0.0
    %2333 = vadd.xlane.f32.xlu0 %v2332
    %v2334 = vpop.xlane.xlu0 %2333
    %v2335 = vrcp.pop %v2331
    %v2336 = vrcp.pop %v2334
    %v2337 = vmul.f32 %v2326, %v2335
    %v2338 = vmul.f32 %v2328, %v2336
    %2339 = vrot.lane.b32.xlu0 %v1620, 40
    %v2340 = vpop.permute.xlu0 %2339
    %2341 = vrot.lane.b32.xlu0 %v1625, 40
    %v2342 = vpop.permute.xlu0 %2341
    %v2346 = vsel %vm230, %v2337, 0
    %v2349 = vsel %vm230, %v2338, 0
    %2351 = vmatprep.subr.mxu0 0.0
    %2352 = vmatpush1.msra.mxu0 0.0
    %2353 = vmatprep.subr.mxu0 0.0
    %2354 = vmatpush1.msra.mxu0 0.0
    %2355 = vmatprep.subr.mxu0 0.0
    %2356 = vmatpush1.msra.mxu0 0.0
    %2357 = vmatprep.subr.mxu0 0.0
    %2358 = vmatpush1.msra.mxu0 0.0
    %2359 = vmatprep.subr.mxu0 0.0
    %2360 = vmatpush1.msra.mxu0 0.0
    %2361 = vmatprep.subr.mxu0 0.0
    %2362 = vmatpush1.msra.mxu0 0.0
    %2363 = vmatprep.subr.mxu0 0.0
    %2364 = vmatpush1.msra.mxu0 0.0
    %2365 = vmatprep.subr.mxu0 0.0
    %2366 = vmatpush1.msra.mxu0 0.0
    %2367 = vmatprep.subr.mxu0 0.0
    %2368 = vmatpush1.msra.mxu0 0.0
    %2369 = vmatprep.subr.mxu0 0.0
    %2370 = vmatpush1.msra.mxu0 0.0
    %2371 = vmatprep.subr.mxu0 0.0
    %2372 = vmatpush1.msra.mxu0 0.0
    %2373 = vmatprep.subr.mxu0 0.0
    %2374 = vmatpush1.msra.mxu0 0.0
    %2375 = vmatprep.subr.mxu0 0.0
    %2376 = vmatpush1.msra.mxu0 0.0
    %2377 = vmatprep.subr.mxu0 0.0
    %2378 = vmatpush1.msra.mxu0 0.0
    %2379 = vmatprep.subr.mxu0 0.0
    %2380 = vmatpush1.msra.mxu0 %v2342
    %2381 = vmatprep.subr.mxu0 0.0
    %2382 = vmatpush1.msra.mxu0 %v2340
    %2383 = vmatprep.subr.mxu0 0.0
    %2384 = vmatpush2.msra.mxu0 0.0
    %2385 = vmatprep.subr.mxu0 0.0
    %2386 = vmatpush2.msra.mxu0 0.0
    %2387 = vmatprep.subr.mxu0 0.0
    %2388 = vmatpush2.msra.mxu0 0.0
    %2389 = vmatprep.subr.mxu0 0.0
    %2390 = vmatpush2.msra.mxu0 0.0
    %2391 = vmatprep.subr.mxu0 0.0
    %2392 = vmatpush2.msra.mxu0 0.0
    %2393 = vmatprep.subr.mxu0 0.0
    %2394 = vmatpush2.msra.mxu0 0.0
    %2395 = vmatprep.subr.mxu0 0.0
    %2396 = vmatpush2.msra.mxu0 0.0
    %2397 = vmatprep.subr.mxu0 0.0
    %2398 = vmatpush2.msra.mxu0 0.0
    %2399 = vmatprep.subr.mxu0 0.0
    %2400 = vmatpush2.msra.mxu0 0.0
    %2401 = vmatprep.subr.mxu0 0.0
    %2402 = vmatpush2.msra.mxu0 0.0
    %2403 = vmatprep.subr.mxu0 0.0
    %2404 = vmatpush2.msra.mxu0 0.0
    %2405 = vmatprep.subr.mxu0 0.0
    %2406 = vmatpush2.msra.mxu0 0.0
    %2407 = vmatprep.subr.mxu0 0.0
    %2408 = vmatpush2.msra.mxu0 0.0
    %2409 = vmatprep.subr.mxu0 0.0
    %2410 = vmatpush2.msra.mxu0 0.0
    %2411 = vmatprep.subr.mxu0 0.0
    %2412 = vmatpush2.msra.mxu0 0.0
    %2413 = vmatprep.subr.mxu0 0.0
    %2414 = vmatpush2.msra.mxu0 0.0
    %2415 = vmatprep.mubr.f32.mxu0 0.0
    %2416 = vmatmul.mubr.f32.gmra.mxu0 %v2346
    %v2417 = vpop.f32.mrf.mxu0
    %v2418 = vadd.f32 0.0, %v2417
    %v2419 = vpop.f32.mrf.mxu0
    %2420 = vmatprep.mubr.f32.mxu0 0.0
    %2421 = vmatmul.mubr.f32.gmra.mxu0 %v2349
    %v2422 = vpop.f32.mrf.mxu0
    %v2423 = vadd.f32 0.0, %v2422
    %v2424 = vpop.f32.mrf.mxu0
    %2425 = vdwg.mxu0
    %2428 = vrot.lane.b32.xlu0 %v2018, 8
    %v2429 = vpop.permute.xlu0 %2428
    %2430 = vrot.lane.b32.xlu0 %v2023, 8
    %v2431 = vpop.permute.xlu0 %2430
    %2436 = vrot.lane.b32.xlu0 %v2218, 16
    %v2437 = vpop.permute.xlu0 %2436
    %2438 = vrot.lane.b32.xlu0 %v2223, 16
    %v2439 = vpop.permute.xlu0 %2438
    %2444 = vrot.lane.b32.xlu0 %v2418, 24
    %v2445 = vpop.permute.xlu0 %2444
    %2446 = vrot.lane.b32.xlu0 %v2423, 24
    %v2447 = vpop.permute.xlu0 %2446
    %v2450 = vsel %vm146, %v1818, %v2429
    %v2451 = vsel %vm146, %v1823, %v2431
    %v2452 = vsel %vm230, %v2450, %v2437
    %v2453 = vsel %vm230, %v2451, %v2439
    %v2454 = vsel %vm968, %v2452, %v2445
    %v2455 = vsel %vm968, %v2453, %v2447
    %s2456 = scalar_lea.vmem %s4, 32
    %v2457 = vld [vmem:[%s2456] sm:$0xff]
    %v2458 = vld [vmem:[%s2456 + $0x8] sm:$0xff]
    %v2459 = vld [vmem:[%s2456 + $0x10] sm:$0xff]
    %v2460 = vld [vmem:[%s2456 + $0x18] sm:$0xff]
    %s2461 = scalar_lea.vmem %s5, 16
    %v2462 = vld [vmem:[%s2461] sm:$0xff]
    %v2463 = vld [vmem:[%s2461 + $0x8] sm:$0xff]
    %v2465 = vsel %vm58, %v2454, 0
    %v2468 = vsel %vm58, %v2455, 0
    %2470 = vmatprep.subr.mxu0 0.0
    %2471 = vmatpush1.msra.mxu0 0.0
    %2472 = vmatprep.subr.mxu0 0.0
    %2473 = vmatpush1.msra.mxu0 0.0
    %2474 = vmatprep.subr.mxu0 0.0
    %2475 = vmatpush1.msra.mxu0 0.0
    %2476 = vmatprep.subr.mxu0 0.0
    %2477 = vmatpush1.msra.mxu0 0.0
    %2478 = vmatprep.subr.mxu0 0.0
    %2479 = vmatpush1.msra.mxu0 0.0
    %2480 = vmatprep.subr.mxu0 0.0
    %2481 = vmatpush1.msra.mxu0 0.0
    %2482 = vmatprep.subr.mxu0 0.0
    %2483 = vmatpush1.msra.mxu0 0.0
    %2484 = vmatprep.subr.mxu0 0.0
    %2485 = vmatpush1.msra.mxu0 0.0
    %2486 = vmatprep.subr.mxu0 0.0
    %2487 = vmatpush1.msra.mxu0 0.0
    %2488 = vmatprep.subr.mxu0 0.0
    %2489 = vmatpush1.msra.mxu0 0.0
    %2490 = vmatprep.subr.mxu0 0.0
    %2491 = vmatpush1.msra.mxu0 0.0
    %2492 = vmatprep.subr.mxu0 0.0
    %2493 = vmatpush1.msra.mxu0 0.0
    %2494 = vmatprep.subr.mxu0 0.0
    %2495 = vmatpush1.msra.mxu0 %v2460
    %2496 = vmatprep.subr.mxu0 0.0
    %2497 = vmatpush1.msra.mxu0 %v2459
    %2498 = vmatprep.subr.mxu0 0.0
    %2499 = vmatpush1.msra.mxu0 %v2458
    %2500 = vmatprep.subr.mxu0 0.0
    %2501 = vmatpush1.msra.mxu0 %v2457
    %2502 = vmatprep.subr.mxu0 0.0
    %2503 = vmatpush2.msra.mxu0 0.0
    %2504 = vmatprep.subr.mxu0 0.0
    %2505 = vmatpush2.msra.mxu0 0.0
    %2506 = vmatprep.subr.mxu0 0.0
    %2507 = vmatpush2.msra.mxu0 0.0
    %2508 = vmatprep.subr.mxu0 0.0
    %2509 = vmatpush2.msra.mxu0 0.0
    %2510 = vmatprep.subr.mxu0 0.0
    %2511 = vmatpush2.msra.mxu0 0.0
    %2512 = vmatprep.subr.mxu0 0.0
    %2513 = vmatpush2.msra.mxu0 0.0
    %2514 = vmatprep.subr.mxu0 0.0
    %2515 = vmatpush2.msra.mxu0 0.0
    %2516 = vmatprep.subr.mxu0 0.0
    %2517 = vmatpush2.msra.mxu0 0.0
    %2518 = vmatprep.subr.mxu0 0.0
    %2519 = vmatpush2.msra.mxu0 0.0
    %2520 = vmatprep.subr.mxu0 0.0
    %2521 = vmatpush2.msra.mxu0 0.0
    %2522 = vmatprep.subr.mxu0 0.0
    %2523 = vmatpush2.msra.mxu0 0.0
    %2524 = vmatprep.subr.mxu0 0.0
    %2525 = vmatpush2.msra.mxu0 0.0
    %2526 = vmatprep.subr.mxu0 0.0
    %2527 = vmatpush2.msra.mxu0 0.0
    %2528 = vmatprep.subr.mxu0 0.0
    %2529 = vmatpush2.msra.mxu0 0.0
    %2530 = vmatprep.subr.mxu0 0.0
    %2531 = vmatpush2.msra.mxu0 0.0
    %2532 = vmatprep.subr.mxu0 0.0
    %2533 = vmatpush2.msra.mxu0 0.0
    %2534 = vmatprep.mubr.f32.mxu0 0.0
    %2535 = vmatmul.mubr.f32.gmra.mxu0 %v2465
    %v2536 = vpop.f32.mrf.mxu0
    %v2537 = vadd.f32 %v2462, %v2536
    %v2538 = vpop.f32.mrf.mxu0
    %2539 = vmatprep.mubr.f32.mxu0 0.0
    %2540 = vmatmul.mubr.f32.gmra.mxu0 %v2468
    %v2541 = vpop.f32.mrf.mxu0
    %v2542 = vadd.f32 %v2463, %v2541
    %v2543 = vpop.f32.mrf.mxu0
    %2544 = vdwg.mxu0
    %v2545 = vadd.f32 %v1537, %v2537
    %v2546 = vadd.f32 %v1538, %v2542
    %s2547 = scalar_lea.vmem %s10, 16
    %v2548 = vld [vmem:[%s2547] sm:$0xff]
    %v2549 = vld [vmem:[%s2547 + $0x8] sm:$0xff]
    %s2550 = scalar_lea.vmem %s11, 16
    %v2551 = vld [vmem:[%s2550] sm:$0xff]
    %v2552 = vld [vmem:[%s2550 + $0x8] sm:$0xff]
    %v2553 = vsel %vm58, %v2545, 0.0
    %2554 = vadd.xlane.f32.xlu0 %v2553
    %v2555 = vpop.xlane.xlu0 %2554
    %v2556 = vsel %vm58, %v2546, 0.0
    %2557 = vadd.xlane.f32.xlu0 %v2556
    %v2558 = vpop.xlane.xlu0 %2557
    %v2559 = vmul.f32 %v2555, %v1070
    %v2560 = vmul.f32 %v2558, %v1070
    %v2561 = vsub.f32 %v2545, %v2559
    %v2562 = vsub.f32 %v2546, %v2560
    %v2563 = vmul.f32 %v2561, %v2561
    %v2564 = vmul.f32 %v2562, %v2562
    %v2565 = vsel %vm58, %v2563, 0.0
    %2566 = vadd.xlane.f32.xlu0 %v2565
    %v2567 = vpop.xlane.xlu0 %2566
    %v2568 = vsel %vm58, %v2564, 0.0
    %2569 = vadd.xlane.f32.xlu0 %v2568
    %v2570 = vpop.xlane.xlu0 %2569
    %v2571 = vmul.f32 %v2567, %v1070
    %v2572 = vmul.f32 %v2570, %v1070
    %v2573 = vadd.f32 %v2571, 1e-05
    %v2574 = vadd.f32 %v2572, 1e-05
    %v2575 = vrsqrt.pop %v2573
    %v2576 = vrsqrt.pop %v2574
    %v2577 = vmul.f32 %v2561, %v2575
    %v2578 = vmul.f32 %v2562, %v2576
    %v2579 = vmul.f32 %v2577, %v2548
    %v2580 = vmul.f32 %v2578, %v2549
    %v2581 = vadd.f32 %v2579, %v2551
    %v2582 = vadd.f32 %v2580, %v2552
    %s2583 = scalar_lea.vmem %s6, 128
    %v2584 = vld [vmem:[%s2583] sm:$0xff]
    %v2585 = vld [vmem:[%s2583 + $0x8] sm:$0xff]
    %v2586 = vld [vmem:[%s2583 + $0x10] sm:$0xff]
    %v2587 = vld [vmem:[%s2583 + $0x18] sm:$0xff]
    %v2588 = vld [vmem:[%s2583 + $0x20] sm:$0xff]
    %v2589 = vld [vmem:[%s2583 + $0x28] sm:$0xff]
    %v2590 = vld [vmem:[%s2583 + $0x30] sm:$0xff]
    %v2591 = vld [vmem:[%s2583 + $0x38] sm:$0xff]
    %v2592 = vld [vmem:[%s2583 + $0x40] sm:$0xff]
    %v2593 = vld [vmem:[%s2583 + $0x48] sm:$0xff]
    %v2594 = vld [vmem:[%s2583 + $0x50] sm:$0xff]
    %v2595 = vld [vmem:[%s2583 + $0x58] sm:$0xff]
    %v2596 = vld [vmem:[%s2583 + $0x60] sm:$0xff]
    %v2597 = vld [vmem:[%s2583 + $0x68] sm:$0xff]
    %v2598 = vld [vmem:[%s2583 + $0x70] sm:$0xff]
    %v2599 = vld [vmem:[%s2583 + $0x78] sm:$0xff]
    %s2600 = scalar_lea.vmem %s7, 64
    %v2601 = vld [vmem:[%s2600] sm:$0xff]
    %v2602 = vld [vmem:[%s2600 + $0x8] sm:$0xff]
    %v2603 = vld [vmem:[%s2600 + $0x10] sm:$0xff]
    %v2604 = vld [vmem:[%s2600 + $0x18] sm:$0xff]
    %v2605 = vld [vmem:[%s2600 + $0x20] sm:$0xff]
    %v2606 = vld [vmem:[%s2600 + $0x28] sm:$0xff]
    %v2607 = vld [vmem:[%s2600 + $0x30] sm:$0xff]
    %v2608 = vld [vmem:[%s2600 + $0x38] sm:$0xff]
    %v2610 = vsel %vm58, %v2581, 0
    %v2613 = vsel %vm58, %v2582, 0
    %2615 = vmatprep.subr.mxu0 0.0
    %2616 = vmatpush1.msra.mxu0 0.0
    %2617 = vmatprep.subr.mxu0 0.0
    %2618 = vmatpush1.msra.mxu0 0.0
    %2619 = vmatprep.subr.mxu0 0.0
    %2620 = vmatpush1.msra.mxu0 0.0
    %2621 = vmatprep.subr.mxu0 0.0
    %2622 = vmatpush1.msra.mxu0 0.0
    %2623 = vmatprep.subr.mxu0 0.0
    %2624 = vmatpush1.msra.mxu0 0.0
    %2625 = vmatprep.subr.mxu0 0.0
    %2626 = vmatpush1.msra.mxu0 0.0
    %2627 = vmatprep.subr.mxu0 0.0
    %2628 = vmatpush1.msra.mxu0 0.0
    %2629 = vmatprep.subr.mxu0 0.0
    %2630 = vmatpush1.msra.mxu0 0.0
    %2631 = vmatprep.subr.mxu0 0.0
    %2632 = vmatpush1.msra.mxu0 0.0
    %2633 = vmatprep.subr.mxu0 0.0
    %2634 = vmatpush1.msra.mxu0 0.0
    %2635 = vmatprep.subr.mxu0 0.0
    %2636 = vmatpush1.msra.mxu0 0.0
    %2637 = vmatprep.subr.mxu0 0.0
    %2638 = vmatpush1.msra.mxu0 0.0
    %2639 = vmatprep.subr.mxu0 %v2597
    %2640 = vmatpush1.msra.mxu0 %v2596
    %2641 = vmatprep.subr.mxu0 %v2593
    %2642 = vmatpush1.msra.mxu0 %v2592
    %2643 = vmatprep.subr.mxu0 %v2589
    %2644 = vmatpush1.msra.mxu0 %v2588
    %2645 = vmatprep.subr.mxu0 %v2585
    %2646 = vmatpush1.msra.mxu0 %v2584
    %2647 = vmatprep.subr.mxu0 0.0
    %2648 = vmatpush2.msra.mxu0 0.0
    %2649 = vmatprep.subr.mxu0 0.0
    %2650 = vmatpush2.msra.mxu0 0.0
    %2651 = vmatprep.subr.mxu0 0.0
    %2652 = vmatpush2.msra.mxu0 0.0
    %2653 = vmatprep.subr.mxu0 0.0
    %2654 = vmatpush2.msra.mxu0 0.0
    %2655 = vmatprep.subr.mxu0 0.0
    %2656 = vmatpush2.msra.mxu0 0.0
    %2657 = vmatprep.subr.mxu0 0.0
    %2658 = vmatpush2.msra.mxu0 0.0
    %2659 = vmatprep.subr.mxu0 0.0
    %2660 = vmatpush2.msra.mxu0 0.0
    %2661 = vmatprep.subr.mxu0 0.0
    %2662 = vmatpush2.msra.mxu0 0.0
    %2663 = vmatprep.subr.mxu0 0.0
    %2664 = vmatpush2.msra.mxu0 0.0
    %2665 = vmatprep.subr.mxu0 0.0
    %2666 = vmatpush2.msra.mxu0 0.0
    %2667 = vmatprep.subr.mxu0 0.0
    %2668 = vmatpush2.msra.mxu0 0.0
    %2669 = vmatprep.subr.mxu0 0.0
    %2670 = vmatpush2.msra.mxu0 0.0
    %2671 = vmatprep.subr.mxu0 0.0
    %2672 = vmatpush2.msra.mxu0 0.0
    %2673 = vmatprep.subr.mxu0 0.0
    %2674 = vmatpush2.msra.mxu0 0.0
    %2675 = vmatprep.subr.mxu0 0.0
    %2676 = vmatpush2.msra.mxu0 0.0
    %2677 = vmatprep.subr.mxu0 0.0
    %2678 = vmatpush2.msra.mxu0 0.0
    %2679 = vmatprep.mubr.f32.mxu0 0.0
    %2680 = vmatmul.mubr.f32.gmra.mxu0 %v2610
    %v2681 = vpop.f32.mrf.mxu0
    %v2682 = vadd.f32 %v2601, %v2681
    %v2683 = vpop.f32.mrf.mxu0
    %v2684 = vadd.f32 %v2602, %v2683
    %2685 = vmatprep.mubr.f32.mxu0 0.0
    %2686 = vmatmul.mubr.f32.gmra.mxu0 %v2613
    %v2687 = vpop.f32.mrf.mxu0
    %v2688 = vadd.f32 %v2605, %v2687
    %v2689 = vpop.f32.mrf.mxu0
    %v2690 = vadd.f32 %v2606, %v2689
    %2691 = vdwg.mxu0
    %2692 = vmatprep.subr.mxu0 0.0
    %2693 = vmatpush1.msra.mxu0 0.0
    %2694 = vmatprep.subr.mxu0 0.0
    %2695 = vmatpush1.msra.mxu0 0.0
    %2696 = vmatprep.subr.mxu0 0.0
    %2697 = vmatpush1.msra.mxu0 0.0
    %2698 = vmatprep.subr.mxu0 0.0
    %2699 = vmatpush1.msra.mxu0 0.0
    %2700 = vmatprep.subr.mxu0 0.0
    %2701 = vmatpush1.msra.mxu0 0.0
    %2702 = vmatprep.subr.mxu0 0.0
    %2703 = vmatpush1.msra.mxu0 0.0
    %2704 = vmatprep.subr.mxu0 0.0
    %2705 = vmatpush1.msra.mxu0 0.0
    %2706 = vmatprep.subr.mxu0 0.0
    %2707 = vmatpush1.msra.mxu0 0.0
    %2708 = vmatprep.subr.mxu0 0.0
    %2709 = vmatpush1.msra.mxu0 0.0
    %2710 = vmatprep.subr.mxu0 0.0
    %2711 = vmatpush1.msra.mxu0 0.0
    %2712 = vmatprep.subr.mxu0 0.0
    %2713 = vmatpush1.msra.mxu0 0.0
    %2714 = vmatprep.subr.mxu0 0.0
    %2715 = vmatpush1.msra.mxu0 0.0
    %2716 = vmatprep.subr.mxu0 %v2599
    %2717 = vmatpush1.msra.mxu0 %v2598
    %2718 = vmatprep.subr.mxu0 %v2595
    %2719 = vmatpush1.msra.mxu0 %v2594
    %2720 = vmatprep.subr.mxu0 %v2591
    %2721 = vmatpush1.msra.mxu0 %v2590
    %2722 = vmatprep.subr.mxu0 %v2587
    %2723 = vmatpush1.msra.mxu0 %v2586
    %2724 = vmatprep.subr.mxu0 0.0
    %2725 = vmatpush2.msra.mxu0 0.0
    %2726 = vmatprep.subr.mxu0 0.0
    %2727 = vmatpush2.msra.mxu0 0.0
    %2728 = vmatprep.subr.mxu0 0.0
    %2729 = vmatpush2.msra.mxu0 0.0
    %2730 = vmatprep.subr.mxu0 0.0
    %2731 = vmatpush2.msra.mxu0 0.0
    %2732 = vmatprep.subr.mxu0 0.0
    %2733 = vmatpush2.msra.mxu0 0.0
    %2734 = vmatprep.subr.mxu0 0.0
    %2735 = vmatpush2.msra.mxu0 0.0
    %2736 = vmatprep.subr.mxu0 0.0
    %2737 = vmatpush2.msra.mxu0 0.0
    %2738 = vmatprep.subr.mxu0 0.0
    %2739 = vmatpush2.msra.mxu0 0.0
    %2740 = vmatprep.subr.mxu0 0.0
    %2741 = vmatpush2.msra.mxu0 0.0
    %2742 = vmatprep.subr.mxu0 0.0
    %2743 = vmatpush2.msra.mxu0 0.0
    %2744 = vmatprep.subr.mxu0 0.0
    %2745 = vmatpush2.msra.mxu0 0.0
    %2746 = vmatprep.subr.mxu0 0.0
    %2747 = vmatpush2.msra.mxu0 0.0
    %2748 = vmatprep.subr.mxu0 0.0
    %2749 = vmatpush2.msra.mxu0 0.0
    %2750 = vmatprep.subr.mxu0 0.0
    %2751 = vmatpush2.msra.mxu0 0.0
    %2752 = vmatprep.subr.mxu0 0.0
    %2753 = vmatpush2.msra.mxu0 0.0
    %2754 = vmatprep.subr.mxu0 0.0
    %2755 = vmatpush2.msra.mxu0 0.0
    %2756 = vmatprep.mubr.f32.mxu0 0.0
    %2757 = vmatmul.mubr.f32.gmra.mxu0 %v2610
    %v2758 = vpop.f32.mrf.mxu0
    %v2759 = vadd.f32 %v2603, %v2758
    %v2760 = vpop.f32.mrf.mxu0
    %v2761 = vadd.f32 %v2604, %v2760
    %2762 = vmatprep.mubr.f32.mxu0 0.0
    %2763 = vmatmul.mubr.f32.gmra.mxu0 %v2613
    %v2764 = vpop.f32.mrf.mxu0
    %v2765 = vadd.f32 %v2607, %v2764
    %v2766 = vpop.f32.mrf.mxu0
    %v2767 = vadd.f32 %v2608, %v2766
    %2768 = vdwg.mxu0
    %v2769 = vmax.f32 %v2682, 0.0
    %v2770 = vmax.f32 %v2684, 0.0
    %v2771 = vmax.f32 %v2759, 0.0
    %v2772 = vmax.f32 %v2761, 0.0
    %v2773 = vmax.f32 %v2688, 0.0
    %v2774 = vmax.f32 %v2690, 0.0
    %v2775 = vmax.f32 %v2765, 0.0
    %v2776 = vmax.f32 %v2767, 0.0
    %s2777 = scalar_lea.vmem %s8, 512
    %v2778 = vld [vmem:[%s2777] sm:$0xff]
    %v2779 = vld [vmem:[%s2777 + $0x8] sm:$0xff]
    %v2780 = vld [vmem:[%s2777 + $0x10] sm:$0xff]
    %v2781 = vld [vmem:[%s2777 + $0x18] sm:$0xff]
    %v2782 = vld [vmem:[%s2777 + $0x20] sm:$0xff]
    %v2783 = vld [vmem:[%s2777 + $0x28] sm:$0xff]
    %v2784 = vld [vmem:[%s2777 + $0x30] sm:$0xff]
    %v2785 = vld [vmem:[%s2777 + $0x38] sm:$0xff]
    %v2786 = vld [vmem:[%s2777 + $0x40] sm:$0xff]
    %v2787 = vld [vmem:[%s2777 + $0x48] sm:$0xff]
    %v2788 = vld [vmem:[%s2777 + $0x50] sm:$0xff]
    %v2789 = vld [vmem:[%s2777 + $0x58] sm:$0xff]
    %v2790 = vld [vmem:[%s2777 + $0x60] sm:$0xff]
    %v2791 = vld [vmem:[%s2777 + $0x68] sm:$0xff]
    %v2792 = vld [vmem:[%s2777 + $0x70] sm:$0xff]
    %v2793 = vld [vmem:[%s2777 + $0x78] sm:$0xff]
    %v2794 = vld [vmem:[%s2777 + $0x80] sm:$0xff]
    %v2795 = vld [vmem:[%s2777 + $0x88] sm:$0xff]
    %v2796 = vld [vmem:[%s2777 + $0x90] sm:$0xff]
    %v2797 = vld [vmem:[%s2777 + $0x98] sm:$0xff]
    %v2798 = vld [vmem:[%s2777 + $0xa0] sm:$0xff]
    %v2799 = vld [vmem:[%s2777 + $0xa8] sm:$0xff]
    %v2800 = vld [vmem:[%s2777 + $0xb0] sm:$0xff]
    %v2801 = vld [vmem:[%s2777 + $0xb8] sm:$0xff]
    %v2802 = vld [vmem:[%s2777 + $0xc0] sm:$0xff]
    %v2803 = vld [vmem:[%s2777 + $0xc8] sm:$0xff]
    %v2804 = vld [vmem:[%s2777 + $0xd0] sm:$0xff]
    %v2805 = vld [vmem:[%s2777 + $0xd8] sm:$0xff]
    %v2806 = vld [vmem:[%s2777 + $0xe0] sm:$0xff]
    %v2807 = vld [vmem:[%s2777 + $0xe8] sm:$0xff]
    %v2808 = vld [vmem:[%s2777 + $0xf0] sm:$0xff]
    %v2809 = vld [vmem:[%s2777 + $0xf8] sm:$0xff]
    %v2810 = vld [vmem:[%s2777 + $0x100] sm:$0xff]
    %v2811 = vld [vmem:[%s2777 + $0x108] sm:$0xff]
    %v2812 = vld [vmem:[%s2777 + $0x110] sm:$0xff]
    %v2813 = vld [vmem:[%s2777 + $0x118] sm:$0xff]
    %v2814 = vld [vmem:[%s2777 + $0x120] sm:$0xff]
    %v2815 = vld [vmem:[%s2777 + $0x128] sm:$0xff]
    %v2816 = vld [vmem:[%s2777 + $0x130] sm:$0xff]
    %v2817 = vld [vmem:[%s2777 + $0x138] sm:$0xff]
    %v2818 = vld [vmem:[%s2777 + $0x140] sm:$0xff]
    %v2819 = vld [vmem:[%s2777 + $0x148] sm:$0xff]
    %v2820 = vld [vmem:[%s2777 + $0x150] sm:$0xff]
    %v2821 = vld [vmem:[%s2777 + $0x158] sm:$0xff]
    %v2822 = vld [vmem:[%s2777 + $0x160] sm:$0xff]
    %v2823 = vld [vmem:[%s2777 + $0x168] sm:$0xff]
    %v2824 = vld [vmem:[%s2777 + $0x170] sm:$0xff]
    %v2825 = vld [vmem:[%s2777 + $0x178] sm:$0xff]
    %v2826 = vld [vmem:[%s2777 + $0x180] sm:$0xff]
    %v2827 = vld [vmem:[%s2777 + $0x188] sm:$0xff]
    %v2828 = vld [vmem:[%s2777 + $0x190] sm:$0xff]
    %v2829 = vld [vmem:[%s2777 + $0x198] sm:$0xff]
    %v2830 = vld [vmem:[%s2777 + $0x1a0] sm:$0xff]
    %v2831 = vld [vmem:[%s2777 + $0x1a8] sm:$0xff]
    %v2832 = vld [vmem:[%s2777 + $0x1b0] sm:$0xff]
    %v2833 = vld [vmem:[%s2777 + $0x1b8] sm:$0xff]
    %v2834 = vld [vmem:[%s2777 + $0x1c0] sm:$0xff]
    %v2835 = vld [vmem:[%s2777 + $0x1c8] sm:$0xff]
    %v2836 = vld [vmem:[%s2777 + $0x1d0] sm:$0xff]
    %v2837 = vld [vmem:[%s2777 + $0x1d8] sm:$0xff]
    %v2838 = vld [vmem:[%s2777 + $0x1e0] sm:$0xff]
    %v2839 = vld [vmem:[%s2777 + $0x1e8] sm:$0xff]
    %v2840 = vld [vmem:[%s2777 + $0x1f0] sm:$0xff]
    %v2841 = vld [vmem:[%s2777 + $0x1f8] sm:$0xff]
    %s2842 = scalar_lea.vmem %s9, 16
    %v2843 = vld [vmem:[%s2842] sm:$0xff]
    %v2844 = vld [vmem:[%s2842 + $0x8] sm:$0xff]
    %2845 = vmatprep.subr.mxu0 0.0
    %2846 = vmatpush1.msra.mxu0 %v2793
    %2847 = vmatprep.subr.mxu0 0.0
    %2848 = vmatpush1.msra.mxu0 %v2792
    %2849 = vmatprep.subr.mxu0 0.0
    %2850 = vmatpush1.msra.mxu0 %v2791
    %2851 = vmatprep.subr.mxu0 0.0
    %2852 = vmatpush1.msra.mxu0 %v2790
    %2853 = vmatprep.subr.mxu0 0.0
    %2854 = vmatpush1.msra.mxu0 %v2789
    %2855 = vmatprep.subr.mxu0 0.0
    %2856 = vmatpush1.msra.mxu0 %v2788
    %2857 = vmatprep.subr.mxu0 0.0
    %2858 = vmatpush1.msra.mxu0 %v2787
    %2859 = vmatprep.subr.mxu0 0.0
    %2860 = vmatpush1.msra.mxu0 %v2786
    %2861 = vmatprep.subr.mxu0 0.0
    %2862 = vmatpush1.msra.mxu0 %v2785
    %2863 = vmatprep.subr.mxu0 0.0
    %2864 = vmatpush1.msra.mxu0 %v2784
    %2865 = vmatprep.subr.mxu0 0.0
    %2866 = vmatpush1.msra.mxu0 %v2783
    %2867 = vmatprep.subr.mxu0 0.0
    %2868 = vmatpush1.msra.mxu0 %v2782
    %2869 = vmatprep.subr.mxu0 0.0
    %2870 = vmatpush1.msra.mxu0 %v2781
    %2871 = vmatprep.subr.mxu0 0.0
    %2872 = vmatpush1.msra.mxu0 %v2780
    %2873 = vmatprep.subr.mxu0 0.0
    %2874 = vmatpush1.msra.mxu0 %v2779
    %2875 = vmatprep.subr.mxu0 0.0
    %2876 = vmatpush1.msra.mxu0 %v2778
    %2877 = vmatprep.subr.mxu0 0.0
    %2878 = vmatpush2.msra.mxu0 %v2809
    %2879 = vmatprep.subr.mxu0 0.0
    %2880 = vmatpush2.msra.mxu0 %v2808
    %2881 = vmatprep.subr.mxu0 0.0
    %2882 = vmatpush2.msra.mxu0 %v2807
    %2883 = vmatprep.subr.mxu0 0.0
    %2884 = vmatpush2.msra.mxu0 %v2806
    %2885 = vmatprep.subr.mxu0 0.0
    %2886 = vmatpush2.msra.mxu0 %v2805
    %2887 = vmatprep.subr.mxu0 0.0
    %2888 = vmatpush2.msra.mxu0 %v2804
    %2889 = vmatprep.subr.mxu0 0.0
    %2890 = vmatpush2.msra.mxu0 %v2803
    %2891 = vmatprep.subr.mxu0 0.0
    %2892 = vmatpush2.msra.mxu0 %v2802
    %2893 = vmatprep.subr.mxu0 0.0
    %2894 = vmatpush2.msra.mxu0 %v2801
    %2895 = vmatprep.subr.mxu0 0.0
    %2896 = vmatpush2.msra.mxu0 %v2800
    %2897 = vmatprep.subr.mxu0 0.0
    %2898 = vmatpush2.msra.mxu0 %v2799
    %2899 = vmatprep.subr.mxu0 0.0
    %2900 = vmatpush2.msra.mxu0 %v2798
    %2901 = vmatprep.subr.mxu0 0.0
    %2902 = vmatpush2.msra.mxu0 %v2797
    %2903 = vmatprep.subr.mxu0 0.0
    %2904 = vmatpush2.msra.mxu0 %v2796
    %2905 = vmatprep.subr.mxu0 0.0
    %2906 = vmatpush2.msra.mxu0 %v2795
    %2907 = vmatprep.subr.mxu0 0.0
    %2908 = vmatpush2.msra.mxu0 %v2794
    %2909 = vmatprep.mubr.f32.mxu0 %v2770
    %2910 = vmatmul.mubr.f32.gmra.mxu0 %v2769
    %v2911 = vpop.f32.mrf.mxu0
    %v2912 = vadd.f32 %v2843, %v2911
    %v2913 = vpop.f32.mrf.mxu0
    %2914 = vmatprep.mubr.f32.mxu0 %v2774
    %2915 = vmatmul.mubr.f32.gmra.mxu0 %v2773
    %v2916 = vpop.f32.mrf.mxu0
    %v2917 = vadd.f32 %v2844, %v2916
    %v2918 = vpop.f32.mrf.mxu0
    %2919 = vdwg.mxu0
    %2920 = vmatprep.subr.mxu0 0.0
    %2921 = vmatpush1.msra.mxu0 %v2825
    %2922 = vmatprep.subr.mxu0 0.0
    %2923 = vmatpush1.msra.mxu0 %v2824
    %2924 = vmatprep.subr.mxu0 0.0
    %2925 = vmatpush1.msra.mxu0 %v2823
    %2926 = vmatprep.subr.mxu0 0.0
    %2927 = vmatpush1.msra.mxu0 %v2822
    %2928 = vmatprep.subr.mxu0 0.0
    %2929 = vmatpush1.msra.mxu0 %v2821
    %2930 = vmatprep.subr.mxu0 0.0
    %2931 = vmatpush1.msra.mxu0 %v2820
    %2932 = vmatprep.subr.mxu0 0.0
    %2933 = vmatpush1.msra.mxu0 %v2819
    %2934 = vmatprep.subr.mxu0 0.0
    %2935 = vmatpush1.msra.mxu0 %v2818
    %2936 = vmatprep.subr.mxu0 0.0
    %2937 = vmatpush1.msra.mxu0 %v2817
    %2938 = vmatprep.subr.mxu0 0.0
    %2939 = vmatpush1.msra.mxu0 %v2816
    %2940 = vmatprep.subr.mxu0 0.0
    %2941 = vmatpush1.msra.mxu0 %v2815
    %2942 = vmatprep.subr.mxu0 0.0
    %2943 = vmatpush1.msra.mxu0 %v2814
    %2944 = vmatprep.subr.mxu0 0.0
    %2945 = vmatpush1.msra.mxu0 %v2813
    %2946 = vmatprep.subr.mxu0 0.0
    %2947 = vmatpush1.msra.mxu0 %v2812
    %2948 = vmatprep.subr.mxu0 0.0
    %2949 = vmatpush1.msra.mxu0 %v2811
    %2950 = vmatprep.subr.mxu0 0.0
    %2951 = vmatpush1.msra.mxu0 %v2810
    %2952 = vmatprep.subr.mxu0 0.0
    %2953 = vmatpush2.msra.mxu0 %v2841
    %2954 = vmatprep.subr.mxu0 0.0
    %2955 = vmatpush2.msra.mxu0 %v2840
    %2956 = vmatprep.subr.mxu0 0.0
    %2957 = vmatpush2.msra.mxu0 %v2839
    %2958 = vmatprep.subr.mxu0 0.0
    %2959 = vmatpush2.msra.mxu0 %v2838
    %2960 = vmatprep.subr.mxu0 0.0
    %2961 = vmatpush2.msra.mxu0 %v2837
    %2962 = vmatprep.subr.mxu0 0.0
    %2963 = vmatpush2.msra.mxu0 %v2836
    %2964 = vmatprep.subr.mxu0 0.0
    %2965 = vmatpush2.msra.mxu0 %v2835
    %2966 = vmatprep.subr.mxu0 0.0
    %2967 = vmatpush2.msra.mxu0 %v2834
    %2968 = vmatprep.subr.mxu0 0.0
    %2969 = vmatpush2.msra.mxu0 %v2833
    %2970 = vmatprep.subr.mxu0 0.0
    %2971 = vmatpush2.msra.mxu0 %v2832
    %2972 = vmatprep.subr.mxu0 0.0
    %2973 = vmatpush2.msra.mxu0 %v2831
    %2974 = vmatprep.subr.mxu0 0.0
    %2975 = vmatpush2.msra.mxu0 %v2830
    %2976 = vmatprep.subr.mxu0 0.0
    %2977 = vmatpush2.msra.mxu0 %v2829
    %2978 = vmatprep.subr.mxu0 0.0
    %2979 = vmatpush2.msra.mxu0 %v2828
    %2980 = vmatprep.subr.mxu0 0.0
    %2981 = vmatpush2.msra.mxu0 %v2827
    %2982 = vmatprep.subr.mxu0 0.0
    %2983 = vmatpush2.msra.mxu0 %v2826
    %2984 = vmatprep.mubr.f32.mxu0 %v2772
    %2985 = vmatmul.mubr.f32.gmra.mxu0 %v2771
    %v2986 = vpop.f32.mrf.mxu0
    %v2987 = vadd.f32 %v2912, %v2986
    %v2988 = vpop.f32.mrf.mxu0
    %2989 = vmatprep.mubr.f32.mxu0 %v2776
    %2990 = vmatmul.mubr.f32.gmra.mxu0 %v2775
    %v2991 = vpop.f32.mrf.mxu0
    %v2992 = vadd.f32 %v2917, %v2991
    %v2993 = vpop.f32.mrf.mxu0
    %2994 = vdwg.mxu0
    %v2995 = vadd.f32 %v2581, %v2987
    %v2996 = vadd.f32 %v2582, %v2992
    %s2997 = scalar_lea.vmem %s12, 16
    %v2998 = vld [vmem:[%s2997] sm:$0xff]
    %v2999 = vld [vmem:[%s2997 + $0x8] sm:$0xff]
    %s3000 = scalar_lea.vmem %s13, 16
    %v3001 = vld [vmem:[%s3000] sm:$0xff]
    %v3002 = vld [vmem:[%s3000 + $0x8] sm:$0xff]
    %v3003 = vsel %vm58, %v2995, 0.0
    %3004 = vadd.xlane.f32.xlu0 %v3003
    %v3005 = vpop.xlane.xlu0 %3004
    %v3006 = vsel %vm58, %v2996, 0.0
    %3007 = vadd.xlane.f32.xlu0 %v3006
    %v3008 = vpop.xlane.xlu0 %3007
    %v3009 = vmul.f32 %v3005, %v1070
    %v3010 = vmul.f32 %v3008, %v1070
    %v3011 = vsub.f32 %v2995, %v3009
    %v3012 = vsub.f32 %v2996, %v3010
    %v3013 = vmul.f32 %v3011, %v3011
    %v3014 = vmul.f32 %v3012, %v3012
    %v3015 = vsel %vm58, %v3013, 0.0
    %3016 = vadd.xlane.f32.xlu0 %v3015
    %v3017 = vpop.xlane.xlu0 %3016
    %v3018 = vsel %vm58, %v3014, 0.0
    %3019 = vadd.xlane.f32.xlu0 %v3018
    %v3020 = vpop.xlane.xlu0 %3019
    %v3021 = vmul.f32 %v3017, %v1070
    %v3022 = vmul.f32 %v3020, %v1070
    %v3023 = vadd.f32 %v3021, 1e-05
    %v3024 = vadd.f32 %v3022, 1e-05
    %v3025 = vrsqrt.pop %v3023
    %v3026 = vrsqrt.pop %v3024
    %v3027 = vmul.f32 %v3011, %v3025
    %v3028 = vmul.f32 %v3012, %v3026
    %v3029 = vmul.f32 %v3027, %v2998
    %v3030 = vmul.f32 %v3028, %v2999
    %v3031 = vadd.f32 %v3029, %v3001
    %v3032 = vadd.f32 %v3030, %v3002
    %s3033 = scalar_lea.vmem %s2, 64
    %v3034 = vld [vmem:[%s3033] sm:$0xff]
    %v3035 = vld [vmem:[%s3033 + $0x8] sm:$0xff]
    %v3036 = vld [vmem:[%s3033 + $0x10] sm:$0xff]
    %v3037 = vld [vmem:[%s3033 + $0x18] sm:$0xff]
    %s3038 = scalar_lea.vmem %s3, 32
    %v3039 = vld [vmem:[%s3038] sm:$0xff]
    %v3040 = vld [vmem:[%s3038 + $0x8] sm:$0xff]
    %v3042 = vsel %vm58, %v3031, 0
    %v3045 = vsel %vm58, %v3032, 0
    %3047 = vmatprep.subr.mxu0 0.0
    %3048 = vmatpush1.msra.mxu0 0.0
    %3049 = vmatprep.subr.mxu0 0.0
    %3050 = vmatpush1.msra.mxu0 0.0
    %3051 = vmatprep.subr.mxu0 0.0
    %3052 = vmatpush1.msra.mxu0 0.0
    %3053 = vmatprep.subr.mxu0 0.0
    %3054 = vmatpush1.msra.mxu0 0.0
    %3055 = vmatprep.subr.mxu0 0.0
    %3056 = vmatpush1.msra.mxu0 0.0
    %3057 = vmatprep.subr.mxu0 0.0
    %3058 = vmatpush1.msra.mxu0 0.0
    %3059 = vmatprep.subr.mxu0 0.0
    %3060 = vmatpush1.msra.mxu0 0.0
    %3061 = vmatprep.subr.mxu0 0.0
    %3062 = vmatpush1.msra.mxu0 0.0
    %3063 = vmatprep.subr.mxu0 0.0
    %3064 = vmatpush1.msra.mxu0 0.0
    %3065 = vmatprep.subr.mxu0 0.0
    %3066 = vmatpush1.msra.mxu0 0.0
    %3067 = vmatprep.subr.mxu0 0.0
    %3068 = vmatpush1.msra.mxu0 0.0
    %3069 = vmatprep.subr.mxu0 0.0
    %3070 = vmatpush1.msra.mxu0 0.0
    %3071 = vmatprep.subr.mxu0 0.0
    %3072 = vmatpush1.msra.mxu0 %v3037
    %3073 = vmatprep.subr.mxu0 0.0
    %3074 = vmatpush1.msra.mxu0 %v3036
    %3075 = vmatprep.subr.mxu0 0.0
    %3076 = vmatpush1.msra.mxu0 %v3035
    %3077 = vmatprep.subr.mxu0 0.0
    %3078 = vmatpush1.msra.mxu0 %v3034
    %3079 = vmatprep.subr.mxu0 0.0
    %3080 = vmatpush2.msra.mxu0 0.0
    %3081 = vmatprep.subr.mxu0 0.0
    %3082 = vmatpush2.msra.mxu0 0.0
    %3083 = vmatprep.subr.mxu0 0.0
    %3084 = vmatpush2.msra.mxu0 0.0
    %3085 = vmatprep.subr.mxu0 0.0
    %3086 = vmatpush2.msra.mxu0 0.0
    %3087 = vmatprep.subr.mxu0 0.0
    %3088 = vmatpush2.msra.mxu0 0.0
    %3089 = vmatprep.subr.mxu0 0.0
    %3090 = vmatpush2.msra.mxu0 0.0
    %3091 = vmatprep.subr.mxu0 0.0
    %3092 = vmatpush2.msra.mxu0 0.0
    %3093 = vmatprep.subr.mxu0 0.0
    %3094 = vmatpush2.msra.mxu0 0.0
    %3095 = vmatprep.subr.mxu0 0.0
    %3096 = vmatpush2.msra.mxu0 0.0
    %3097 = vmatprep.subr.mxu0 0.0
    %3098 = vmatpush2.msra.mxu0 0.0
    %3099 = vmatprep.subr.mxu0 0.0
    %3100 = vmatpush2.msra.mxu0 0.0
    %3101 = vmatprep.subr.mxu0 0.0
    %3102 = vmatpush2.msra.mxu0 0.0
    %3103 = vmatprep.subr.mxu0 0.0
    %3104 = vmatpush2.msra.mxu0 0.0
    %3105 = vmatprep.subr.mxu0 0.0
    %3106 = vmatpush2.msra.mxu0 0.0
    %3107 = vmatprep.subr.mxu0 0.0
    %3108 = vmatpush2.msra.mxu0 0.0
    %3109 = vmatprep.subr.mxu0 0.0
    %3110 = vmatpush2.msra.mxu0 0.0
    %3111 = vmatprep.mubr.f32.mxu0 0.0
    %3112 = vmatmul.mubr.f32.gmra.mxu0 %v3042
    %v3113 = vpop.f32.mrf.mxu0
    %v3114 = vadd.f32 %v3039, %v3113
    %v3115 = vpop.f32.mrf.mxu0
    %3116 = vmatprep.mubr.f32.mxu0 0.0
    %3117 = vmatmul.mubr.f32.gmra.mxu0 %v3045
    %v3118 = vpop.f32.mrf.mxu0
    %v3119 = vadd.f32 %v3040, %v3118
    %v3120 = vpop.f32.mrf.mxu0
    %3121 = vdwg.mxu0
    %3124 = vrot.lane.b32.xlu0 %v3114, 96
    %v3125 = vpop.permute.xlu0 %3124
    %3126 = vrot.lane.b32.xlu0 %v3119, 96
    %v3127 = vpop.permute.xlu0 %3126
    %v3128 = vsel %vm146, %v3114, 0
    %v3130 = vsel %vm146, %v3119, 0
    %v3132 = vsel %vm146, %v3125, 0
    %v3134 = vsel %vm146, %v3127, 0
    %3136 = vmatprep.subr.mxu0 0.0
    %3137 = vmatpush1.xpose.msra.mxu0 0.0
    %3138 = vmatprep.subr.mxu0 0.0
    %3139 = vmatpush1.xpose.msra.mxu0 0.0
    %3140 = vmatprep.subr.mxu0 0.0
    %3141 = vmatpush1.xpose.msra.mxu0 0.0
    %3142 = vmatprep.subr.mxu0 0.0
    %3143 = vmatpush1.xpose.msra.mxu0 0.0
    %3144 = vmatprep.subr.mxu0 0.0
    %3145 = vmatpush1.xpose.msra.mxu0 0.0
    %3146 = vmatprep.subr.mxu0 0.0
    %3147 = vmatpush1.xpose.msra.mxu0 0.0
    %3148 = vmatprep.subr.mxu0 0.0
    %3149 = vmatpush1.xpose.msra.mxu0 0.0
    %3150 = vmatprep.subr.mxu0 0.0
    %3151 = vmatpush1.xpose.msra.mxu0 0.0
    %3152 = vmatprep.subr.mxu0 0.0
    %3153 = vmatpush1.xpose.msra.mxu0 0.0
    %3154 = vmatprep.subr.mxu0 0.0
    %3155 = vmatpush1.xpose.msra.mxu0 0.0
    %3156 = vmatprep.subr.mxu0 0.0
    %3157 = vmatpush1.xpose.msra.mxu0 0.0
    %3158 = vmatprep.subr.mxu0 0.0
    %3159 = vmatpush1.xpose.msra.mxu0 0.0
    %3160 = vmatprep.subr.mxu0 0.0
    %3161 = vmatpush1.xpose.msra.mxu0 0.0
    %3162 = vmatprep.subr.mxu0 0.0
    %3163 = vmatpush1.xpose.msra.mxu0 0.0
    %3164 = vmatprep.subr.mxu0 0.0
    %3165 = vmatpush1.xpose.msra.mxu0 %v3134
    %3166 = vmatprep.subr.mxu0 0.0
    %3167 = vmatpush1.xpose.msra.mxu0 %v3132
    %3168 = vmatprep.subr.mxu0 0.0
    %3169 = vmatpush2.xpose.msra.mxu0 0.0
    %3170 = vmatprep.subr.mxu0 0.0
    %3171 = vmatpush2.xpose.msra.mxu0 0.0
    %3172 = vmatprep.subr.mxu0 0.0
    %3173 = vmatpush2.xpose.msra.mxu0 0.0
    %3174 = vmatprep.subr.mxu0 0.0
    %3175 = vmatpush2.xpose.msra.mxu0 0.0
    %3176 = vmatprep.subr.mxu0 0.0
    %3177 = vmatpush2.xpose.msra.mxu0 0.0
    %3178 = vmatprep.subr.mxu0 0.0
    %3179 = vmatpush2.xpose.msra.mxu0 0.0
    %3180 = vmatprep.subr.mxu0 0.0
    %3181 = vmatpush2.xpose.msra.mxu0 0.0
    %3182 = vmatprep.subr.mxu0 0.0
    %3183 = vmatpush2.xpose.msra.mxu0 0.0
    %3184 = vmatprep.subr.mxu0 0.0
    %3185 = vmatpush2.xpose.msra.mxu0 0.0
    %3186 = vmatprep.subr.mxu0 0.0
    %3187 = vmatpush2.xpose.msra.mxu0 0.0
    %3188 = vmatprep.subr.mxu0 0.0
    %3189 = vmatpush2.xpose.msra.mxu0 0.0
    %3190 = vmatprep.subr.mxu0 0.0
    %3191 = vmatpush2.xpose.msra.mxu0 0.0
    %3192 = vmatprep.subr.mxu0 0.0
    %3193 = vmatpush2.xpose.msra.mxu0 0.0
    %3194 = vmatprep.subr.mxu0 0.0
    %3195 = vmatpush2.xpose.msra.mxu0 0.0
    %3196 = vmatprep.subr.mxu0 0.0
    %3197 = vmatpush2.xpose.msra.mxu0 0.0
    %3198 = vmatprep.subr.mxu0 0.0
    %3199 = vmatpush2.xpose.msra.mxu0 0.0
    %3200 = vmatprep.mubr.f32.mxu0 0.0
    %3201 = vmatmul.mubr.f32.gmra.mxu0 %v3128
    %v3202 = vpop.f32.mrf.mxu0
    %v3203 = vadd.f32 %v50, %v3202
    %v3204 = vpop.f32.mrf.mxu0
    %3205 = vmatprep.mubr.f32.mxu0 0.0
    %3206 = vmatmul.mubr.f32.gmra.mxu0 %v3130
    %v3207 = vpop.f32.mrf.mxu0
    %v3208 = vadd.f32 %v51, %v3207
    %v3209 = vpop.f32.mrf.mxu0
    %3210 = vdwg.mxu0
    %v3211 = vsel %vm230, %v3203, -inf
    %3212 = vmax.xlane.f32.xlu0 %v3211
    %v3213 = vpop.xlane.xlu0 %3212
    %v3214 = vsel %vm230, %v3208, -inf
    %3215 = vmax.xlane.f32.xlu0 %v3214
    %v3216 = vpop.xlane.xlu0 %3215
    %v3217 = vsub.f32 %v3203, %v3213
    %v3218 = vsub.f32 %v3208, %v3216
    %v3219 = vmul.f32 %v3217, 1.442695
    %v3220 = vpow.pop %v3219
    %v3221 = vmul.f32 %v3218, 1.442695
    %v3222 = vpow.pop %v3221
    %v3223 = vsel %vm230, %v3220, 0.0
    %3224 = vadd.xlane.f32.xlu0 %v3223
    %v3225 = vpop.xlane.xlu0 %3224
    %v3226 = vsel %vm230, %v3222, 0.0
    %3227 = vadd.xlane.f32.xlu0 %v3226
    %v3228 = vpop.xlane.xlu0 %3227
    %v3229 = vrcp.pop %v3225
    %v3230 = vrcp.pop %v3228
    %v3231 = vmul.f32 %v3220, %v3229
    %v3232 = vmul.f32 %v3222, %v3230
    %3233 = vrot.lane.b32.xlu0 %v3114, 64
    %v3234 = vpop.permute.xlu0 %3233
    %3235 = vrot.lane.b32.xlu0 %v3119, 64
    %v3236 = vpop.permute.xlu0 %3235
    %v3240 = vsel %vm230, %v3231, 0
    %v3243 = vsel %vm230, %v3232, 0
    %3245 = vmatprep.subr.mxu0 0.0
    %3246 = vmatpush1.msra.mxu0 0.0
    %3247 = vmatprep.subr.mxu0 0.0
    %3248 = vmatpush1.msra.mxu0 0.0
    %3249 = vmatprep.subr.mxu0 0.0
    %3250 = vmatpush1.msra.mxu0 0.0
    %3251 = vmatprep.subr.mxu0 0.0
    %3252 = vmatpush1.msra.mxu0 0.0
    %3253 = vmatprep.subr.mxu0 0.0
    %3254 = vmatpush1.msra.mxu0 0.0
    %3255 = vmatprep.subr.mxu0 0.0
    %3256 = vmatpush1.msra.mxu0 0.0
    %3257 = vmatprep.subr.mxu0 0.0
    %3258 = vmatpush1.msra.mxu0 0.0
    %3259 = vmatprep.subr.mxu0 0.0
    %3260 = vmatpush1.msra.mxu0 0.0
    %3261 = vmatprep.subr.mxu0 0.0
    %3262 = vmatpush1.msra.mxu0 0.0
    %3263 = vmatprep.subr.mxu0 0.0
    %3264 = vmatpush1.msra.mxu0 0.0
    %3265 = vmatprep.subr.mxu0 0.0
    %3266 = vmatpush1.msra.mxu0 0.0
    %3267 = vmatprep.subr.mxu0 0.0
    %3268 = vmatpush1.msra.mxu0 0.0
    %3269 = vmatprep.subr.mxu0 0.0
    %3270 = vmatpush1.msra.mxu0 0.0
    %3271 = vmatprep.subr.mxu0 0.0
    %3272 = vmatpush1.msra.mxu0 0.0
    %3273 = vmatprep.subr.mxu0 0.0
    %3274 = vmatpush1.msra.mxu0 %v3236
    %3275 = vmatprep.subr.mxu0 0.0
    %3276 = vmatpush1.msra.mxu0 %v3234
    %3277 = vmatprep.subr.mxu0 0.0
    %3278 = vmatpush2.msra.mxu0 0.0
    %3279 = vmatprep.subr.mxu0 0.0
    %3280 = vmatpush2.msra.mxu0 0.0
    %3281 = vmatprep.subr.mxu0 0.0
    %3282 = vmatpush2.msra.mxu0 0.0
    %3283 = vmatprep.subr.mxu0 0.0
    %3284 = vmatpush2.msra.mxu0 0.0
    %3285 = vmatprep.subr.mxu0 0.0
    %3286 = vmatpush2.msra.mxu0 0.0
    %3287 = vmatprep.subr.mxu0 0.0
    %3288 = vmatpush2.msra.mxu0 0.0
    %3289 = vmatprep.subr.mxu0 0.0
    %3290 = vmatpush2.msra.mxu0 0.0
    %3291 = vmatprep.subr.mxu0 0.0
    %3292 = vmatpush2.msra.mxu0 0.0
    %3293 = vmatprep.subr.mxu0 0.0
    %3294 = vmatpush2.msra.mxu0 0.0
    %3295 = vmatprep.subr.mxu0 0.0
    %3296 = vmatpush2.msra.mxu0 0.0
    %3297 = vmatprep.subr.mxu0 0.0
    %3298 = vmatpush2.msra.mxu0 0.0
    %3299 = vmatprep.subr.mxu0 0.0
    %3300 = vmatpush2.msra.mxu0 0.0
    %3301 = vmatprep.subr.mxu0 0.0
    %3302 = vmatpush2.msra.mxu0 0.0
    %3303 = vmatprep.subr.mxu0 0.0
    %3304 = vmatpush2.msra.mxu0 0.0
    %3305 = vmatprep.subr.mxu0 0.0
    %3306 = vmatpush2.msra.mxu0 0.0
    %3307 = vmatprep.subr.mxu0 0.0
    %3308 = vmatpush2.msra.mxu0 0.0
    %3309 = vmatprep.mubr.f32.mxu0 0.0
    %3310 = vmatmul.mubr.f32.gmra.mxu0 %v3240
    %v3311 = vpop.f32.mrf.mxu0
    %v3312 = vadd.f32 0.0, %v3311
    %v3313 = vpop.f32.mrf.mxu0
    %3314 = vmatprep.mubr.f32.mxu0 0.0
    %3315 = vmatmul.mubr.f32.gmra.mxu0 %v3243
    %v3316 = vpop.f32.mrf.mxu0
    %v3317 = vadd.f32 0.0, %v3316
    %v3318 = vpop.f32.mrf.mxu0
    %3319 = vdwg.mxu0
    %3320 = vrot.lane.b32.xlu0 %v3114, 120
    %v3321 = vpop.permute.xlu0 %3320
    %3322 = vrot.lane.b32.xlu0 %v3119, 120
    %v3323 = vpop.permute.xlu0 %3322
    %3324 = vrot.lane.b32.xlu0 %v3114, 88
    %v3325 = vpop.permute.xlu0 %3324
    %3326 = vrot.lane.b32.xlu0 %v3119, 88
    %v3327 = vpop.permute.xlu0 %3326
    %v3328 = vsel %vm146, %v3321, 0
    %v3330 = vsel %vm146, %v3323, 0
    %v3332 = vsel %vm146, %v3325, 0
    %v3334 = vsel %vm146, %v3327, 0
    %3336 = vmatprep.subr.mxu0 0.0
    %3337 = vmatpush1.xpose.msra.mxu0 0.0
    %3338 = vmatprep.subr.mxu0 0.0
    %3339 = vmatpush1.xpose.msra.mxu0 0.0
    %3340 = vmatprep.subr.mxu0 0.0
    %3341 = vmatpush1.xpose.msra.mxu0 0.0
    %3342 = vmatprep.subr.mxu0 0.0
    %3343 = vmatpush1.xpose.msra.mxu0 0.0
    %3344 = vmatprep.subr.mxu0 0.0
    %3345 = vmatpush1.xpose.msra.mxu0 0.0
    %3346 = vmatprep.subr.mxu0 0.0
    %3347 = vmatpush1.xpose.msra.mxu0 0.0
    %3348 = vmatprep.subr.mxu0 0.0
    %3349 = vmatpush1.xpose.msra.mxu0 0.0
    %3350 = vmatprep.subr.mxu0 0.0
    %3351 = vmatpush1.xpose.msra.mxu0 0.0
    %3352 = vmatprep.subr.mxu0 0.0
    %3353 = vmatpush1.xpose.msra.mxu0 0.0
    %3354 = vmatprep.subr.mxu0 0.0
    %3355 = vmatpush1.xpose.msra.mxu0 0.0
    %3356 = vmatprep.subr.mxu0 0.0
    %3357 = vmatpush1.xpose.msra.mxu0 0.0
    %3358 = vmatprep.subr.mxu0 0.0
    %3359 = vmatpush1.xpose.msra.mxu0 0.0
    %3360 = vmatprep.subr.mxu0 0.0
    %3361 = vmatpush1.xpose.msra.mxu0 0.0
    %3362 = vmatprep.subr.mxu0 0.0
    %3363 = vmatpush1.xpose.msra.mxu0 0.0
    %3364 = vmatprep.subr.mxu0 0.0
    %3365 = vmatpush1.xpose.msra.mxu0 %v3334
    %3366 = vmatprep.subr.mxu0 0.0
    %3367 = vmatpush1.xpose.msra.mxu0 %v3332
    %3368 = vmatprep.subr.mxu0 0.0
    %3369 = vmatpush2.xpose.msra.mxu0 0.0
    %3370 = vmatprep.subr.mxu0 0.0
    %3371 = vmatpush2.xpose.msra.mxu0 0.0
    %3372 = vmatprep.subr.mxu0 0.0
    %3373 = vmatpush2.xpose.msra.mxu0 0.0
    %3374 = vmatprep.subr.mxu0 0.0
    %3375 = vmatpush2.xpose.msra.mxu0 0.0
    %3376 = vmatprep.subr.mxu0 0.0
    %3377 = vmatpush2.xpose.msra.mxu0 0.0
    %3378 = vmatprep.subr.mxu0 0.0
    %3379 = vmatpush2.xpose.msra.mxu0 0.0
    %3380 = vmatprep.subr.mxu0 0.0
    %3381 = vmatpush2.xpose.msra.mxu0 0.0
    %3382 = vmatprep.subr.mxu0 0.0
    %3383 = vmatpush2.xpose.msra.mxu0 0.0
    %3384 = vmatprep.subr.mxu0 0.0
    %3385 = vmatpush2.xpose.msra.mxu0 0.0
    %3386 = vmatprep.subr.mxu0 0.0
    %3387 = vmatpush2.xpose.msra.mxu0 0.0
    %3388 = vmatprep.subr.mxu0 0.0
    %3389 = vmatpush2.xpose.msra.mxu0 0.0
    %3390 = vmatprep.subr.mxu0 0.0
    %3391 = vmatpush2.xpose.msra.mxu0 0.0
    %3392 = vmatprep.subr.mxu0 0.0
    %3393 = vmatpush2.xpose.msra.mxu0 0.0
    %3394 = vmatprep.subr.mxu0 0.0
    %3395 = vmatpush2.xpose.msra.mxu0 0.0
    %3396 = vmatprep.subr.mxu0 0.0
    %3397 = vmatpush2.xpose.msra.mxu0 0.0
    %3398 = vmatprep.subr.mxu0 0.0
    %3399 = vmatpush2.xpose.msra.mxu0 0.0
    %3400 = vmatprep.mubr.f32.mxu0 0.0
    %3401 = vmatmul.mubr.f32.gmra.mxu0 %v3328
    %v3402 = vpop.f32.mrf.mxu0
    %v3403 = vadd.f32 %v50, %v3402
    %v3404 = vpop.f32.mrf.mxu0
    %3405 = vmatprep.mubr.f32.mxu0 0.0
    %3406 = vmatmul.mubr.f32.gmra.mxu0 %v3330
    %v3407 = vpop.f32.mrf.mxu0
    %v3408 = vadd.f32 %v51, %v3407
    %v3409 = vpop.f32.mrf.mxu0
    %3410 = vdwg.mxu0
    %v3411 = vsel %vm230, %v3403, -inf
    %3412 = vmax.xlane.f32.xlu0 %v3411
    %v3413 = vpop.xlane.xlu0 %3412
    %v3414 = vsel %vm230, %v3408, -inf
    %3415 = vmax.xlane.f32.xlu0 %v3414
    %v3416 = vpop.xlane.xlu0 %3415
    %v3417 = vsub.f32 %v3403, %v3413
    %v3418 = vsub.f32 %v3408, %v3416
    %v3419 = vmul.f32 %v3417, 1.442695
    %v3420 = vpow.pop %v3419
    %v3421 = vmul.f32 %v3418, 1.442695
    %v3422 = vpow.pop %v3421
    %v3423 = vsel %vm230, %v3420, 0.0
    %3424 = vadd.xlane.f32.xlu0 %v3423
    %v3425 = vpop.xlane.xlu0 %3424
    %v3426 = vsel %vm230, %v3422, 0.0
    %3427 = vadd.xlane.f32.xlu0 %v3426
    %v3428 = vpop.xlane.xlu0 %3427
    %v3429 = vrcp.pop %v3425
    %v3430 = vrcp.pop %v3428
    %v3431 = vmul.f32 %v3420, %v3429
    %v3432 = vmul.f32 %v3422, %v3430
    %3433 = vrot.lane.b32.xlu0 %v3114, 56
    %v3434 = vpop.permute.xlu0 %3433
    %3435 = vrot.lane.b32.xlu0 %v3119, 56
    %v3436 = vpop.permute.xlu0 %3435
    %v3440 = vsel %vm230, %v3431, 0
    %v3443 = vsel %vm230, %v3432, 0
    %3445 = vmatprep.subr.mxu0 0.0
    %3446 = vmatpush1.msra.mxu0 0.0
    %3447 = vmatprep.subr.mxu0 0.0
    %3448 = vmatpush1.msra.mxu0 0.0
    %3449 = vmatprep.subr.mxu0 0.0
    %3450 = vmatpush1.msra.mxu0 0.0
    %3451 = vmatprep.subr.mxu0 0.0
    %3452 = vmatpush1.msra.mxu0 0.0
    %3453 = vmatprep.subr.mxu0 0.0
    %3454 = vmatpush1.msra.mxu0 0.0
    %3455 = vmatprep.subr.mxu0 0.0
    %3456 = vmatpush1.msra.mxu0 0.0
    %3457 = vmatprep.subr.mxu0 0.0
    %3458 = vmatpush1.msra.mxu0 0.0
    %3459 = vmatprep.subr.mxu0 0.0
    %3460 = vmatpush1.msra.mxu0 0.0
    %3461 = vmatprep.subr.mxu0 0.0
    %3462 = vmatpush1.msra.mxu0 0.0
    %3463 = vmatprep.subr.mxu0 0.0
    %3464 = vmatpush1.msra.mxu0 0.0
    %3465 = vmatprep.subr.mxu0 0.0
    %3466 = vmatpush1.msra.mxu0 0.0
    %3467 = vmatprep.subr.mxu0 0.0
    %3468 = vmatpush1.msra.mxu0 0.0
    %3469 = vmatprep.subr.mxu0 0.0
    %3470 = vmatpush1.msra.mxu0 0.0
    %3471 = vmatprep.subr.mxu0 0.0
    %3472 = vmatpush1.msra.mxu0 0.0
    %3473 = vmatprep.subr.mxu0 0.0
    %3474 = vmatpush1.msra.mxu0 %v3436
    %3475 = vmatprep.subr.mxu0 0.0
    %3476 = vmatpush1.msra.mxu0 %v3434
    %3477 = vmatprep.subr.mxu0 0.0
    %3478 = vmatpush2.msra.mxu0 0.0
    %3479 = vmatprep.subr.mxu0 0.0
    %3480 = vmatpush2.msra.mxu0 0.0
    %3481 = vmatprep.subr.mxu0 0.0
    %3482 = vmatpush2.msra.mxu0 0.0
    %3483 = vmatprep.subr.mxu0 0.0
    %3484 = vmatpush2.msra.mxu0 0.0
    %3485 = vmatprep.subr.mxu0 0.0
    %3486 = vmatpush2.msra.mxu0 0.0
    %3487 = vmatprep.subr.mxu0 0.0
    %3488 = vmatpush2.msra.mxu0 0.0
    %3489 = vmatprep.subr.mxu0 0.0
    %3490 = vmatpush2.msra.mxu0 0.0
    %3491 = vmatprep.subr.mxu0 0.0
    %3492 = vmatpush2.msra.mxu0 0.0
    %3493 = vmatprep.subr.mxu0 0.0
    %3494 = vmatpush2.msra.mxu0 0.0
    %3495 = vmatprep.subr.mxu0 0.0
    %3496 = vmatpush2.msra.mxu0 0.0
    %3497 = vmatprep.subr.mxu0 0.0
    %3498 = vmatpush2.msra.mxu0 0.0
    %3499 = vmatprep.subr.mxu0 0.0
    %3500 = vmatpush2.msra.mxu0 0.0
    %3501 = vmatprep.subr.mxu0 0.0
    %3502 = vmatpush2.msra.mxu0 0.0
    %3503 = vmatprep.subr.mxu0 0.0
    %3504 = vmatpush2.msra.mxu0 0.0
    %3505 = vmatprep.subr.mxu0 0.0
    %3506 = vmatpush2.msra.mxu0 0.0
    %3507 = vmatprep.subr.mxu0 0.0
    %3508 = vmatpush2.msra.mxu0 0.0
    %3509 = vmatprep.mubr.f32.mxu0 0.0
    %3510 = vmatmul.mubr.f32.gmra.mxu0 %v3440
    %v3511 = vpop.f32.mrf.mxu0
    %v3512 = vadd.f32 0.0, %v3511
    %v3513 = vpop.f32.mrf.mxu0
    %3514 = vmatprep.mubr.f32.mxu0 0.0
    %3515 = vmatmul.mubr.f32.gmra.mxu0 %v3443
    %v3516 = vpop.f32.mrf.mxu0
    %v3517 = vadd.f32 0.0, %v3516
    %v3518 = vpop.f32.mrf.mxu0
    %3519 = vdwg.mxu0
    %3520 = vrot.lane.b32.xlu0 %v3114, 112
    %v3521 = vpop.permute.xlu0 %3520
    %3522 = vrot.lane.b32.xlu0 %v3119, 112
    %v3523 = vpop.permute.xlu0 %3522
    %3524 = vrot.lane.b32.xlu0 %v3114, 80
    %v3525 = vpop.permute.xlu0 %3524
    %3526 = vrot.lane.b32.xlu0 %v3119, 80
    %v3527 = vpop.permute.xlu0 %3526
    %v3528 = vsel %vm146, %v3521, 0
    %v3530 = vsel %vm146, %v3523, 0
    %v3532 = vsel %vm146, %v3525, 0
    %v3534 = vsel %vm146, %v3527, 0
    %3536 = vmatprep.subr.mxu0 0.0
    %3537 = vmatpush1.xpose.msra.mxu0 0.0
    %3538 = vmatprep.subr.mxu0 0.0
    %3539 = vmatpush1.xpose.msra.mxu0 0.0
    %3540 = vmatprep.subr.mxu0 0.0
    %3541 = vmatpush1.xpose.msra.mxu0 0.0
    %3542 = vmatprep.subr.mxu0 0.0
    %3543 = vmatpush1.xpose.msra.mxu0 0.0
    %3544 = vmatprep.subr.mxu0 0.0
    %3545 = vmatpush1.xpose.msra.mxu0 0.0
    %3546 = vmatprep.subr.mxu0 0.0
    %3547 = vmatpush1.xpose.msra.mxu0 0.0
    %3548 = vmatprep.subr.mxu0 0.0
    %3549 = vmatpush1.xpose.msra.mxu0 0.0
    %3550 = vmatprep.subr.mxu0 0.0
    %3551 = vmatpush1.xpose.msra.mxu0 0.0
    %3552 = vmatprep.subr.mxu0 0.0
    %3553 = vmatpush1.xpose.msra.mxu0 0.0
    %3554 = vmatprep.subr.mxu0 0.0
    %3555 = vmatpush1.xpose.msra.mxu0 0.0
    %3556 = vmatprep.subr.mxu0 0.0
    %3557 = vmatpush1.xpose.msra.mxu0 0.0
    %3558 = vmatprep.subr.mxu0 0.0
    %3559 = vmatpush1.xpose.msra.mxu0 0.0
    %3560 = vmatprep.subr.mxu0 0.0
    %3561 = vmatpush1.xpose.msra.mxu0 0.0
    %3562 = vmatprep.subr.mxu0 0.0
    %3563 = vmatpush1.xpose.msra.mxu0 0.0
    %3564 = vmatprep.subr.mxu0 0.0
    %3565 = vmatpush1.xpose.msra.mxu0 %v3534
    %3566 = vmatprep.subr.mxu0 0.0
    %3567 = vmatpush1.xpose.msra.mxu0 %v3532
    %3568 = vmatprep.subr.mxu0 0.0
    %3569 = vmatpush2.xpose.msra.mxu0 0.0
    %3570 = vmatprep.subr.mxu0 0.0
    %3571 = vmatpush2.xpose.msra.mxu0 0.0
    %3572 = vmatprep.subr.mxu0 0.0
    %3573 = vmatpush2.xpose.msra.mxu0 0.0
    %3574 = vmatprep.subr.mxu0 0.0
    %3575 = vmatpush2.xpose.msra.mxu0 0.0
    %3576 = vmatprep.subr.mxu0 0.0
    %3577 = vmatpush2.xpose.msra.mxu0 0.0
    %3578 = vmatprep.subr.mxu0 0.0
    %3579 = vmatpush2.xpose.msra.mxu0 0.0
    %3580 = vmatprep.subr.mxu0 0.0
    %3581 = vmatpush2.xpose.msra.mxu0 0.0
    %3582 = vmatprep.subr.mxu0 0.0
    %3583 = vmatpush2.xpose.msra.mxu0 0.0
    %3584 = vmatprep.subr.mxu0 0.0
    %3585 = vmatpush2.xpose.msra.mxu0 0.0
    %3586 = vmatprep.subr.mxu0 0.0
    %3587 = vmatpush2.xpose.msra.mxu0 0.0
    %3588 = vmatprep.subr.mxu0 0.0
    %3589 = vmatpush2.xpose.msra.mxu0 0.0
    %3590 = vmatprep.subr.mxu0 0.0
    %3591 = vmatpush2.xpose.msra.mxu0 0.0
    %3592 = vmatprep.subr.mxu0 0.0
    %3593 = vmatpush2.xpose.msra.mxu0 0.0
    %3594 = vmatprep.subr.mxu0 0.0
    %3595 = vmatpush2.xpose.msra.mxu0 0.0
    %3596 = vmatprep.subr.mxu0 0.0
    %3597 = vmatpush2.xpose.msra.mxu0 0.0
    %3598 = vmatprep.subr.mxu0 0.0
    %3599 = vmatpush2.xpose.msra.mxu0 0.0
    %3600 = vmatprep.mubr.f32.mxu0 0.0
    %3601 = vmatmul.mubr.f32.gmra.mxu0 %v3528
    %v3602 = vpop.f32.mrf.mxu0
    %v3603 = vadd.f32 %v50, %v3602
    %v3604 = vpop.f32.mrf.mxu0
    %3605 = vmatprep.mubr.f32.mxu0 0.0
    %3606 = vmatmul.mubr.f32.gmra.mxu0 %v3530
    %v3607 = vpop.f32.mrf.mxu0
    %v3608 = vadd.f32 %v51, %v3607
    %v3609 = vpop.f32.mrf.mxu0
    %3610 = vdwg.mxu0
    %v3611 = vsel %vm230, %v3603, -inf
    %3612 = vmax.xlane.f32.xlu0 %v3611
    %v3613 = vpop.xlane.xlu0 %3612
    %v3614 = vsel %vm230, %v3608, -inf
    %3615 = vmax.xlane.f32.xlu0 %v3614
    %v3616 = vpop.xlane.xlu0 %3615
    %v3617 = vsub.f32 %v3603, %v3613
    %v3618 = vsub.f32 %v3608, %v3616
    %v3619 = vmul.f32 %v3617, 1.442695
    %v3620 = vpow.pop %v3619
    %v3621 = vmul.f32 %v3618, 1.442695
    %v3622 = vpow.pop %v3621
    %v3623 = vsel %vm230, %v3620, 0.0
    %3624 = vadd.xlane.f32.xlu0 %v3623
    %v3625 = vpop.xlane.xlu0 %3624
    %v3626 = vsel %vm230, %v3622, 0.0
    %3627 = vadd.xlane.f32.xlu0 %v3626
    %v3628 = vpop.xlane.xlu0 %3627
    %v3629 = vrcp.pop %v3625
    %v3630 = vrcp.pop %v3628
    %v3631 = vmul.f32 %v3620, %v3629
    %v3632 = vmul.f32 %v3622, %v3630
    %3633 = vrot.lane.b32.xlu0 %v3114, 48
    %v3634 = vpop.permute.xlu0 %3633
    %3635 = vrot.lane.b32.xlu0 %v3119, 48
    %v3636 = vpop.permute.xlu0 %3635
    %v3640 = vsel %vm230, %v3631, 0
    %v3643 = vsel %vm230, %v3632, 0
    %3645 = vmatprep.subr.mxu0 0.0
    %3646 = vmatpush1.msra.mxu0 0.0
    %3647 = vmatprep.subr.mxu0 0.0
    %3648 = vmatpush1.msra.mxu0 0.0
    %3649 = vmatprep.subr.mxu0 0.0
    %3650 = vmatpush1.msra.mxu0 0.0
    %3651 = vmatprep.subr.mxu0 0.0
    %3652 = vmatpush1.msra.mxu0 0.0
    %3653 = vmatprep.subr.mxu0 0.0
    %3654 = vmatpush1.msra.mxu0 0.0
    %3655 = vmatprep.subr.mxu0 0.0
    %3656 = vmatpush1.msra.mxu0 0.0
    %3657 = vmatprep.subr.mxu0 0.0
    %3658 = vmatpush1.msra.mxu0 0.0
    %3659 = vmatprep.subr.mxu0 0.0
    %3660 = vmatpush1.msra.mxu0 0.0
    %3661 = vmatprep.subr.mxu0 0.0
    %3662 = vmatpush1.msra.mxu0 0.0
    %3663 = vmatprep.subr.mxu0 0.0
    %3664 = vmatpush1.msra.mxu0 0.0
    %3665 = vmatprep.subr.mxu0 0.0
    %3666 = vmatpush1.msra.mxu0 0.0
    %3667 = vmatprep.subr.mxu0 0.0
    %3668 = vmatpush1.msra.mxu0 0.0
    %3669 = vmatprep.subr.mxu0 0.0
    %3670 = vmatpush1.msra.mxu0 0.0
    %3671 = vmatprep.subr.mxu0 0.0
    %3672 = vmatpush1.msra.mxu0 0.0
    %3673 = vmatprep.subr.mxu0 0.0
    %3674 = vmatpush1.msra.mxu0 %v3636
    %3675 = vmatprep.subr.mxu0 0.0
    %3676 = vmatpush1.msra.mxu0 %v3634
    %3677 = vmatprep.subr.mxu0 0.0
    %3678 = vmatpush2.msra.mxu0 0.0
    %3679 = vmatprep.subr.mxu0 0.0
    %3680 = vmatpush2.msra.mxu0 0.0
    %3681 = vmatprep.subr.mxu0 0.0
    %3682 = vmatpush2.msra.mxu0 0.0
    %3683 = vmatprep.subr.mxu0 0.0
    %3684 = vmatpush2.msra.mxu0 0.0
    %3685 = vmatprep.subr.mxu0 0.0
    %3686 = vmatpush2.msra.mxu0 0.0
    %3687 = vmatprep.subr.mxu0 0.0
    %3688 = vmatpush2.msra.mxu0 0.0
    %3689 = vmatprep.subr.mxu0 0.0
    %3690 = vmatpush2.msra.mxu0 0.0
    %3691 = vmatprep.subr.mxu0 0.0
    %3692 = vmatpush2.msra.mxu0 0.0
    %3693 = vmatprep.subr.mxu0 0.0
    %3694 = vmatpush2.msra.mxu0 0.0
    %3695 = vmatprep.subr.mxu0 0.0
    %3696 = vmatpush2.msra.mxu0 0.0
    %3697 = vmatprep.subr.mxu0 0.0
    %3698 = vmatpush2.msra.mxu0 0.0
    %3699 = vmatprep.subr.mxu0 0.0
    %3700 = vmatpush2.msra.mxu0 0.0
    %3701 = vmatprep.subr.mxu0 0.0
    %3702 = vmatpush2.msra.mxu0 0.0
    %3703 = vmatprep.subr.mxu0 0.0
    %3704 = vmatpush2.msra.mxu0 0.0
    %3705 = vmatprep.subr.mxu0 0.0
    %3706 = vmatpush2.msra.mxu0 0.0
    %3707 = vmatprep.subr.mxu0 0.0
    %3708 = vmatpush2.msra.mxu0 0.0
    %3709 = vmatprep.mubr.f32.mxu0 0.0
    %3710 = vmatmul.mubr.f32.gmra.mxu0 %v3640
    %v3711 = vpop.f32.mrf.mxu0
    %v3712 = vadd.f32 0.0, %v3711
    %v3713 = vpop.f32.mrf.mxu0
    %3714 = vmatprep.mubr.f32.mxu0 0.0
    %3715 = vmatmul.mubr.f32.gmra.mxu0 %v3643
    %v3716 = vpop.f32.mrf.mxu0
    %v3717 = vadd.f32 0.0, %v3716
    %v3718 = vpop.f32.mrf.mxu0
    %3719 = vdwg.mxu0
    %3720 = vrot.lane.b32.xlu0 %v3114, 104
    %v3721 = vpop.permute.xlu0 %3720
    %3722 = vrot.lane.b32.xlu0 %v3119, 104
    %v3723 = vpop.permute.xlu0 %3722
    %3724 = vrot.lane.b32.xlu0 %v3114, 72
    %v3725 = vpop.permute.xlu0 %3724
    %3726 = vrot.lane.b32.xlu0 %v3119, 72
    %v3727 = vpop.permute.xlu0 %3726
    %v3728 = vsel %vm146, %v3721, 0
    %v3730 = vsel %vm146, %v3723, 0
    %v3732 = vsel %vm146, %v3725, 0
    %v3734 = vsel %vm146, %v3727, 0
    %3736 = vmatprep.subr.mxu0 0.0
    %3737 = vmatpush1.xpose.msra.mxu0 0.0
    %3738 = vmatprep.subr.mxu0 0.0
    %3739 = vmatpush1.xpose.msra.mxu0 0.0
    %3740 = vmatprep.subr.mxu0 0.0
    %3741 = vmatpush1.xpose.msra.mxu0 0.0
    %3742 = vmatprep.subr.mxu0 0.0
    %3743 = vmatpush1.xpose.msra.mxu0 0.0
    %3744 = vmatprep.subr.mxu0 0.0
    %3745 = vmatpush1.xpose.msra.mxu0 0.0
    %3746 = vmatprep.subr.mxu0 0.0
    %3747 = vmatpush1.xpose.msra.mxu0 0.0
    %3748 = vmatprep.subr.mxu0 0.0
    %3749 = vmatpush1.xpose.msra.mxu0 0.0
    %3750 = vmatprep.subr.mxu0 0.0
    %3751 = vmatpush1.xpose.msra.mxu0 0.0
    %3752 = vmatprep.subr.mxu0 0.0
    %3753 = vmatpush1.xpose.msra.mxu0 0.0
    %3754 = vmatprep.subr.mxu0 0.0
    %3755 = vmatpush1.xpose.msra.mxu0 0.0
    %3756 = vmatprep.subr.mxu0 0.0
    %3757 = vmatpush1.xpose.msra.mxu0 0.0
    %3758 = vmatprep.subr.mxu0 0.0
    %3759 = vmatpush1.xpose.msra.mxu0 0.0
    %3760 = vmatprep.subr.mxu0 0.0
    %3761 = vmatpush1.xpose.msra.mxu0 0.0
    %3762 = vmatprep.subr.mxu0 0.0
    %3763 = vmatpush1.xpose.msra.mxu0 0.0
    %3764 = vmatprep.subr.mxu0 0.0
    %3765 = vmatpush1.xpose.msra.mxu0 %v3734
    %3766 = vmatprep.subr.mxu0 0.0
    %3767 = vmatpush1.xpose.msra.mxu0 %v3732
    %3768 = vmatprep.subr.mxu0 0.0
    %3769 = vmatpush2.xpose.msra.mxu0 0.0
    %3770 = vmatprep.subr.mxu0 0.0
    %3771 = vmatpush2.xpose.msra.mxu0 0.0
    %3772 = vmatprep.subr.mxu0 0.0
    %3773 = vmatpush2.xpose.msra.mxu0 0.0
    %3774 = vmatprep.subr.mxu0 0.0
    %3775 = vmatpush2.xpose.msra.mxu0 0.0
    %3776 = vmatprep.subr.mxu0 0.0
    %3777 = vmatpush2.xpose.msra.mxu0 0.0
    %3778 = vmatprep.subr.mxu0 0.0
    %3779 = vmatpush2.xpose.msra.mxu0 0.0
    %3780 = vmatprep.subr.mxu0 0.0
    %3781 = vmatpush2.xpose.msra.mxu0 0.0
    %3782 = vmatprep.subr.mxu0 0.0
    %3783 = vmatpush2.xpose.msra.mxu0 0.0
    %3784 = vmatprep.subr.mxu0 0.0
    %3785 = vmatpush2.xpose.msra.mxu0 0.0
    %3786 = vmatprep.subr.mxu0 0.0
    %3787 = vmatpush2.xpose.msra.mxu0 0.0
    %3788 = vmatprep.subr.mxu0 0.0
    %3789 = vmatpush2.xpose.msra.mxu0 0.0
    %3790 = vmatprep.subr.mxu0 0.0
    %3791 = vmatpush2.xpose.msra.mxu0 0.0
    %3792 = vmatprep.subr.mxu0 0.0
    %3793 = vmatpush2.xpose.msra.mxu0 0.0
    %3794 = vmatprep.subr.mxu0 0.0
    %3795 = vmatpush2.xpose.msra.mxu0 0.0
    %3796 = vmatprep.subr.mxu0 0.0
    %3797 = vmatpush2.xpose.msra.mxu0 0.0
    %3798 = vmatprep.subr.mxu0 0.0
    %3799 = vmatpush2.xpose.msra.mxu0 0.0
    %3800 = vmatprep.mubr.f32.mxu0 0.0
    %3801 = vmatmul.mubr.f32.gmra.mxu0 %v3728
    %v3802 = vpop.f32.mrf.mxu0
    %v3803 = vadd.f32 %v50, %v3802
    %v3804 = vpop.f32.mrf.mxu0
    %3805 = vmatprep.mubr.f32.mxu0 0.0
    %3806 = vmatmul.mubr.f32.gmra.mxu0 %v3730
    %v3807 = vpop.f32.mrf.mxu0
    %v3808 = vadd.f32 %v51, %v3807
    %v3809 = vpop.f32.mrf.mxu0
    %3810 = vdwg.mxu0
    %v3811 = vsel %vm230, %v3803, -inf
    %3812 = vmax.xlane.f32.xlu0 %v3811
    %v3813 = vpop.xlane.xlu0 %3812
    %v3814 = vsel %vm230, %v3808, -inf
    %3815 = vmax.xlane.f32.xlu0 %v3814
    %v3816 = vpop.xlane.xlu0 %3815
    %v3817 = vsub.f32 %v3803, %v3813
    %v3818 = vsub.f32 %v3808, %v3816
    %v3819 = vmul.f32 %v3817, 1.442695
    %v3820 = vpow.pop %v3819
    %v3821 = vmul.f32 %v3818, 1.442695
    %v3822 = vpow.pop %v3821
    %v3823 = vsel %vm230, %v3820, 0.0
    %3824 = vadd.xlane.f32.xlu0 %v3823
    %v3825 = vpop.xlane.xlu0 %3824
    %v3826 = vsel %vm230, %v3822, 0.0
    %3827 = vadd.xlane.f32.xlu0 %v3826
    %v3828 = vpop.xlane.xlu0 %3827
    %v3829 = vrcp.pop %v3825
    %v3830 = vrcp.pop %v3828
    %v3831 = vmul.f32 %v3820, %v3829
    %v3832 = vmul.f32 %v3822, %v3830
    %3833 = vrot.lane.b32.xlu0 %v3114, 40
    %v3834 = vpop.permute.xlu0 %3833
    %3835 = vrot.lane.b32.xlu0 %v3119, 40
    %v3836 = vpop.permute.xlu0 %3835
    %v3840 = vsel %vm230, %v3831, 0
    %v3843 = vsel %vm230, %v3832, 0
    %3845 = vmatprep.subr.mxu0 0.0
    %3846 = vmatpush1.msra.mxu0 0.0
    %3847 = vmatprep.subr.mxu0 0.0
    %3848 = vmatpush1.msra.mxu0 0.0
    %3849 = vmatprep.subr.mxu0 0.0
    %3850 = vmatpush1.msra.mxu0 0.0
    %3851 = vmatprep.subr.mxu0 0.0
    %3852 = vmatpush1.msra.mxu0 0.0
    %3853 = vmatprep.subr.mxu0 0.0
    %3854 = vmatpush1.msra.mxu0 0.0
    %3855 = vmatprep.subr.mxu0 0.0
    %3856 = vmatpush1.msra.mxu0 0.0
    %3857 = vmatprep.subr.mxu0 0.0
    %3858 = vmatpush1.msra.mxu0 0.0
    %3859 = vmatprep.subr.mxu0 0.0
    %3860 = vmatpush1.msra.mxu0 0.0
    %3861 = vmatprep.subr.mxu0 0.0
    %3862 = vmatpush1.msra.mxu0 0.0
    %3863 = vmatprep.subr.mxu0 0.0
    %3864 = vmatpush1.msra.mxu0 0.0
    %3865 = vmatprep.subr.mxu0 0.0
    %3866 = vmatpush1.msra.mxu0 0.0
    %3867 = vmatprep.subr.mxu0 0.0
    %3868 = vmatpush1.msra.mxu0 0.0
    %3869 = vmatprep.subr.mxu0 0.0
    %3870 = vmatpush1.msra.mxu0 0.0
    %3871 = vmatprep.subr.mxu0 0.0
    %3872 = vmatpush1.msra.mxu0 0.0
    %3873 = vmatprep.subr.mxu0 0.0
    %3874 = vmatpush1.msra.mxu0 %v3836
    %3875 = vmatprep.subr.mxu0 0.0
    %3876 = vmatpush1.msra.mxu0 %v3834
    %3877 = vmatprep.subr.mxu0 0.0
    %3878 = vmatpush2.msra.mxu0 0.0
    %3879 = vmatprep.subr.mxu0 0.0
    %3880 = vmatpush2.msra.mxu0 0.0
    %3881 = vmatprep.subr.mxu0 0.0
    %3882 = vmatpush2.msra.mxu0 0.0
    %3883 = vmatprep.subr.mxu0 0.0
    %3884 = vmatpush2.msra.mxu0 0.0
    %3885 = vmatprep.subr.mxu0 0.0
    %3886 = vmatpush2.msra.mxu0 0.0
    %3887 = vmatprep.subr.mxu0 0.0
    %3888 = vmatpush2.msra.mxu0 0.0
    %3889 = vmatprep.subr.mxu0 0.0
    %3890 = vmatpush2.msra.mxu0 0.0
    %3891 = vmatprep.subr.mxu0 0.0
    %3892 = vmatpush2.msra.mxu0 0.0
    %3893 = vmatprep.subr.mxu0 0.0
    %3894 = vmatpush2.msra.mxu0 0.0
    %3895 = vmatprep.subr.mxu0 0.0
    %3896 = vmatpush2.msra.mxu0 0.0
    %3897 = vmatprep.subr.mxu0 0.0
    %3898 = vmatpush2.msra.mxu0 0.0
    %3899 = vmatprep.subr.mxu0 0.0
    %3900 = vmatpush2.msra.mxu0 0.0
    %3901 = vmatprep.subr.mxu0 0.0
    %3902 = vmatpush2.msra.mxu0 0.0
    %3903 = vmatprep.subr.mxu0 0.0
    %3904 = vmatpush2.msra.mxu0 0.0
    %3905 = vmatprep.subr.mxu0 0.0
    %3906 = vmatpush2.msra.mxu0 0.0
    %3907 = vmatprep.subr.mxu0 0.0
    %3908 = vmatpush2.msra.mxu0 0.0
    %3909 = vmatprep.mubr.f32.mxu0 0.0
    %3910 = vmatmul.mubr.f32.gmra.mxu0 %v3840
    %v3911 = vpop.f32.mrf.mxu0
    %v3912 = vadd.f32 0.0, %v3911
    %v3913 = vpop.f32.mrf.mxu0
    %3914 = vmatprep.mubr.f32.mxu0 0.0
    %3915 = vmatmul.mubr.f32.gmra.mxu0 %v3843
    %v3916 = vpop.f32.mrf.mxu0
    %v3917 = vadd.f32 0.0, %v3916
    %v3918 = vpop.f32.mrf.mxu0
    %3919 = vdwg.mxu0
    %3922 = vrot.lane.b32.xlu0 %v3512, 8
    %v3923 = vpop.permute.xlu0 %3922
    %3924 = vrot.lane.b32.xlu0 %v3517, 8
    %v3925 = vpop.permute.xlu0 %3924
    %3930 = vrot.lane.b32.xlu0 %v3712, 16
    %v3931 = vpop.permute.xlu0 %3930
    %3932 = vrot.lane.b32.xlu0 %v3717, 16
    %v3933 = vpop.permute.xlu0 %3932
    %3938 = vrot.lane.b32.xlu0 %v3912, 24
    %v3939 = vpop.permute.xlu0 %3938
    %3940 = vrot.lane.b32.xlu0 %v3917, 24
    %v3941 = vpop.permute.xlu0 %3940
    %v3944 = vsel %vm146, %v3312, %v3923
    %v3945 = vsel %vm146, %v3317, %v3925
    %v3946 = vsel %vm230, %v3944, %v3931
    %v3947 = vsel %vm230, %v3945, %v3933
    %v3948 = vsel %vm968, %v3946, %v3939
    %v3949 = vsel %vm968, %v3947, %v3941
    %s3950 = scalar_lea.vmem %s4, 64
    %v3951 = vld [vmem:[%s3950] sm:$0xff]
    %v3952 = vld [vmem:[%s3950 + $0x8] sm:$0xff]
    %v3953 = vld [vmem:[%s3950 + $0x10] sm:$0xff]
    %v3954 = vld [vmem:[%s3950 + $0x18] sm:$0xff]
    %s3955 = scalar_lea.vmem %s5, 32
    %v3956 = vld [vmem:[%s3955] sm:$0xff]
    %v3957 = vld [vmem:[%s3955 + $0x8] sm:$0xff]
    %v3959 = vsel %vm58, %v3948, 0
    %v3962 = vsel %vm58, %v3949, 0
    %3964 = vmatprep.subr.mxu0 0.0
    %3965 = vmatpush1.msra.mxu0 0.0
    %3966 = vmatprep.subr.mxu0 0.0
    %3967 = vmatpush1.msra.mxu0 0.0
    %3968 = vmatprep.subr.mxu0 0.0
    %3969 = vmatpush1.msra.mxu0 0.0
    %3970 = vmatprep.subr.mxu0 0.0
    %3971 = vmatpush1.msra.mxu0 0.0
    %3972 = vmatprep.subr.mxu0 0.0
    %3973 = vmatpush1.msra.mxu0 0.0
    %3974 = vmatprep.subr.mxu0 0.0
    %3975 = vmatpush1.msra.mxu0 0.0
    %3976 = vmatprep.subr.mxu0 0.0
    %3977 = vmatpush1.msra.mxu0 0.0
    %3978 = vmatprep.subr.mxu0 0.0
    %3979 = vmatpush1.msra.mxu0 0.0
    %3980 = vmatprep.subr.mxu0 0.0
    %3981 = vmatpush1.msra.mxu0 0.0
    %3982 = vmatprep.subr.mxu0 0.0
    %3983 = vmatpush1.msra.mxu0 0.0
    %3984 = vmatprep.subr.mxu0 0.0
    %3985 = vmatpush1.msra.mxu0 0.0
    %3986 = vmatprep.subr.mxu0 0.0
    %3987 = vmatpush1.msra.mxu0 0.0
    %3988 = vmatprep.subr.mxu0 0.0
    %3989 = vmatpush1.msra.mxu0 %v3954
    %3990 = vmatprep.subr.mxu0 0.0
    %3991 = vmatpush1.msra.mxu0 %v3953
    %3992 = vmatprep.subr.mxu0 0.0
    %3993 = vmatpush1.msra.mxu0 %v3952
    %3994 = vmatprep.subr.mxu0 0.0
    %3995 = vmatpush1.msra.mxu0 %v3951
    %3996 = vmatprep.subr.mxu0 0.0
    %3997 = vmatpush2.msra.mxu0 0.0
    %3998 = vmatprep.subr.mxu0 0.0
    %3999 = vmatpush2.msra.mxu0 0.0
    %4000 = vmatprep.subr.mxu0 0.0
    %4001 = vmatpush2.msra.mxu0 0.0
    %4002 = vmatprep.subr.mxu0 0.0
    %4003 = vmatpush2.msra.mxu0 0.0
    %4004 = vmatprep.subr.mxu0 0.0
    %4005 = vmatpush2.msra.mxu0 0.0
    %4006 = vmatprep.subr.mxu0 0.0
    %4007 = vmatpush2.msra.mxu0 0.0
    %4008 = vmatprep.subr.mxu0 0.0
    %4009 = vmatpush2.msra.mxu0 0.0
    %4010 = vmatprep.subr.mxu0 0.0
    %4011 = vmatpush2.msra.mxu0 0.0
    %4012 = vmatprep.subr.mxu0 0.0
    %4013 = vmatpush2.msra.mxu0 0.0
    %4014 = vmatprep.subr.mxu0 0.0
    %4015 = vmatpush2.msra.mxu0 0.0
    %4016 = vmatprep.subr.mxu0 0.0
    %4017 = vmatpush2.msra.mxu0 0.0
    %4018 = vmatprep.subr.mxu0 0.0
    %4019 = vmatpush2.msra.mxu0 0.0
    %4020 = vmatprep.subr.mxu0 0.0
    %4021 = vmatpush2.msra.mxu0 0.0
    %4022 = vmatprep.subr.mxu0 0.0
    %4023 = vmatpush2.msra.mxu0 0.0
    %4024 = vmatprep.subr.mxu0 0.0
    %4025 = vmatpush2.msra.mxu0 0.0
    %4026 = vmatprep.subr.mxu0 0.0
    %4027 = vmatpush2.msra.mxu0 0.0
    %4028 = vmatprep.mubr.f32.mxu0 0.0
    %4029 = vmatmul.mubr.f32.gmra.mxu0 %v3959
    %v4030 = vpop.f32.mrf.mxu0
    %v4031 = vadd.f32 %v3956, %v4030
    %v4032 = vpop.f32.mrf.mxu0
    %4033 = vmatprep.mubr.f32.mxu0 0.0
    %4034 = vmatmul.mubr.f32.gmra.mxu0 %v3962
    %v4035 = vpop.f32.mrf.mxu0
    %v4036 = vadd.f32 %v3957, %v4035
    %v4037 = vpop.f32.mrf.mxu0
    %4038 = vdwg.mxu0
    %v4039 = vadd.f32 %v3031, %v4031
    %v4040 = vadd.f32 %v3032, %v4036
    %s4041 = scalar_lea.vmem %s10, 32
    %v4042 = vld [vmem:[%s4041] sm:$0xff]
    %v4043 = vld [vmem:[%s4041 + $0x8] sm:$0xff]
    %s4044 = scalar_lea.vmem %s11, 32
    %v4045 = vld [vmem:[%s4044] sm:$0xff]
    %v4046 = vld [vmem:[%s4044 + $0x8] sm:$0xff]
    %v4047 = vsel %vm58, %v4039, 0.0
    %4048 = vadd.xlane.f32.xlu0 %v4047
    %v4049 = vpop.xlane.xlu0 %4048
    %v4050 = vsel %vm58, %v4040, 0.0
    %4051 = vadd.xlane.f32.xlu0 %v4050
    %v4052 = vpop.xlane.xlu0 %4051
    %v4053 = vmul.f32 %v4049, %v1070
    %v4054 = vmul.f32 %v4052, %v1070
    %v4055 = vsub.f32 %v4039, %v4053
    %v4056 = vsub.f32 %v4040, %v4054
    %v4057 = vmul.f32 %v4055, %v4055
    %v4058 = vmul.f32 %v4056, %v4056
    %v4059 = vsel %vm58, %v4057, 0.0
    %4060 = vadd.xlane.f32.xlu0 %v4059
    %v4061 = vpop.xlane.xlu0 %4060
    %v4062 = vsel %vm58, %v4058, 0.0
    %4063 = vadd.xlane.f32.xlu0 %v4062
    %v4064 = vpop.xlane.xlu0 %4063
    %v4065 = vmul.f32 %v4061, %v1070
    %v4066 = vmul.f32 %v4064, %v1070
    %v4067 = vadd.f32 %v4065, 1e-05
    %v4068 = vadd.f32 %v4066, 1e-05
    %v4069 = vrsqrt.pop %v4067
    %v4070 = vrsqrt.pop %v4068
    %v4071 = vmul.f32 %v4055, %v4069
    %v4072 = vmul.f32 %v4056, %v4070
    %v4073 = vmul.f32 %v4071, %v4042
    %v4074 = vmul.f32 %v4072, %v4043
    %v4075 = vadd.f32 %v4073, %v4045
    %v4076 = vadd.f32 %v4074, %v4046
    %s4077 = scalar_lea.vmem %s6, 256
    %v4078 = vld [vmem:[%s4077] sm:$0xff]
    %v4079 = vld [vmem:[%s4077 + $0x8] sm:$0xff]
    %v4080 = vld [vmem:[%s4077 + $0x10] sm:$0xff]
    %v4081 = vld [vmem:[%s4077 + $0x18] sm:$0xff]
    %v4082 = vld [vmem:[%s4077 + $0x20] sm:$0xff]
    %v4083 = vld [vmem:[%s4077 + $0x28] sm:$0xff]
    %v4084 = vld [vmem:[%s4077 + $0x30] sm:$0xff]
    %v4085 = vld [vmem:[%s4077 + $0x38] sm:$0xff]
    %v4086 = vld [vmem:[%s4077 + $0x40] sm:$0xff]
    %v4087 = vld [vmem:[%s4077 + $0x48] sm:$0xff]
    %v4088 = vld [vmem:[%s4077 + $0x50] sm:$0xff]
    %v4089 = vld [vmem:[%s4077 + $0x58] sm:$0xff]
    %v4090 = vld [vmem:[%s4077 + $0x60] sm:$0xff]
    %v4091 = vld [vmem:[%s4077 + $0x68] sm:$0xff]
    %v4092 = vld [vmem:[%s4077 + $0x70] sm:$0xff]
    %v4093 = vld [vmem:[%s4077 + $0x78] sm:$0xff]
    %s4094 = scalar_lea.vmem %s7, 128
    %v4095 = vld [vmem:[%s4094] sm:$0xff]
    %v4096 = vld [vmem:[%s4094 + $0x8] sm:$0xff]
    %v4097 = vld [vmem:[%s4094 + $0x10] sm:$0xff]
    %v4098 = vld [vmem:[%s4094 + $0x18] sm:$0xff]
    %v4099 = vld [vmem:[%s4094 + $0x20] sm:$0xff]
    %v4100 = vld [vmem:[%s4094 + $0x28] sm:$0xff]
    %v4101 = vld [vmem:[%s4094 + $0x30] sm:$0xff]
    %v4102 = vld [vmem:[%s4094 + $0x38] sm:$0xff]
    %v4104 = vsel %vm58, %v4075, 0
    %v4107 = vsel %vm58, %v4076, 0
    %4109 = vmatprep.subr.mxu0 0.0
    %4110 = vmatpush1.msra.mxu0 0.0
    %4111 = vmatprep.subr.mxu0 0.0
    %4112 = vmatpush1.msra.mxu0 0.0
    %4113 = vmatprep.subr.mxu0 0.0
    %4114 = vmatpush1.msra.mxu0 0.0
    %4115 = vmatprep.subr.mxu0 0.0
    %4116 = vmatpush1.msra.mxu0 0.0
    %4117 = vmatprep.subr.mxu0 0.0
    %4118 = vmatpush1.msra.mxu0 0.0
    %4119 = vmatprep.subr.mxu0 0.0
    %4120 = vmatpush1.msra.mxu0 0.0
    %4121 = vmatprep.subr.mxu0 0.0
    %4122 = vmatpush1.msra.mxu0 0.0
    %4123 = vmatprep.subr.mxu0 0.0
    %4124 = vmatpush1.msra.mxu0 0.0
    %4125 = vmatprep.subr.mxu0 0.0
    %4126 = vmatpush1.msra.mxu0 0.0
    %4127 = vmatprep.subr.mxu0 0.0
    %4128 = vmatpush1.msra.mxu0 0.0
    %4129 = vmatprep.subr.mxu0 0.0
    %4130 = vmatpush1.msra.mxu0 0.0
    %4131 = vmatprep.subr.mxu0 0.0
    %4132 = vmatpush1.msra.mxu0 0.0
    %4133 = vmatprep.subr.mxu0 %v4091
    %4134 = vmatpush1.msra.mxu0 %v4090
    %4135 = vmatprep.subr.mxu0 %v4087
    %4136 = vmatpush1.msra.mxu0 %v4086
    %4137 = vmatprep.subr.mxu0 %v4083
    %4138 = vmatpush1.msra.mxu0 %v4082
    %4139 = vmatprep.subr.mxu0 %v4079
    %4140 = vmatpush1.msra.mxu0 %v4078
    %4141 = vmatprep.subr.mxu0 0.0
    %4142 = vmatpush2.msra.mxu0 0.0
    %4143 = vmatprep.subr.mxu0 0.0
    %4144 = vmatpush2.msra.mxu0 0.0
    %4145 = vmatprep.subr.mxu0 0.0
    %4146 = vmatpush2.msra.mxu0 0.0
    %4147 = vmatprep.subr.mxu0 0.0
    %4148 = vmatpush2.msra.mxu0 0.0
    %4149 = vmatprep.subr.mxu0 0.0
    %4150 = vmatpush2.msra.mxu0 0.0
    %4151 = vmatprep.subr.mxu0 0.0
    %4152 = vmatpush2.msra.mxu0 0.0
    %4153 = vmatprep.subr.mxu0 0.0
    %4154 = vmatpush2.msra.mxu0 0.0
    %4155 = vmatprep.subr.mxu0 0.0
    %4156 = vmatpush2.msra.mxu0 0.0
    %4157 = vmatprep.subr.mxu0 0.0
    %4158 = vmatpush2.msra.mxu0 0.0
    %4159 = vmatprep.subr.mxu0 0.0
    %4160 = vmatpush2.msra.mxu0 0.0
    %4161 = vmatprep.subr.mxu0 0.0
    %4162 = vmatpush2.msra.mxu0 0.0
    %4163 = vmatprep.subr.mxu0 0.0
    %4164 = vmatpush2.msra.mxu0 0.0
    %4165 = vmatprep.subr.mxu0 0.0
    %4166 = vmatpush2.msra.mxu0 0.0
    %4167 = vmatprep.subr.mxu0 0.0
    %4168 = vmatpush2.msra.mxu0 0.0
    %4169 = vmatprep.subr.mxu0 0.0
    %4170 = vmatpush2.msra.mxu0 0.0
    %4171 = vmatprep.subr.mxu0 0.0
    %4172 = vmatpush2.msra.mxu0 0.0
    %4173 = vmatprep.mubr.f32.mxu0 0.0
    %4174 = vmatmul.mubr.f32.gmra.mxu0 %v4104
    %v4175 = vpop.f32.mrf.mxu0
    %v4176 = vadd.f32 %v4095, %v4175
    %v4177 = vpop.f32.mrf.mxu0
    %v4178 = vadd.f32 %v4096, %v4177
    %4179 = vmatprep.mubr.f32.mxu0 0.0
    %4180 = vmatmul.mubr.f32.gmra.mxu0 %v4107
    %v4181 = vpop.f32.mrf.mxu0
    %v4182 = vadd.f32 %v4099, %v4181
    %v4183 = vpop.f32.mrf.mxu0
    %v4184 = vadd.f32 %v4100, %v4183
    %4185 = vdwg.mxu0
    %4186 = vmatprep.subr.mxu0 0.0
    %4187 = vmatpush1.msra.mxu0 0.0
    %4188 = vmatprep.subr.mxu0 0.0
    %4189 = vmatpush1.msra.mxu0 0.0
    %4190 = vmatprep.subr.mxu0 0.0
    %4191 = vmatpush1.msra.mxu0 0.0
    %4192 = vmatprep.subr.mxu0 0.0
    %4193 = vmatpush1.msra.mxu0 0.0
    %4194 = vmatprep.subr.mxu0 0.0
    %4195 = vmatpush1.msra.mxu0 0.0
    %4196 = vmatprep.subr.mxu0 0.0
    %4197 = vmatpush1.msra.mxu0 0.0
    %4198 = vmatprep.subr.mxu0 0.0
    %4199 = vmatpush1.msra.mxu0 0.0
    %4200 = vmatprep.subr.mxu0 0.0
    %4201 = vmatpush1.msra.mxu0 0.0
    %4202 = vmatprep.subr.mxu0 0.0
    %4203 = vmatpush1.msra.mxu0 0.0
    %4204 = vmatprep.subr.mxu0 0.0
    %4205 = vmatpush1.msra.mxu0 0.0
    %4206 = vmatprep.subr.mxu0 0.0
    %4207 = vmatpush1.msra.mxu0 0.0
    %4208 = vmatprep.subr.mxu0 0.0
    %4209 = vmatpush1.msra.mxu0 0.0
    %4210 = vmatprep.subr.mxu0 %v4093
    %4211 = vmatpush1.msra.mxu0 %v4092
    %4212 = vmatprep.subr.mxu0 %v4089
    %4213 = vmatpush1.msra.mxu0 %v4088
    %4214 = vmatprep.subr.mxu0 %v4085
    %4215 = vmatpush1.msra.mxu0 %v4084
    %4216 = vmatprep.subr.mxu0 %v4081
    %4217 = vmatpush1.msra.mxu0 %v4080
    %4218 = vmatprep.subr.mxu0 0.0
    %4219 = vmatpush2.msra.mxu0 0.0
    %4220 = vmatprep.subr.mxu0 0.0
    %4221 = vmatpush2.msra.mxu0 0.0
    %4222 = vmatprep.subr.mxu0 0.0
    %4223 = vmatpush2.msra.mxu0 0.0
    %4224 = vmatprep.subr.mxu0 0.0
    %4225 = vmatpush2.msra.mxu0 0.0
    %4226 = vmatprep.subr.mxu0 0.0
    %4227 = vmatpush2.msra.mxu0 0.0
    %4228 = vmatprep.subr.mxu0 0.0
    %4229 = vmatpush2.msra.mxu0 0.0
    %4230 = vmatprep.subr.mxu0 0.0
    %4231 = vmatpush2.msra.mxu0 0.0
    %4232 = vmatprep.subr.mxu0 0.0
    %4233 = vmatpush2.msra.mxu0 0.0
    %4234 = vmatprep.subr.mxu0 0.0
    %4235 = vmatpush2.msra.mxu0 0.0
    %4236 = vmatprep.subr.mxu0 0.0
    %4237 = vmatpush2.msra.mxu0 0.0
    %4238 = vmatprep.subr.mxu0 0.0
    %4239 = vmatpush2.msra.mxu0 0.0
    %4240 = vmatprep.subr.mxu0 0.0
    %4241 = vmatpush2.msra.mxu0 0.0
    %4242 = vmatprep.subr.mxu0 0.0
    %4243 = vmatpush2.msra.mxu0 0.0
    %4244 = vmatprep.subr.mxu0 0.0
    %4245 = vmatpush2.msra.mxu0 0.0
    %4246 = vmatprep.subr.mxu0 0.0
    %4247 = vmatpush2.msra.mxu0 0.0
    %4248 = vmatprep.subr.mxu0 0.0
    %4249 = vmatpush2.msra.mxu0 0.0
    %4250 = vmatprep.mubr.f32.mxu0 0.0
    %4251 = vmatmul.mubr.f32.gmra.mxu0 %v4104
    %v4252 = vpop.f32.mrf.mxu0
    %v4253 = vadd.f32 %v4097, %v4252
    %v4254 = vpop.f32.mrf.mxu0
    %v4255 = vadd.f32 %v4098, %v4254
    %4256 = vmatprep.mubr.f32.mxu0 0.0
    %4257 = vmatmul.mubr.f32.gmra.mxu0 %v4107
    %v4258 = vpop.f32.mrf.mxu0
    %v4259 = vadd.f32 %v4101, %v4258
    %v4260 = vpop.f32.mrf.mxu0
    %v4261 = vadd.f32 %v4102, %v4260
    %4262 = vdwg.mxu0
    %v4263 = vmax.f32 %v4176, 0.0
    %v4264 = vmax.f32 %v4178, 0.0
    %v4265 = vmax.f32 %v4253, 0.0
    %v4266 = vmax.f32 %v4255, 0.0
    %v4267 = vmax.f32 %v4182, 0.0
    %v4268 = vmax.f32 %v4184, 0.0
    %v4269 = vmax.f32 %v4259, 0.0
    %v4270 = vmax.f32 %v4261, 0.0
    %s4271 = scalar_lea.vmem %s8, 1024
    %v4272 = vld [vmem:[%s4271] sm:$0xff]
    %v4273 = vld [vmem:[%s4271 + $0x8] sm:$0xff]
    %v4274 = vld [vmem:[%s4271 + $0x10] sm:$0xff]
    %v4275 = vld [vmem:[%s4271 + $0x18] sm:$0xff]
    %v4276 = vld [vmem:[%s4271 + $0x20] sm:$0xff]
    %v4277 = vld [vmem:[%s4271 + $0x28] sm:$0xff]
    %v4278 = vld [vmem:[%s4271 + $0x30] sm:$0xff]
    %v4279 = vld [vmem:[%s4271 + $0x38] sm:$0xff]
    %v4280 = vld [vmem:[%s4271 + $0x40] sm:$0xff]
    %v4281 = vld [vmem:[%s4271 + $0x48] sm:$0xff]
    %v4282 = vld [vmem:[%s4271 + $0x50] sm:$0xff]
    %v4283 = vld [vmem:[%s4271 + $0x58] sm:$0xff]
    %v4284 = vld [vmem:[%s4271 + $0x60] sm:$0xff]
    %v4285 = vld [vmem:[%s4271 + $0x68] sm:$0xff]
    %v4286 = vld [vmem:[%s4271 + $0x70] sm:$0xff]
    %v4287 = vld [vmem:[%s4271 + $0x78] sm:$0xff]
    %v4288 = vld [vmem:[%s4271 + $0x80] sm:$0xff]
    %v4289 = vld [vmem:[%s4271 + $0x88] sm:$0xff]
    %v4290 = vld [vmem:[%s4271 + $0x90] sm:$0xff]
    %v4291 = vld [vmem:[%s4271 + $0x98] sm:$0xff]
    %v4292 = vld [vmem:[%s4271 + $0xa0] sm:$0xff]
    %v4293 = vld [vmem:[%s4271 + $0xa8] sm:$0xff]
    %v4294 = vld [vmem:[%s4271 + $0xb0] sm:$0xff]
    %v4295 = vld [vmem:[%s4271 + $0xb8] sm:$0xff]
    %v4296 = vld [vmem:[%s4271 + $0xc0] sm:$0xff]
    %v4297 = vld [vmem:[%s4271 + $0xc8] sm:$0xff]
    %v4298 = vld [vmem:[%s4271 + $0xd0] sm:$0xff]
    %v4299 = vld [vmem:[%s4271 + $0xd8] sm:$0xff]
    %v4300 = vld [vmem:[%s4271 + $0xe0] sm:$0xff]
    %v4301 = vld [vmem:[%s4271 + $0xe8] sm:$0xff]
    %v4302 = vld [vmem:[%s4271 + $0xf0] sm:$0xff]
    %v4303 = vld [vmem:[%s4271 + $0xf8] sm:$0xff]
    %v4304 = vld [vmem:[%s4271 + $0x100] sm:$0xff]
    %v4305 = vld [vmem:[%s4271 + $0x108] sm:$0xff]
    %v4306 = vld [vmem:[%s4271 + $0x110] sm:$0xff]
    %v4307 = vld [vmem:[%s4271 + $0x118] sm:$0xff]
    %v4308 = vld [vmem:[%s4271 + $0x120] sm:$0xff]
    %v4309 = vld [vmem:[%s4271 + $0x128] sm:$0xff]
    %v4310 = vld [vmem:[%s4271 + $0x130] sm:$0xff]
    %v4311 = vld [vmem:[%s4271 + $0x138] sm:$0xff]
    %v4312 = vld [vmem:[%s4271 + $0x140] sm:$0xff]
    %v4313 = vld [vmem:[%s4271 + $0x148] sm:$0xff]
    %v4314 = vld [vmem:[%s4271 + $0x150] sm:$0xff]
    %v4315 = vld [vmem:[%s4271 + $0x158] sm:$0xff]
    %v4316 = vld [vmem:[%s4271 + $0x160] sm:$0xff]
    %v4317 = vld [vmem:[%s4271 + $0x168] sm:$0xff]
    %v4318 = vld [vmem:[%s4271 + $0x170] sm:$0xff]
    %v4319 = vld [vmem:[%s4271 + $0x178] sm:$0xff]
    %v4320 = vld [vmem:[%s4271 + $0x180] sm:$0xff]
    %v4321 = vld [vmem:[%s4271 + $0x188] sm:$0xff]
    %v4322 = vld [vmem:[%s4271 + $0x190] sm:$0xff]
    %v4323 = vld [vmem:[%s4271 + $0x198] sm:$0xff]
    %v4324 = vld [vmem:[%s4271 + $0x1a0] sm:$0xff]
    %v4325 = vld [vmem:[%s4271 + $0x1a8] sm:$0xff]
    %v4326 = vld [vmem:[%s4271 + $0x1b0] sm:$0xff]
    %v4327 = vld [vmem:[%s4271 + $0x1b8] sm:$0xff]
    %v4328 = vld [vmem:[%s4271 + $0x1c0] sm:$0xff]
    %v4329 = vld [vmem:[%s4271 + $0x1c8] sm:$0xff]
    %v4330 = vld [vmem:[%s4271 + $0x1d0] sm:$0xff]
    %v4331 = vld [vmem:[%s4271 + $0x1d8] sm:$0xff]
    %v4332 = vld [vmem:[%s4271 + $0x1e0] sm:$0xff]
    %v4333 = vld [vmem:[%s4271 + $0x1e8] sm:$0xff]
    %v4334 = vld [vmem:[%s4271 + $0x1f0] sm:$0xff]
    %v4335 = vld [vmem:[%s4271 + $0x1f8] sm:$0xff]
    %s4336 = scalar_lea.vmem %s9, 32
    %v4337 = vld [vmem:[%s4336] sm:$0xff]
    %v4338 = vld [vmem:[%s4336 + $0x8] sm:$0xff]
    %4339 = vmatprep.subr.mxu0 0.0
    %4340 = vmatpush1.msra.mxu0 %v4287
    %4341 = vmatprep.subr.mxu0 0.0
    %4342 = vmatpush1.msra.mxu0 %v4286
    %4343 = vmatprep.subr.mxu0 0.0
    %4344 = vmatpush1.msra.mxu0 %v4285
    %4345 = vmatprep.subr.mxu0 0.0
    %4346 = vmatpush1.msra.mxu0 %v4284
    %4347 = vmatprep.subr.mxu0 0.0
    %4348 = vmatpush1.msra.mxu0 %v4283
    %4349 = vmatprep.subr.mxu0 0.0
    %4350 = vmatpush1.msra.mxu0 %v4282
    %4351 = vmatprep.subr.mxu0 0.0
    %4352 = vmatpush1.msra.mxu0 %v4281
    %4353 = vmatprep.subr.mxu0 0.0
    %4354 = vmatpush1.msra.mxu0 %v4280
    %4355 = vmatprep.subr.mxu0 0.0
    %4356 = vmatpush1.msra.mxu0 %v4279
    %4357 = vmatprep.subr.mxu0 0.0
    %4358 = vmatpush1.msra.mxu0 %v4278
    %4359 = vmatprep.subr.mxu0 0.0
    %4360 = vmatpush1.msra.mxu0 %v4277
    %4361 = vmatprep.subr.mxu0 0.0
    %4362 = vmatpush1.msra.mxu0 %v4276
    %4363 = vmatprep.subr.mxu0 0.0
    %4364 = vmatpush1.msra.mxu0 %v4275
    %4365 = vmatprep.subr.mxu0 0.0
    %4366 = vmatpush1.msra.mxu0 %v4274
    %4367 = vmatprep.subr.mxu0 0.0
    %4368 = vmatpush1.msra.mxu0 %v4273
    %4369 = vmatprep.subr.mxu0 0.0
    %4370 = vmatpush1.msra.mxu0 %v4272
    %4371 = vmatprep.subr.mxu0 0.0
    %4372 = vmatpush2.msra.mxu0 %v4303
    %4373 = vmatprep.subr.mxu0 0.0
    %4374 = vmatpush2.msra.mxu0 %v4302
    %4375 = vmatprep.subr.mxu0 0.0
    %4376 = vmatpush2.msra.mxu0 %v4301
    %4377 = vmatprep.subr.mxu0 0.0
    %4378 = vmatpush2.msra.mxu0 %v4300
    %4379 = vmatprep.subr.mxu0 0.0
    %4380 = vmatpush2.msra.mxu0 %v4299
    %4381 = vmatprep.subr.mxu0 0.0
    %4382 = vmatpush2.msra.mxu0 %v4298
    %4383 = vmatprep.subr.mxu0 0.0
    %4384 = vmatpush2.msra.mxu0 %v4297
    %4385 = vmatprep.subr.mxu0 0.0
    %4386 = vmatpush2.msra.mxu0 %v4296
    %4387 = vmatprep.subr.mxu0 0.0
    %4388 = vmatpush2.msra.mxu0 %v4295
    %4389 = vmatprep.subr.mxu0 0.0
    %4390 = vmatpush2.msra.mxu0 %v4294
    %4391 = vmatprep.subr.mxu0 0.0
    %4392 = vmatpush2.msra.mxu0 %v4293
    %4393 = vmatprep.subr.mxu0 0.0
    %4394 = vmatpush2.msra.mxu0 %v4292
    %4395 = vmatprep.subr.mxu0 0.0
    %4396 = vmatpush2.msra.mxu0 %v4291
    %4397 = vmatprep.subr.mxu0 0.0
    %4398 = vmatpush2.msra.mxu0 %v4290
    %4399 = vmatprep.subr.mxu0 0.0
    %4400 = vmatpush2.msra.mxu0 %v4289
    %4401 = vmatprep.subr.mxu0 0.0
    %4402 = vmatpush2.msra.mxu0 %v4288
    %4403 = vmatprep.mubr.f32.mxu0 %v4264
    %4404 = vmatmul.mubr.f32.gmra.mxu0 %v4263
    %v4405 = vpop.f32.mrf.mxu0
    %v4406 = vadd.f32 %v4337, %v4405
    %v4407 = vpop.f32.mrf.mxu0
    %4408 = vmatprep.mubr.f32.mxu0 %v4268
    %4409 = vmatmul.mubr.f32.gmra.mxu0 %v4267
    %v4410 = vpop.f32.mrf.mxu0
    %v4411 = vadd.f32 %v4338, %v4410
    %v4412 = vpop.f32.mrf.mxu0
    %4413 = vdwg.mxu0
    %4414 = vmatprep.subr.mxu0 0.0
    %4415 = vmatpush1.msra.mxu0 %v4319
    %4416 = vmatprep.subr.mxu0 0.0
    %4417 = vmatpush1.msra.mxu0 %v4318
    %4418 = vmatprep.subr.mxu0 0.0
    %4419 = vmatpush1.msra.mxu0 %v4317
    %4420 = vmatprep.subr.mxu0 0.0
    %4421 = vmatpush1.msra.mxu0 %v4316
    %4422 = vmatprep.subr.mxu0 0.0
    %4423 = vmatpush1.msra.mxu0 %v4315
    %4424 = vmatprep.subr.mxu0 0.0
    %4425 = vmatpush1.msra.mxu0 %v4314
    %4426 = vmatprep.subr.mxu0 0.0
    %4427 = vmatpush1.msra.mxu0 %v4313
    %4428 = vmatprep.subr.mxu0 0.0
    %4429 = vmatpush1.msra.mxu0 %v4312
    %4430 = vmatprep.subr.mxu0 0.0
    %4431 = vmatpush1.msra.mxu0 %v4311
    %4432 = vmatprep.subr.mxu0 0.0
    %4433 = vmatpush1.msra.mxu0 %v4310
    %4434 = vmatprep.subr.mxu0 0.0
    %4435 = vmatpush1.msra.mxu0 %v4309
    %4436 = vmatprep.subr.mxu0 0.0
    %4437 = vmatpush1.msra.mxu0 %v4308
    %4438 = vmatprep.subr.mxu0 0.0
    %4439 = vmatpush1.msra.mxu0 %v4307
    %4440 = vmatprep.subr.mxu0 0.0
    %4441 = vmatpush1.msra.mxu0 %v4306
    %4442 = vmatprep.subr.mxu0 0.0
    %4443 = vmatpush1.msra.mxu0 %v4305
    %4444 = vmatprep.subr.mxu0 0.0
    %4445 = vmatpush1.msra.mxu0 %v4304
    %4446 = vmatprep.subr.mxu0 0.0
    %4447 = vmatpush2.msra.mxu0 %v4335
    %4448 = vmatprep.subr.mxu0 0.0
    %4449 = vmatpush2.msra.mxu0 %v4334
    %4450 = vmatprep.subr.mxu0 0.0
    %4451 = vmatpush2.msra.mxu0 %v4333
    %4452 = vmatprep.subr.mxu0 0.0
    %4453 = vmatpush2.msra.mxu0 %v4332
    %4454 = vmatprep.subr.mxu0 0.0
    %4455 = vmatpush2.msra.mxu0 %v4331
    %4456 = vmatprep.subr.mxu0 0.0
    %4457 = vmatpush2.msra.mxu0 %v4330
    %4458 = vmatprep.subr.mxu0 0.0
    %4459 = vmatpush2.msra.mxu0 %v4329
    %4460 = vmatprep.subr.mxu0 0.0
    %4461 = vmatpush2.msra.mxu0 %v4328
    %4462 = vmatprep.subr.mxu0 0.0
    %4463 = vmatpush2.msra.mxu0 %v4327
    %4464 = vmatprep.subr.mxu0 0.0
    %4465 = vmatpush2.msra.mxu0 %v4326
    %4466 = vmatprep.subr.mxu0 0.0
    %4467 = vmatpush2.msra.mxu0 %v4325
    %4468 = vmatprep.subr.mxu0 0.0
    %4469 = vmatpush2.msra.mxu0 %v4324
    %4470 = vmatprep.subr.mxu0 0.0
    %4471 = vmatpush2.msra.mxu0 %v4323
    %4472 = vmatprep.subr.mxu0 0.0
    %4473 = vmatpush2.msra.mxu0 %v4322
    %4474 = vmatprep.subr.mxu0 0.0
    %4475 = vmatpush2.msra.mxu0 %v4321
    %4476 = vmatprep.subr.mxu0 0.0
    %4477 = vmatpush2.msra.mxu0 %v4320
    %4478 = vmatprep.mubr.f32.mxu0 %v4266
    %4479 = vmatmul.mubr.f32.gmra.mxu0 %v4265
    %v4480 = vpop.f32.mrf.mxu0
    %v4481 = vadd.f32 %v4406, %v4480
    %v4482 = vpop.f32.mrf.mxu0
    %4483 = vmatprep.mubr.f32.mxu0 %v4270
    %4484 = vmatmul.mubr.f32.gmra.mxu0 %v4269
    %v4485 = vpop.f32.mrf.mxu0
    %v4486 = vadd.f32 %v4411, %v4485
    %v4487 = vpop.f32.mrf.mxu0
    %4488 = vdwg.mxu0
    %v4489 = vadd.f32 %v4075, %v4481
    %v4490 = vadd.f32 %v4076, %v4486
    %s4491 = scalar_lea.vmem %s12, 32
    %v4492 = vld [vmem:[%s4491] sm:$0xff]
    %v4493 = vld [vmem:[%s4491 + $0x8] sm:$0xff]
    %s4494 = scalar_lea.vmem %s13, 32
    %v4495 = vld [vmem:[%s4494] sm:$0xff]
    %v4496 = vld [vmem:[%s4494 + $0x8] sm:$0xff]
    %v4497 = vsel %vm58, %v4489, 0.0
    %4498 = vadd.xlane.f32.xlu0 %v4497
    %v4499 = vpop.xlane.xlu0 %4498
    %v4500 = vsel %vm58, %v4490, 0.0
    %4501 = vadd.xlane.f32.xlu0 %v4500
    %v4502 = vpop.xlane.xlu0 %4501
    %v4503 = vmul.f32 %v4499, %v1070
    %v4504 = vmul.f32 %v4502, %v1070
    %v4505 = vsub.f32 %v4489, %v4503
    %v4506 = vsub.f32 %v4490, %v4504
    %v4507 = vmul.f32 %v4505, %v4505
    %v4508 = vmul.f32 %v4506, %v4506
    %v4509 = vsel %vm58, %v4507, 0.0
    %4510 = vadd.xlane.f32.xlu0 %v4509
    %v4511 = vpop.xlane.xlu0 %4510
    %v4512 = vsel %vm58, %v4508, 0.0
    %4513 = vadd.xlane.f32.xlu0 %v4512
    %v4514 = vpop.xlane.xlu0 %4513
    %v4515 = vmul.f32 %v4511, %v1070
    %v4516 = vmul.f32 %v4514, %v1070
    %v4517 = vadd.f32 %v4515, 1e-05
    %v4518 = vadd.f32 %v4516, 1e-05
    %v4519 = vrsqrt.pop %v4517
    %v4520 = vrsqrt.pop %v4518
    %v4521 = vmul.f32 %v4505, %v4519
    %v4522 = vmul.f32 %v4506, %v4520
    %v4523 = vmul.f32 %v4521, %v4492
    %v4524 = vmul.f32 %v4522, %v4493
    %v4525 = vadd.f32 %v4523, %v4495
    %v4526 = vadd.f32 %v4524, %v4496
    %s4527 = scalar_lea.vmem %s2, 96
    %v4528 = vld [vmem:[%s4527] sm:$0xff]
    %v4529 = vld [vmem:[%s4527 + $0x8] sm:$0xff]
    %v4530 = vld [vmem:[%s4527 + $0x10] sm:$0xff]
    %v4531 = vld [vmem:[%s4527 + $0x18] sm:$0xff]
    %s4532 = scalar_lea.vmem %s3, 48
    %v4533 = vld [vmem:[%s4532] sm:$0xff]
    %v4534 = vld [vmem:[%s4532 + $0x8] sm:$0xff]
    %v4536 = vsel %vm58, %v4525, 0
    %v4539 = vsel %vm58, %v4526, 0
    %4541 = vmatprep.subr.mxu0 0.0
    %4542 = vmatpush1.msra.mxu0 0.0
    %4543 = vmatprep.subr.mxu0 0.0
    %4544 = vmatpush1.msra.mxu0 0.0
    %4545 = vmatprep.subr.mxu0 0.0
    %4546 = vmatpush1.msra.mxu0 0.0
    %4547 = vmatprep.subr.mxu0 0.0
    %4548 = vmatpush1.msra.mxu0 0.0
    %4549 = vmatprep.subr.mxu0 0.0
    %4550 = vmatpush1.msra.mxu0 0.0
    %4551 = vmatprep.subr.mxu0 0.0
    %4552 = vmatpush1.msra.mxu0 0.0
    %4553 = vmatprep.subr.mxu0 0.0
    %4554 = vmatpush1.msra.mxu0 0.0
    %4555 = vmatprep.subr.mxu0 0.0
    %4556 = vmatpush1.msra.mxu0 0.0
    %4557 = vmatprep.subr.mxu0 0.0
    %4558 = vmatpush1.msra.mxu0 0.0
    %4559 = vmatprep.subr.mxu0 0.0
    %4560 = vmatpush1.msra.mxu0 0.0
    %4561 = vmatprep.subr.mxu0 0.0
    %4562 = vmatpush1.msra.mxu0 0.0
    %4563 = vmatprep.subr.mxu0 0.0
    %4564 = vmatpush1.msra.mxu0 0.0
    %4565 = vmatprep.subr.mxu0 0.0
    %4566 = vmatpush1.msra.mxu0 %v4531
    %4567 = vmatprep.subr.mxu0 0.0
    %4568 = vmatpush1.msra.mxu0 %v4530
    %4569 = vmatprep.subr.mxu0 0.0
    %4570 = vmatpush1.msra.mxu0 %v4529
    %4571 = vmatprep.subr.mxu0 0.0
    %4572 = vmatpush1.msra.mxu0 %v4528
    %4573 = vmatprep.subr.mxu0 0.0
    %4574 = vmatpush2.msra.mxu0 0.0
    %4575 = vmatprep.subr.mxu0 0.0
    %4576 = vmatpush2.msra.mxu0 0.0
    %4577 = vmatprep.subr.mxu0 0.0
    %4578 = vmatpush2.msra.mxu0 0.0
    %4579 = vmatprep.subr.mxu0 0.0
    %4580 = vmatpush2.msra.mxu0 0.0
    %4581 = vmatprep.subr.mxu0 0.0
    %4582 = vmatpush2.msra.mxu0 0.0
    %4583 = vmatprep.subr.mxu0 0.0
    %4584 = vmatpush2.msra.mxu0 0.0
    %4585 = vmatprep.subr.mxu0 0.0
    %4586 = vmatpush2.msra.mxu0 0.0
    %4587 = vmatprep.subr.mxu0 0.0
    %4588 = vmatpush2.msra.mxu0 0.0
    %4589 = vmatprep.subr.mxu0 0.0
    %4590 = vmatpush2.msra.mxu0 0.0
    %4591 = vmatprep.subr.mxu0 0.0
    %4592 = vmatpush2.msra.mxu0 0.0
    %4593 = vmatprep.subr.mxu0 0.0
    %4594 = vmatpush2.msra.mxu0 0.0
    %4595 = vmatprep.subr.mxu0 0.0
    %4596 = vmatpush2.msra.mxu0 0.0
    %4597 = vmatprep.subr.mxu0 0.0
    %4598 = vmatpush2.msra.mxu0 0.0
    %4599 = vmatprep.subr.mxu0 0.0
    %4600 = vmatpush2.msra.mxu0 0.0
    %4601 = vmatprep.subr.mxu0 0.0
    %4602 = vmatpush2.msra.mxu0 0.0
    %4603 = vmatprep.subr.mxu0 0.0
    %4604 = vmatpush2.msra.mxu0 0.0
    %4605 = vmatprep.mubr.f32.mxu0 0.0
    %4606 = vmatmul.mubr.f32.gmra.mxu0 %v4536
    %v4607 = vpop.f32.mrf.mxu0
    %v4608 = vadd.f32 %v4533, %v4607
    %v4609 = vpop.f32.mrf.mxu0
    %4610 = vmatprep.mubr.f32.mxu0 0.0
    %4611 = vmatmul.mubr.f32.gmra.mxu0 %v4539
    %v4612 = vpop.f32.mrf.mxu0
    %v4613 = vadd.f32 %v4534, %v4612
    %v4614 = vpop.f32.mrf.mxu0
    %4615 = vdwg.mxu0
    %4618 = vrot.lane.b32.xlu0 %v4608, 96
    %v4619 = vpop.permute.xlu0 %4618
    %4620 = vrot.lane.b32.xlu0 %v4613, 96
    %v4621 = vpop.permute.xlu0 %4620
    %v4622 = vsel %vm146, %v4608, 0
    %v4624 = vsel %vm146, %v4613, 0
    %v4626 = vsel %vm146, %v4619, 0
    %v4628 = vsel %vm146, %v4621, 0
    %4630 = vmatprep.subr.mxu0 0.0
    %4631 = vmatpush1.xpose.msra.mxu0 0.0
    %4632 = vmatprep.subr.mxu0 0.0
    %4633 = vmatpush1.xpose.msra.mxu0 0.0
    %4634 = vmatprep.subr.mxu0 0.0
    %4635 = vmatpush1.xpose.msra.mxu0 0.0
    %4636 = vmatprep.subr.mxu0 0.0
    %4637 = vmatpush1.xpose.msra.mxu0 0.0
    %4638 = vmatprep.subr.mxu0 0.0
    %4639 = vmatpush1.xpose.msra.mxu0 0.0
    %4640 = vmatprep.subr.mxu0 0.0
    %4641 = vmatpush1.xpose.msra.mxu0 0.0
    %4642 = vmatprep.subr.mxu0 0.0
    %4643 = vmatpush1.xpose.msra.mxu0 0.0
    %4644 = vmatprep.subr.mxu0 0.0
    %4645 = vmatpush1.xpose.msra.mxu0 0.0
    %4646 = vmatprep.subr.mxu0 0.0
    %4647 = vmatpush1.xpose.msra.mxu0 0.0
    %4648 = vmatprep.subr.mxu0 0.0
    %4649 = vmatpush1.xpose.msra.mxu0 0.0
    %4650 = vmatprep.subr.mxu0 0.0
    %4651 = vmatpush1.xpose.msra.mxu0 0.0
    %4652 = vmatprep.subr.mxu0 0.0
    %4653 = vmatpush1.xpose.msra.mxu0 0.0
    %4654 = vmatprep.subr.mxu0 0.0
    %4655 = vmatpush1.xpose.msra.mxu0 0.0
    %4656 = vmatprep.subr.mxu0 0.0
    %4657 = vmatpush1.xpose.msra.mxu0 0.0
    %4658 = vmatprep.subr.mxu0 0.0
    %4659 = vmatpush1.xpose.msra.mxu0 %v4628
    %4660 = vmatprep.subr.mxu0 0.0
    %4661 = vmatpush1.xpose.msra.mxu0 %v4626
    %4662 = vmatprep.subr.mxu0 0.0
    %4663 = vmatpush2.xpose.msra.mxu0 0.0
    %4664 = vmatprep.subr.mxu0 0.0
    %4665 = vmatpush2.xpose.msra.mxu0 0.0
    %4666 = vmatprep.subr.mxu0 0.0
    %4667 = vmatpush2.xpose.msra.mxu0 0.0
    %4668 = vmatprep.subr.mxu0 0.0
    %4669 = vmatpush2.xpose.msra.mxu0 0.0
    %4670 = vmatprep.subr.mxu0 0.0
    %4671 = vmatpush2.xpose.msra.mxu0 0.0
    %4672 = vmatprep.subr.mxu0 0.0
    %4673 = vmatpush2.xpose.msra.mxu0 0.0
    %4674 = vmatprep.subr.mxu0 0.0
    %4675 = vmatpush2.xpose.msra.mxu0 0.0
    %4676 = vmatprep.subr.mxu0 0.0
    %4677 = vmatpush2.xpose.msra.mxu0 0.0
    %4678 = vmatprep.subr.mxu0 0.0
    %4679 = vmatpush2.xpose.msra.mxu0 0.0
    %4680 = vmatprep.subr.mxu0 0.0
    %4681 = vmatpush2.xpose.msra.mxu0 0.0
    %4682 = vmatprep.subr.mxu0 0.0
    %4683 = vmatpush2.xpose.msra.mxu0 0.0
    %4684 = vmatprep.subr.mxu0 0.0
    %4685 = vmatpush2.xpose.msra.mxu0 0.0
    %4686 = vmatprep.subr.mxu0 0.0
    %4687 = vmatpush2.xpose.msra.mxu0 0.0
    %4688 = vmatprep.subr.mxu0 0.0
    %4689 = vmatpush2.xpose.msra.mxu0 0.0
    %4690 = vmatprep.subr.mxu0 0.0
    %4691 = vmatpush2.xpose.msra.mxu0 0.0
    %4692 = vmatprep.subr.mxu0 0.0
    %4693 = vmatpush2.xpose.msra.mxu0 0.0
    %4694 = vmatprep.mubr.f32.mxu0 0.0
    %4695 = vmatmul.mubr.f32.gmra.mxu0 %v4622
    %v4696 = vpop.f32.mrf.mxu0
    %v4697 = vadd.f32 %v50, %v4696
    %v4698 = vpop.f32.mrf.mxu0
    %4699 = vmatprep.mubr.f32.mxu0 0.0
    %4700 = vmatmul.mubr.f32.gmra.mxu0 %v4624
    %v4701 = vpop.f32.mrf.mxu0
    %v4702 = vadd.f32 %v51, %v4701
    %v4703 = vpop.f32.mrf.mxu0
    %4704 = vdwg.mxu0
    %v4705 = vsel %vm230, %v4697, -inf
    %4706 = vmax.xlane.f32.xlu0 %v4705
    %v4707 = vpop.xlane.xlu0 %4706
    %v4708 = vsel %vm230, %v4702, -inf
    %4709 = vmax.xlane.f32.xlu0 %v4708
    %v4710 = vpop.xlane.xlu0 %4709
    %v4711 = vsub.f32 %v4697, %v4707
    %v4712 = vsub.f32 %v4702, %v4710
    %v4713 = vmul.f32 %v4711, 1.442695
    %v4714 = vpow.pop %v4713
    %v4715 = vmul.f32 %v4712, 1.442695
    %v4716 = vpow.pop %v4715
    %v4717 = vsel %vm230, %v4714, 0.0
    %4718 = vadd.xlane.f32.xlu0 %v4717
    %v4719 = vpop.xlane.xlu0 %4718
    %v4720 = vsel %vm230, %v4716, 0.0
    %4721 = vadd.xlane.f32.xlu0 %v4720
    %v4722 = vpop.xlane.xlu0 %4721
    %v4723 = vrcp.pop %v4719
    %v4724 = vrcp.pop %v4722
    %v4725 = vmul.f32 %v4714, %v4723
    %v4726 = vmul.f32 %v4716, %v4724
    %4727 = vrot.lane.b32.xlu0 %v4608, 64
    %v4728 = vpop.permute.xlu0 %4727
    %4729 = vrot.lane.b32.xlu0 %v4613, 64
    %v4730 = vpop.permute.xlu0 %4729
    %v4734 = vsel %vm230, %v4725, 0
    %v4737 = vsel %vm230, %v4726, 0
    %4739 = vmatprep.subr.mxu0 0.0
    %4740 = vmatpush1.msra.mxu0 0.0
    %4741 = vmatprep.subr.mxu0 0.0
    %4742 = vmatpush1.msra.mxu0 0.0
    %4743 = vmatprep.subr.mxu0 0.0
    %4744 = vmatpush1.msra.mxu0 0.0
    %4745 = vmatprep.subr.mxu0 0.0
    %4746 = vmatpush1.msra.mxu0 0.0
    %4747 = vmatprep.subr.mxu0 0.0
    %4748 = vmatpush1.msra.mxu0 0.0
    %4749 = vmatprep.subr.mxu0 0.0
    %4750 = vmatpush1.msra.mxu0 0.0
    %4751 = vmatprep.subr.mxu0 0.0
    %4752 = vmatpush1.msra.mxu0 0.0
    %4753 = vmatprep.subr.mxu0 0.0
    %4754 = vmatpush1.msra.mxu0 0.0
    %4755 = vmatprep.subr.mxu0 0.0
    %4756 = vmatpush1.msra.mxu0 0.0
    %4757 = vmatprep.subr.mxu0 0.0
    %4758 = vmatpush1.msra.mxu0 0.0
    %4759 = vmatprep.subr.mxu0 0.0
    %4760 = vmatpush1.msra.mxu0 0.0
    %4761 = vmatprep.subr.mxu0 0.0
    %4762 = vmatpush1.msra.mxu0 0.0
    %4763 = vmatprep.subr.mxu0 0.0
    %4764 = vmatpush1.msra.mxu0 0.0
    %4765 = vmatprep.subr.mxu0 0.0
    %4766 = vmatpush1.msra.mxu0 0.0
    %4767 = vmatprep.subr.mxu0 0.0
    %4768 = vmatpush1.msra.mxu0 %v4730
    %4769 = vmatprep.subr.mxu0 0.0
    %4770 = vmatpush1.msra.mxu0 %v4728
    %4771 = vmatprep.subr.mxu0 0.0
    %4772 = vmatpush2.msra.mxu0 0.0
    %4773 = vmatprep.subr.mxu0 0.0
    %4774 = vmatpush2.msra.mxu0 0.0
    %4775 = vmatprep.subr.mxu0 0.0
    %4776 = vmatpush2.msra.mxu0 0.0
    %4777 = vmatprep.subr.mxu0 0.0
    %4778 = vmatpush2.msra.mxu0 0.0
    %4779 = vmatprep.subr.mxu0 0.0
    %4780 = vmatpush2.msra.mxu0 0.0
    %4781 = vmatprep.subr.mxu0 0.0
    %4782 = vmatpush2.msra.mxu0 0.0
    %4783 = vmatprep.subr.mxu0 0.0
    %4784 = vmatpush2.msra.mxu0 0.0
    %4785 = vmatprep.subr.mxu0 0.0
    %4786 = vmatpush2.msra.mxu0 0.0
    %4787 = vmatprep.subr.mxu0 0.0
    %4788 = vmatpush2.msra.mxu0 0.0
    %4789 = vmatprep.subr.mxu0 0.0
    %4790 = vmatpush2.msra.mxu0 0.0
    %4791 = vmatprep.subr.mxu0 0.0
    %4792 = vmatpush2.msra.mxu0 0.0
    %4793 = vmatprep.subr.mxu0 0.0
    %4794 = vmatpush2.msra.mxu0 0.0
    %4795 = vmatprep.subr.mxu0 0.0
    %4796 = vmatpush2.msra.mxu0 0.0
    %4797 = vmatprep.subr.mxu0 0.0
    %4798 = vmatpush2.msra.mxu0 0.0
    %4799 = vmatprep.subr.mxu0 0.0
    %4800 = vmatpush2.msra.mxu0 0.0
    %4801 = vmatprep.subr.mxu0 0.0
    %4802 = vmatpush2.msra.mxu0 0.0
    %4803 = vmatprep.mubr.f32.mxu0 0.0
    %4804 = vmatmul.mubr.f32.gmra.mxu0 %v4734
    %v4805 = vpop.f32.mrf.mxu0
    %v4806 = vadd.f32 0.0, %v4805
    %v4807 = vpop.f32.mrf.mxu0
    %4808 = vmatprep.mubr.f32.mxu0 0.0
    %4809 = vmatmul.mubr.f32.gmra.mxu0 %v4737
    %v4810 = vpop.f32.mrf.mxu0
    %v4811 = vadd.f32 0.0, %v4810
    %v4812 = vpop.f32.mrf.mxu0
    %4813 = vdwg.mxu0
    %4814 = vrot.lane.b32.xlu0 %v4608, 120
    %v4815 = vpop.permute.xlu0 %4814
    %4816 = vrot.lane.b32.xlu0 %v4613, 120
    %v4817 = vpop.permute.xlu0 %4816
    %4818 = vrot.lane.b32.xlu0 %v4608, 88
    %v4819 = vpop.permute.xlu0 %4818
    %4820 = vrot.lane.b32.xlu0 %v4613, 88
    %v4821 = vpop.permute.xlu0 %4820
    %v4822 = vsel %vm146, %v4815, 0
    %v4824 = vsel %vm146, %v4817, 0
    %v4826 = vsel %vm146, %v4819, 0
    %v4828 = vsel %vm146, %v4821, 0
    %4830 = vmatprep.subr.mxu0 0.0
    %4831 = vmatpush1.xpose.msra.mxu0 0.0
    %4832 = vmatprep.subr.mxu0 0.0
    %4833 = vmatpush1.xpose.msra.mxu0 0.0
    %4834 = vmatprep.subr.mxu0 0.0
    %4835 = vmatpush1.xpose.msra.mxu0 0.0
    %4836 = vmatprep.subr.mxu0 0.0
    %4837 = vmatpush1.xpose.msra.mxu0 0.0
    %4838 = vmatprep.subr.mxu0 0.0
    %4839 = vmatpush1.xpose.msra.mxu0 0.0
    %4840 = vmatprep.subr.mxu0 0.0
    %4841 = vmatpush1.xpose.msra.mxu0 0.0
    %4842 = vmatprep.subr.mxu0 0.0
    %4843 = vmatpush1.xpose.msra.mxu0 0.0
    %4844 = vmatprep.subr.mxu0 0.0
    %4845 = vmatpush1.xpose.msra.mxu0 0.0
    %4846 = vmatprep.subr.mxu0 0.0
    %4847 = vmatpush1.xpose.msra.mxu0 0.0
    %4848 = vmatprep.subr.mxu0 0.0
    %4849 = vmatpush1.xpose.msra.mxu0 0.0
    %4850 = vmatprep.subr.mxu0 0.0
    %4851 = vmatpush1.xpose.msra.mxu0 0.0
    %4852 = vmatprep.subr.mxu0 0.0
    %4853 = vmatpush1.xpose.msra.mxu0 0.0
    %4854 = vmatprep.subr.mxu0 0.0
    %4855 = vmatpush1.xpose.msra.mxu0 0.0
    %4856 = vmatprep.subr.mxu0 0.0
    %4857 = vmatpush1.xpose.msra.mxu0 0.0
    %4858 = vmatprep.subr.mxu0 0.0
    %4859 = vmatpush1.xpose.msra.mxu0 %v4828
    %4860 = vmatprep.subr.mxu0 0.0
    %4861 = vmatpush1.xpose.msra.mxu0 %v4826
    %4862 = vmatprep.subr.mxu0 0.0
    %4863 = vmatpush2.xpose.msra.mxu0 0.0
    %4864 = vmatprep.subr.mxu0 0.0
    %4865 = vmatpush2.xpose.msra.mxu0 0.0
    %4866 = vmatprep.subr.mxu0 0.0
    %4867 = vmatpush2.xpose.msra.mxu0 0.0
    %4868 = vmatprep.subr.mxu0 0.0
    %4869 = vmatpush2.xpose.msra.mxu0 0.0
    %4870 = vmatprep.subr.mxu0 0.0
    %4871 = vmatpush2.xpose.msra.mxu0 0.0
    %4872 = vmatprep.subr.mxu0 0.0
    %4873 = vmatpush2.xpose.msra.mxu0 0.0
    %4874 = vmatprep.subr.mxu0 0.0
    %4875 = vmatpush2.xpose.msra.mxu0 0.0
    %4876 = vmatprep.subr.mxu0 0.0
    %4877 = vmatpush2.xpose.msra.mxu0 0.0
    %4878 = vmatprep.subr.mxu0 0.0
    %4879 = vmatpush2.xpose.msra.mxu0 0.0
    %4880 = vmatprep.subr.mxu0 0.0
    %4881 = vmatpush2.xpose.msra.mxu0 0.0
    %4882 = vmatprep.subr.mxu0 0.0
    %4883 = vmatpush2.xpose.msra.mxu0 0.0
    %4884 = vmatprep.subr.mxu0 0.0
    %4885 = vmatpush2.xpose.msra.mxu0 0.0
    %4886 = vmatprep.subr.mxu0 0.0
    %4887 = vmatpush2.xpose.msra.mxu0 0.0
    %4888 = vmatprep.subr.mxu0 0.0
    %4889 = vmatpush2.xpose.msra.mxu0 0.0
    %4890 = vmatprep.subr.mxu0 0.0
    %4891 = vmatpush2.xpose.msra.mxu0 0.0
    %4892 = vmatprep.subr.mxu0 0.0
    %4893 = vmatpush2.xpose.msra.mxu0 0.0
    %4894 = vmatprep.mubr.f32.mxu0 0.0
    %4895 = vmatmul.mubr.f32.gmra.mxu0 %v4822
    %v4896 = vpop.f32.mrf.mxu0
    %v4897 = vadd.f32 %v50, %v4896
    %v4898 = vpop.f32.mrf.mxu0
    %4899 = vmatprep.mubr.f32.mxu0 0.0
    %4900 = vmatmul.mubr.f32.gmra.mxu0 %v4824
    %v4901 = vpop.f32.mrf.mxu0
    %v4902 = vadd.f32 %v51, %v4901
    %v4903 = vpop.f32.mrf.mxu0
    %4904 = vdwg.mxu0
    %v4905 = vsel %vm230, %v4897, -inf
    %4906 = vmax.xlane.f32.xlu0 %v4905
    %v4907 = vpop.xlane.xlu0 %4906
    %v4908 = vsel %vm230, %v4902, -inf
    %4909 = vmax.xlane.f32.xlu0 %v4908
    %v4910 = vpop.xlane.xlu0 %4909
    %v4911 = vsub.f32 %v4897, %v4907
    %v4912 = vsub.f32 %v4902, %v4910
    %v4913 = vmul.f32 %v4911, 1.442695
    %v4914 = vpow.pop %v4913
    %v4915 = vmul.f32 %v4912, 1.442695
    %v4916 = vpow.pop %v4915
    %v4917 = vsel %vm230, %v4914, 0.0
    %4918 = vadd.xlane.f32.xlu0 %v4917
    %v4919 = vpop.xlane.xlu0 %4918
    %v4920 = vsel %vm230, %v4916, 0.0
    %4921 = vadd.xlane.f32.xlu0 %v4920
    %v4922 = vpop.xlane.xlu0 %4921
    %v4923 = vrcp.pop %v4919
    %v4924 = vrcp.pop %v4922
    %v4925 = vmul.f32 %v4914, %v4923
    %v4926 = vmul.f32 %v4916, %v4924
    %4927 = vrot.lane.b32.xlu0 %v4608, 56
    %v4928 = vpop.permute.xlu0 %4927
    %4929 = vrot.lane.b32.xlu0 %v4613, 56
    %v4930 = vpop.permute.xlu0 %4929
    %v4934 = vsel %vm230, %v4925, 0
    %v4937 = vsel %vm230, %v4926, 0
    %4939 = vmatprep.subr.mxu0 0.0
    %4940 = vmatpush1.msra.mxu0 0.0
    %4941 = vmatprep.subr.mxu0 0.0
    %4942 = vmatpush1.msra.mxu0 0.0
    %4943 = vmatprep.subr.mxu0 0.0
    %4944 = vmatpush1.msra.mxu0 0.0
    %4945 = vmatprep.subr.mxu0 0.0
    %4946 = vmatpush1.msra.mxu0 0.0
    %4947 = vmatprep.subr.mxu0 0.0
    %4948 = vmatpush1.msra.mxu0 0.0
    %4949 = vmatprep.subr.mxu0 0.0
    %4950 = vmatpush1.msra.mxu0 0.0
    %4951 = vmatprep.subr.mxu0 0.0
    %4952 = vmatpush1.msra.mxu0 0.0
    %4953 = vmatprep.subr.mxu0 0.0
    %4954 = vmatpush1.msra.mxu0 0.0
    %4955 = vmatprep.subr.mxu0 0.0
    %4956 = vmatpush1.msra.mxu0 0.0
    %4957 = vmatprep.subr.mxu0 0.0
    %4958 = vmatpush1.msra.mxu0 0.0
    %4959 = vmatprep.subr.mxu0 0.0
    %4960 = vmatpush1.msra.mxu0 0.0
    %4961 = vmatprep.subr.mxu0 0.0
    %4962 = vmatpush1.msra.mxu0 0.0
    %4963 = vmatprep.subr.mxu0 0.0
    %4964 = vmatpush1.msra.mxu0 0.0
    %4965 = vmatprep.subr.mxu0 0.0
    %4966 = vmatpush1.msra.mxu0 0.0
    %4967 = vmatprep.subr.mxu0 0.0
    %4968 = vmatpush1.msra.mxu0 %v4930
    %4969 = vmatprep.subr.mxu0 0.0
    %4970 = vmatpush1.msra.mxu0 %v4928
    %4971 = vmatprep.subr.mxu0 0.0
    %4972 = vmatpush2.msra.mxu0 0.0
    %4973 = vmatprep.subr.mxu0 0.0
    %4974 = vmatpush2.msra.mxu0 0.0
    %4975 = vmatprep.subr.mxu0 0.0
    %4976 = vmatpush2.msra.mxu0 0.0
    %4977 = vmatprep.subr.mxu0 0.0
    %4978 = vmatpush2.msra.mxu0 0.0
    %4979 = vmatprep.subr.mxu0 0.0
    %4980 = vmatpush2.msra.mxu0 0.0
    %4981 = vmatprep.subr.mxu0 0.0
    %4982 = vmatpush2.msra.mxu0 0.0
    %4983 = vmatprep.subr.mxu0 0.0
    %4984 = vmatpush2.msra.mxu0 0.0
    %4985 = vmatprep.subr.mxu0 0.0
    %4986 = vmatpush2.msra.mxu0 0.0
    %4987 = vmatprep.subr.mxu0 0.0
    %4988 = vmatpush2.msra.mxu0 0.0
    %4989 = vmatprep.subr.mxu0 0.0
    %4990 = vmatpush2.msra.mxu0 0.0
    %4991 = vmatprep.subr.mxu0 0.0
    %4992 = vmatpush2.msra.mxu0 0.0
    %4993 = vmatprep.subr.mxu0 0.0
    %4994 = vmatpush2.msra.mxu0 0.0
    %4995 = vmatprep.subr.mxu0 0.0
    %4996 = vmatpush2.msra.mxu0 0.0
    %4997 = vmatprep.subr.mxu0 0.0
    %4998 = vmatpush2.msra.mxu0 0.0
    %4999 = vmatprep.subr.mxu0 0.0
    %5000 = vmatpush2.msra.mxu0 0.0
    %5001 = vmatprep.subr.mxu0 0.0
    %5002 = vmatpush2.msra.mxu0 0.0
    %5003 = vmatprep.mubr.f32.mxu0 0.0
    %5004 = vmatmul.mubr.f32.gmra.mxu0 %v4934
    %v5005 = vpop.f32.mrf.mxu0
    %v5006 = vadd.f32 0.0, %v5005
    %v5007 = vpop.f32.mrf.mxu0
    %5008 = vmatprep.mubr.f32.mxu0 0.0
    %5009 = vmatmul.mubr.f32.gmra.mxu0 %v4937
    %v5010 = vpop.f32.mrf.mxu0
    %v5011 = vadd.f32 0.0, %v5010
    %v5012 = vpop.f32.mrf.mxu0
    %5013 = vdwg.mxu0
    %5014 = vrot.lane.b32.xlu0 %v4608, 112
    %v5015 = vpop.permute.xlu0 %5014
    %5016 = vrot.lane.b32.xlu0 %v4613, 112
    %v5017 = vpop.permute.xlu0 %5016
    %5018 = vrot.lane.b32.xlu0 %v4608, 80
    %v5019 = vpop.permute.xlu0 %5018
    %5020 = vrot.lane.b32.xlu0 %v4613, 80
    %v5021 = vpop.permute.xlu0 %5020
    %v5022 = vsel %vm146, %v5015, 0
    %v5024 = vsel %vm146, %v5017, 0
    %v5026 = vsel %vm146, %v5019, 0
    %v5028 = vsel %vm146, %v5021, 0
    %5030 = vmatprep.subr.mxu0 0.0
    %5031 = vmatpush1.xpose.msra.mxu0 0.0
    %5032 = vmatprep.subr.mxu0 0.0
    %5033 = vmatpush1.xpose.msra.mxu0 0.0
    %5034 = vmatprep.subr.mxu0 0.0
    %5035 = vmatpush1.xpose.msra.mxu0 0.0
    %5036 = vmatprep.subr.mxu0 0.0
    %5037 = vmatpush1.xpose.msra.mxu0 0.0
    %5038 = vmatprep.subr.mxu0 0.0
    %5039 = vmatpush1.xpose.msra.mxu0 0.0
    %5040 = vmatprep.subr.mxu0 0.0
    %5041 = vmatpush1.xpose.msra.mxu0 0.0
    %5042 = vmatprep.subr.mxu0 0.0
    %5043 = vmatpush1.xpose.msra.mxu0 0.0
    %5044 = vmatprep.subr.mxu0 0.0
    %5045 = vmatpush1.xpose.msra.mxu0 0.0
    %5046 = vmatprep.subr.mxu0 0.0
    %5047 = vmatpush1.xpose.msra.mxu0 0.0
    %5048 = vmatprep.subr.mxu0 0.0
    %5049 = vmatpush1.xpose.msra.mxu0 0.0
    %5050 = vmatprep.subr.mxu0 0.0
    %5051 = vmatpush1.xpose.msra.mxu0 0.0
    %5052 = vmatprep.subr.mxu0 0.0
    %5053 = vmatpush1.xpose.msra.mxu0 0.0
    %5054 = vmatprep.subr.mxu0 0.0
    %5055 = vmatpush1.xpose.msra.mxu0 0.0
    %5056 = vmatprep.subr.mxu0 0.0
    %5057 = vmatpush1.xpose.msra.mxu0 0.0
    %5058 = vmatprep.subr.mxu0 0.0
    %5059 = vmatpush1.xpose.msra.mxu0 %v5028
    %5060 = vmatprep.subr.mxu0 0.0
    %5061 = vmatpush1.xpose.msra.mxu0 %v5026
    %5062 = vmatprep.subr.mxu0 0.0
    %5063 = vmatpush2.xpose.msra.mxu0 0.0
    %5064 = vmatprep.subr.mxu0 0.0
    %5065 = vmatpush2.xpose.msra.mxu0 0.0
    %5066 = vmatprep.subr.mxu0 0.0
    %5067 = vmatpush2.xpose.msra.mxu0 0.0
    %5068 = vmatprep.subr.mxu0 0.0
    %5069 = vmatpush2.xpose.msra.mxu0 0.0
    %5070 = vmatprep.subr.mxu0 0.0
    %5071 = vmatpush2.xpose.msra.mxu0 0.0
    %5072 = vmatprep.subr.mxu0 0.0
    %5073 = vmatpush2.xpose.msra.mxu0 0.0
    %5074 = vmatprep.subr.mxu0 0.0
    %5075 = vmatpush2.xpose.msra.mxu0 0.0
    %5076 = vmatprep.subr.mxu0 0.0
    %5077 = vmatpush2.xpose.msra.mxu0 0.0
    %5078 = vmatprep.subr.mxu0 0.0
    %5079 = vmatpush2.xpose.msra.mxu0 0.0
    %5080 = vmatprep.subr.mxu0 0.0
    %5081 = vmatpush2.xpose.msra.mxu0 0.0
    %5082 = vmatprep.subr.mxu0 0.0
    %5083 = vmatpush2.xpose.msra.mxu0 0.0
    %5084 = vmatprep.subr.mxu0 0.0
    %5085 = vmatpush2.xpose.msra.mxu0 0.0
    %5086 = vmatprep.subr.mxu0 0.0
    %5087 = vmatpush2.xpose.msra.mxu0 0.0
    %5088 = vmatprep.subr.mxu0 0.0
    %5089 = vmatpush2.xpose.msra.mxu0 0.0
    %5090 = vmatprep.subr.mxu0 0.0
    %5091 = vmatpush2.xpose.msra.mxu0 0.0
    %5092 = vmatprep.subr.mxu0 0.0
    %5093 = vmatpush2.xpose.msra.mxu0 0.0
    %5094 = vmatprep.mubr.f32.mxu0 0.0
    %5095 = vmatmul.mubr.f32.gmra.mxu0 %v5022
    %v5096 = vpop.f32.mrf.mxu0
    %v5097 = vadd.f32 %v50, %v5096
    %v5098 = vpop.f32.mrf.mxu0
    %5099 = vmatprep.mubr.f32.mxu0 0.0
    %5100 = vmatmul.mubr.f32.gmra.mxu0 %v5024
    %v5101 = vpop.f32.mrf.mxu0
    %v5102 = vadd.f32 %v51, %v5101
    %v5103 = vpop.f32.mrf.mxu0
    %5104 = vdwg.mxu0
    %v5105 = vsel %vm230, %v5097, -inf
    %5106 = vmax.xlane.f32.xlu0 %v5105
    %v5107 = vpop.xlane.xlu0 %5106
    %v5108 = vsel %vm230, %v5102, -inf
    %5109 = vmax.xlane.f32.xlu0 %v5108
    %v5110 = vpop.xlane.xlu0 %5109
    %v5111 = vsub.f32 %v5097, %v5107
    %v5112 = vsub.f32 %v5102, %v5110
    %v5113 = vmul.f32 %v5111, 1.442695
    %v5114 = vpow.pop %v5113
    %v5115 = vmul.f32 %v5112, 1.442695
    %v5116 = vpow.pop %v5115
    %v5117 = vsel %vm230, %v5114, 0.0
    %5118 = vadd.xlane.f32.xlu0 %v5117
    %v5119 = vpop.xlane.xlu0 %5118
    %v5120 = vsel %vm230, %v5116, 0.0
    %5121 = vadd.xlane.f32.xlu0 %v5120
    %v5122 = vpop.xlane.xlu0 %5121
    %v5123 = vrcp.pop %v5119
    %v5124 = vrcp.pop %v5122
    %v5125 = vmul.f32 %v5114, %v5123
    %v5126 = vmul.f32 %v5116, %v5124
    %5127 = vrot.lane.b32.xlu0 %v4608, 48
    %v5128 = vpop.permute.xlu0 %5127
    %5129 = vrot.lane.b32.xlu0 %v4613, 48
    %v5130 = vpop.permute.xlu0 %5129
    %v5134 = vsel %vm230, %v5125, 0
    %v5137 = vsel %vm230, %v5126, 0
    %5139 = vmatprep.subr.mxu0 0.0
    %5140 = vmatpush1.msra.mxu0 0.0
    %5141 = vmatprep.subr.mxu0 0.0
    %5142 = vmatpush1.msra.mxu0 0.0
    %5143 = vmatprep.subr.mxu0 0.0
    %5144 = vmatpush1.msra.mxu0 0.0
    %5145 = vmatprep.subr.mxu0 0.0
    %5146 = vmatpush1.msra.mxu0 0.0
    %5147 = vmatprep.subr.mxu0 0.0
    %5148 = vmatpush1.msra.mxu0 0.0
    %5149 = vmatprep.subr.mxu0 0.0
    %5150 = vmatpush1.msra.mxu0 0.0
    %5151 = vmatprep.subr.mxu0 0.0
    %5152 = vmatpush1.msra.mxu0 0.0
    %5153 = vmatprep.subr.mxu0 0.0
    %5154 = vmatpush1.msra.mxu0 0.0
    %5155 = vmatprep.subr.mxu0 0.0
    %5156 = vmatpush1.msra.mxu0 0.0
    %5157 = vmatprep.subr.mxu0 0.0
    %5158 = vmatpush1.msra.mxu0 0.0
    %5159 = vmatprep.subr.mxu0 0.0
    %5160 = vmatpush1.msra.mxu0 0.0
    %5161 = vmatprep.subr.mxu0 0.0
    %5162 = vmatpush1.msra.mxu0 0.0
    %5163 = vmatprep.subr.mxu0 0.0
    %5164 = vmatpush1.msra.mxu0 0.0
    %5165 = vmatprep.subr.mxu0 0.0
    %5166 = vmatpush1.msra.mxu0 0.0
    %5167 = vmatprep.subr.mxu0 0.0
    %5168 = vmatpush1.msra.mxu0 %v5130
    %5169 = vmatprep.subr.mxu0 0.0
    %5170 = vmatpush1.msra.mxu0 %v5128
    %5171 = vmatprep.subr.mxu0 0.0
    %5172 = vmatpush2.msra.mxu0 0.0
    %5173 = vmatprep.subr.mxu0 0.0
    %5174 = vmatpush2.msra.mxu0 0.0
    %5175 = vmatprep.subr.mxu0 0.0
    %5176 = vmatpush2.msra.mxu0 0.0
    %5177 = vmatprep.subr.mxu0 0.0
    %5178 = vmatpush2.msra.mxu0 0.0
    %5179 = vmatprep.subr.mxu0 0.0
    %5180 = vmatpush2.msra.mxu0 0.0
    %5181 = vmatprep.subr.mxu0 0.0
    %5182 = vmatpush2.msra.mxu0 0.0
    %5183 = vmatprep.subr.mxu0 0.0
    %5184 = vmatpush2.msra.mxu0 0.0
    %5185 = vmatprep.subr.mxu0 0.0
    %5186 = vmatpush2.msra.mxu0 0.0
    %5187 = vmatprep.subr.mxu0 0.0
    %5188 = vmatpush2.msra.mxu0 0.0
    %5189 = vmatprep.subr.mxu0 0.0
    %5190 = vmatpush2.msra.mxu0 0.0
    %5191 = vmatprep.subr.mxu0 0.0
    %5192 = vmatpush2.msra.mxu0 0.0
    %5193 = vmatprep.subr.mxu0 0.0
    %5194 = vmatpush2.msra.mxu0 0.0
    %5195 = vmatprep.subr.mxu0 0.0
    %5196 = vmatpush2.msra.mxu0 0.0
    %5197 = vmatprep.subr.mxu0 0.0
    %5198 = vmatpush2.msra.mxu0 0.0
    %5199 = vmatprep.subr.mxu0 0.0
    %5200 = vmatpush2.msra.mxu0 0.0
    %5201 = vmatprep.subr.mxu0 0.0
    %5202 = vmatpush2.msra.mxu0 0.0
    %5203 = vmatprep.mubr.f32.mxu0 0.0
    %5204 = vmatmul.mubr.f32.gmra.mxu0 %v5134
    %v5205 = vpop.f32.mrf.mxu0
    %v5206 = vadd.f32 0.0, %v5205
    %v5207 = vpop.f32.mrf.mxu0
    %5208 = vmatprep.mubr.f32.mxu0 0.0
    %5209 = vmatmul.mubr.f32.gmra.mxu0 %v5137
    %v5210 = vpop.f32.mrf.mxu0
    %v5211 = vadd.f32 0.0, %v5210
    %v5212 = vpop.f32.mrf.mxu0
    %5213 = vdwg.mxu0
    %5214 = vrot.lane.b32.xlu0 %v4608, 104
    %v5215 = vpop.permute.xlu0 %5214
    %5216 = vrot.lane.b32.xlu0 %v4613, 104
    %v5217 = vpop.permute.xlu0 %5216
    %5218 = vrot.lane.b32.xlu0 %v4608, 72
    %v5219 = vpop.permute.xlu0 %5218
    %5220 = vrot.lane.b32.xlu0 %v4613, 72
    %v5221 = vpop.permute.xlu0 %5220
    %v5222 = vsel %vm146, %v5215, 0
    %v5224 = vsel %vm146, %v5217, 0
    %v5226 = vsel %vm146, %v5219, 0
    %v5228 = vsel %vm146, %v5221, 0
    %5230 = vmatprep.subr.mxu0 0.0
    %5231 = vmatpush1.xpose.msra.mxu0 0.0
    %5232 = vmatprep.subr.mxu0 0.0
    %5233 = vmatpush1.xpose.msra.mxu0 0.0
    %5234 = vmatprep.subr.mxu0 0.0
    %5235 = vmatpush1.xpose.msra.mxu0 0.0
    %5236 = vmatprep.subr.mxu0 0.0
    %5237 = vmatpush1.xpose.msra.mxu0 0.0
    %5238 = vmatprep.subr.mxu0 0.0
    %5239 = vmatpush1.xpose.msra.mxu0 0.0
    %5240 = vmatprep.subr.mxu0 0.0
    %5241 = vmatpush1.xpose.msra.mxu0 0.0
    %5242 = vmatprep.subr.mxu0 0.0
    %5243 = vmatpush1.xpose.msra.mxu0 0.0
    %5244 = vmatprep.subr.mxu0 0.0
    %5245 = vmatpush1.xpose.msra.mxu0 0.0
    %5246 = vmatprep.subr.mxu0 0.0
    %5247 = vmatpush1.xpose.msra.mxu0 0.0
    %5248 = vmatprep.subr.mxu0 0.0
    %5249 = vmatpush1.xpose.msra.mxu0 0.0
    %5250 = vmatprep.subr.mxu0 0.0
    %5251 = vmatpush1.xpose.msra.mxu0 0.0
    %5252 = vmatprep.subr.mxu0 0.0
    %5253 = vmatpush1.xpose.msra.mxu0 0.0
    %5254 = vmatprep.subr.mxu0 0.0
    %5255 = vmatpush1.xpose.msra.mxu0 0.0
    %5256 = vmatprep.subr.mxu0 0.0
    %5257 = vmatpush1.xpose.msra.mxu0 0.0
    %5258 = vmatprep.subr.mxu0 0.0
    %5259 = vmatpush1.xpose.msra.mxu0 %v5228
    %5260 = vmatprep.subr.mxu0 0.0
    %5261 = vmatpush1.xpose.msra.mxu0 %v5226
    %5262 = vmatprep.subr.mxu0 0.0
    %5263 = vmatpush2.xpose.msra.mxu0 0.0
    %5264 = vmatprep.subr.mxu0 0.0
    %5265 = vmatpush2.xpose.msra.mxu0 0.0
    %5266 = vmatprep.subr.mxu0 0.0
    %5267 = vmatpush2.xpose.msra.mxu0 0.0
    %5268 = vmatprep.subr.mxu0 0.0
    %5269 = vmatpush2.xpose.msra.mxu0 0.0
    %5270 = vmatprep.subr.mxu0 0.0
    %5271 = vmatpush2.xpose.msra.mxu0 0.0
    %5272 = vmatprep.subr.mxu0 0.0
    %5273 = vmatpush2.xpose.msra.mxu0 0.0
    %5274 = vmatprep.subr.mxu0 0.0
    %5275 = vmatpush2.xpose.msra.mxu0 0.0
    %5276 = vmatprep.subr.mxu0 0.0
    %5277 = vmatpush2.xpose.msra.mxu0 0.0
    %5278 = vmatprep.subr.mxu0 0.0
    %5279 = vmatpush2.xpose.msra.mxu0 0.0
    %5280 = vmatprep.subr.mxu0 0.0
    %5281 = vmatpush2.xpose.msra.mxu0 0.0
    %5282 = vmatprep.subr.mxu0 0.0
    %5283 = vmatpush2.xpose.msra.mxu0 0.0
    %5284 = vmatprep.subr.mxu0 0.0
    %5285 = vmatpush2.xpose.msra.mxu0 0.0
    %5286 = vmatprep.subr.mxu0 0.0
    %5287 = vmatpush2.xpose.msra.mxu0 0.0
    %5288 = vmatprep.subr.mxu0 0.0
    %5289 = vmatpush2.xpose.msra.mxu0 0.0
    %5290 = vmatprep.subr.mxu0 0.0
    %5291 = vmatpush2.xpose.msra.mxu0 0.0
    %5292 = vmatprep.subr.mxu0 0.0
    %5293 = vmatpush2.xpose.msra.mxu0 0.0
    %5294 = vmatprep.mubr.f32.mxu0 0.0
    %5295 = vmatmul.mubr.f32.gmra.mxu0 %v5222
    %v5296 = vpop.f32.mrf.mxu0
    %v5297 = vadd.f32 %v50, %v5296
    %v5298 = vpop.f32.mrf.mxu0
    %5299 = vmatprep.mubr.f32.mxu0 0.0
    %5300 = vmatmul.mubr.f32.gmra.mxu0 %v5224
    %v5301 = vpop.f32.mrf.mxu0
    %v5302 = vadd.f32 %v51, %v5301
    %v5303 = vpop.f32.mrf.mxu0
    %5304 = vdwg.mxu0
    %v5305 = vsel %vm230, %v5297, -inf
    %5306 = vmax.xlane.f32.xlu0 %v5305
    %v5307 = vpop.xlane.xlu0 %5306
    %v5308 = vsel %vm230, %v5302, -inf
    %5309 = vmax.xlane.f32.xlu0 %v5308
    %v5310 = vpop.xlane.xlu0 %5309
    %v5311 = vsub.f32 %v5297, %v5307
    %v5312 = vsub.f32 %v5302, %v5310
    %v5313 = vmul.f32 %v5311, 1.442695
    %v5314 = vpow.pop %v5313
    %v5315 = vmul.f32 %v5312, 1.442695
    %v5316 = vpow.pop %v5315
    %v5317 = vsel %vm230, %v5314, 0.0
    %5318 = vadd.xlane.f32.xlu0 %v5317
    %v5319 = vpop.xlane.xlu0 %5318
    %v5320 = vsel %vm230, %v5316, 0.0
    %5321 = vadd.xlane.f32.xlu0 %v5320
    %v5322 = vpop.xlane.xlu0 %5321
    %v5323 = vrcp.pop %v5319
    %v5324 = vrcp.pop %v5322
    %v5325 = vmul.f32 %v5314, %v5323
    %v5326 = vmul.f32 %v5316, %v5324
    %5327 = vrot.lane.b32.xlu0 %v4608, 40
    %v5328 = vpop.permute.xlu0 %5327
    %5329 = vrot.lane.b32.xlu0 %v4613, 40
    %v5330 = vpop.permute.xlu0 %5329
    %v5334 = vsel %vm230, %v5325, 0
    %v5337 = vsel %vm230, %v5326, 0
    %5339 = vmatprep.subr.mxu0 0.0
    %5340 = vmatpush1.msra.mxu0 0.0
    %5341 = vmatprep.subr.mxu0 0.0
    %5342 = vmatpush1.msra.mxu0 0.0
    %5343 = vmatprep.subr.mxu0 0.0
    %5344 = vmatpush1.msra.mxu0 0.0
    %5345 = vmatprep.subr.mxu0 0.0
    %5346 = vmatpush1.msra.mxu0 0.0
    %5347 = vmatprep.subr.mxu0 0.0
    %5348 = vmatpush1.msra.mxu0 0.0
    %5349 = vmatprep.subr.mxu0 0.0
    %5350 = vmatpush1.msra.mxu0 0.0
    %5351 = vmatprep.subr.mxu0 0.0
    %5352 = vmatpush1.msra.mxu0 0.0
    %5353 = vmatprep.subr.mxu0 0.0
    %5354 = vmatpush1.msra.mxu0 0.0
    %5355 = vmatprep.subr.mxu0 0.0
    %5356 = vmatpush1.msra.mxu0 0.0
    %5357 = vmatprep.subr.mxu0 0.0
    %5358 = vmatpush1.msra.mxu0 0.0
    %5359 = vmatprep.subr.mxu0 0.0
    %5360 = vmatpush1.msra.mxu0 0.0
    %5361 = vmatprep.subr.mxu0 0.0
    %5362 = vmatpush1.msra.mxu0 0.0
    %5363 = vmatprep.subr.mxu0 0.0
    %5364 = vmatpush1.msra.mxu0 0.0
    %5365 = vmatprep.subr.mxu0 0.0
    %5366 = vmatpush1.msra.mxu0 0.0
    %5367 = vmatprep.subr.mxu0 0.0
    %5368 = vmatpush1.msra.mxu0 %v5330
    %5369 = vmatprep.subr.mxu0 0.0
    %5370 = vmatpush1.msra.mxu0 %v5328
    %5371 = vmatprep.subr.mxu0 0.0
    %5372 = vmatpush2.msra.mxu0 0.0
    %5373 = vmatprep.subr.mxu0 0.0
    %5374 = vmatpush2.msra.mxu0 0.0
    %5375 = vmatprep.subr.mxu0 0.0
    %5376 = vmatpush2.msra.mxu0 0.0
    %5377 = vmatprep.subr.mxu0 0.0
    %5378 = vmatpush2.msra.mxu0 0.0
    %5379 = vmatprep.subr.mxu0 0.0
    %5380 = vmatpush2.msra.mxu0 0.0
    %5381 = vmatprep.subr.mxu0 0.0
    %5382 = vmatpush2.msra.mxu0 0.0
    %5383 = vmatprep.subr.mxu0 0.0
    %5384 = vmatpush2.msra.mxu0 0.0
    %5385 = vmatprep.subr.mxu0 0.0
    %5386 = vmatpush2.msra.mxu0 0.0
    %5387 = vmatprep.subr.mxu0 0.0
    %5388 = vmatpush2.msra.mxu0 0.0
    %5389 = vmatprep.subr.mxu0 0.0
    %5390 = vmatpush2.msra.mxu0 0.0
    %5391 = vmatprep.subr.mxu0 0.0
    %5392 = vmatpush2.msra.mxu0 0.0
    %5393 = vmatprep.subr.mxu0 0.0
    %5394 = vmatpush2.msra.mxu0 0.0
    %5395 = vmatprep.subr.mxu0 0.0
    %5396 = vmatpush2.msra.mxu0 0.0
    %5397 = vmatprep.subr.mxu0 0.0
    %5398 = vmatpush2.msra.mxu0 0.0
    %5399 = vmatprep.subr.mxu0 0.0
    %5400 = vmatpush2.msra.mxu0 0.0
    %5401 = vmatprep.subr.mxu0 0.0
    %5402 = vmatpush2.msra.mxu0 0.0
    %5403 = vmatprep.mubr.f32.mxu0 0.0
    %5404 = vmatmul.mubr.f32.gmra.mxu0 %v5334
    %v5405 = vpop.f32.mrf.mxu0
    %v5406 = vadd.f32 0.0, %v5405
    %v5407 = vpop.f32.mrf.mxu0
    %5408 = vmatprep.mubr.f32.mxu0 0.0
    %5409 = vmatmul.mubr.f32.gmra.mxu0 %v5337
    %v5410 = vpop.f32.mrf.mxu0
    %v5411 = vadd.f32 0.0, %v5410
    %v5412 = vpop.f32.mrf.mxu0
    %5413 = vdwg.mxu0
    %5416 = vrot.lane.b32.xlu0 %v5006, 8
    %v5417 = vpop.permute.xlu0 %5416
    %5418 = vrot.lane.b32.xlu0 %v5011, 8
    %v5419 = vpop.permute.xlu0 %5418
    %5424 = vrot.lane.b32.xlu0 %v5206, 16
    %v5425 = vpop.permute.xlu0 %5424
    %5426 = vrot.lane.b32.xlu0 %v5211, 16
    %v5427 = vpop.permute.xlu0 %5426
    %5432 = vrot.lane.b32.xlu0 %v5406, 24
    %v5433 = vpop.permute.xlu0 %5432
    %5434 = vrot.lane.b32.xlu0 %v5411, 24
    %v5435 = vpop.permute.xlu0 %5434
    %v5438 = vsel %vm146, %v4806, %v5417
    %v5439 = vsel %vm146, %v4811, %v5419
    %v5440 = vsel %vm230, %v5438, %v5425
    %v5441 = vsel %vm230, %v5439, %v5427
    %v5442 = vsel %vm968, %v5440, %v5433
    %v5443 = vsel %vm968, %v5441, %v5435
    %s5444 = scalar_lea.vmem %s4, 96
    %v5445 = vld [vmem:[%s5444] sm:$0xff]
    %v5446 = vld [vmem:[%s5444 + $0x8] sm:$0xff]
    %v5447 = vld [vmem:[%s5444 + $0x10] sm:$0xff]
    %v5448 = vld [vmem:[%s5444 + $0x18] sm:$0xff]
    %s5449 = scalar_lea.vmem %s5, 48
    %v5450 = vld [vmem:[%s5449] sm:$0xff]
    %v5451 = vld [vmem:[%s5449 + $0x8] sm:$0xff]
    %v5453 = vsel %vm58, %v5442, 0
    %v5456 = vsel %vm58, %v5443, 0
    %5458 = vmatprep.subr.mxu0 0.0
    %5459 = vmatpush1.msra.mxu0 0.0
    %5460 = vmatprep.subr.mxu0 0.0
    %5461 = vmatpush1.msra.mxu0 0.0
    %5462 = vmatprep.subr.mxu0 0.0
    %5463 = vmatpush1.msra.mxu0 0.0
    %5464 = vmatprep.subr.mxu0 0.0
    %5465 = vmatpush1.msra.mxu0 0.0
    %5466 = vmatprep.subr.mxu0 0.0
    %5467 = vmatpush1.msra.mxu0 0.0
    %5468 = vmatprep.subr.mxu0 0.0
    %5469 = vmatpush1.msra.mxu0 0.0
    %5470 = vmatprep.subr.mxu0 0.0
    %5471 = vmatpush1.msra.mxu0 0.0
    %5472 = vmatprep.subr.mxu0 0.0
    %5473 = vmatpush1.msra.mxu0 0.0
    %5474 = vmatprep.subr.mxu0 0.0
    %5475 = vmatpush1.msra.mxu0 0.0
    %5476 = vmatprep.subr.mxu0 0.0
    %5477 = vmatpush1.msra.mxu0 0.0
    %5478 = vmatprep.subr.mxu0 0.0
    %5479 = vmatpush1.msra.mxu0 0.0
    %5480 = vmatprep.subr.mxu0 0.0
    %5481 = vmatpush1.msra.mxu0 0.0
    %5482 = vmatprep.subr.mxu0 0.0
    %5483 = vmatpush1.msra.mxu0 %v5448
    %5484 = vmatprep.subr.mxu0 0.0
    %5485 = vmatpush1.msra.mxu0 %v5447
    %5486 = vmatprep.subr.mxu0 0.0
    %5487 = vmatpush1.msra.mxu0 %v5446
    %5488 = vmatprep.subr.mxu0 0.0
    %5489 = vmatpush1.msra.mxu0 %v5445
    %5490 = vmatprep.subr.mxu0 0.0
    %5491 = vmatpush2.msra.mxu0 0.0
    %5492 = vmatprep.subr.mxu0 0.0
    %5493 = vmatpush2.msra.mxu0 0.0
    %5494 = vmatprep.subr.mxu0 0.0
    %5495 = vmatpush2.msra.mxu0 0.0
    %5496 = vmatprep.subr.mxu0 0.0
    %5497 = vmatpush2.msra.mxu0 0.0
    %5498 = vmatprep.subr.mxu0 0.0
    %5499 = vmatpush2.msra.mxu0 0.0
    %5500 = vmatprep.subr.mxu0 0.0
    %5501 = vmatpush2.msra.mxu0 0.0
    %5502 = vmatprep.subr.mxu0 0.0
    %5503 = vmatpush2.msra.mxu0 0.0
    %5504 = vmatprep.subr.mxu0 0.0
    %5505 = vmatpush2.msra.mxu0 0.0
    %5506 = vmatprep.subr.mxu0 0.0
    %5507 = vmatpush2.msra.mxu0 0.0
    %5508 = vmatprep.subr.mxu0 0.0
    %5509 = vmatpush2.msra.mxu0 0.0
    %5510 = vmatprep.subr.mxu0 0.0
    %5511 = vmatpush2.msra.mxu0 0.0
    %5512 = vmatprep.subr.mxu0 0.0
    %5513 = vmatpush2.msra.mxu0 0.0
    %5514 = vmatprep.subr.mxu0 0.0
    %5515 = vmatpush2.msra.mxu0 0.0
    %5516 = vmatprep.subr.mxu0 0.0
    %5517 = vmatpush2.msra.mxu0 0.0
    %5518 = vmatprep.subr.mxu0 0.0
    %5519 = vmatpush2.msra.mxu0 0.0
    %5520 = vmatprep.subr.mxu0 0.0
    %5521 = vmatpush2.msra.mxu0 0.0
    %5522 = vmatprep.mubr.f32.mxu0 0.0
    %5523 = vmatmul.mubr.f32.gmra.mxu0 %v5453
    %v5524 = vpop.f32.mrf.mxu0
    %v5525 = vadd.f32 %v5450, %v5524
    %v5526 = vpop.f32.mrf.mxu0
    %5527 = vmatprep.mubr.f32.mxu0 0.0
    %5528 = vmatmul.mubr.f32.gmra.mxu0 %v5456
    %v5529 = vpop.f32.mrf.mxu0
    %v5530 = vadd.f32 %v5451, %v5529
    %v5531 = vpop.f32.mrf.mxu0
    %5532 = vdwg.mxu0
    %v5533 = vadd.f32 %v4525, %v5525
    %v5534 = vadd.f32 %v4526, %v5530
    %s5535 = scalar_lea.vmem %s10, 48
    %v5536 = vld [vmem:[%s5535] sm:$0xff]
    %v5537 = vld [vmem:[%s5535 + $0x8] sm:$0xff]
    %s5538 = scalar_lea.vmem %s11, 48
    %v5539 = vld [vmem:[%s5538] sm:$0xff]
    %v5540 = vld [vmem:[%s5538 + $0x8] sm:$0xff]
    %v5541 = vsel %vm58, %v5533, 0.0
    %5542 = vadd.xlane.f32.xlu0 %v5541
    %v5543 = vpop.xlane.xlu0 %5542
    %v5544 = vsel %vm58, %v5534, 0.0
    %5545 = vadd.xlane.f32.xlu0 %v5544
    %v5546 = vpop.xlane.xlu0 %5545
    %v5547 = vmul.f32 %v5543, %v1070
    %v5548 = vmul.f32 %v5546, %v1070
    %v5549 = vsub.f32 %v5533, %v5547
    %v5550 = vsub.f32 %v5534, %v5548
    %v5551 = vmul.f32 %v5549, %v5549
    %v5552 = vmul.f32 %v5550, %v5550
    %v5553 = vsel %vm58, %v5551, 0.0
    %5554 = vadd.xlane.f32.xlu0 %v5553
    %v5555 = vpop.xlane.xlu0 %5554
    %v5556 = vsel %vm58, %v5552, 0.0
    %5557 = vadd.xlane.f32.xlu0 %v5556
    %v5558 = vpop.xlane.xlu0 %5557
    %v5559 = vmul.f32 %v5555, %v1070
    %v5560 = vmul.f32 %v5558, %v1070
    %v5561 = vadd.f32 %v5559, 1e-05
    %v5562 = vadd.f32 %v5560, 1e-05
    %v5563 = vrsqrt.pop %v5561
    %v5564 = vrsqrt.pop %v5562
    %v5565 = vmul.f32 %v5549, %v5563
    %v5566 = vmul.f32 %v5550, %v5564
    %v5567 = vmul.f32 %v5565, %v5536
    %v5568 = vmul.f32 %v5566, %v5537
    %v5569 = vadd.f32 %v5567, %v5539
    %v5570 = vadd.f32 %v5568, %v5540
    %s5571 = scalar_lea.vmem %s6, 384
    %v5572 = vld [vmem:[%s5571] sm:$0xff]
    %v5573 = vld [vmem:[%s5571 + $0x8] sm:$0xff]
    %v5574 = vld [vmem:[%s5571 + $0x10] sm:$0xff]
    %v5575 = vld [vmem:[%s5571 + $0x18] sm:$0xff]
    %v5576 = vld [vmem:[%s5571 + $0x20] sm:$0xff]
    %v5577 = vld [vmem:[%s5571 + $0x28] sm:$0xff]
    %v5578 = vld [vmem:[%s5571 + $0x30] sm:$0xff]
    %v5579 = vld [vmem:[%s5571 + $0x38] sm:$0xff]
    %v5580 = vld [vmem:[%s5571 + $0x40] sm:$0xff]
    %v5581 = vld [vmem:[%s5571 + $0x48] sm:$0xff]
    %v5582 = vld [vmem:[%s5571 + $0x50] sm:$0xff]
    %v5583 = vld [vmem:[%s5571 + $0x58] sm:$0xff]
    %v5584 = vld [vmem:[%s5571 + $0x60] sm:$0xff]
    %v5585 = vld [vmem:[%s5571 + $0x68] sm:$0xff]
    %v5586 = vld [vmem:[%s5571 + $0x70] sm:$0xff]
    %v5587 = vld [vmem:[%s5571 + $0x78] sm:$0xff]
    %s5588 = scalar_lea.vmem %s7, 192
    %v5589 = vld [vmem:[%s5588] sm:$0xff]
    %v5590 = vld [vmem:[%s5588 + $0x8] sm:$0xff]
    %v5591 = vld [vmem:[%s5588 + $0x10] sm:$0xff]
    %v5592 = vld [vmem:[%s5588 + $0x18] sm:$0xff]
    %v5593 = vld [vmem:[%s5588 + $0x20] sm:$0xff]
    %v5594 = vld [vmem:[%s5588 + $0x28] sm:$0xff]
    %v5595 = vld [vmem:[%s5588 + $0x30] sm:$0xff]
    %v5596 = vld [vmem:[%s5588 + $0x38] sm:$0xff]
    %v5598 = vsel %vm58, %v5569, 0
    %v5601 = vsel %vm58, %v5570, 0
    %5603 = vmatprep.subr.mxu0 0.0
    %5604 = vmatpush1.msra.mxu0 0.0
    %5605 = vmatprep.subr.mxu0 0.0
    %5606 = vmatpush1.msra.mxu0 0.0
    %5607 = vmatprep.subr.mxu0 0.0
    %5608 = vmatpush1.msra.mxu0 0.0
    %5609 = vmatprep.subr.mxu0 0.0
    %5610 = vmatpush1.msra.mxu0 0.0
    %5611 = vmatprep.subr.mxu0 0.0
    %5612 = vmatpush1.msra.mxu0 0.0
    %5613 = vmatprep.subr.mxu0 0.0
    %5614 = vmatpush1.msra.mxu0 0.0
    %5615 = vmatprep.subr.mxu0 0.0
    %5616 = vmatpush1.msra.mxu0 0.0
    %5617 = vmatprep.subr.mxu0 0.0
    %5618 = vmatpush1.msra.mxu0 0.0
    %5619 = vmatprep.subr.mxu0 0.0
    %5620 = vmatpush1.msra.mxu0 0.0
    %5621 = vmatprep.subr.mxu0 0.0
    %5622 = vmatpush1.msra.mxu0 0.0
    %5623 = vmatprep.subr.mxu0 0.0
    %5624 = vmatpush1.msra.mxu0 0.0
    %5625 = vmatprep.subr.mxu0 0.0
    %5626 = vmatpush1.msra.mxu0 0.0
    %5627 = vmatprep.subr.mxu0 %v5585
    %5628 = vmatpush1.msra.mxu0 %v5584
    %5629 = vmatprep.subr.mxu0 %v5581
    %5630 = vmatpush1.msra.mxu0 %v5580
    %5631 = vmatprep.subr.mxu0 %v5577
    %5632 = vmatpush1.msra.mxu0 %v5576
    %5633 = vmatprep.subr.mxu0 %v5573
    %5634 = vmatpush1.msra.mxu0 %v5572
    %5635 = vmatprep.subr.mxu0 0.0
    %5636 = vmatpush2.msra.mxu0 0.0
    %5637 = vmatprep.subr.mxu0 0.0
    %5638 = vmatpush2.msra.mxu0 0.0
    %5639 = vmatprep.subr.mxu0 0.0
    %5640 = vmatpush2.msra.mxu0 0.0
    %5641 = vmatprep.subr.mxu0 0.0
    %5642 = vmatpush2.msra.mxu0 0.0
    %5643 = vmatprep.subr.mxu0 0.0
    %5644 = vmatpush2.msra.mxu0 0.0
    %5645 = vmatprep.subr.mxu0 0.0
    %5646 = vmatpush2.msra.mxu0 0.0
    %5647 = vmatprep.subr.mxu0 0.0
    %5648 = vmatpush2.msra.mxu0 0.0
    %5649 = vmatprep.subr.mxu0 0.0
    %5650 = vmatpush2.msra.mxu0 0.0
    %5651 = vmatprep.subr.mxu0 0.0
    %5652 = vmatpush2.msra.mxu0 0.0
    %5653 = vmatprep.subr.mxu0 0.0
    %5654 = vmatpush2.msra.mxu0 0.0
    %5655 = vmatprep.subr.mxu0 0.0
    %5656 = vmatpush2.msra.mxu0 0.0
    %5657 = vmatprep.subr.mxu0 0.0
    %5658 = vmatpush2.msra.mxu0 0.0
    %5659 = vmatprep.subr.mxu0 0.0
    %5660 = vmatpush2.msra.mxu0 0.0
    %5661 = vmatprep.subr.mxu0 0.0
    %5662 = vmatpush2.msra.mxu0 0.0
    %5663 = vmatprep.subr.mxu0 0.0
    %5664 = vmatpush2.msra.mxu0 0.0
    %5665 = vmatprep.subr.mxu0 0.0
    %5666 = vmatpush2.msra.mxu0 0.0
    %5667 = vmatprep.mubr.f32.mxu0 0.0
    %5668 = vmatmul.mubr.f32.gmra.mxu0 %v5598
    %v5669 = vpop.f32.mrf.mxu0
    %v5670 = vadd.f32 %v5589, %v5669
    %v5671 = vpop.f32.mrf.mxu0
    %v5672 = vadd.f32 %v5590, %v5671
    %5673 = vmatprep.mubr.f32.mxu0 0.0
    %5674 = vmatmul.mubr.f32.gmra.mxu0 %v5601
    %v5675 = vpop.f32.mrf.mxu0
    %v5676 = vadd.f32 %v5593, %v5675
    %v5677 = vpop.f32.mrf.mxu0
    %v5678 = vadd.f32 %v5594, %v5677
    %5679 = vdwg.mxu0
    %5680 = vmatprep.subr.mxu0 0.0
    %5681 = vmatpush1.msra.mxu0 0.0
    %5682 = vmatprep.subr.mxu0 0.0
    %5683 = vmatpush1.msra.mxu0 0.0
    %5684 = vmatprep.subr.mxu0 0.0
    %5685 = vmatpush1.msra.mxu0 0.0
    %5686 = vmatprep.subr.mxu0 0.0
    %5687 = vmatpush1.msra.mxu0 0.0
    %5688 = vmatprep.subr.mxu0 0.0
    %5689 = vmatpush1.msra.mxu0 0.0
    %5690 = vmatprep.subr.mxu0 0.0
    %5691 = vmatpush1.msra.mxu0 0.0
    %5692 = vmatprep.subr.mxu0 0.0
    %5693 = vmatpush1.msra.mxu0 0.0
    %5694 = vmatprep.subr.mxu0 0.0
    %5695 = vmatpush1.msra.mxu0 0.0
    %5696 = vmatprep.subr.mxu0 0.0
    %5697 = vmatpush1.msra.mxu0 0.0
    %5698 = vmatprep.subr.mxu0 0.0
    %5699 = vmatpush1.msra.mxu0 0.0
    %5700 = vmatprep.subr.mxu0 0.0
    %5701 = vmatpush1.msra.mxu0 0.0
    %5702 = vmatprep.subr.mxu0 0.0
    %5703 = vmatpush1.msra.mxu0 0.0
    %5704 = vmatprep.subr.mxu0 %v5587
    %5705 = vmatpush1.msra.mxu0 %v5586
    %5706 = vmatprep.subr.mxu0 %v5583
    %5707 = vmatpush1.msra.mxu0 %v5582
    %5708 = vmatprep.subr.mxu0 %v5579
    %5709 = vmatpush1.msra.mxu0 %v5578
    %5710 = vmatprep.subr.mxu0 %v5575
    %5711 = vmatpush1.msra.mxu0 %v5574
    %5712 = vmatprep.subr.mxu0 0.0
    %5713 = vmatpush2.msra.mxu0 0.0
    %5714 = vmatprep.subr.mxu0 0.0
    %5715 = vmatpush2.msra.mxu0 0.0
    %5716 = vmatprep.subr.mxu0 0.0
    %5717 = vmatpush2.msra.mxu0 0.0
    %5718 = vmatprep.subr.mxu0 0.0
    %5719 = vmatpush2.msra.mxu0 0.0
    %5720 = vmatprep.subr.mxu0 0.0
    %5721 = vmatpush2.msra.mxu0 0.0
    %5722 = vmatprep.subr.mxu0 0.0
    %5723 = vmatpush2.msra.mxu0 0.0
    %5724 = vmatprep.subr.mxu0 0.0
    %5725 = vmatpush2.msra.mxu0 0.0
    %5726 = vmatprep.subr.mxu0 0.0
    %5727 = vmatpush2.msra.mxu0 0.0
    %5728 = vmatprep.subr.mxu0 0.0
    %5729 = vmatpush2.msra.mxu0 0.0
    %5730 = vmatprep.subr.mxu0 0.0
    %5731 = vmatpush2.msra.mxu0 0.0
    %5732 = vmatprep.subr.mxu0 0.0
    %5733 = vmatpush2.msra.mxu0 0.0
    %5734 = vmatprep.subr.mxu0 0.0
    %5735 = vmatpush2.msra.mxu0 0.0
    %5736 = vmatprep.subr.mxu0 0.0
    %5737 = vmatpush2.msra.mxu0 0.0
    %5738 = vmatprep.subr.mxu0 0.0
    %5739 = vmatpush2.msra.mxu0 0.0
    %5740 = vmatprep.subr.mxu0 0.0
    %5741 = vmatpush2.msra.mxu0 0.0
    %5742 = vmatprep.subr.mxu0 0.0
    %5743 = vmatpush2.msra.mxu0 0.0
    %5744 = vmatprep.mubr.f32.mxu0 0.0
    %5745 = vmatmul.mubr.f32.gmra.mxu0 %v5598
    %v5746 = vpop.f32.mrf.mxu0
    %v5747 = vadd.f32 %v5591, %v5746
    %v5748 = vpop.f32.mrf.mxu0
    %v5749 = vadd.f32 %v5592, %v5748
    %5750 = vmatprep.mubr.f32.mxu0 0.0
    %5751 = vmatmul.mubr.f32.gmra.mxu0 %v5601
    %v5752 = vpop.f32.mrf.mxu0
    %v5753 = vadd.f32 %v5595, %v5752
    %v5754 = vpop.f32.mrf.mxu0
    %v5755 = vadd.f32 %v5596, %v5754
    %5756 = vdwg.mxu0
    %v5757 = vmax.f32 %v5670, 0.0
    %v5758 = vmax.f32 %v5672, 0.0
    %v5759 = vmax.f32 %v5747, 0.0
    %v5760 = vmax.f32 %v5749, 0.0
    %v5761 = vmax.f32 %v5676, 0.0
    %v5762 = vmax.f32 %v5678, 0.0
    %v5763 = vmax.f32 %v5753, 0.0
    %v5764 = vmax.f32 %v5755, 0.0
    %s5765 = scalar_lea.vmem %s8, 1536
    %v5766 = vld [vmem:[%s5765] sm:$0xff]
    %v5767 = vld [vmem:[%s5765 + $0x8] sm:$0xff]
    %v5768 = vld [vmem:[%s5765 + $0x10] sm:$0xff]
    %v5769 = vld [vmem:[%s5765 + $0x18] sm:$0xff]
    %v5770 = vld [vmem:[%s5765 + $0x20] sm:$0xff]
    %v5771 = vld [vmem:[%s5765 + $0x28] sm:$0xff]
    %v5772 = vld [vmem:[%s5765 + $0x30] sm:$0xff]
    %v5773 = vld [vmem:[%s5765 + $0x38] sm:$0xff]
    %v5774 = vld [vmem:[%s5765 + $0x40] sm:$0xff]
    %v5775 = vld [vmem:[%s5765 + $0x48] sm:$0xff]
    %v5776 = vld [vmem:[%s5765 + $0x50] sm:$0xff]
    %v5777 = vld [vmem:[%s5765 + $0x58] sm:$0xff]
    %v5778 = vld [vmem:[%s5765 + $0x60] sm:$0xff]
    %v5779 = vld [vmem:[%s5765 + $0x68] sm:$0xff]
    %v5780 = vld [vmem:[%s5765 + $0x70] sm:$0xff]
    %v5781 = vld [vmem:[%s5765 + $0x78] sm:$0xff]
    %v5782 = vld [vmem:[%s5765 + $0x80] sm:$0xff]
    %v5783 = vld [vmem:[%s5765 + $0x88] sm:$0xff]
    %v5784 = vld [vmem:[%s5765 + $0x90] sm:$0xff]
    %v5785 = vld [vmem:[%s5765 + $0x98] sm:$0xff]
    %v5786 = vld [vmem:[%s5765 + $0xa0] sm:$0xff]
    %v5787 = vld [vmem:[%s5765 + $0xa8] sm:$0xff]
    %v5788 = vld [vmem:[%s5765 + $0xb0] sm:$0xff]
    %v5789 = vld [vmem:[%s5765 + $0xb8] sm:$0xff]
    %v5790 = vld [vmem:[%s5765 + $0xc0] sm:$0xff]
    %v5791 = vld [vmem:[%s5765 + $0xc8] sm:$0xff]
    %v5792 = vld [vmem:[%s5765 + $0xd0] sm:$0xff]
    %v5793 = vld [vmem:[%s5765 + $0xd8] sm:$0xff]
    %v5794 = vld [vmem:[%s5765 + $0xe0] sm:$0xff]
    %v5795 = vld [vmem:[%s5765 + $0xe8] sm:$0xff]
    %v5796 = vld [vmem:[%s5765 + $0xf0] sm:$0xff]
    %v5797 = vld [vmem:[%s5765 + $0xf8] sm:$0xff]
    %v5798 = vld [vmem:[%s5765 + $0x100] sm:$0xff]
    %v5799 = vld [vmem:[%s5765 + $0x108] sm:$0xff]
    %v5800 = vld [vmem:[%s5765 + $0x110] sm:$0xff]
    %v5801 = vld [vmem:[%s5765 + $0x118] sm:$0xff]
    %v5802 = vld [vmem:[%s5765 + $0x120] sm:$0xff]
    %v5803 = vld [vmem:[%s5765 + $0x128] sm:$0xff]
    %v5804 = vld [vmem:[%s5765 + $0x130] sm:$0xff]
    %v5805 = vld [vmem:[%s5765 + $0x138] sm:$0xff]
    %v5806 = vld [vmem:[%s5765 + $0x140] sm:$0xff]
    %v5807 = vld [vmem:[%s5765 + $0x148] sm:$0xff]
    %v5808 = vld [vmem:[%s5765 + $0x150] sm:$0xff]
    %v5809 = vld [vmem:[%s5765 + $0x158] sm:$0xff]
    %v5810 = vld [vmem:[%s5765 + $0x160] sm:$0xff]
    %v5811 = vld [vmem:[%s5765 + $0x168] sm:$0xff]
    %v5812 = vld [vmem:[%s5765 + $0x170] sm:$0xff]
    %v5813 = vld [vmem:[%s5765 + $0x178] sm:$0xff]
    %v5814 = vld [vmem:[%s5765 + $0x180] sm:$0xff]
    %v5815 = vld [vmem:[%s5765 + $0x188] sm:$0xff]
    %v5816 = vld [vmem:[%s5765 + $0x190] sm:$0xff]
    %v5817 = vld [vmem:[%s5765 + $0x198] sm:$0xff]
    %v5818 = vld [vmem:[%s5765 + $0x1a0] sm:$0xff]
    %v5819 = vld [vmem:[%s5765 + $0x1a8] sm:$0xff]
    %v5820 = vld [vmem:[%s5765 + $0x1b0] sm:$0xff]
    %v5821 = vld [vmem:[%s5765 + $0x1b8] sm:$0xff]
    %v5822 = vld [vmem:[%s5765 + $0x1c0] sm:$0xff]
    %v5823 = vld [vmem:[%s5765 + $0x1c8] sm:$0xff]
    %v5824 = vld [vmem:[%s5765 + $0x1d0] sm:$0xff]
    %v5825 = vld [vmem:[%s5765 + $0x1d8] sm:$0xff]
    %v5826 = vld [vmem:[%s5765 + $0x1e0] sm:$0xff]
    %v5827 = vld [vmem:[%s5765 + $0x1e8] sm:$0xff]
    %v5828 = vld [vmem:[%s5765 + $0x1f0] sm:$0xff]
    %v5829 = vld [vmem:[%s5765 + $0x1f8] sm:$0xff]
    %s5830 = scalar_lea.vmem %s9, 48
    %v5831 = vld [vmem:[%s5830] sm:$0xff]
    %v5832 = vld [vmem:[%s5830 + $0x8] sm:$0xff]
    %5833 = vmatprep.subr.mxu0 0.0
    %5834 = vmatpush1.msra.mxu0 %v5781
    %5835 = vmatprep.subr.mxu0 0.0
    %5836 = vmatpush1.msra.mxu0 %v5780
    %5837 = vmatprep.subr.mxu0 0.0
    %5838 = vmatpush1.msra.mxu0 %v5779
    %5839 = vmatprep.subr.mxu0 0.0
    %5840 = vmatpush1.msra.mxu0 %v5778
    %5841 = vmatprep.subr.mxu0 0.0
    %5842 = vmatpush1.msra.mxu0 %v5777
    %5843 = vmatprep.subr.mxu0 0.0
    %5844 = vmatpush1.msra.mxu0 %v5776
    %5845 = vmatprep.subr.mxu0 0.0
    %5846 = vmatpush1.msra.mxu0 %v5775
    %5847 = vmatprep.subr.mxu0 0.0
    %5848 = vmatpush1.msra.mxu0 %v5774
    %5849 = vmatprep.subr.mxu0 0.0
    %5850 = vmatpush1.msra.mxu0 %v5773
    %5851 = vmatprep.subr.mxu0 0.0
    %5852 = vmatpush1.msra.mxu0 %v5772
    %5853 = vmatprep.subr.mxu0 0.0
    %5854 = vmatpush1.msra.mxu0 %v5771
    %5855 = vmatprep.subr.mxu0 0.0
    %5856 = vmatpush1.msra.mxu0 %v5770
    %5857 = vmatprep.subr.mxu0 0.0
    %5858 = vmatpush1.msra.mxu0 %v5769
    %5859 = vmatprep.subr.mxu0 0.0
    %5860 = vmatpush1.msra.mxu0 %v5768
    %5861 = vmatprep.subr.mxu0 0.0
    %5862 = vmatpush1.msra.mxu0 %v5767
    %5863 = vmatprep.subr.mxu0 0.0
    %5864 = vmatpush1.msra.mxu0 %v5766
    %5865 = vmatprep.subr.mxu0 0.0
    %5866 = vmatpush2.msra.mxu0 %v5797
    %5867 = vmatprep.subr.mxu0 0.0
    %5868 = vmatpush2.msra.mxu0 %v5796
    %5869 = vmatprep.subr.mxu0 0.0
    %5870 = vmatpush2.msra.mxu0 %v5795
    %5871 = vmatprep.subr.mxu0 0.0
    %5872 = vmatpush2.msra.mxu0 %v5794
    %5873 = vmatprep.subr.mxu0 0.0
    %5874 = vmatpush2.msra.mxu0 %v5793
    %5875 = vmatprep.subr.mxu0 0.0
    %5876 = vmatpush2.msra.mxu0 %v5792
    %5877 = vmatprep.subr.mxu0 0.0
    %5878 = vmatpush2.msra.mxu0 %v5791
    %5879 = vmatprep.subr.mxu0 0.0
    %5880 = vmatpush2.msra.mxu0 %v5790
    %5881 = vmatprep.subr.mxu0 0.0
    %5882 = vmatpush2.msra.mxu0 %v5789
    %5883 = vmatprep.subr.mxu0 0.0
    %5884 = vmatpush2.msra.mxu0 %v5788
    %5885 = vmatprep.subr.mxu0 0.0
    %5886 = vmatpush2.msra.mxu0 %v5787
    %5887 = vmatprep.subr.mxu0 0.0
    %5888 = vmatpush2.msra.mxu0 %v5786
    %5889 = vmatprep.subr.mxu0 0.0
    %5890 = vmatpush2.msra.mxu0 %v5785
    %5891 = vmatprep.subr.mxu0 0.0
    %5892 = vmatpush2.msra.mxu0 %v5784
    %5893 = vmatprep.subr.mxu0 0.0
    %5894 = vmatpush2.msra.mxu0 %v5783
    %5895 = vmatprep.subr.mxu0 0.0
    %5896 = vmatpush2.msra.mxu0 %v5782
    %5897 = vmatprep.mubr.f32.mxu0 %v5758
    %5898 = vmatmul.mubr.f32.gmra.mxu0 %v5757
    %v5899 = vpop.f32.mrf.mxu0
    %v5900 = vadd.f32 %v5831, %v5899
    %v5901 = vpop.f32.mrf.mxu0
    %5902 = vmatprep.mubr.f32.mxu0 %v5762
    %5903 = vmatmul.mubr.f32.gmra.mxu0 %v5761
    %v5904 = vpop.f32.mrf.mxu0
    %v5905 = vadd.f32 %v5832, %v5904
    %v5906 = vpop.f32.mrf.mxu0
    %5907 = vdwg.mxu0
    %5908 = vmatprep.subr.mxu0 0.0
    %5909 = vmatpush1.msra.mxu0 %v5813
    %5910 = vmatprep.subr.mxu0 0.0
    %5911 = vmatpush1.msra.mxu0 %v5812
    %5912 = vmatprep.subr.mxu0 0.0
    %5913 = vmatpush1.msra.mxu0 %v5811
    %5914 = vmatprep.subr.mxu0 0.0
    %5915 = vmatpush1.msra.mxu0 %v5810
    %5916 = vmatprep.subr.mxu0 0.0
    %5917 = vmatpush1.msra.mxu0 %v5809
    %5918 = vmatprep.subr.mxu0 0.0
    %5919 = vmatpush1.msra.mxu0 %v5808
    %5920 = vmatprep.subr.mxu0 0.0
    %5921 = vmatpush1.msra.mxu0 %v5807
    %5922 = vmatprep.subr.mxu0 0.0
    %5923 = vmatpush1.msra.mxu0 %v5806
    %5924 = vmatprep.subr.mxu0 0.0
    %5925 = vmatpush1.msra.mxu0 %v5805
    %5926 = vmatprep.subr.mxu0 0.0
    %5927 = vmatpush1.msra.mxu0 %v5804
    %5928 = vmatprep.subr.mxu0 0.0
    %5929 = vmatpush1.msra.mxu0 %v5803
    %5930 = vmatprep.subr.mxu0 0.0
    %5931 = vmatpush1.msra.mxu0 %v5802
    %5932 = vmatprep.subr.mxu0 0.0
    %5933 = vmatpush1.msra.mxu0 %v5801
    %5934 = vmatprep.subr.mxu0 0.0
    %5935 = vmatpush1.msra.mxu0 %v5800
    %5936 = vmatprep.subr.mxu0 0.0
    %5937 = vmatpush1.msra.mxu0 %v5799
    %5938 = vmatprep.subr.mxu0 0.0
    %5939 = vmatpush1.msra.mxu0 %v5798
    %5940 = vmatprep.subr.mxu0 0.0
    %5941 = vmatpush2.msra.mxu0 %v5829
    %5942 = vmatprep.subr.mxu0 0.0
    %5943 = vmatpush2.msra.mxu0 %v5828
    %5944 = vmatprep.subr.mxu0 0.0
    %5945 = vmatpush2.msra.mxu0 %v5827
    %5946 = vmatprep.subr.mxu0 0.0
    %5947 = vmatpush2.msra.mxu0 %v5826
    %5948 = vmatprep.subr.mxu0 0.0
    %5949 = vmatpush2.msra.mxu0 %v5825
    %5950 = vmatprep.subr.mxu0 0.0
    %5951 = vmatpush2.msra.mxu0 %v5824
    %5952 = vmatprep.subr.mxu0 0.0
    %5953 = vmatpush2.msra.mxu0 %v5823
    %5954 = vmatprep.subr.mxu0 0.0
    %5955 = vmatpush2.msra.mxu0 %v5822
    %5956 = vmatprep.subr.mxu0 0.0
    %5957 = vmatpush2.msra.mxu0 %v5821
    %5958 = vmatprep.subr.mxu0 0.0
    %5959 = vmatpush2.msra.mxu0 %v5820
    %5960 = vmatprep.subr.mxu0 0.0
    %5961 = vmatpush2.msra.mxu0 %v5819
    %5962 = vmatprep.subr.mxu0 0.0
    %5963 = vmatpush2.msra.mxu0 %v5818
    %5964 = vmatprep.subr.mxu0 0.0
    %5965 = vmatpush2.msra.mxu0 %v5817
    %5966 = vmatprep.subr.mxu0 0.0
    %5967 = vmatpush2.msra.mxu0 %v5816
    %5968 = vmatprep.subr.mxu0 0.0
    %5969 = vmatpush2.msra.mxu0 %v5815
    %5970 = vmatprep.subr.mxu0 0.0
    %5971 = vmatpush2.msra.mxu0 %v5814
    %5972 = vmatprep.mubr.f32.mxu0 %v5760
    %5973 = vmatmul.mubr.f32.gmra.mxu0 %v5759
    %v5974 = vpop.f32.mrf.mxu0
    %v5975 = vadd.f32 %v5900, %v5974
    %v5976 = vpop.f32.mrf.mxu0
    %5977 = vmatprep.mubr.f32.mxu0 %v5764
    %5978 = vmatmul.mubr.f32.gmra.mxu0 %v5763
    %v5979 = vpop.f32.mrf.mxu0
    %v5980 = vadd.f32 %v5905, %v5979
    %v5981 = vpop.f32.mrf.mxu0
    %5982 = vdwg.mxu0
    %v5983 = vadd.f32 %v5569, %v5975
    %v5984 = vadd.f32 %v5570, %v5980
    %s5985 = scalar_lea.vmem %s12, 48
    %v5986 = vld [vmem:[%s5985] sm:$0xff]
    %v5987 = vld [vmem:[%s5985 + $0x8] sm:$0xff]
    %s5988 = scalar_lea.vmem %s13, 48
    %v5989 = vld [vmem:[%s5988] sm:$0xff]
    %v5990 = vld [vmem:[%s5988 + $0x8] sm:$0xff]
    %v5991 = vsel %vm58, %v5983, 0.0
    %5992 = vadd.xlane.f32.xlu0 %v5991
    %v5993 = vpop.xlane.xlu0 %5992
    %v5994 = vsel %vm58, %v5984, 0.0
    %5995 = vadd.xlane.f32.xlu0 %v5994
    %v5996 = vpop.xlane.xlu0 %5995
    %v5997 = vmul.f32 %v5993, %v1070
    %v5998 = vmul.f32 %v5996, %v1070
    %v5999 = vsub.f32 %v5983, %v5997
    %v6000 = vsub.f32 %v5984, %v5998
    %v6001 = vmul.f32 %v5999, %v5999
    %v6002 = vmul.f32 %v6000, %v6000
    %v6003 = vsel %vm58, %v6001, 0.0
    %6004 = vadd.xlane.f32.xlu0 %v6003
    %v6005 = vpop.xlane.xlu0 %6004
    %v6006 = vsel %vm58, %v6002, 0.0
    %6007 = vadd.xlane.f32.xlu0 %v6006
    %v6008 = vpop.xlane.xlu0 %6007
    %v6009 = vmul.f32 %v6005, %v1070
    %v6010 = vmul.f32 %v6008, %v1070
    %v6011 = vadd.f32 %v6009, 1e-05
    %v6012 = vadd.f32 %v6010, 1e-05
    %v6013 = vrsqrt.pop %v6011
    %v6014 = vrsqrt.pop %v6012
    %v6015 = vmul.f32 %v5999, %v6013
    %v6016 = vmul.f32 %v6000, %v6014
    %v6017 = vmul.f32 %v6015, %v5986
    %v6018 = vmul.f32 %v6016, %v5987
    %v6019 = vadd.f32 %v6017, %v5989
    %v6020 = vadd.f32 %v6018, %v5990
    %6021 = vst.msk [vmem:[#allocation2] sm:$0xff] %vm58, %v6019
    %6022 = vst.msk [vmem:[#allocation2 + $0x8] sm:$0xff] %vm58, %v6020
    // Predicated region
    $region58: #{transformer_pallas.1} parent=1 // pred_check
      _
    $region59: #{transformer_pallas.1} parent=1 // pred_check_branch
      %6024 = sbr.rel (0) target = $region61
    $region60: #{transformer_pallas.1} parent=1 // pred_region
      %s6026 = ssub.s32 256, 256
      %6027 = vsyncadd [#allocation3], %s6026
      %s6028 = sshll.u32 [#allocation2], 4
      %s6029 = int_to_ptr.vmem [resolvable:$true] %s6028
      %6034 = dma.vmem_to_hbm [thread:$0]  %s6029, 256, %s14, [#allocation3], 128, 128, 8
    $region61: #{transformer_pallas.1} parent=1 // pred_fallthru
      _
    // Predicated region
    $region62: #{transformer_pallas.1} parent=1 // pred_check
      _
    $region63: #{transformer_pallas.1} parent=1 // pred_check_branch
      %6036 = sbr.rel (0) target = $region65
    $region64: #{transformer_pallas.1} parent=1 // pred_region
      %6037 = dma.done [#allocation3], 256
    $region65: #{transformer_pallas.1} parent=1 // pred_fallthru
      _
    %6038 = vsyncpa [#allocation3], 1

</llo_original>
